<compile_context>
chip_gen: v6e
topology: v6e:2x2x1
jax: 0.10.0
libtpu: 0.0.40
codegen_flags: <defaults>
</compile_context>

<pallas_src>
import math

import numpy as np
import jax
import jax.numpy as jnp
from jax.experimental import pallas as pl
from jax.experimental.pallas import tpu as pltpu

# --- model hyper-parameters (small, consistent with the module) ---
B = 2            # batch
N = 8            # set size (genes per genome)
VOCAB = 16       # vocab_size; pad_idx = VOCAB
D = 32           # d_model
H = 4            # num_heads
HD = D // H      # head dim
L = 2            # num_sab
BN = B * N
EPS = 1e-5       # LayerNorm eps (PyTorch default)
NEG = -1e30      # additive mask bias
LANES = 128


# ----------------------------------------------------------------------------
# parameter slab layout: every weight/bias is an (rows, cols<=128) f32 block at an
# 8-aligned row offset inside a single (SLAB_ROWS, 128) array (one DMA total).
# ----------------------------------------------------------------------------
def _layout_entries():
    e = [("emb", VOCAB + 1, D), ("count_w", 1, D), ("count_b", 1, D)]

    def mha(prefix):
        ents = []
        for h in range(H):
            ents += [(f"{prefix}_wq{h}", D, HD), (f"{prefix}_wk{h}", D, HD),
                     (f"{prefix}_wv{h}", D, HD), (f"{prefix}_bq{h}", 1, HD),
                     (f"{prefix}_bk{h}", 1, HD), (f"{prefix}_bv{h}", 1, HD),
                     (f"{prefix}_wo{h}", HD, D)]
        ents.append((f"{prefix}_out_b", 1, D))
        return ents

    for l in range(L):
        e += mha(f"sab{l}")
        e += [(f"sab{l}_ln1_g", 1, D), (f"sab{l}_ln1_b", 1, D),
              (f"sab{l}_ff_w1", D, D), (f"sab{l}_ff_b1", 1, D),
              (f"sab{l}_ff_w2", D, D), (f"sab{l}_ff_b2", 1, D),
              (f"sab{l}_ln2_g", 1, D), (f"sab{l}_ln2_b", 1, D)]
    e.append(("pma_seed", 1, D))
    e += mha("pma")
    e += [("pma_ln_g", 1, D), ("pma_ln_b", 1, D),
          ("dec_w1a", D, D), ("dec_w1b", D, D), ("dec_b1", 1, D),
          # decoder head weight/bias read 128 lanes wide -> lane-dense output store
          ("dec_w2", D, LANES), ("dec_b2", 1, LANES)]
    return e


def _build_layout():
    layout, off = {}, 0
    for name, rows, cols in _layout_entries():
        layout[name] = (off, rows, cols)
        off += -(-rows // 8) * 8          # each entry starts at an 8-aligned row
    return layout, off


LAYOUT, SLAB_ROWS = _build_layout()


def _flatten_params(p):
    """Split / pre-arrange the PyTorch-style parameter dict into slab entries."""
    pn = {k: np.asarray(v, dtype=np.float32) for k, v in p.items()}
    vals = {"emb": pn["emb"], "count_w": pn["count_w"], "count_b": pn["count_b"]}

    def split_mha(prefix, in_w, in_b, out_w, out_b):
        # in_w: (D, 3D) stored so that x @ in_w == PyTorch x @ in_proj_weight.T
        for h in range(H):
            sl = slice(h * HD, (h + 1) * HD)
            vals[f"{prefix}_wq{h}"] = in_w[:, 0 * D:1 * D][:, sl]
            vals[f"{prefix}_wk{h}"] = in_w[:, 1 * D:2 * D][:, sl]
            vals[f"{prefix}_wv{h}"] = in_w[:, 2 * D:3 * D][:, sl]
            vals[f"{prefix}_bq{h}"] = in_b[:, 0 * D:1 * D][:, sl]
            vals[f"{prefix}_bk{h}"] = in_b[:, 1 * D:2 * D][:, sl]
            vals[f"{prefix}_bv{h}"] = in_b[:, 2 * D:3 * D][:, sl]
            vals[f"{prefix}_wo{h}"] = out_w[sl, :]
        vals[f"{prefix}_out_b"] = out_b

    for l in range(L):
        split_mha(f"sab{l}", pn["sab_in_w"][l], pn["sab_in_b"][l],
                  pn["sab_out_w"][l], pn["sab_out_b"][l])
        for nm in ("ln1_g", "ln1_b", "ff_w1", "ff_b1",
                   "ff_w2", "ff_b2", "ln2_g", "ln2_b"):
            vals[f"sab{l}_{nm}"] = pn[f"sab_{nm}"][l]
    vals["pma_seed"] = pn["pma_seed"]
    split_mha("pma", pn["pma_in_w"], pn["pma_in_b"],
              pn["pma_out_w"], pn["pma_out_b"])
    vals["pma_ln_g"] = pn["pma_ln_g"]
    vals["pma_ln_b"] = pn["pma_ln_b"]
    vals["dec_w1a"] = pn["dec_w1"][:D, :]       # concat-free decoder: split halves
    vals["dec_w1b"] = pn["dec_w1"][D:, :]
    vals["dec_b1"] = pn["dec_b1"]
    vals["dec_w2"] = pn["dec_w2"]
    vals["dec_b2"] = pn["dec_b2"]
    return vals


def pack_params(p):
    """One-time weight prep: pack all parameters into a single lane-aligned slab."""
    vals = _flatten_params(p)
    slab = np.zeros((SLAB_ROWS, LANES), np.float32)
    for name, (off, rows, cols) in LAYOUT.items():
        a = vals[name]
        assert a.shape[0] == rows and a.shape[1] <= cols, (name, a.shape)
        slab[off:off + a.shape[0], :a.shape[1]] = a
    return jnp.asarray(slab)


# ----------------------------------------------------------------------------
# shared math
# ----------------------------------------------------------------------------
def _layer_norm(x, g, b):
    mu = jnp.mean(x, axis=-1, keepdims=True)
    var = jnp.mean((x - mu) ** 2, axis=-1, keepdims=True)
    return (x - mu) * jax.lax.rsqrt(var + EPS) * g + b


# ----------------------------------------------------------------------------
# Pallas kernel: ONE grid step == the whole batch, fully fused forward pass
# ----------------------------------------------------------------------------
def genome_set_transformer_kernel(ids_ref, bc_ref, bias_ref, slab_ref, out_ref, x_scr):
    def get(name):
        off, rows, cols = LAYOUT[name]
        return slab_ref[off:off + rows, 0:cols]      # static, 8-aligned slab slice

    # --- embedding + count linear: B*N dynamic row reads, ids/counts from SMEM ---
    cw = get("count_w")                              # (1, D)
    cb = get("count_b")                              # (1, D)
    emb_off = LAYOUT["emb"][0]
    for b in range(B):
        for t in range(N):
            r = b * N + t
            idx = ids_ref[b, t]                      # SMEM scalar (pad id -> zero row)
            bc = bc_ref[b, t].astype(jnp.float32)    # binarized count, scalar
            row = slab_ref[pl.ds(emb_off + idx, 1), 0:D]   # (1, D) embedding row
            x_scr[r:r + 1, :] = row + bc * cw + cb
    x = x_scr[...]                                   # (BN, D)

    # --- local skip: per-sample UNMASKED mean over the set (as in PyTorch),
    #     done as one tiny matmul (no reshapes / cross-sublane reductions) ---
    ri = jax.lax.broadcasted_iota(jnp.int32, (B, BN), 0)
    ci = jax.lax.broadcasted_iota(jnp.int32, (B, BN), 1)
    pool = jnp.where((ci >= ri * N) & (ci < (ri + 1) * N), 1.0 / N, 0.0)
    local = jnp.dot(pool, x, preferred_element_type=jnp.float32)   # (B, D)

    sab_bias = bias_ref[0:BN, :]                     # (BN, BN) block-diag + key pad
    pma_bias = bias_ref[BN:BN + B, :]                # (B, BN)
    scale = 1.0 / math.sqrt(HD)

    def mha(prefix, xq, xkv, bias):
        # Per-head weights are separate slab entries -> no 8-lane slicing of
        # activations; output projection is accumulated per head -> no concat.
        acc = None
        for h in range(H):
            qh = (jnp.dot(xq, get(f"{prefix}_wq{h}"),
                          preferred_element_type=jnp.float32)
                  + get(f"{prefix}_bq{h}")) * scale
            kh = (jnp.dot(xkv, get(f"{prefix}_wk{h}"),
                          preferred_element_type=jnp.float32)
                  + get(f"{prefix}_bk{h}"))
            vh = (jnp.dot(xkv, get(f"{prefix}_wv{h}"),
                          preferred_element_type=jnp.float32)
                  + get(f"{prefix}_bv{h}"))
            s = jax.lax.dot_general(qh, kh, (((1,), (1,)), ((), ())),
                                    preferred_element_type=jnp.float32) + bias
            s = s - jnp.max(s, axis=-1, keepdims=True)
            p = jnp.exp(s)
            p = p / jnp.sum(p, axis=-1, keepdims=True)
            oh = jnp.dot(p, vh, preferred_element_type=jnp.float32)
            part = jnp.dot(oh, get(f"{prefix}_wo{h}"),
                           preferred_element_type=jnp.float32)
            acc = part if acc is None else acc + part
        return acc + get(f"{prefix}_out_b")

    # --- SAB blocks: whole batch at once; bias keeps samples independent ---
    for l in range(L):
        pre = f"sab{l}"
        attn = mha(pre, x, x, sab_bias)
        x = _layer_norm(x + attn, get(f"{pre}_ln1_g"), get(f"{pre}_ln1_b"))
        h1 = jnp.maximum(
            jnp.dot(x, get(f"{pre}_ff_w1"), preferred_element_type=jnp.float32)
            + get(f"{pre}_ff_b1"), 0.0)
        ff = (jnp.dot(h1, get(f"{pre}_ff_w2"), preferred_element_type=jnp.float32)
              + get(f"{pre}_ff_b2"))
        x = _layer_norm(x + ff, get(f"{pre}_ln2_g"), get(f"{pre}_ln2_b"))

    # --- PMA: one seed query row per sample ---
    seed = jnp.broadcast_to(get("pma_seed"), (B, D))
    attn = mha("pma", seed, x, pma_bias)
    pooled = _layer_norm(attn + seed, get("pma_ln_g"), get("pma_ln_b"))   # (B, D)

    # --- decoder: concat-free (dec_w1 split), lane-dense 128-wide sigmoid output ---
    hdec = jnp.maximum(
        jnp.dot(pooled, get("dec_w1a"), preferred_element_type=jnp.float32)
        + jnp.dot(local, get("dec_w1b"), preferred_element_type=jnp.float32)
        + get("dec_b1"), 0.0)
    logits = (jnp.dot(hdec, get("dec_w2"), preferred_element_type=jnp.float32)
              + get("dec_b2"))                        # (B, 128); cols >= VOCAB are zero
    out_ref[...] = jax.nn.sigmoid(logits)


def genome_set_transformer(tokens, mask, slab):
    """tokens: (B, N, 2); mask: (B, N) bool (True = padded). Returns (B, VOCAB)."""
    bsz, n, _ = tokens.shape
    bn = bsz * n
    cog = tokens[:, :, 0].astype(jnp.int32)                  # (B, N) -> SMEM
    bcnt = (tokens[:, :, 1] > 0.0).astype(jnp.int32)         # (B, N) -> SMEM
    maskf = mask.astype(jnp.float32)                         # 1.0 = padded

    # Additive attention bias (built once, tiny):
    #   rows 0..BN-1   : SAB bias  (block-diagonal per sample + key padding)
    #   rows BN..BN+B-1: PMA bias  (seed row b attends to sample b's valid keys)
    sample = jnp.repeat(jnp.arange(bsz, dtype=jnp.int32), n)            # (BN,)
    key_pad = maskf.reshape(-1) * NEG                                   # (BN,)
    sab_bias = (jnp.where(sample[:, None] == sample[None, :], 0.0, NEG)
                + key_pad[None, :])
    pma_bias = (jnp.where(jnp.arange(bsz, dtype=jnp.int32)[:, None]
                          == sample[None, :], 0.0, NEG)
                + key_pad[None, :])
    bias_all = jnp.concatenate([sab_bias, pma_bias], axis=0)            # (BN+B, BN)

    out = pl.pallas_call(
        genome_set_transformer_kernel,
        out_shape=jax.ShapeDtypeStruct((bsz, LANES), jnp.float32),
        grid_spec=pltpu.PrefetchScalarGridSpec(
            num_scalar_prefetch=2,               # cog ids + binarized counts -> SMEM
            grid=(1,),                           # single step: whole batch fused
            in_specs=[
                pl.BlockSpec((bn + bsz, bn), lambda i, ids, bc: (0, 0)),      # bias
                pl.BlockSpec((SLAB_ROWS, LANES), lambda i, ids, bc: (0, 0)),  # params
            ],
            out_specs=pl.BlockSpec((bsz, LANES), lambda i, ids, bc: (0, 0)),
            scratch_shapes=[pltpu.VMEM((bn, D), jnp.float32)],
        ),
        compiler_params=pltpu.CompilerParams(dimension_semantics=("arbitrary",)),
    )(cog, bcnt, bias_all, slab)
    return out[:, :VOCAB]


# ----------------------------------------------------------------------------
# deterministic parameter init (shapes derived from the module __init__)
# ----------------------------------------------------------------------------
def init_params(key):
    ks = jax.random.split(key, 20)

    def nrm(k, shape, scale=0.1):
        return (scale * jax.random.normal(k, shape)).astype(jnp.float32)

    emb = nrm(ks[0], (VOCAB + 1, D))
    emb = emb.at[VOCAB].set(0.0)          # padding_idx row is zero
    return dict(
        emb=emb,
        count_w=nrm(ks[1], (1, D)),
        count_b=nrm(ks[2], (1, D)),
        sab_in_w=nrm(ks[3], (L, D, 3 * D)),
        sab_in_b=nrm(ks[4], (L, 1, 3 * D)),
        sab_out_w=nrm(ks[5], (L, D, D)),
        sab_out_b=nrm(ks[6], (L, 1, D)),
        sab_ln1_g=jnp.ones((L, 1, D), jnp.float32),
        sab_ln1_b=jnp.zeros((L, 1, D), jnp.float32),
        sab_ff_w1=nrm(ks[7], (L, D, D)),
        sab_ff_b1=nrm(ks[8], (L, 1, D)),
        sab_ff_w2=nrm(ks[9], (L, D, D)),
        sab_ff_b2=nrm(ks[10], (L, 1, D)),
        sab_ln2_g=jnp.ones((L, 1, D), jnp.float32),
        sab_ln2_b=jnp.zeros((L, 1, D), jnp.float32),
        pma_seed=nrm(ks[11], (1, D), 1.0),
        pma_in_w=nrm(ks[12], (D, 3 * D)),
        pma_in_b=nrm(ks[13], (1, 3 * D)),
        pma_out_w=nrm(ks[14], (D, D)),
        pma_out_b=nrm(ks[15], (1, D)),
        pma_ln_g=jnp.ones((1, D), jnp.float32),
        pma_ln_b=jnp.zeros((1, D), jnp.float32),
        dec_w1=nrm(ks[16], (2 * D, D)),
        dec_b1=nrm(ks[17], (1, D)),
        dec_w2=nrm(ks[18], (D, VOCAB)),
        dec_b2=nrm(ks[19], (1, VOCAB)),
    )


# ----------------------------------------------------------------------------
# pure-JAX per-sample reference (mirrors the PyTorch module, no Pallas)
# ----------------------------------------------------------------------------
def _ref_mha(q_in, kv_in, in_w, in_b, out_w, out_b, bias):
    d = q_in.shape[-1]
    hd = d // H
    q = q_in @ in_w[:, :d] + in_b[:, :d]
    k = kv_in @ in_w[:, d:2 * d] + in_b[:, d:2 * d]
    v = kv_in @ in_w[:, 2 * d:] + in_b[:, 2 * d:]
    scale = 1.0 / math.sqrt(hd)
    heads = []
    for h in range(H):
        qh = q[:, h * hd:(h + 1) * hd] * scale
        kh = k[:, h * hd:(h + 1) * hd]
        vh = v[:, h * hd:(h + 1) * hd]
        s = qh @ kh.T + bias
        s = s - jnp.max(s, axis=-1, keepdims=True)
        p = jnp.exp(s)
        p = p / jnp.sum(p, axis=-1, keepdims=True)
        heads.append(p @ vh)
    return jnp.concatenate(heads, axis=-1) @ out_w + out_b


def reference_forward(tokens, mask, p):
    cog = tokens[:, :, 0].astype(jnp.int32)
    bc = (tokens[:, :, 1] > 0.0).astype(jnp.float32)[..., None]       # (B, N, 1)
    x0 = p["emb"][cog] + bc * p["count_w"] + p["count_b"]             # (B, N, D)
    local = jnp.mean(x0, axis=1)                                      # (B, D)
    outs = []
    for b in range(tokens.shape[0]):
        xb = x0[b]
        bias = mask[b].astype(jnp.float32)[None, :] * NEG             # (1, N)
        for l in range(L):
            attn = _ref_mha(xb, xb, p["sab_in_w"][l], p["sab_in_b"][l],
                            p["sab_out_w"][l], p["sab_out_b"][l], bias)
            xb = _layer_norm(xb + attn, p["sab_ln1_g"][l], p["sab_ln1_b"][l])
            h1 = jnp.maximum(xb @ p["sab_ff_w1"][l] + p["sab_ff_b1"][l], 0.0)
            ff = h1 @ p["sab_ff_w2"][l] + p["sab_ff_b2"][l]
            xb = _layer_norm(xb + ff, p["sab_ln2_g"][l], p["sab_ln2_b"][l])
        attn = _ref_mha(p["pma_seed"], xb, p["pma_in_w"], p["pma_in_b"],
                        p["pma_out_w"], p["pma_out_b"], bias)
        pooled = _layer_norm(attn + p["pma_seed"], p["pma_ln_g"], p["pma_ln_b"])
        combined = jnp.concatenate([pooled, local[b:b + 1]], axis=-1)
        hdec = jnp.maximum(combined @ p["dec_w1"] + p["dec_b1"], 0.0)
        logits = hdec @ p["dec_w2"] + p["dec_b2"]
        outs.append(jax.nn.sigmoid(logits)[0])
    return jnp.stack(outs, axis=0)


if __name__ == "__main__":
    key = jax.random.PRNGKey(0)
    k_tok, k_cnt, k_par = jax.random.split(key, 3)
    params = init_params(k_par)
    slab = pack_params(params)          # one-time weight prep (single DMA at run time)

    # example inputs: batch 0 has 8 genes, batch 1 has 5 (last 3 padded)
    lengths = jnp.array([N, N - 3], dtype=jnp.int32)
    mask = jnp.arange(N)[None, :] >= lengths[:, None]          # (B, N), True = pad
    cog_ids = jax.random.randint(k_tok, (B, N), 0, VOCAB)
    cog_ids = jnp.where(mask, VOCAB, cog_ids)                  # pad token id
    counts = jax.random.normal(k_cnt, (B, N))
    counts = jnp.where(mask, 0.0, counts)
    tokens = jnp.stack([cog_ids.astype(jnp.float32), counts], axis=-1)   # (B, N, 2)

    probs = genome_set_transformer(tokens, mask, slab)
    probs = jax.block_until_ready(probs)

    ref = reference_forward(tokens, mask, params)
    assert probs.shape == (B, VOCAB)
    assert bool(jnp.all(jnp.isfinite(probs)))
    max_err = float(jnp.max(jnp.abs(probs - ref)))
    assert max_err < 1e-3, f"mismatch vs reference: {max_err}"
    print("KERNEL_OK")
</pallas_src>

<mosaic_0001>
module attributes {stable_mosaic.version = 11 : i64} {
  func.func @genome_set_transformer_kernel(%arg0: i32, %arg1: memref<2x8xi32, #tpu.memory_space<smem>>, %arg2: memref<2x8xi32, #tpu.memory_space<smem>>, %arg3: memref<18x16xf32, #tpu.memory_space<vmem>>, %arg4: memref<1960x128xf32, #tpu.memory_space<vmem>>, %arg5: memref<2x128xf32, #tpu.memory_space<vmem>>, %arg6: memref<16x32xf32, #tpu.memory_space<vmem>>) attributes {dimension_semantics = [#tpu.dimension_semantics<arbitrary>], iteration_bounds = array<i64: 1>, scalar_prefetch = 2 : i64, scratch_operands = 1 : i64, tpu.core_type = #tpu.core_type<tc>, window_params = [{pipeline_mode = #tpu.pipeline_mode<synchronous>, transform_indices = @transform_0, window_bounds = array<i64: 18, 16>}, {pipeline_mode = #tpu.pipeline_mode<synchronous>, transform_indices = @transform_1, window_bounds = array<i64: 1960, 128>}, {pipeline_mode = #tpu.pipeline_mode<synchronous>, transform_indices = @transform_2, window_bounds = array<i64: 2, 128>}]} {
    %c24 = arith.constant 24 : index
    %c0 = arith.constant 0 : index
    %0 = vector.load %arg4[%c24, %c0] : memref<1960x128xf32, #tpu.memory_space<vmem>>, vector<1x32xf32>
    %c32 = arith.constant 32 : index
    %c0_0 = arith.constant 0 : index
    %1 = vector.load %arg4[%c32, %c0_0] : memref<1960x128xf32, #tpu.memory_space<vmem>>, vector<1x32xf32>
    %c0_1 = arith.constant 0 : index
    %c0_2 = arith.constant 0 : index
    %2 = memref.load %arg1[%c0_1, %c0_2] : memref<2x8xi32, #tpu.memory_space<smem>>
    %c0_3 = arith.constant 0 : index
    %c0_4 = arith.constant 0 : index
    %3 = memref.load %arg2[%c0_3, %c0_4] : memref<2x8xi32, #tpu.memory_space<smem>>
    %4 = arith.sitofp %3 : i32 to f32
    %c0_i32 = arith.constant 0 : i32
    %5 = arith.addi %c0_i32, %2 : i32
    %6 = arith.index_cast %5 : i32 to index
    %c0_5 = arith.constant 0 : index
    %7 = vector.load %arg4[%6, %c0_5] : memref<1960x128xf32, #tpu.memory_space<vmem>>, vector<1x32xf32>
    %8 = vector.broadcast %4 : f32 to vector<1x32xf32>
    %9 = arith.mulf %8, %0 : vector<1x32xf32>
    %10 = arith.addf %7, %9 : vector<1x32xf32>
    %11 = arith.addf %10, %1 : vector<1x32xf32>
    %c0_6 = arith.constant 0 : index
    %c0_7 = arith.constant 0 : index
    %12 = vector.load %arg6[%c0_6, %c0_7] : memref<16x32xf32, #tpu.memory_space<vmem>>, vector<1x32xf32>
    tpu.vector_store %arg6[%c0_6, %c0_7], %11 {strides = array<i32>} : memref<16x32xf32, #tpu.memory_space<vmem>>, vector<1x32xf32>,
    %c0_8 = arith.constant 0 : index
    %c1 = arith.constant 1 : index
    %13 = memref.load %arg1[%c0_8, %c1] : memref<2x8xi32, #tpu.memory_space<smem>>
    %c0_9 = arith.constant 0 : index
    %c1_10 = arith.constant 1 : index
    %14 = memref.load %arg2[%c0_9, %c1_10] : memref<2x8xi32, #tpu.memory_space<smem>>
    %15 = arith.sitofp %14 : i32 to f32
    %c0_i32_11 = arith.constant 0 : i32
    %16 = arith.addi %c0_i32_11, %13 : i32
    %17 = arith.index_cast %16 : i32 to index
    %c0_12 = arith.constant 0 : index
    %18 = vector.load %arg4[%17, %c0_12] : memref<1960x128xf32, #tpu.memory_space<vmem>>, vector<1x32xf32>
    %19 = vector.broadcast %15 : f32 to vector<1x32xf32>
    %20 = arith.mulf %19, %0 : vector<1x32xf32>
    %21 = arith.addf %18, %20 : vector<1x32xf32>
    %22 = arith.addf %21, %1 : vector<1x32xf32>
    %c1_13 = arith.constant 1 : index
    %c0_14 = arith.constant 0 : index
    %23 = vector.load %arg6[%c1_13, %c0_14] : memref<16x32xf32, #tpu.memory_space<vmem>>, vector<1x32xf32>
    tpu.vector_store %arg6[%c1_13, %c0_14], %22 {strides = array<i32>} : memref<16x32xf32, #tpu.memory_space<vmem>>, vector<1x32xf32>,
    %c0_15 = arith.constant 0 : index
    %c2 = arith.constant 2 : index
    %24 = memref.load %arg1[%c0_15, %c2] : memref<2x8xi32, #tpu.memory_space<smem>>
    %c0_16 = arith.constant 0 : index
    %c2_17 = arith.constant 2 : index
    %25 = memref.load %arg2[%c0_16, %c2_17] : memref<2x8xi32, #tpu.memory_space<smem>>
    %26 = arith.sitofp %25 : i32 to f32
    %c0_i32_18 = arith.constant 0 : i32
    %27 = arith.addi %c0_i32_18, %24 : i32
    %28 = arith.index_cast %27 : i32 to index
    %c0_19 = arith.constant 0 : index
    %29 = vector.load %arg4[%28, %c0_19] : memref<1960x128xf32, #tpu.memory_space<vmem>>, vector<1x32xf32>
    %30 = vector.broadcast %26 : f32 to vector<1x32xf32>
    %31 = arith.mulf %30, %0 : vector<1x32xf32>
    %32 = arith.addf %29, %31 : vector<1x32xf32>
    %33 = arith.addf %32, %1 : vector<1x32xf32>
    %c2_20 = arith.constant 2 : index
    %c0_21 = arith.constant 0 : index
    %34 = vector.load %arg6[%c2_20, %c0_21] : memref<16x32xf32, #tpu.memory_space<vmem>>, vector<1x32xf32>
    tpu.vector_store %arg6[%c2_20, %c0_21], %33 {strides = array<i32>} : memref<16x32xf32, #tpu.memory_space<vmem>>, vector<1x32xf32>,
    %c0_22 = arith.constant 0 : index
    %c3 = arith.constant 3 : index
    %35 = memref.load %arg1[%c0_22, %c3] : memref<2x8xi32, #tpu.memory_space<smem>>
    %c0_23 = arith.constant 0 : index
    %c3_24 = arith.constant 3 : index
    %36 = memref.load %arg2[%c0_23, %c3_24] : memref<2x8xi32, #tpu.memory_space<smem>>
    %37 = arith.sitofp %36 : i32 to f32
    %c0_i32_25 = arith.constant 0 : i32
    %38 = arith.addi %c0_i32_25, %35 : i32
    %39 = arith.index_cast %38 : i32 to index
    %c0_26 = arith.constant 0 : index
    %40 = vector.load %arg4[%39, %c0_26] : memref<1960x128xf32, #tpu.memory_space<vmem>>, vector<1x32xf32>
    %41 = vector.broadcast %37 : f32 to vector<1x32xf32>
    %42 = arith.mulf %41, %0 : vector<1x32xf32>
    %43 = arith.addf %40, %42 : vector<1x32xf32>
    %44 = arith.addf %43, %1 : vector<1x32xf32>
    %c3_27 = arith.constant 3 : index
    %c0_28 = arith.constant 0 : index
    %45 = vector.load %arg6[%c3_27, %c0_28] : memref<16x32xf32, #tpu.memory_space<vmem>>, vector<1x32xf32>
    tpu.vector_store %arg6[%c3_27, %c0_28], %44 {strides = array<i32>} : memref<16x32xf32, #tpu.memory_space<vmem>>, vector<1x32xf32>,
    %c0_29 = arith.constant 0 : index
    %c4 = arith.constant 4 : index
    %46 = memref.load %arg1[%c0_29, %c4] : memref<2x8xi32, #tpu.memory_space<smem>>
    %c0_30 = arith.constant 0 : index
    %c4_31 = arith.constant 4 : index
    %47 = memref.load %arg2[%c0_30, %c4_31] : memref<2x8xi32, #tpu.memory_space<smem>>
    %48 = arith.sitofp %47 : i32 to f32
    %c0_i32_32 = arith.constant 0 : i32
    %49 = arith.addi %c0_i32_32, %46 : i32
    %50 = arith.index_cast %49 : i32 to index
    %c0_33 = arith.constant 0 : index
    %51 = vector.load %arg4[%50, %c0_33] : memref<1960x128xf32, #tpu.memory_space<vmem>>, vector<1x32xf32>
    %52 = vector.broadcast %48 : f32 to vector<1x32xf32>
    %53 = arith.mulf %52, %0 : vector<1x32xf32>
    %54 = arith.addf %51, %53 : vector<1x32xf32>
    %55 = arith.addf %54, %1 : vector<1x32xf32>
    %c4_34 = arith.constant 4 : index
    %c0_35 = arith.constant 0 : index
    %56 = vector.load %arg6[%c4_34, %c0_35] : memref<16x32xf32, #tpu.memory_space<vmem>>, vector<1x32xf32>
    tpu.vector_store %arg6[%c4_34, %c0_35], %55 {strides = array<i32>} : memref<16x32xf32, #tpu.memory_space<vmem>>, vector<1x32xf32>,
    %c0_36 = arith.constant 0 : index
    %c5 = arith.constant 5 : index
    %57 = memref.load %arg1[%c0_36, %c5] : memref<2x8xi32, #tpu.memory_space<smem>>
    %c0_37 = arith.constant 0 : index
    %c5_38 = arith.constant 5 : index
    %58 = memref.load %arg2[%c0_37, %c5_38] : memref<2x8xi32, #tpu.memory_space<smem>>
    %59 = arith.sitofp %58 : i32 to f32
    %c0_i32_39 = arith.constant 0 : i32
    %60 = arith.addi %c0_i32_39, %57 : i32
    %61 = arith.index_cast %60 : i32 to index
    %c0_40 = arith.constant 0 : index
    %62 = vector.load %arg4[%61, %c0_40] : memref<1960x128xf32, #tpu.memory_space<vmem>>, vector<1x32xf32>
    %63 = vector.broadcast %59 : f32 to vector<1x32xf32>
    %64 = arith.mulf %63, %0 : vector<1x32xf32>
    %65 = arith.addf %62, %64 : vector<1x32xf32>
    %66 = arith.addf %65, %1 : vector<1x32xf32>
    %c5_41 = arith.constant 5 : index
    %c0_42 = arith.constant 0 : index
    %67 = vector.load %arg6[%c5_41, %c0_42] : memref<16x32xf32, #tpu.memory_space<vmem>>, vector<1x32xf32>
    tpu.vector_store %arg6[%c5_41, %c0_42], %66 {strides = array<i32>} : memref<16x32xf32, #tpu.memory_space<vmem>>, vector<1x32xf32>,
    %c0_43 = arith.constant 0 : index
    %c6 = arith.constant 6 : index
    %68 = memref.load %arg1[%c0_43, %c6] : memref<2x8xi32, #tpu.memory_space<smem>>
    %c0_44 = arith.constant 0 : index
    %c6_45 = arith.constant 6 : index
    %69 = memref.load %arg2[%c0_44, %c6_45] : memref<2x8xi32, #tpu.memory_space<smem>>
    %70 = arith.sitofp %69 : i32 to f32
    %c0_i32_46 = arith.constant 0 : i32
    %71 = arith.addi %c0_i32_46, %68 : i32
    %72 = arith.index_cast %71 : i32 to index
    %c0_47 = arith.constant 0 : index
    %73 = vector.load %arg4[%72, %c0_47] : memref<1960x128xf32, #tpu.memory_space<vmem>>, vector<1x32xf32>
    %74 = vector.broadcast %70 : f32 to vector<1x32xf32>
    %75 = arith.mulf %74, %0 : vector<1x32xf32>
    %76 = arith.addf %73, %75 : vector<1x32xf32>
    %77 = arith.addf %76, %1 : vector<1x32xf32>
    %c6_48 = arith.constant 6 : index
    %c0_49 = arith.constant 0 : index
    %78 = vector.load %arg6[%c6_48, %c0_49] : memref<16x32xf32, #tpu.memory_space<vmem>>, vector<1x32xf32>
    tpu.vector_store %arg6[%c6_48, %c0_49], %77 {strides = array<i32>} : memref<16x32xf32, #tpu.memory_space<vmem>>, vector<1x32xf32>,
    %c0_50 = arith.constant 0 : index
    %c7 = arith.constant 7 : index
    %79 = memref.load %arg1[%c0_50, %c7] : memref<2x8xi32, #tpu.memory_space<smem>>
    %c0_51 = arith.constant 0 : index
    %c7_52 = arith.constant 7 : index
    %80 = memref.load %arg2[%c0_51, %c7_52] : memref<2x8xi32, #tpu.memory_space<smem>>
    %81 = arith.sitofp %80 : i32 to f32
    %c0_i32_53 = arith.constant 0 : i32
    %82 = arith.addi %c0_i32_53, %79 : i32
    %83 = arith.index_cast %82 : i32 to index
    %c0_54 = arith.constant 0 : index
    %84 = vector.load %arg4[%83, %c0_54] : memref<1960x128xf32, #tpu.memory_space<vmem>>, vector<1x32xf32>
    %85 = vector.broadcast %81 : f32 to vector<1x32xf32>
    %86 = arith.mulf %85, %0 : vector<1x32xf32>
    %87 = arith.addf %84, %86 : vector<1x32xf32>
    %88 = arith.addf %87, %1 : vector<1x32xf32>
    %c7_55 = arith.constant 7 : index
    %c0_56 = arith.constant 0 : index
    %89 = vector.load %arg6[%c7_55, %c0_56] : memref<16x32xf32, #tpu.memory_space<vmem>>, vector<1x32xf32>
    tpu.vector_store %arg6[%c7_55, %c0_56], %88 {strides = array<i32>} : memref<16x32xf32, #tpu.memory_space<vmem>>, vector<1x32xf32>,
    %c1_57 = arith.constant 1 : index
    %c0_58 = arith.constant 0 : index
    %90 = memref.load %arg1[%c1_57, %c0_58] : memref<2x8xi32, #tpu.memory_space<smem>>
    %c1_59 = arith.constant 1 : index
    %c0_60 = arith.constant 0 : index
    %91 = memref.load %arg2[%c1_59, %c0_60] : memref<2x8xi32, #tpu.memory_space<smem>>
    %92 = arith.sitofp %91 : i32 to f32
    %c0_i32_61 = arith.constant 0 : i32
    %93 = arith.addi %c0_i32_61, %90 : i32
    %94 = arith.index_cast %93 : i32 to index
    %c0_62 = arith.constant 0 : index
    %95 = vector.load %arg4[%94, %c0_62] : memref<1960x128xf32, #tpu.memory_space<vmem>>, vector<1x32xf32>
    %96 = vector.broadcast %92 : f32 to vector<1x32xf32>
    %97 = arith.mulf %96, %0 : vector<1x32xf32>
    %98 = arith.addf %95, %97 : vector<1x32xf32>
    %99 = arith.addf %98, %1 : vector<1x32xf32>
    %c8 = arith.constant 8 : index
    %c0_63 = arith.constant 0 : index
    %100 = vector.load %arg6[%c8, %c0_63] : memref<16x32xf32, #tpu.memory_space<vmem>>, vector<1x32xf32>
    tpu.vector_store %arg6[%c8, %c0_63], %99 {strides = array<i32>} : memref<16x32xf32, #tpu.memory_space<vmem>>, vector<1x32xf32>,
    %c1_64 = arith.constant 1 : index
    %c1_65 = arith.constant 1 : index
    %101 = memref.load %arg1[%c1_64, %c1_65] : memref<2x8xi32, #tpu.memory_space<smem>>
    %c1_66 = arith.constant 1 : index
    %c1_67 = arith.constant 1 : index
    %102 = memref.load %arg2[%c1_66, %c1_67] : memref<2x8xi32, #tpu.memory_space<smem>>
    %103 = arith.sitofp %102 : i32 to f32
    %c0_i32_68 = arith.constant 0 : i32
    %104 = arith.addi %c0_i32_68, %101 : i32
    %105 = arith.index_cast %104 : i32 to index
    %c0_69 = arith.constant 0 : index
    %106 = vector.load %arg4[%105, %c0_69] : memref<1960x128xf32, #tpu.memory_space<vmem>>, vector<1x32xf32>
    %107 = vector.broadcast %103 : f32 to vector<1x32xf32>
    %108 = arith.mulf %107, %0 : vector<1x32xf32>
    %109 = arith.addf %106, %108 : vector<1x32xf32>
    %110 = arith.addf %109, %1 : vector<1x32xf32>
    %c9 = arith.constant 9 : index
    %c0_70 = arith.constant 0 : index
    %111 = vector.load %arg6[%c9, %c0_70] : memref<16x32xf32, #tpu.memory_space<vmem>>, vector<1x32xf32>
    tpu.vector_store %arg6[%c9, %c0_70], %110 {strides = array<i32>} : memref<16x32xf32, #tpu.memory_space<vmem>>, vector<1x32xf32>,
    %c1_71 = arith.constant 1 : index
    %c2_72 = arith.constant 2 : index
    %112 = memref.load %arg1[%c1_71, %c2_72] : memref<2x8xi32, #tpu.memory_space<smem>>
    %c1_73 = arith.constant 1 : index
    %c2_74 = arith.constant 2 : index
    %113 = memref.load %arg2[%c1_73, %c2_74] : memref<2x8xi32, #tpu.memory_space<smem>>
    %114 = arith.sitofp %113 : i32 to f32
    %c0_i32_75 = arith.constant 0 : i32
    %115 = arith.addi %c0_i32_75, %112 : i32
    %116 = arith.index_cast %115 : i32 to index
    %c0_76 = arith.constant 0 : index
    %117 = vector.load %arg4[%116, %c0_76] : memref<1960x128xf32, #tpu.memory_space<vmem>>, vector<1x32xf32>
    %118 = vector.broadcast %114 : f32 to vector<1x32xf32>
    %119 = arith.mulf %118, %0 : vector<1x32xf32>
    %120 = arith.addf %117, %119 : vector<1x32xf32>
    %121 = arith.addf %120, %1 : vector<1x32xf32>
    %c10 = arith.constant 10 : index
    %c0_77 = arith.constant 0 : index
    %122 = vector.load %arg6[%c10, %c0_77] : memref<16x32xf32, #tpu.memory_space<vmem>>, vector<1x32xf32>
    tpu.vector_store %arg6[%c10, %c0_77], %121 {strides = array<i32>} : memref<16x32xf32, #tpu.memory_space<vmem>>, vector<1x32xf32>,
    %c1_78 = arith.constant 1 : index
    %c3_79 = arith.constant 3 : index
    %123 = memref.load %arg1[%c1_78, %c3_79] : memref<2x8xi32, #tpu.memory_space<smem>>
    %c1_80 = arith.constant 1 : index
    %c3_81 = arith.constant 3 : index
    %124 = memref.load %arg2[%c1_80, %c3_81] : memref<2x8xi32, #tpu.memory_space<smem>>
    %125 = arith.sitofp %124 : i32 to f32
    %c0_i32_82 = arith.constant 0 : i32
    %126 = arith.addi %c0_i32_82, %123 : i32
    %127 = arith.index_cast %126 : i32 to index
    %c0_83 = arith.constant 0 : index
    %128 = vector.load %arg4[%127, %c0_83] : memref<1960x128xf32, #tpu.memory_space<vmem>>, vector<1x32xf32>
    %129 = vector.broadcast %125 : f32 to vector<1x32xf32>
    %130 = arith.mulf %129, %0 : vector<1x32xf32>
    %131 = arith.addf %128, %130 : vector<1x32xf32>
    %132 = arith.addf %131, %1 : vector<1x32xf32>
    %c11 = arith.constant 11 : index
    %c0_84 = arith.constant 0 : index
    %133 = vector.load %arg6[%c11, %c0_84] : memref<16x32xf32, #tpu.memory_space<vmem>>, vector<1x32xf32>
    tpu.vector_store %arg6[%c11, %c0_84], %132 {strides = array<i32>} : memref<16x32xf32, #tpu.memory_space<vmem>>, vector<1x32xf32>,
    %c1_85 = arith.constant 1 : index
    %c4_86 = arith.constant 4 : index
    %134 = memref.load %arg1[%c1_85, %c4_86] : memref<2x8xi32, #tpu.memory_space<smem>>
    %c1_87 = arith.constant 1 : index
    %c4_88 = arith.constant 4 : index
    %135 = memref.load %arg2[%c1_87, %c4_88] : memref<2x8xi32, #tpu.memory_space<smem>>
    %136 = arith.sitofp %135 : i32 to f32
    %c0_i32_89 = arith.constant 0 : i32
    %137 = arith.addi %c0_i32_89, %134 : i32
    %138 = arith.index_cast %137 : i32 to index
    %c0_90 = arith.constant 0 : index
    %139 = vector.load %arg4[%138, %c0_90] : memref<1960x128xf32, #tpu.memory_space<vmem>>, vector<1x32xf32>
    %140 = vector.broadcast %136 : f32 to vector<1x32xf32>
    %141 = arith.mulf %140, %0 : vector<1x32xf32>
    %142 = arith.addf %139, %141 : vector<1x32xf32>
    %143 = arith.addf %142, %1 : vector<1x32xf32>
    %c12 = arith.constant 12 : index
    %c0_91 = arith.constant 0 : index
    %144 = vector.load %arg6[%c12, %c0_91] : memref<16x32xf32, #tpu.memory_space<vmem>>, vector<1x32xf32>
    tpu.vector_store %arg6[%c12, %c0_91], %143 {strides = array<i32>} : memref<16x32xf32, #tpu.memory_space<vmem>>, vector<1x32xf32>,
    %c1_92 = arith.constant 1 : index
    %c5_93 = arith.constant 5 : index
    %145 = memref.load %arg1[%c1_92, %c5_93] : memref<2x8xi32, #tpu.memory_space<smem>>
    %c1_94 = arith.constant 1 : index
    %c5_95 = arith.constant 5 : index
    %146 = memref.load %arg2[%c1_94, %c5_95] : memref<2x8xi32, #tpu.memory_space<smem>>
    %147 = arith.sitofp %146 : i32 to f32
    %c0_i32_96 = arith.constant 0 : i32
    %148 = arith.addi %c0_i32_96, %145 : i32
    %149 = arith.index_cast %148 : i32 to index
    %c0_97 = arith.constant 0 : index
    %150 = vector.load %arg4[%149, %c0_97] : memref<1960x128xf32, #tpu.memory_space<vmem>>, vector<1x32xf32>
    %151 = vector.broadcast %147 : f32 to vector<1x32xf32>
    %152 = arith.mulf %151, %0 : vector<1x32xf32>
    %153 = arith.addf %150, %152 : vector<1x32xf32>
    %154 = arith.addf %153, %1 : vector<1x32xf32>
    %c13 = arith.constant 13 : index
    %c0_98 = arith.constant 0 : index
    %155 = vector.load %arg6[%c13, %c0_98] : memref<16x32xf32, #tpu.memory_space<vmem>>, vector<1x32xf32>
    tpu.vector_store %arg6[%c13, %c0_98], %154 {strides = array<i32>} : memref<16x32xf32, #tpu.memory_space<vmem>>, vector<1x32xf32>,
    %c1_99 = arith.constant 1 : index
    %c6_100 = arith.constant 6 : index
    %156 = memref.load %arg1[%c1_99, %c6_100] : memref<2x8xi32, #tpu.memory_space<smem>>
    %c1_101 = arith.constant 1 : index
    %c6_102 = arith.constant 6 : index
    %157 = memref.load %arg2[%c1_101, %c6_102] : memref<2x8xi32, #tpu.memory_space<smem>>
    %158 = arith.sitofp %157 : i32 to f32
    %c0_i32_103 = arith.constant 0 : i32
    %159 = arith.addi %c0_i32_103, %156 : i32
    %160 = arith.index_cast %159 : i32 to index
    %c0_104 = arith.constant 0 : index
    %161 = vector.load %arg4[%160, %c0_104] : memref<1960x128xf32, #tpu.memory_space<vmem>>, vector<1x32xf32>
    %162 = vector.broadcast %158 : f32 to vector<1x32xf32>
    %163 = arith.mulf %162, %0 : vector<1x32xf32>
    %164 = arith.addf %161, %163 : vector<1x32xf32>
    %165 = arith.addf %164, %1 : vector<1x32xf32>
    %c14 = arith.constant 14 : index
    %c0_105 = arith.constant 0 : index
    %166 = vector.load %arg6[%c14, %c0_105] : memref<16x32xf32, #tpu.memory_space<vmem>>, vector<1x32xf32>
    tpu.vector_store %arg6[%c14, %c0_105], %165 {strides = array<i32>} : memref<16x32xf32, #tpu.memory_space<vmem>>, vector<1x32xf32>,
    %c1_106 = arith.constant 1 : index
    %c7_107 = arith.constant 7 : index
    %167 = memref.load %arg1[%c1_106, %c7_107] : memref<2x8xi32, #tpu.memory_space<smem>>
    %c1_108 = arith.constant 1 : index
    %c7_109 = arith.constant 7 : index
    %168 = memref.load %arg2[%c1_108, %c7_109] : memref<2x8xi32, #tpu.memory_space<smem>>
    %169 = arith.sitofp %168 : i32 to f32
    %c0_i32_110 = arith.constant 0 : i32
    %170 = arith.addi %c0_i32_110, %167 : i32
    %171 = arith.index_cast %170 : i32 to index
    %c0_111 = arith.constant 0 : index
    %172 = vector.load %arg4[%171, %c0_111] : memref<1960x128xf32, #tpu.memory_space<vmem>>, vector<1x32xf32>
    %173 = vector.broadcast %169 : f32 to vector<1x32xf32>
    %174 = arith.mulf %173, %0 : vector<1x32xf32>
    %175 = arith.addf %172, %174 : vector<1x32xf32>
    %176 = arith.addf %175, %1 : vector<1x32xf32>
    %c15 = arith.constant 15 : index
    %c0_112 = arith.constant 0 : index
    %177 = vector.load %arg6[%c15, %c0_112] : memref<16x32xf32, #tpu.memory_space<vmem>>, vector<1x32xf32>
    tpu.vector_store %arg6[%c15, %c0_112], %176 {strides = array<i32>} : memref<16x32xf32, #tpu.memory_space<vmem>>, vector<1x32xf32>,
    %c0_113 = arith.constant 0 : index
    %c0_114 = arith.constant 0 : index
    %178 = vector.load %arg6[%c0_113, %c0_114] : memref<16x32xf32, #tpu.memory_space<vmem>>, vector<16x32xf32>
    %179 = tpu.iota {dimensions = array<i32: 0>} : vector<2x16xi32>
    %180 = tpu.iota {dimensions = array<i32: 1>} : vector<2x16xi32>
    %c8_i32 = arith.constant 8 : i32
    %181 = vector.broadcast %c8_i32 : i32 to vector<2x16xi32>
    %182 = arith.muli %179, %181 : vector<2x16xi32>
    %183 = arith.cmpi sge, %180, %182 : vector<2x16xi32>
    %c1_i32 = arith.constant 1 : i32
    %184 = vector.broadcast %c1_i32 : i32 to vector<2x16xi32>
    %185 = arith.addi %179, %184 : vector<2x16xi32>
    %c8_i32_115 = arith.constant 8 : i32
    %186 = vector.broadcast %c8_i32_115 : i32 to vector<2x16xi32>
    %187 = arith.muli %185, %186 : vector<2x16xi32>
    %188 = arith.cmpi slt, %180, %187 : vector<2x16xi32>
    %189 = arith.andi %183, %188 : vector<2x16xi1>
    %cst = arith.constant 1.250000e-01 : f32
    %cst_116 = arith.constant 0.000000e+00 : f32
    %190 = vector.broadcast %cst : f32 to vector<2x16xf32>
    %191 = vector.broadcast %cst_116 : f32 to vector<2x16xf32>
    %192 = arith.select %189, %190, %191 : vector<2x16xi1>, vector<2x16xf32>
    %cst_117 = arith.constant dense<0.000000e+00> : vector<2x32xf32>
    %193 = tpu.matmul %192, %178, %cst_117 {dimension_numbers = #tpu.dot_dimension_numbers<[1], [0], [0], [1], [0, 0, 1, 1], [], []>} : vector<2x16xf32>, vector<16x32xf32>, vector<2x32xf32> -> vector<2x32xf32>
    %c0_118 = arith.constant 0 : index
    %c0_119 = arith.constant 0 : index
    %194 = vector.load %arg3[%c0_118, %c0_119] : memref<18x16xf32, #tpu.memory_space<vmem>>, vector<16x16xf32>
    %c16 = arith.constant 16 : index
    %c0_120 = arith.constant 0 : index
    %195 = vector.load %arg3[%c16, %c0_120] : memref<18x16xf32, #tpu.memory_space<vmem>>, vector<2x16xf32>
    %c40 = arith.constant 40 : index
    %c0_121 = arith.constant 0 : index
    %196 = vector.load %arg4[%c40, %c0_121] : memref<1960x128xf32, #tpu.memory_space<vmem>>, vector<32x8xf32>
    %cst_122 = arith.constant dense<0.000000e+00> : vector<16x8xf32>
    %197 = tpu.matmul %178, %196, %cst_122 {dimension_numbers = #tpu.dot_dimension_numbers<[1], [0], [0], [1], [0, 0, 1, 1], [], []>} : vector<16x32xf32>, vector<32x8xf32>, vector<16x8xf32> -> vector<16x8xf32>
    %c136 = arith.constant 136 : index
    %c0_123 = arith.constant 0 : index
    %198 = vector.load %arg4[%c136, %c0_123] : memref<1960x128xf32, #tpu.memory_space<vmem>>, vector<1x8xf32>
    %199 = vector.broadcast %198 : vector<1x8xf32> to vector<16x8xf32>
    %200 = arith.addf %197, %199 : vector<16x8xf32>
    %cst_124 = arith.constant 0.353553385 : f32
    %201 = vector.broadcast %cst_124 : f32 to vector<16x8xf32>
    %202 = arith.mulf %200, %201 : vector<16x8xf32>
    %c72 = arith.constant 72 : index
    %c0_125 = arith.constant 0 : index
    %203 = vector.load %arg4[%c72, %c0_125] : memref<1960x128xf32, #tpu.memory_space<vmem>>, vector<32x8xf32>
    %cst_126 = arith.constant dense<0.000000e+00> : vector<16x8xf32>
    %204 = tpu.matmul %178, %203, %cst_126 {dimension_numbers = #tpu.dot_dimension_numbers<[1], [0], [0], [1], [0, 0, 1, 1], [], []>} : vector<16x32xf32>, vector<32x8xf32>, vector<16x8xf32> -> vector<16x8xf32>
    %c144 = arith.constant 144 : index
    %c0_127 = arith.constant 0 : index
    %205 = vector.load %arg4[%c144, %c0_127] : memref<1960x128xf32, #tpu.memory_space<vmem>>, vector<1x8xf32>
    %206 = vector.broadcast %205 : vector<1x8xf32> to vector<16x8xf32>
    %207 = arith.addf %204, %206 : vector<16x8xf32>
    %c104 = arith.constant 104 : index
    %c0_128 = arith.constant 0 : index
    %208 = vector.load %arg4[%c104, %c0_128] : memref<1960x128xf32, #tpu.memory_space<vmem>>, vector<32x8xf32>
    %cst_129 = arith.constant dense<0.000000e+00> : vector<16x8xf32>
    %209 = tpu.matmul %178, %208, %cst_129 {dimension_numbers = #tpu.dot_dimension_numbers<[1], [0], [0], [1], [0, 0, 1, 1], [], []>} : vector<16x32xf32>, vector<32x8xf32>, vector<16x8xf32> -> vector<16x8xf32>
    %c152 = arith.constant 152 : index
    %c0_130 = arith.constant 0 : index
    %210 = vector.load %arg4[%c152, %c0_130] : memref<1960x128xf32, #tpu.memory_space<vmem>>, vector<1x8xf32>
    %211 = vector.broadcast %210 : vector<1x8xf32> to vector<16x8xf32>
    %212 = arith.addf %209, %211 : vector<16x8xf32>
    %cst_131 = arith.constant dense<0.000000e+00> : vector<16x16xf32>
    %213 = tpu.matmul %202, %207, %cst_131 {dimension_numbers = #tpu.dot_dimension_numbers<[1], [1], [0], [0], [0, 0, 1, 0], [], []>} : vector<16x8xf32>, vector<16x8xf32>, vector<16x16xf32> -> vector<16x16xf32>
    %214 = arith.addf %213, %194 : vector<16x16xf32>
    %cst_132 = arith.constant dense<0xFF800000> : vector<16xf32>
    %215 = vector.multi_reduction <maximumf>, %214, %cst_132 [1] : vector<16x16xf32> to vector<16xf32>
    %216 = vector.shape_cast %215 : vector<16xf32> to vector<16x1xf32>
    %217 = vector.broadcast %216 : vector<16x1xf32> to vector<16x16xf32>
    %218 = arith.subf %214, %217 : vector<16x16xf32>
    %219 = math.exp %218 : vector<16x16xf32>
    %cst_133 = arith.constant dense<0.000000e+00> : vector<16xf32>
    %220 = vector.multi_reduction <add>, %219, %cst_133 [1] : vector<16x16xf32> to vector<16xf32>
    %221 = vector.shape_cast %220 : vector<16xf32> to vector<16x1xf32>
    %222 = vector.broadcast %221 : vector<16x1xf32> to vector<16x16xf32>
    %223 = arith.divf %219, %222 : vector<16x16xf32>
    %cst_134 = arith.constant dense<0.000000e+00> : vector<16x8xf32>
    %224 = tpu.matmul %223, %212, %cst_134 {dimension_numbers = #tpu.dot_dimension_numbers<[1], [0], [0], [1], [0, 0, 1, 1], [], []>} : vector<16x16xf32>, vector<16x8xf32>, vector<16x8xf32> -> vector<16x8xf32>
    %c160 = arith.constant 160 : index
    %c0_135 = arith.constant 0 : index
    %225 = vector.load %arg4[%c160, %c0_135] : memref<1960x128xf32, #tpu.memory_space<vmem>>, vector<8x32xf32>
    %cst_136 = arith.constant dense<0.000000e+00> : vector<16x32xf32>
    %226 = tpu.matmul %224, %225, %cst_136 {dimension_numbers = #tpu.dot_dimension_numbers<[1], [0], [0], [1], [0, 0, 1, 1], [], []>} : vector<16x8xf32>, vector<8x32xf32>, vector<16x32xf32> -> vector<16x32xf32>
    %c168 = arith.constant 168 : index
    %c0_137 = arith.constant 0 : index
    %227 = vector.load %arg4[%c168, %c0_137] : memref<1960x128xf32, #tpu.memory_space<vmem>>, vector<32x8xf32>
    %cst_138 = arith.constant dense<0.000000e+00> : vector<16x8xf32>
    %228 = tpu.matmul %178, %227, %cst_138 {dimension_numbers = #tpu.dot_dimension_numbers<[1], [0], [0], [1], [0, 0, 1, 1], [], []>} : vector<16x32xf32>, vector<32x8xf32>, vector<16x8xf32> -> vector<16x8xf32>
    %c264 = arith.constant 264 : index
    %c0_139 = arith.constant 0 : index
    %229 = vector.load %arg4[%c264, %c0_139] : memref<1960x128xf32, #tpu.memory_space<vmem>>, vector<1x8xf32>
    %230 = vector.broadcast %229 : vector<1x8xf32> to vector<16x8xf32>
    %231 = arith.addf %228, %230 : vector<16x8xf32>
    %cst_140 = arith.constant 0.353553385 : f32
    %232 = vector.broadcast %cst_140 : f32 to vector<16x8xf32>
    %233 = arith.mulf %231, %232 : vector<16x8xf32>
    %c200 = arith.constant 200 : index
    %c0_141 = arith.constant 0 : index
    %234 = vector.load %arg4[%c200, %c0_141] : memref<1960x128xf32, #tpu.memory_space<vmem>>, vector<32x8xf32>
    %cst_142 = arith.constant dense<0.000000e+00> : vector<16x8xf32>
    %235 = tpu.matmul %178, %234, %cst_142 {dimension_numbers = #tpu.dot_dimension_numbers<[1], [0], [0], [1], [0, 0, 1, 1], [], []>} : vector<16x32xf32>, vector<32x8xf32>, vector<16x8xf32> -> vector<16x8xf32>
    %c272 = arith.constant 272 : index
    %c0_143 = arith.constant 0 : index
    %236 = vector.load %arg4[%c272, %c0_143] : memref<1960x128xf32, #tpu.memory_space<vmem>>, vector<1x8xf32>
    %237 = vector.broadcast %236 : vector<1x8xf32> to vector<16x8xf32>
    %238 = arith.addf %235, %237 : vector<16x8xf32>
    %c232 = arith.constant 232 : index
    %c0_144 = arith.constant 0 : index
    %239 = vector.load %arg4[%c232, %c0_144] : memref<1960x128xf32, #tpu.memory_space<vmem>>, vector<32x8xf32>
    %cst_145 = arith.constant dense<0.000000e+00> : vector<16x8xf32>
    %240 = tpu.matmul %178, %239, %cst_145 {dimension_numbers = #tpu.dot_dimension_numbers<[1], [0], [0], [1], [0, 0, 1, 1], [], []>} : vector<16x32xf32>, vector<32x8xf32>, vector<16x8xf32> -> vector<16x8xf32>
    %c280 = arith.constant 280 : index
    %c0_146 = arith.constant 0 : index
    %241 = vector.load %arg4[%c280, %c0_146] : memref<1960x128xf32, #tpu.memory_space<vmem>>, vector<1x8xf32>
    %242 = vector.broadcast %241 : vector<1x8xf32> to vector<16x8xf32>
    %243 = arith.addf %240, %242 : vector<16x8xf32>
    %cst_147 = arith.constant dense<0.000000e+00> : vector<16x16xf32>
    %244 = tpu.matmul %233, %238, %cst_147 {dimension_numbers = #tpu.dot_dimension_numbers<[1], [1], [0], [0], [0, 0, 1, 0], [], []>} : vector<16x8xf32>, vector<16x8xf32>, vector<16x16xf32> -> vector<16x16xf32>
    %245 = arith.addf %244, %194 : vector<16x16xf32>
    %cst_148 = arith.constant dense<0xFF800000> : vector<16xf32>
    %246 = vector.multi_reduction <maximumf>, %245, %cst_148 [1] : vector<16x16xf32> to vector<16xf32>
    %247 = vector.shape_cast %246 : vector<16xf32> to vector<16x1xf32>
    %248 = vector.broadcast %247 : vector<16x1xf32> to vector<16x16xf32>
    %249 = arith.subf %245, %248 : vector<16x16xf32>
    %250 = math.exp %249 : vector<16x16xf32>
    %cst_149 = arith.constant dense<0.000000e+00> : vector<16xf32>
    %251 = vector.multi_reduction <add>, %250, %cst_149 [1] : vector<16x16xf32> to vector<16xf32>
    %252 = vector.shape_cast %251 : vector<16xf32> to vector<16x1xf32>
    %253 = vector.broadcast %252 : vector<16x1xf32> to vector<16x16xf32>
    %254 = arith.divf %250, %253 : vector<16x16xf32>
    %cst_150 = arith.constant dense<0.000000e+00> : vector<16x8xf32>
    %255 = tpu.matmul %254, %243, %cst_150 {dimension_numbers = #tpu.dot_dimension_numbers<[1], [0], [0], [1], [0, 0, 1, 1], [], []>} : vector<16x16xf32>, vector<16x8xf32>, vector<16x8xf32> -> vector<16x8xf32>
    %c288 = arith.constant 288 : index
    %c0_151 = arith.constant 0 : index
    %256 = vector.load %arg4[%c288, %c0_151] : memref<1960x128xf32, #tpu.memory_space<vmem>>, vector<8x32xf32>
    %cst_152 = arith.constant dense<0.000000e+00> : vector<16x32xf32>
    %257 = tpu.matmul %255, %256, %cst_152 {dimension_numbers = #tpu.dot_dimension_numbers<[1], [0], [0], [1], [0, 0, 1, 1], [], []>} : vector<16x8xf32>, vector<8x32xf32>, vector<16x32xf32> -> vector<16x32xf32>
    %258 = arith.addf %226, %257 : vector<16x32xf32>
    %c296 = arith.constant 296 : index
    %c0_153 = arith.constant 0 : index
    %259 = vector.load %arg4[%c296, %c0_153] : memref<1960x128xf32, #tpu.memory_space<vmem>>, vector<32x8xf32>
    %cst_154 = arith.constant dense<0.000000e+00> : vector<16x8xf32>
    %260 = tpu.matmul %178, %259, %cst_154 {dimension_numbers = #tpu.dot_dimension_numbers<[1], [0], [0], [1], [0, 0, 1, 1], [], []>} : vector<16x32xf32>, vector<32x8xf32>, vector<16x8xf32> -> vector<16x8xf32>
    %c392 = arith.constant 392 : index
    %c0_155 = arith.constant 0 : index
    %261 = vector.load %arg4[%c392, %c0_155] : memref<1960x128xf32, #tpu.memory_space<vmem>>, vector<1x8xf32>
    %262 = vector.broadcast %261 : vector<1x8xf32> to vector<16x8xf32>
    %263 = arith.addf %260, %262 : vector<16x8xf32>
    %cst_156 = arith.constant 0.353553385 : f32
    %264 = vector.broadcast %cst_156 : f32 to vector<16x8xf32>
    %265 = arith.mulf %263, %264 : vector<16x8xf32>
    %c328 = arith.constant 328 : index
    %c0_157 = arith.constant 0 : index
    %266 = vector.load %arg4[%c328, %c0_157] : memref<1960x128xf32, #tpu.memory_space<vmem>>, vector<32x8xf32>
    %cst_158 = arith.constant dense<0.000000e+00> : vector<16x8xf32>
    %267 = tpu.matmul %178, %266, %cst_158 {dimension_numbers = #tpu.dot_dimension_numbers<[1], [0], [0], [1], [0, 0, 1, 1], [], []>} : vector<16x32xf32>, vector<32x8xf32>, vector<16x8xf32> -> vector<16x8xf32>
    %c400 = arith.constant 400 : index
    %c0_159 = arith.constant 0 : index
    %268 = vector.load %arg4[%c400, %c0_159] : memref<1960x128xf32, #tpu.memory_space<vmem>>, vector<1x8xf32>
    %269 = vector.broadcast %268 : vector<1x8xf32> to vector<16x8xf32>
    %270 = arith.addf %267, %269 : vector<16x8xf32>
    %c360 = arith.constant 360 : index
    %c0_160 = arith.constant 0 : index
    %271 = vector.load %arg4[%c360, %c0_160] : memref<1960x128xf32, #tpu.memory_space<vmem>>, vector<32x8xf32>
    %cst_161 = arith.constant dense<0.000000e+00> : vector<16x8xf32>
    %272 = tpu.matmul %178, %271, %cst_161 {dimension_numbers = #tpu.dot_dimension_numbers<[1], [0], [0], [1], [0, 0, 1, 1], [], []>} : vector<16x32xf32>, vector<32x8xf32>, vector<16x8xf32> -> vector<16x8xf32>
    %c408 = arith.constant 408 : index
    %c0_162 = arith.constant 0 : index
    %273 = vector.load %arg4[%c408, %c0_162] : memref<1960x128xf32, #tpu.memory_space<vmem>>, vector<1x8xf32>
    %274 = vector.broadcast %273 : vector<1x8xf32> to vector<16x8xf32>
    %275 = arith.addf %272, %274 : vector<16x8xf32>
    %cst_163 = arith.constant dense<0.000000e+00> : vector<16x16xf32>
    %276 = tpu.matmul %265, %270, %cst_163 {dimension_numbers = #tpu.dot_dimension_numbers<[1], [1], [0], [0], [0, 0, 1, 0], [], []>} : vector<16x8xf32>, vector<16x8xf32>, vector<16x16xf32> -> vector<16x16xf32>
    %277 = arith.addf %276, %194 : vector<16x16xf32>
    %cst_164 = arith.constant dense<0xFF800000> : vector<16xf32>
    %278 = vector.multi_reduction <maximumf>, %277, %cst_164 [1] : vector<16x16xf32> to vector<16xf32>
    %279 = vector.shape_cast %278 : vector<16xf32> to vector<16x1xf32>
    %280 = vector.broadcast %279 : vector<16x1xf32> to vector<16x16xf32>
    %281 = arith.subf %277, %280 : vector<16x16xf32>
    %282 = math.exp %281 : vector<16x16xf32>
    %cst_165 = arith.constant dense<0.000000e+00> : vector<16xf32>
    %283 = vector.multi_reduction <add>, %282, %cst_165 [1] : vector<16x16xf32> to vector<16xf32>
    %284 = vector.shape_cast %283 : vector<16xf32> to vector<16x1xf32>
    %285 = vector.broadcast %284 : vector<16x1xf32> to vector<16x16xf32>
    %286 = arith.divf %282, %285 : vector<16x16xf32>
    %cst_166 = arith.constant dense<0.000000e+00> : vector<16x8xf32>
    %287 = tpu.matmul %286, %275, %cst_166 {dimension_numbers = #tpu.dot_dimension_numbers<[1], [0], [0], [1], [0, 0, 1, 1], [], []>} : vector<16x16xf32>, vector<16x8xf32>, vector<16x8xf32> -> vector<16x8xf32>
    %c416 = arith.constant 416 : index
    %c0_167 = arith.constant 0 : index
    %288 = vector.load %arg4[%c416, %c0_167] : memref<1960x128xf32, #tpu.memory_space<vmem>>, vector<8x32xf32>
    %cst_168 = arith.constant dense<0.000000e+00> : vector<16x32xf32>
    %289 = tpu.matmul %287, %288, %cst_168 {dimension_numbers = #tpu.dot_dimension_numbers<[1], [0], [0], [1], [0, 0, 1, 1], [], []>} : vector<16x8xf32>, vector<8x32xf32>, vector<16x32xf32> -> vector<16x32xf32>
    %290 = arith.addf %258, %289 : vector<16x32xf32>
    %c424 = arith.constant 424 : index
    %c0_169 = arith.constant 0 : index
    %291 = vector.load %arg4[%c424, %c0_169] : memref<1960x128xf32, #tpu.memory_space<vmem>>, vector<32x8xf32>
    %cst_170 = arith.constant dense<0.000000e+00> : vector<16x8xf32>
    %292 = tpu.matmul %178, %291, %cst_170 {dimension_numbers = #tpu.dot_dimension_numbers<[1], [0], [0], [1], [0, 0, 1, 1], [], []>} : vector<16x32xf32>, vector<32x8xf32>, vector<16x8xf32> -> vector<16x8xf32>
    %c520 = arith.constant 520 : index
    %c0_171 = arith.constant 0 : index
    %293 = vector.load %arg4[%c520, %c0_171] : memref<1960x128xf32, #tpu.memory_space<vmem>>, vector<1x8xf32>
    %294 = vector.broadcast %293 : vector<1x8xf32> to vector<16x8xf32>
    %295 = arith.addf %292, %294 : vector<16x8xf32>
    %cst_172 = arith.constant 0.353553385 : f32
    %296 = vector.broadcast %cst_172 : f32 to vector<16x8xf32>
    %297 = arith.mulf %295, %296 : vector<16x8xf32>
    %c456 = arith.constant 456 : index
    %c0_173 = arith.constant 0 : index
    %298 = vector.load %arg4[%c456, %c0_173] : memref<1960x128xf32, #tpu.memory_space<vmem>>, vector<32x8xf32>
    %cst_174 = arith.constant dense<0.000000e+00> : vector<16x8xf32>
    %299 = tpu.matmul %178, %298, %cst_174 {dimension_numbers = #tpu.dot_dimension_numbers<[1], [0], [0], [1], [0, 0, 1, 1], [], []>} : vector<16x32xf32>, vector<32x8xf32>, vector<16x8xf32> -> vector<16x8xf32>
    %c528 = arith.constant 528 : index
    %c0_175 = arith.constant 0 : index
    %300 = vector.load %arg4[%c528, %c0_175] : memref<1960x128xf32, #tpu.memory_space<vmem>>, vector<1x8xf32>
    %301 = vector.broadcast %300 : vector<1x8xf32> to vector<16x8xf32>
    %302 = arith.addf %299, %301 : vector<16x8xf32>
    %c488 = arith.constant 488 : index
    %c0_176 = arith.constant 0 : index
    %303 = vector.load %arg4[%c488, %c0_176] : memref<1960x128xf32, #tpu.memory_space<vmem>>, vector<32x8xf32>
    %cst_177 = arith.constant dense<0.000000e+00> : vector<16x8xf32>
    %304 = tpu.matmul %178, %303, %cst_177 {dimension_numbers = #tpu.dot_dimension_numbers<[1], [0], [0], [1], [0, 0, 1, 1], [], []>} : vector<16x32xf32>, vector<32x8xf32>, vector<16x8xf32> -> vector<16x8xf32>
    %c536 = arith.constant 536 : index
    %c0_178 = arith.constant 0 : index
    %305 = vector.load %arg4[%c536, %c0_178] : memref<1960x128xf32, #tpu.memory_space<vmem>>, vector<1x8xf32>
    %306 = vector.broadcast %305 : vector<1x8xf32> to vector<16x8xf32>
    %307 = arith.addf %304, %306 : vector<16x8xf32>
    %cst_179 = arith.constant dense<0.000000e+00> : vector<16x16xf32>
    %308 = tpu.matmul %297, %302, %cst_179 {dimension_numbers = #tpu.dot_dimension_numbers<[1], [1], [0], [0], [0, 0, 1, 0], [], []>} : vector<16x8xf32>, vector<16x8xf32>, vector<16x16xf32> -> vector<16x16xf32>
    %309 = arith.addf %308, %194 : vector<16x16xf32>
    %cst_180 = arith.constant dense<0xFF800000> : vector<16xf32>
    %310 = vector.multi_reduction <maximumf>, %309, %cst_180 [1] : vector<16x16xf32> to vector<16xf32>
    %311 = vector.shape_cast %310 : vector<16xf32> to vector<16x1xf32>
    %312 = vector.broadcast %311 : vector<16x1xf32> to vector<16x16xf32>
    %313 = arith.subf %309, %312 : vector<16x16xf32>
    %314 = math.exp %313 : vector<16x16xf32>
    %cst_181 = arith.constant dense<0.000000e+00> : vector<16xf32>
    %315 = vector.multi_reduction <add>, %314, %cst_181 [1] : vector<16x16xf32> to vector<16xf32>
    %316 = vector.shape_cast %315 : vector<16xf32> to vector<16x1xf32>
    %317 = vector.broadcast %316 : vector<16x1xf32> to vector<16x16xf32>
    %318 = arith.divf %314, %317 : vector<16x16xf32>
    %cst_182 = arith.constant dense<0.000000e+00> : vector<16x8xf32>
    %319 = tpu.matmul %318, %307, %cst_182 {dimension_numbers = #tpu.dot_dimension_numbers<[1], [0], [0], [1], [0, 0, 1, 1], [], []>} : vector<16x16xf32>, vector<16x8xf32>, vector<16x8xf32> -> vector<16x8xf32>
    %c544 = arith.constant 544 : index
    %c0_183 = arith.constant 0 : index
    %320 = vector.load %arg4[%c544, %c0_183] : memref<1960x128xf32, #tpu.memory_space<vmem>>, vector<8x32xf32>
    %cst_184 = arith.constant dense<0.000000e+00> : vector<16x32xf32>
    %321 = tpu.matmul %319, %320, %cst_184 {dimension_numbers = #tpu.dot_dimension_numbers<[1], [0], [0], [1], [0, 0, 1, 1], [], []>} : vector<16x8xf32>, vector<8x32xf32>, vector<16x32xf32> -> vector<16x32xf32>
    %322 = arith.addf %290, %321 : vector<16x32xf32>
    %c552 = arith.constant 552 : index
    %c0_185 = arith.constant 0 : index
    %323 = vector.load %arg4[%c552, %c0_185] : memref<1960x128xf32, #tpu.memory_space<vmem>>, vector<1x32xf32>
    %324 = vector.broadcast %323 : vector<1x32xf32> to vector<16x32xf32>
    %325 = arith.addf %322, %324 : vector<16x32xf32>
    %326 = arith.addf %178, %325 : vector<16x32xf32>
    %c560 = arith.constant 560 : index
    %c0_186 = arith.constant 0 : index
    %327 = vector.load %arg4[%c560, %c0_186] : memref<1960x128xf32, #tpu.memory_space<vmem>>, vector<1x32xf32>
    %c568 = arith.constant 568 : index
    %c0_187 = arith.constant 0 : index
    %328 = vector.load %arg4[%c568, %c0_187] : memref<1960x128xf32, #tpu.memory_space<vmem>>, vector<1x32xf32>
    %cst_188 = arith.constant dense<0.000000e+00> : vector<16xf32>
    %329 = vector.multi_reduction <add>, %326, %cst_188 [1] : vector<16x32xf32> to vector<16xf32>
    %330 = vector.shape_cast %329 : vector<16xf32> to vector<16x1xf32>
    %cst_189 = arith.constant 3.200000e+01 : f32
    %331 = vector.broadcast %cst_189 : f32 to vector<16x1xf32>
    %332 = arith.divf %330, %331 : vector<16x1xf32>
    %333 = vector.broadcast %332 : vector<16x1xf32> to vector<16x32xf32>
    %334 = arith.subf %326, %333 : vector<16x32xf32>
    %335 = arith.mulf %334, %334 : vector<16x32xf32>
    %cst_190 = arith.constant dense<0.000000e+00> : vector<16xf32>
    %336 = vector.multi_reduction <add>, %335, %cst_190 [1] : vector<16x32xf32> to vector<16xf32>
    %337 = vector.shape_cast %336 : vector<16xf32> to vector<16x1xf32>
    %cst_191 = arith.constant 3.200000e+01 : f32
    %338 = vector.broadcast %cst_191 : f32 to vector<16x1xf32>
    %339 = arith.divf %337, %338 : vector<16x1xf32>
    %340 = vector.broadcast %332 : vector<16x1xf32> to vector<16x32xf32>
    %341 = arith.subf %326, %340 : vector<16x32xf32>
    %cst_192 = arith.constant 9.99999974E-6 : f32
    %342 = vector.broadcast %cst_192 : f32 to vector<16x1xf32>
    %343 = arith.addf %339, %342 : vector<16x1xf32>
    %344 = math.rsqrt %343 : vector<16x1xf32>
    %345 = vector.broadcast %344 : vector<16x1xf32> to vector<16x32xf32>
    %346 = arith.mulf %341, %345 : vector<16x32xf32>
    %347 = vector.broadcast %327 : vector<1x32xf32> to vector<16x32xf32>
    %348 = arith.mulf %346, %347 : vector<16x32xf32>
    %349 = vector.broadcast %328 : vector<1x32xf32> to vector<16x32xf32>
    %350 = arith.addf %348, %349 : vector<16x32xf32>
    %c576 = arith.constant 576 : index
    %c0_193 = arith.constant 0 : index
    %351 = vector.load %arg4[%c576, %c0_193] : memref<1960x128xf32, #tpu.memory_space<vmem>>, vector<32x32xf32>
    %cst_194 = arith.constant dense<0.000000e+00> : vector<16x32xf32>
    %352 = tpu.matmul %350, %351, %cst_194 {dimension_numbers = #tpu.dot_dimension_numbers<[1], [0], [0], [1], [0, 0, 1, 1], [], []>} : vector<16x32xf32>, vector<32x32xf32>, vector<16x32xf32> -> vector<16x32xf32>
    %c608 = arith.constant 608 : index
    %c0_195 = arith.constant 0 : index
    %353 = vector.load %arg4[%c608, %c0_195] : memref<1960x128xf32, #tpu.memory_space<vmem>>, vector<1x32xf32>
    %354 = vector.broadcast %353 : vector<1x32xf32> to vector<16x32xf32>
    %355 = arith.addf %352, %354 : vector<16x32xf32>
    %cst_196 = arith.constant 0.000000e+00 : f32
    %356 = vector.broadcast %cst_196 : f32 to vector<16x32xf32>
    %357 = arith.maximumf %355, %356 : vector<16x32xf32>
    %c616 = arith.constant 616 : index
    %c0_197 = arith.constant 0 : index
    %358 = vector.load %arg4[%c616, %c0_197] : memref<1960x128xf32, #tpu.memory_space<vmem>>, vector<32x32xf32>
    %cst_198 = arith.constant dense<0.000000e+00> : vector<16x32xf32>
    %359 = tpu.matmul %357, %358, %cst_198 {dimension_numbers = #tpu.dot_dimension_numbers<[1], [0], [0], [1], [0, 0, 1, 1], [], []>} : vector<16x32xf32>, vector<32x32xf32>, vector<16x32xf32> -> vector<16x32xf32>
    %c648 = arith.constant 648 : index
    %c0_199 = arith.constant 0 : index
    %360 = vector.load %arg4[%c648, %c0_199] : memref<1960x128xf32, #tpu.memory_space<vmem>>, vector<1x32xf32>
    %361 = vector.broadcast %360 : vector<1x32xf32> to vector<16x32xf32>
    %362 = arith.addf %359, %361 : vector<16x32xf32>
    %363 = arith.addf %350, %362 : vector<16x32xf32>
    %c656 = arith.constant 656 : index
    %c0_200 = arith.constant 0 : index
    %364 = vector.load %arg4[%c656, %c0_200] : memref<1960x128xf32, #tpu.memory_space<vmem>>, vector<1x32xf32>
    %c664 = arith.constant 664 : index
    %c0_201 = arith.constant 0 : index
    %365 = vector.load %arg4[%c664, %c0_201] : memref<1960x128xf32, #tpu.memory_space<vmem>>, vector<1x32xf32>
    %cst_202 = arith.constant dense<0.000000e+00> : vector<16xf32>
    %366 = vector.multi_reduction <add>, %363, %cst_202 [1] : vector<16x32xf32> to vector<16xf32>
    %367 = vector.shape_cast %366 : vector<16xf32> to vector<16x1xf32>
    %cst_203 = arith.constant 3.200000e+01 : f32
    %368 = vector.broadcast %cst_203 : f32 to vector<16x1xf32>
    %369 = arith.divf %367, %368 : vector<16x1xf32>
    %370 = vector.broadcast %369 : vector<16x1xf32> to vector<16x32xf32>
    %371 = arith.subf %363, %370 : vector<16x32xf32>
    %372 = arith.mulf %371, %371 : vector<16x32xf32>
    %cst_204 = arith.constant dense<0.000000e+00> : vector<16xf32>
    %373 = vector.multi_reduction <add>, %372, %cst_204 [1] : vector<16x32xf32> to vector<16xf32>
    %374 = vector.shape_cast %373 : vector<16xf32> to vector<16x1xf32>
    %cst_205 = arith.constant 3.200000e+01 : f32
    %375 = vector.broadcast %cst_205 : f32 to vector<16x1xf32>
    %376 = arith.divf %374, %375 : vector<16x1xf32>
    %377 = vector.broadcast %369 : vector<16x1xf32> to vector<16x32xf32>
    %378 = arith.subf %363, %377 : vector<16x32xf32>
    %cst_206 = arith.constant 9.99999974E-6 : f32
    %379 = vector.broadcast %cst_206 : f32 to vector<16x1xf32>
    %380 = arith.addf %376, %379 : vector<16x1xf32>
    %381 = math.rsqrt %380 : vector<16x1xf32>
    %382 = vector.broadcast %381 : vector<16x1xf32> to vector<16x32xf32>
    %383 = arith.mulf %378, %382 : vector<16x32xf32>
    %384 = vector.broadcast %364 : vector<1x32xf32> to vector<16x32xf32>
    %385 = arith.mulf %383, %384 : vector<16x32xf32>
    %386 = vector.broadcast %365 : vector<1x32xf32> to vector<16x32xf32>
    %387 = arith.addf %385, %386 : vector<16x32xf32>
    %c672 = arith.constant 672 : index
    %c0_207 = arith.constant 0 : index
    %388 = vector.load %arg4[%c672, %c0_207] : memref<1960x128xf32, #tpu.memory_space<vmem>>, vector<32x8xf32>
    %cst_208 = arith.constant dense<0.000000e+00> : vector<16x8xf32>
    %389 = tpu.matmul %387, %388, %cst_208 {dimension_numbers = #tpu.dot_dimension_numbers<[1], [0], [0], [1], [0, 0, 1, 1], [], []>} : vector<16x32xf32>, vector<32x8xf32>, vector<16x8xf32> -> vector<16x8xf32>
    %c768 = arith.constant 768 : index
    %c0_209 = arith.constant 0 : index
    %390 = vector.load %arg4[%c768, %c0_209] : memref<1960x128xf32, #tpu.memory_space<vmem>>, vector<1x8xf32>
    %391 = vector.broadcast %390 : vector<1x8xf32> to vector<16x8xf32>
    %392 = arith.addf %389, %391 : vector<16x8xf32>
    %cst_210 = arith.constant 0.353553385 : f32
    %393 = vector.broadcast %cst_210 : f32 to vector<16x8xf32>
    %394 = arith.mulf %392, %393 : vector<16x8xf32>
    %c704 = arith.constant 704 : index
    %c0_211 = arith.constant 0 : index
    %395 = vector.load %arg4[%c704, %c0_211] : memref<1960x128xf32, #tpu.memory_space<vmem>>, vector<32x8xf32>
    %cst_212 = arith.constant dense<0.000000e+00> : vector<16x8xf32>
    %396 = tpu.matmul %387, %395, %cst_212 {dimension_numbers = #tpu.dot_dimension_numbers<[1], [0], [0], [1], [0, 0, 1, 1], [], []>} : vector<16x32xf32>, vector<32x8xf32>, vector<16x8xf32> -> vector<16x8xf32>
    %c776 = arith.constant 776 : index
    %c0_213 = arith.constant 0 : index
    %397 = vector.load %arg4[%c776, %c0_213] : memref<1960x128xf32, #tpu.memory_space<vmem>>, vector<1x8xf32>
    %398 = vector.broadcast %397 : vector<1x8xf32> to vector<16x8xf32>
    %399 = arith.addf %396, %398 : vector<16x8xf32>
    %c736 = arith.constant 736 : index
    %c0_214 = arith.constant 0 : index
    %400 = vector.load %arg4[%c736, %c0_214] : memref<1960x128xf32, #tpu.memory_space<vmem>>, vector<32x8xf32>
    %cst_215 = arith.constant dense<0.000000e+00> : vector<16x8xf32>
    %401 = tpu.matmul %387, %400, %cst_215 {dimension_numbers = #tpu.dot_dimension_numbers<[1], [0], [0], [1], [0, 0, 1, 1], [], []>} : vector<16x32xf32>, vector<32x8xf32>, vector<16x8xf32> -> vector<16x8xf32>
    %c784 = arith.constant 784 : index
    %c0_216 = arith.constant 0 : index
    %402 = vector.load %arg4[%c784, %c0_216] : memref<1960x128xf32, #tpu.memory_space<vmem>>, vector<1x8xf32>
    %403 = vector.broadcast %402 : vector<1x8xf32> to vector<16x8xf32>
    %404 = arith.addf %401, %403 : vector<16x8xf32>
    %cst_217 = arith.constant dense<0.000000e+00> : vector<16x16xf32>
    %405 = tpu.matmul %394, %399, %cst_217 {dimension_numbers = #tpu.dot_dimension_numbers<[1], [1], [0], [0], [0, 0, 1, 0], [], []>} : vector<16x8xf32>, vector<16x8xf32>, vector<16x16xf32> -> vector<16x16xf32>
    %406 = arith.addf %405, %194 : vector<16x16xf32>
    %cst_218 = arith.constant dense<0xFF800000> : vector<16xf32>
    %407 = vector.multi_reduction <maximumf>, %406, %cst_218 [1] : vector<16x16xf32> to vector<16xf32>
    %408 = vector.shape_cast %407 : vector<16xf32> to vector<16x1xf32>
    %409 = vector.broadcast %408 : vector<16x1xf32> to vector<16x16xf32>
    %410 = arith.subf %406, %409 : vector<16x16xf32>
    %411 = math.exp %410 : vector<16x16xf32>
    %cst_219 = arith.constant dense<0.000000e+00> : vector<16xf32>
    %412 = vector.multi_reduction <add>, %411, %cst_219 [1] : vector<16x16xf32> to vector<16xf32>
    %413 = vector.shape_cast %412 : vector<16xf32> to vector<16x1xf32>
    %414 = vector.broadcast %413 : vector<16x1xf32> to vector<16x16xf32>
    %415 = arith.divf %411, %414 : vector<16x16xf32>
    %cst_220 = arith.constant dense<0.000000e+00> : vector<16x8xf32>
    %416 = tpu.matmul %415, %404, %cst_220 {dimension_numbers = #tpu.dot_dimension_numbers<[1], [0], [0], [1], [0, 0, 1, 1], [], []>} : vector<16x16xf32>, vector<16x8xf32>, vector<16x8xf32> -> vector<16x8xf32>
    %c792 = arith.constant 792 : index
    %c0_221 = arith.constant 0 : index
    %417 = vector.load %arg4[%c792, %c0_221] : memref<1960x128xf32, #tpu.memory_space<vmem>>, vector<8x32xf32>
    %cst_222 = arith.constant dense<0.000000e+00> : vector<16x32xf32>
    %418 = tpu.matmul %416, %417, %cst_222 {dimension_numbers = #tpu.dot_dimension_numbers<[1], [0], [0], [1], [0, 0, 1, 1], [], []>} : vector<16x8xf32>, vector<8x32xf32>, vector<16x32xf32> -> vector<16x32xf32>
    %c800 = arith.constant 800 : index
    %c0_223 = arith.constant 0 : index
    %419 = vector.load %arg4[%c800, %c0_223] : memref<1960x128xf32, #tpu.memory_space<vmem>>, vector<32x8xf32>
    %cst_224 = arith.constant dense<0.000000e+00> : vector<16x8xf32>
    %420 = tpu.matmul %387, %419, %cst_224 {dimension_numbers = #tpu.dot_dimension_numbers<[1], [0], [0], [1], [0, 0, 1, 1], [], []>} : vector<16x32xf32>, vector<32x8xf32>, vector<16x8xf32> -> vector<16x8xf32>
    %c896 = arith.constant 896 : index
    %c0_225 = arith.constant 0 : index
    %421 = vector.load %arg4[%c896, %c0_225] : memref<1960x128xf32, #tpu.memory_space<vmem>>, vector<1x8xf32>
    %422 = vector.broadcast %421 : vector<1x8xf32> to vector<16x8xf32>
    %423 = arith.addf %420, %422 : vector<16x8xf32>
    %cst_226 = arith.constant 0.353553385 : f32
    %424 = vector.broadcast %cst_226 : f32 to vector<16x8xf32>
    %425 = arith.mulf %423, %424 : vector<16x8xf32>
    %c832 = arith.constant 832 : index
    %c0_227 = arith.constant 0 : index
    %426 = vector.load %arg4[%c832, %c0_227] : memref<1960x128xf32, #tpu.memory_space<vmem>>, vector<32x8xf32>
    %cst_228 = arith.constant dense<0.000000e+00> : vector<16x8xf32>
    %427 = tpu.matmul %387, %426, %cst_228 {dimension_numbers = #tpu.dot_dimension_numbers<[1], [0], [0], [1], [0, 0, 1, 1], [], []>} : vector<16x32xf32>, vector<32x8xf32>, vector<16x8xf32> -> vector<16x8xf32>
    %c904 = arith.constant 904 : index
    %c0_229 = arith.constant 0 : index
    %428 = vector.load %arg4[%c904, %c0_229] : memref<1960x128xf32, #tpu.memory_space<vmem>>, vector<1x8xf32>
    %429 = vector.broadcast %428 : vector<1x8xf32> to vector<16x8xf32>
    %430 = arith.addf %427, %429 : vector<16x8xf32>
    %c864 = arith.constant 864 : index
    %c0_230 = arith.constant 0 : index
    %431 = vector.load %arg4[%c864, %c0_230] : memref<1960x128xf32, #tpu.memory_space<vmem>>, vector<32x8xf32>
    %cst_231 = arith.constant dense<0.000000e+00> : vector<16x8xf32>
    %432 = tpu.matmul %387, %431, %cst_231 {dimension_numbers = #tpu.dot_dimension_numbers<[1], [0], [0], [1], [0, 0, 1, 1], [], []>} : vector<16x32xf32>, vector<32x8xf32>, vector<16x8xf32> -> vector<16x8xf32>
    %c912 = arith.constant 912 : index
    %c0_232 = arith.constant 0 : index
    %433 = vector.load %arg4[%c912, %c0_232] : memref<1960x128xf32, #tpu.memory_space<vmem>>, vector<1x8xf32>
    %434 = vector.broadcast %433 : vector<1x8xf32> to vector<16x8xf32>
    %435 = arith.addf %432, %434 : vector<16x8xf32>
    %cst_233 = arith.constant dense<0.000000e+00> : vector<16x16xf32>
    %436 = tpu.matmul %425, %430, %cst_233 {dimension_numbers = #tpu.dot_dimension_numbers<[1], [1], [0], [0], [0, 0, 1, 0], [], []>} : vector<16x8xf32>, vector<16x8xf32>, vector<16x16xf32> -> vector<16x16xf32>
    %437 = arith.addf %436, %194 : vector<16x16xf32>
    %cst_234 = arith.constant dense<0xFF800000> : vector<16xf32>
    %438 = vector.multi_reduction <maximumf>, %437, %cst_234 [1] : vector<16x16xf32> to vector<16xf32>
    %439 = vector.shape_cast %438 : vector<16xf32> to vector<16x1xf32>
    %440 = vector.broadcast %439 : vector<16x1xf32> to vector<16x16xf32>
    %441 = arith.subf %437, %440 : vector<16x16xf32>
    %442 = math.exp %441 : vector<16x16xf32>
    %cst_235 = arith.constant dense<0.000000e+00> : vector<16xf32>
    %443 = vector.multi_reduction <add>, %442, %cst_235 [1] : vector<16x16xf32> to vector<16xf32>
    %444 = vector.shape_cast %443 : vector<16xf32> to vector<16x1xf32>
    %445 = vector.broadcast %444 : vector<16x1xf32> to vector<16x16xf32>
    %446 = arith.divf %442, %445 : vector<16x16xf32>
    %cst_236 = arith.constant dense<0.000000e+00> : vector<16x8xf32>
    %447 = tpu.matmul %446, %435, %cst_236 {dimension_numbers = #tpu.dot_dimension_numbers<[1], [0], [0], [1], [0, 0, 1, 1], [], []>} : vector<16x16xf32>, vector<16x8xf32>, vector<16x8xf32> -> vector<16x8xf32>
    %c920 = arith.constant 920 : index
    %c0_237 = arith.constant 0 : index
    %448 = vector.load %arg4[%c920, %c0_237] : memref<1960x128xf32, #tpu.memory_space<vmem>>, vector<8x32xf32>
    %cst_238 = arith.constant dense<0.000000e+00> : vector<16x32xf32>
    %449 = tpu.matmul %447, %448, %cst_238 {dimension_numbers = #tpu.dot_dimension_numbers<[1], [0], [0], [1], [0, 0, 1, 1], [], []>} : vector<16x8xf32>, vector<8x32xf32>, vector<16x32xf32> -> vector<16x32xf32>
    %450 = arith.addf %418, %449 : vector<16x32xf32>
    %c928 = arith.constant 928 : index
    %c0_239 = arith.constant 0 : index
    %451 = vector.load %arg4[%c928, %c0_239] : memref<1960x128xf32, #tpu.memory_space<vmem>>, vector<32x8xf32>
    %cst_240 = arith.constant dense<0.000000e+00> : vector<16x8xf32>
    %452 = tpu.matmul %387, %451, %cst_240 {dimension_numbers = #tpu.dot_dimension_numbers<[1], [0], [0], [1], [0, 0, 1, 1], [], []>} : vector<16x32xf32>, vector<32x8xf32>, vector<16x8xf32> -> vector<16x8xf32>
    %c1024 = arith.constant 1024 : index
    %c0_241 = arith.constant 0 : index
    %453 = vector.load %arg4[%c1024, %c0_241] : memref<1960x128xf32, #tpu.memory_space<vmem>>, vector<1x8xf32>
    %454 = vector.broadcast %453 : vector<1x8xf32> to vector<16x8xf32>
    %455 = arith.addf %452, %454 : vector<16x8xf32>
    %cst_242 = arith.constant 0.353553385 : f32
    %456 = vector.broadcast %cst_242 : f32 to vector<16x8xf32>
    %457 = arith.mulf %455, %456 : vector<16x8xf32>
    %c960 = arith.constant 960 : index
    %c0_243 = arith.constant 0 : index
    %458 = vector.load %arg4[%c960, %c0_243] : memref<1960x128xf32, #tpu.memory_space<vmem>>, vector<32x8xf32>
    %cst_244 = arith.constant dense<0.000000e+00> : vector<16x8xf32>
    %459 = tpu.matmul %387, %458, %cst_244 {dimension_numbers = #tpu.dot_dimension_numbers<[1], [0], [0], [1], [0, 0, 1, 1], [], []>} : vector<16x32xf32>, vector<32x8xf32>, vector<16x8xf32> -> vector<16x8xf32>
    %c1032 = arith.constant 1032 : index
    %c0_245 = arith.constant 0 : index
    %460 = vector.load %arg4[%c1032, %c0_245] : memref<1960x128xf32, #tpu.memory_space<vmem>>, vector<1x8xf32>
    %461 = vector.broadcast %460 : vector<1x8xf32> to vector<16x8xf32>
    %462 = arith.addf %459, %461 : vector<16x8xf32>
    %c992 = arith.constant 992 : index
    %c0_246 = arith.constant 0 : index
    %463 = vector.load %arg4[%c992, %c0_246] : memref<1960x128xf32, #tpu.memory_space<vmem>>, vector<32x8xf32>
    %cst_247 = arith.constant dense<0.000000e+00> : vector<16x8xf32>
    %464 = tpu.matmul %387, %463, %cst_247 {dimension_numbers = #tpu.dot_dimension_numbers<[1], [0], [0], [1], [0, 0, 1, 1], [], []>} : vector<16x32xf32>, vector<32x8xf32>, vector<16x8xf32> -> vector<16x8xf32>
    %c1040 = arith.constant 1040 : index
    %c0_248 = arith.constant 0 : index
    %465 = vector.load %arg4[%c1040, %c0_248] : memref<1960x128xf32, #tpu.memory_space<vmem>>, vector<1x8xf32>
    %466 = vector.broadcast %465 : vector<1x8xf32> to vector<16x8xf32>
    %467 = arith.addf %464, %466 : vector<16x8xf32>
    %cst_249 = arith.constant dense<0.000000e+00> : vector<16x16xf32>
    %468 = tpu.matmul %457, %462, %cst_249 {dimension_numbers = #tpu.dot_dimension_numbers<[1], [1], [0], [0], [0, 0, 1, 0], [], []>} : vector<16x8xf32>, vector<16x8xf32>, vector<16x16xf32> -> vector<16x16xf32>
    %469 = arith.addf %468, %194 : vector<16x16xf32>
    %cst_250 = arith.constant dense<0xFF800000> : vector<16xf32>
    %470 = vector.multi_reduction <maximumf>, %469, %cst_250 [1] : vector<16x16xf32> to vector<16xf32>
    %471 = vector.shape_cast %470 : vector<16xf32> to vector<16x1xf32>
    %472 = vector.broadcast %471 : vector<16x1xf32> to vector<16x16xf32>
    %473 = arith.subf %469, %472 : vector<16x16xf32>
    %474 = math.exp %473 : vector<16x16xf32>
    %cst_251 = arith.constant dense<0.000000e+00> : vector<16xf32>
    %475 = vector.multi_reduction <add>, %474, %cst_251 [1] : vector<16x16xf32> to vector<16xf32>
    %476 = vector.shape_cast %475 : vector<16xf32> to vector<16x1xf32>
    %477 = vector.broadcast %476 : vector<16x1xf32> to vector<16x16xf32>
    %478 = arith.divf %474, %477 : vector<16x16xf32>
    %cst_252 = arith.constant dense<0.000000e+00> : vector<16x8xf32>
    %479 = tpu.matmul %478, %467, %cst_252 {dimension_numbers = #tpu.dot_dimension_numbers<[1], [0], [0], [1], [0, 0, 1, 1], [], []>} : vector<16x16xf32>, vector<16x8xf32>, vector<16x8xf32> -> vector<16x8xf32>
    %c1048 = arith.constant 1048 : index
    %c0_253 = arith.constant 0 : index
    %480 = vector.load %arg4[%c1048, %c0_253] : memref<1960x128xf32, #tpu.memory_space<vmem>>, vector<8x32xf32>
    %cst_254 = arith.constant dense<0.000000e+00> : vector<16x32xf32>
    %481 = tpu.matmul %479, %480, %cst_254 {dimension_numbers = #tpu.dot_dimension_numbers<[1], [0], [0], [1], [0, 0, 1, 1], [], []>} : vector<16x8xf32>, vector<8x32xf32>, vector<16x32xf32> -> vector<16x32xf32>
    %482 = arith.addf %450, %481 : vector<16x32xf32>
    %c1056 = arith.constant 1056 : index
    %c0_255 = arith.constant 0 : index
    %483 = vector.load %arg4[%c1056, %c0_255] : memref<1960x128xf32, #tpu.memory_space<vmem>>, vector<32x8xf32>
    %cst_256 = arith.constant dense<0.000000e+00> : vector<16x8xf32>
    %484 = tpu.matmul %387, %483, %cst_256 {dimension_numbers = #tpu.dot_dimension_numbers<[1], [0], [0], [1], [0, 0, 1, 1], [], []>} : vector<16x32xf32>, vector<32x8xf32>, vector<16x8xf32> -> vector<16x8xf32>
    %c1152 = arith.constant 1152 : index
    %c0_257 = arith.constant 0 : index
    %485 = vector.load %arg4[%c1152, %c0_257] : memref<1960x128xf32, #tpu.memory_space<vmem>>, vector<1x8xf32>
    %486 = vector.broadcast %485 : vector<1x8xf32> to vector<16x8xf32>
    %487 = arith.addf %484, %486 : vector<16x8xf32>
    %cst_258 = arith.constant 0.353553385 : f32
    %488 = vector.broadcast %cst_258 : f32 to vector<16x8xf32>
    %489 = arith.mulf %487, %488 : vector<16x8xf32>
    %c1088 = arith.constant 1088 : index
    %c0_259 = arith.constant 0 : index
    %490 = vector.load %arg4[%c1088, %c0_259] : memref<1960x128xf32, #tpu.memory_space<vmem>>, vector<32x8xf32>
    %cst_260 = arith.constant dense<0.000000e+00> : vector<16x8xf32>
    %491 = tpu.matmul %387, %490, %cst_260 {dimension_numbers = #tpu.dot_dimension_numbers<[1], [0], [0], [1], [0, 0, 1, 1], [], []>} : vector<16x32xf32>, vector<32x8xf32>, vector<16x8xf32> -> vector<16x8xf32>
    %c1160 = arith.constant 1160 : index
    %c0_261 = arith.constant 0 : index
    %492 = vector.load %arg4[%c1160, %c0_261] : memref<1960x128xf32, #tpu.memory_space<vmem>>, vector<1x8xf32>
    %493 = vector.broadcast %492 : vector<1x8xf32> to vector<16x8xf32>
    %494 = arith.addf %491, %493 : vector<16x8xf32>
    %c1120 = arith.constant 1120 : index
    %c0_262 = arith.constant 0 : index
    %495 = vector.load %arg4[%c1120, %c0_262] : memref<1960x128xf32, #tpu.memory_space<vmem>>, vector<32x8xf32>
    %cst_263 = arith.constant dense<0.000000e+00> : vector<16x8xf32>
    %496 = tpu.matmul %387, %495, %cst_263 {dimension_numbers = #tpu.dot_dimension_numbers<[1], [0], [0], [1], [0, 0, 1, 1], [], []>} : vector<16x32xf32>, vector<32x8xf32>, vector<16x8xf32> -> vector<16x8xf32>
    %c1168 = arith.constant 1168 : index
    %c0_264 = arith.constant 0 : index
    %497 = vector.load %arg4[%c1168, %c0_264] : memref<1960x128xf32, #tpu.memory_space<vmem>>, vector<1x8xf32>
    %498 = vector.broadcast %497 : vector<1x8xf32> to vector<16x8xf32>
    %499 = arith.addf %496, %498 : vector<16x8xf32>
    %cst_265 = arith.constant dense<0.000000e+00> : vector<16x16xf32>
    %500 = tpu.matmul %489, %494, %cst_265 {dimension_numbers = #tpu.dot_dimension_numbers<[1], [1], [0], [0], [0, 0, 1, 0], [], []>} : vector<16x8xf32>, vector<16x8xf32>, vector<16x16xf32> -> vector<16x16xf32>
    %501 = arith.addf %500, %194 : vector<16x16xf32>
    %cst_266 = arith.constant dense<0xFF800000> : vector<16xf32>
    %502 = vector.multi_reduction <maximumf>, %501, %cst_266 [1] : vector<16x16xf32> to vector<16xf32>
    %503 = vector.shape_cast %502 : vector<16xf32> to vector<16x1xf32>
    %504 = vector.broadcast %503 : vector<16x1xf32> to vector<16x16xf32>
    %505 = arith.subf %501, %504 : vector<16x16xf32>
    %506 = math.exp %505 : vector<16x16xf32>
    %cst_267 = arith.constant dense<0.000000e+00> : vector<16xf32>
    %507 = vector.multi_reduction <add>, %506, %cst_267 [1] : vector<16x16xf32> to vector<16xf32>
    %508 = vector.shape_cast %507 : vector<16xf32> to vector<16x1xf32>
    %509 = vector.broadcast %508 : vector<16x1xf32> to vector<16x16xf32>
    %510 = arith.divf %506, %509 : vector<16x16xf32>
    %cst_268 = arith.constant dense<0.000000e+00> : vector<16x8xf32>
    %511 = tpu.matmul %510, %499, %cst_268 {dimension_numbers = #tpu.dot_dimension_numbers<[1], [0], [0], [1], [0, 0, 1, 1], [], []>} : vector<16x16xf32>, vector<16x8xf32>, vector<16x8xf32> -> vector<16x8xf32>
    %c1176 = arith.constant 1176 : index
    %c0_269 = arith.constant 0 : index
    %512 = vector.load %arg4[%c1176, %c0_269] : memref<1960x128xf32, #tpu.memory_space<vmem>>, vector<8x32xf32>
    %cst_270 = arith.constant dense<0.000000e+00> : vector<16x32xf32>
    %513 = tpu.matmul %511, %512, %cst_270 {dimension_numbers = #tpu.dot_dimension_numbers<[1], [0], [0], [1], [0, 0, 1, 1], [], []>} : vector<16x8xf32>, vector<8x32xf32>, vector<16x32xf32> -> vector<16x32xf32>
    %514 = arith.addf %482, %513 : vector<16x32xf32>
    %c1184 = arith.constant 1184 : index
    %c0_271 = arith.constant 0 : index
    %515 = vector.load %arg4[%c1184, %c0_271] : memref<1960x128xf32, #tpu.memory_space<vmem>>, vector<1x32xf32>
    %516 = vector.broadcast %515 : vector<1x32xf32> to vector<16x32xf32>
    %517 = arith.addf %514, %516 : vector<16x32xf32>
    %518 = arith.addf %387, %517 : vector<16x32xf32>
    %c1192 = arith.constant 1192 : index
    %c0_272 = arith.constant 0 : index
    %519 = vector.load %arg4[%c1192, %c0_272] : memref<1960x128xf32, #tpu.memory_space<vmem>>, vector<1x32xf32>
    %c1200 = arith.constant 1200 : index
    %c0_273 = arith.constant 0 : index
    %520 = vector.load %arg4[%c1200, %c0_273] : memref<1960x128xf32, #tpu.memory_space<vmem>>, vector<1x32xf32>
    %cst_274 = arith.constant dense<0.000000e+00> : vector<16xf32>
    %521 = vector.multi_reduction <add>, %518, %cst_274 [1] : vector<16x32xf32> to vector<16xf32>
    %522 = vector.shape_cast %521 : vector<16xf32> to vector<16x1xf32>
    %cst_275 = arith.constant 3.200000e+01 : f32
    %523 = vector.broadcast %cst_275 : f32 to vector<16x1xf32>
    %524 = arith.divf %522, %523 : vector<16x1xf32>
    %525 = vector.broadcast %524 : vector<16x1xf32> to vector<16x32xf32>
    %526 = arith.subf %518, %525 : vector<16x32xf32>
    %527 = arith.mulf %526, %526 : vector<16x32xf32>
    %cst_276 = arith.constant dense<0.000000e+00> : vector<16xf32>
    %528 = vector.multi_reduction <add>, %527, %cst_276 [1] : vector<16x32xf32> to vector<16xf32>
    %529 = vector.shape_cast %528 : vector<16xf32> to vector<16x1xf32>
    %cst_277 = arith.constant 3.200000e+01 : f32
    %530 = vector.broadcast %cst_277 : f32 to vector<16x1xf32>
    %531 = arith.divf %529, %530 : vector<16x1xf32>
    %532 = vector.broadcast %524 : vector<16x1xf32> to vector<16x32xf32>
    %533 = arith.subf %518, %532 : vector<16x32xf32>
    %cst_278 = arith.constant 9.99999974E-6 : f32
    %534 = vector.broadcast %cst_278 : f32 to vector<16x1xf32>
    %535 = arith.addf %531, %534 : vector<16x1xf32>
    %536 = math.rsqrt %535 : vector<16x1xf32>
    %537 = vector.broadcast %536 : vector<16x1xf32> to vector<16x32xf32>
    %538 = arith.mulf %533, %537 : vector<16x32xf32>
    %539 = vector.broadcast %519 : vector<1x32xf32> to vector<16x32xf32>
    %540 = arith.mulf %538, %539 : vector<16x32xf32>
    %541 = vector.broadcast %520 : vector<1x32xf32> to vector<16x32xf32>
    %542 = arith.addf %540, %541 : vector<16x32xf32>
    %c1208 = arith.constant 1208 : index
    %c0_279 = arith.constant 0 : index
    %543 = vector.load %arg4[%c1208, %c0_279] : memref<1960x128xf32, #tpu.memory_space<vmem>>, vector<32x32xf32>
    %cst_280 = arith.constant dense<0.000000e+00> : vector<16x32xf32>
    %544 = tpu.matmul %542, %543, %cst_280 {dimension_numbers = #tpu.dot_dimension_numbers<[1], [0], [0], [1], [0, 0, 1, 1], [], []>} : vector<16x32xf32>, vector<32x32xf32>, vector<16x32xf32> -> vector<16x32xf32>
    %c1240 = arith.constant 1240 : index
    %c0_281 = arith.constant 0 : index
    %545 = vector.load %arg4[%c1240, %c0_281] : memref<1960x128xf32, #tpu.memory_space<vmem>>, vector<1x32xf32>
    %546 = vector.broadcast %545 : vector<1x32xf32> to vector<16x32xf32>
    %547 = arith.addf %544, %546 : vector<16x32xf32>
    %cst_282 = arith.constant 0.000000e+00 : f32
    %548 = vector.broadcast %cst_282 : f32 to vector<16x32xf32>
    %549 = arith.maximumf %547, %548 : vector<16x32xf32>
    %c1248 = arith.constant 1248 : index
    %c0_283 = arith.constant 0 : index
    %550 = vector.load %arg4[%c1248, %c0_283] : memref<1960x128xf32, #tpu.memory_space<vmem>>, vector<32x32xf32>
    %cst_284 = arith.constant dense<0.000000e+00> : vector<16x32xf32>
    %551 = tpu.matmul %549, %550, %cst_284 {dimension_numbers = #tpu.dot_dimension_numbers<[1], [0], [0], [1], [0, 0, 1, 1], [], []>} : vector<16x32xf32>, vector<32x32xf32>, vector<16x32xf32> -> vector<16x32xf32>
    %c1280 = arith.constant 1280 : index
    %c0_285 = arith.constant 0 : index
    %552 = vector.load %arg4[%c1280, %c0_285] : memref<1960x128xf32, #tpu.memory_space<vmem>>, vector<1x32xf32>
    %553 = vector.broadcast %552 : vector<1x32xf32> to vector<16x32xf32>
    %554 = arith.addf %551, %553 : vector<16x32xf32>
    %555 = arith.addf %542, %554 : vector<16x32xf32>
    %c1288 = arith.constant 1288 : index
    %c0_286 = arith.constant 0 : index
    %556 = vector.load %arg4[%c1288, %c0_286] : memref<1960x128xf32, #tpu.memory_space<vmem>>, vector<1x32xf32>
    %c1296 = arith.constant 1296 : index
    %c0_287 = arith.constant 0 : index
    %557 = vector.load %arg4[%c1296, %c0_287] : memref<1960x128xf32, #tpu.memory_space<vmem>>, vector<1x32xf32>
    %cst_288 = arith.constant dense<0.000000e+00> : vector<16xf32>
    %558 = vector.multi_reduction <add>, %555, %cst_288 [1] : vector<16x32xf32> to vector<16xf32>
    %559 = vector.shape_cast %558 : vector<16xf32> to vector<16x1xf32>
    %cst_289 = arith.constant 3.200000e+01 : f32
    %560 = vector.broadcast %cst_289 : f32 to vector<16x1xf32>
    %561 = arith.divf %559, %560 : vector<16x1xf32>
    %562 = vector.broadcast %561 : vector<16x1xf32> to vector<16x32xf32>
    %563 = arith.subf %555, %562 : vector<16x32xf32>
    %564 = arith.mulf %563, %563 : vector<16x32xf32>
    %cst_290 = arith.constant dense<0.000000e+00> : vector<16xf32>
    %565 = vector.multi_reduction <add>, %564, %cst_290 [1] : vector<16x32xf32> to vector<16xf32>
    %566 = vector.shape_cast %565 : vector<16xf32> to vector<16x1xf32>
    %cst_291 = arith.constant 3.200000e+01 : f32
    %567 = vector.broadcast %cst_291 : f32 to vector<16x1xf32>
    %568 = arith.divf %566, %567 : vector<16x1xf32>
    %569 = vector.broadcast %561 : vector<16x1xf32> to vector<16x32xf32>
    %570 = arith.subf %555, %569 : vector<16x32xf32>
    %cst_292 = arith.constant 9.99999974E-6 : f32
    %571 = vector.broadcast %cst_292 : f32 to vector<16x1xf32>
    %572 = arith.addf %568, %571 : vector<16x1xf32>
    %573 = math.rsqrt %572 : vector<16x1xf32>
    %574 = vector.broadcast %573 : vector<16x1xf32> to vector<16x32xf32>
    %575 = arith.mulf %570, %574 : vector<16x32xf32>
    %576 = vector.broadcast %556 : vector<1x32xf32> to vector<16x32xf32>
    %577 = arith.mulf %575, %576 : vector<16x32xf32>
    %578 = vector.broadcast %557 : vector<1x32xf32> to vector<16x32xf32>
    %579 = arith.addf %577, %578 : vector<16x32xf32>
    %c1304 = arith.constant 1304 : index
    %c0_293 = arith.constant 0 : index
    %580 = vector.load %arg4[%c1304, %c0_293] : memref<1960x128xf32, #tpu.memory_space<vmem>>, vector<1x32xf32>
    %581 = vector.shape_cast %580 : vector<1x32xf32> to vector<1x32xf32>
    %582 = vector.broadcast %581 : vector<1x32xf32> to vector<2x32xf32>
    %c1312 = arith.constant 1312 : index
    %c0_294 = arith.constant 0 : index
    %583 = vector.load %arg4[%c1312, %c0_294] : memref<1960x128xf32, #tpu.memory_space<vmem>>, vector<32x8xf32>
    %cst_295 = arith.constant dense<0.000000e+00> : vector<2x8xf32>
    %584 = tpu.matmul %582, %583, %cst_295 {dimension_numbers = #tpu.dot_dimension_numbers<[1], [0], [0], [1], [0, 0, 1, 1], [], []>} : vector<2x32xf32>, vector<32x8xf32>, vector<2x8xf32> -> vector<2x8xf32>
    %c1408 = arith.constant 1408 : index
    %c0_296 = arith.constant 0 : index
    %585 = vector.load %arg4[%c1408, %c0_296] : memref<1960x128xf32, #tpu.memory_space<vmem>>, vector<1x8xf32>
    %586 = vector.broadcast %585 : vector<1x8xf32> to vector<2x8xf32>
    %587 = arith.addf %584, %586 : vector<2x8xf32>
    %cst_297 = arith.constant 0.353553385 : f32
    %588 = vector.broadcast %cst_297 : f32 to vector<2x8xf32>
    %589 = arith.mulf %587, %588 : vector<2x8xf32>
    %c1344 = arith.constant 1344 : index
    %c0_298 = arith.constant 0 : index
    %590 = vector.load %arg4[%c1344, %c0_298] : memref<1960x128xf32, #tpu.memory_space<vmem>>, vector<32x8xf32>
    %cst_299 = arith.constant dense<0.000000e+00> : vector<16x8xf32>
    %591 = tpu.matmul %579, %590, %cst_299 {dimension_numbers = #tpu.dot_dimension_numbers<[1], [0], [0], [1], [0, 0, 1, 1], [], []>} : vector<16x32xf32>, vector<32x8xf32>, vector<16x8xf32> -> vector<16x8xf32>
    %c1416 = arith.constant 1416 : index
    %c0_300 = arith.constant 0 : index
    %592 = vector.load %arg4[%c1416, %c0_300] : memref<1960x128xf32, #tpu.memory_space<vmem>>, vector<1x8xf32>
    %593 = vector.broadcast %592 : vector<1x8xf32> to vector<16x8xf32>
    %594 = arith.addf %591, %593 : vector<16x8xf32>
    %c1376 = arith.constant 1376 : index
    %c0_301 = arith.constant 0 : index
    %595 = vector.load %arg4[%c1376, %c0_301] : memref<1960x128xf32, #tpu.memory_space<vmem>>, vector<32x8xf32>
    %cst_302 = arith.constant dense<0.000000e+00> : vector<16x8xf32>
    %596 = tpu.matmul %579, %595, %cst_302 {dimension_numbers = #tpu.dot_dimension_numbers<[1], [0], [0], [1], [0, 0, 1, 1], [], []>} : vector<16x32xf32>, vector<32x8xf32>, vector<16x8xf32> -> vector<16x8xf32>
    %c1424 = arith.constant 1424 : index
    %c0_303 = arith.constant 0 : index
    %597 = vector.load %arg4[%c1424, %c0_303] : memref<1960x128xf32, #tpu.memory_space<vmem>>, vector<1x8xf32>
    %598 = vector.broadcast %597 : vector<1x8xf32> to vector<16x8xf32>
    %599 = arith.addf %596, %598 : vector<16x8xf32>
    %cst_304 = arith.constant dense<0.000000e+00> : vector<2x16xf32>
    %600 = tpu.matmul %589, %594, %cst_304 {dimension_numbers = #tpu.dot_dimension_numbers<[1], [1], [0], [0], [0, 0, 1, 0], [], []>} : vector<2x8xf32>, vector<16x8xf32>, vector<2x16xf32> -> vector<2x16xf32>
    %601 = arith.addf %600, %195 : vector<2x16xf32>
    %cst_305 = arith.constant dense<0xFF800000> : vector<2xf32>
    %602 = vector.multi_reduction <maximumf>, %601, %cst_305 [1] : vector<2x16xf32> to vector<2xf32>
    %603 = vector.shape_cast %602 : vector<2xf32> to vector<2x1xf32>
    %604 = vector.broadcast %603 : vector<2x1xf32> to vector<2x16xf32>
    %605 = arith.subf %601, %604 : vector<2x16xf32>
    %606 = math.exp %605 : vector<2x16xf32>
    %cst_306 = arith.constant dense<0.000000e+00> : vector<2xf32>
    %607 = vector.multi_reduction <add>, %606, %cst_306 [1] : vector<2x16xf32> to vector<2xf32>
    %608 = vector.shape_cast %607 : vector<2xf32> to vector<2x1xf32>
    %609 = vector.broadcast %608 : vector<2x1xf32> to vector<2x16xf32>
    %610 = arith.divf %606, %609 : vector<2x16xf32>
    %cst_307 = arith.constant dense<0.000000e+00> : vector<2x8xf32>
    %611 = tpu.matmul %610, %599, %cst_307 {dimension_numbers = #tpu.dot_dimension_numbers<[1], [0], [0], [1], [0, 0, 1, 1], [], []>} : vector<2x16xf32>, vector<16x8xf32>, vector<2x8xf32> -> vector<2x8xf32>
    %c1432 = arith.constant 1432 : index
    %c0_308 = arith.constant 0 : index
    %612 = vector.load %arg4[%c1432, %c0_308] : memref<1960x128xf32, #tpu.memory_space<vmem>>, vector<8x32xf32>
    %cst_309 = arith.constant dense<0.000000e+00> : vector<2x32xf32>
    %613 = tpu.matmul %611, %612, %cst_309 {dimension_numbers = #tpu.dot_dimension_numbers<[1], [0], [0], [1], [0, 0, 1, 1], [], []>} : vector<2x8xf32>, vector<8x32xf32>, vector<2x32xf32> -> vector<2x32xf32>
    %c1440 = arith.constant 1440 : index
    %c0_310 = arith.constant 0 : index
    %614 = vector.load %arg4[%c1440, %c0_310] : memref<1960x128xf32, #tpu.memory_space<vmem>>, vector<32x8xf32>
    %cst_311 = arith.constant dense<0.000000e+00> : vector<2x8xf32>
    %615 = tpu.matmul %582, %614, %cst_311 {dimension_numbers = #tpu.dot_dimension_numbers<[1], [0], [0], [1], [0, 0, 1, 1], [], []>} : vector<2x32xf32>, vector<32x8xf32>, vector<2x8xf32> -> vector<2x8xf32>
    %c1536 = arith.constant 1536 : index
    %c0_312 = arith.constant 0 : index
    %616 = vector.load %arg4[%c1536, %c0_312] : memref<1960x128xf32, #tpu.memory_space<vmem>>, vector<1x8xf32>
    %617 = vector.broadcast %616 : vector<1x8xf32> to vector<2x8xf32>
    %618 = arith.addf %615, %617 : vector<2x8xf32>
    %cst_313 = arith.constant 0.353553385 : f32
    %619 = vector.broadcast %cst_313 : f32 to vector<2x8xf32>
    %620 = arith.mulf %618, %619 : vector<2x8xf32>
    %c1472 = arith.constant 1472 : index
    %c0_314 = arith.constant 0 : index
    %621 = vector.load %arg4[%c1472, %c0_314] : memref<1960x128xf32, #tpu.memory_space<vmem>>, vector<32x8xf32>
    %cst_315 = arith.constant dense<0.000000e+00> : vector<16x8xf32>
    %622 = tpu.matmul %579, %621, %cst_315 {dimension_numbers = #tpu.dot_dimension_numbers<[1], [0], [0], [1], [0, 0, 1, 1], [], []>} : vector<16x32xf32>, vector<32x8xf32>, vector<16x8xf32> -> vector<16x8xf32>
    %c1544 = arith.constant 1544 : index
    %c0_316 = arith.constant 0 : index
    %623 = vector.load %arg4[%c1544, %c0_316] : memref<1960x128xf32, #tpu.memory_space<vmem>>, vector<1x8xf32>
    %624 = vector.broadcast %623 : vector<1x8xf32> to vector<16x8xf32>
    %625 = arith.addf %622, %624 : vector<16x8xf32>
    %c1504 = arith.constant 1504 : index
    %c0_317 = arith.constant 0 : index
    %626 = vector.load %arg4[%c1504, %c0_317] : memref<1960x128xf32, #tpu.memory_space<vmem>>, vector<32x8xf32>
    %cst_318 = arith.constant dense<0.000000e+00> : vector<16x8xf32>
    %627 = tpu.matmul %579, %626, %cst_318 {dimension_numbers = #tpu.dot_dimension_numbers<[1], [0], [0], [1], [0, 0, 1, 1], [], []>} : vector<16x32xf32>, vector<32x8xf32>, vector<16x8xf32> -> vector<16x8xf32>
    %c1552 = arith.constant 1552 : index
    %c0_319 = arith.constant 0 : index
    %628 = vector.load %arg4[%c1552, %c0_319] : memref<1960x128xf32, #tpu.memory_space<vmem>>, vector<1x8xf32>
    %629 = vector.broadcast %628 : vector<1x8xf32> to vector<16x8xf32>
    %630 = arith.addf %627, %629 : vector<16x8xf32>
    %cst_320 = arith.constant dense<0.000000e+00> : vector<2x16xf32>
    %631 = tpu.matmul %620, %625, %cst_320 {dimension_numbers = #tpu.dot_dimension_numbers<[1], [1], [0], [0], [0, 0, 1, 0], [], []>} : vector<2x8xf32>, vector<16x8xf32>, vector<2x16xf32> -> vector<2x16xf32>
    %632 = arith.addf %631, %195 : vector<2x16xf32>
    %cst_321 = arith.constant dense<0xFF800000> : vector<2xf32>
    %633 = vector.multi_reduction <maximumf>, %632, %cst_321 [1] : vector<2x16xf32> to vector<2xf32>
    %634 = vector.shape_cast %633 : vector<2xf32> to vector<2x1xf32>
    %635 = vector.broadcast %634 : vector<2x1xf32> to vector<2x16xf32>
    %636 = arith.subf %632, %635 : vector<2x16xf32>
    %637 = math.exp %636 : vector<2x16xf32>
    %cst_322 = arith.constant dense<0.000000e+00> : vector<2xf32>
    %638 = vector.multi_reduction <add>, %637, %cst_322 [1] : vector<2x16xf32> to vector<2xf32>
    %639 = vector.shape_cast %638 : vector<2xf32> to vector<2x1xf32>
    %640 = vector.broadcast %639 : vector<2x1xf32> to vector<2x16xf32>
    %641 = arith.divf %637, %640 : vector<2x16xf32>
    %cst_323 = arith.constant dense<0.000000e+00> : vector<2x8xf32>
    %642 = tpu.matmul %641, %630, %cst_323 {dimension_numbers = #tpu.dot_dimension_numbers<[1], [0], [0], [1], [0, 0, 1, 1], [], []>} : vector<2x16xf32>, vector<16x8xf32>, vector<2x8xf32> -> vector<2x8xf32>
    %c1560 = arith.constant 1560 : index
    %c0_324 = arith.constant 0 : index
    %643 = vector.load %arg4[%c1560, %c0_324] : memref<1960x128xf32, #tpu.memory_space<vmem>>, vector<8x32xf32>
    %cst_325 = arith.constant dense<0.000000e+00> : vector<2x32xf32>
    %644 = tpu.matmul %642, %643, %cst_325 {dimension_numbers = #tpu.dot_dimension_numbers<[1], [0], [0], [1], [0, 0, 1, 1], [], []>} : vector<2x8xf32>, vector<8x32xf32>, vector<2x32xf32> -> vector<2x32xf32>
    %645 = arith.addf %613, %644 : vector<2x32xf32>
    %c1568 = arith.constant 1568 : index
    %c0_326 = arith.constant 0 : index
    %646 = vector.load %arg4[%c1568, %c0_326] : memref<1960x128xf32, #tpu.memory_space<vmem>>, vector<32x8xf32>
    %cst_327 = arith.constant dense<0.000000e+00> : vector<2x8xf32>
    %647 = tpu.matmul %582, %646, %cst_327 {dimension_numbers = #tpu.dot_dimension_numbers<[1], [0], [0], [1], [0, 0, 1, 1], [], []>} : vector<2x32xf32>, vector<32x8xf32>, vector<2x8xf32> -> vector<2x8xf32>
    %c1664 = arith.constant 1664 : index
    %c0_328 = arith.constant 0 : index
    %648 = vector.load %arg4[%c1664, %c0_328] : memref<1960x128xf32, #tpu.memory_space<vmem>>, vector<1x8xf32>
    %649 = vector.broadcast %648 : vector<1x8xf32> to vector<2x8xf32>
    %650 = arith.addf %647, %649 : vector<2x8xf32>
    %cst_329 = arith.constant 0.353553385 : f32
    %651 = vector.broadcast %cst_329 : f32 to vector<2x8xf32>
    %652 = arith.mulf %650, %651 : vector<2x8xf32>
    %c1600 = arith.constant 1600 : index
    %c0_330 = arith.constant 0 : index
    %653 = vector.load %arg4[%c1600, %c0_330] : memref<1960x128xf32, #tpu.memory_space<vmem>>, vector<32x8xf32>
    %cst_331 = arith.constant dense<0.000000e+00> : vector<16x8xf32>
    %654 = tpu.matmul %579, %653, %cst_331 {dimension_numbers = #tpu.dot_dimension_numbers<[1], [0], [0], [1], [0, 0, 1, 1], [], []>} : vector<16x32xf32>, vector<32x8xf32>, vector<16x8xf32> -> vector<16x8xf32>
    %c1672 = arith.constant 1672 : index
    %c0_332 = arith.constant 0 : index
    %655 = vector.load %arg4[%c1672, %c0_332] : memref<1960x128xf32, #tpu.memory_space<vmem>>, vector<1x8xf32>
    %656 = vector.broadcast %655 : vector<1x8xf32> to vector<16x8xf32>
    %657 = arith.addf %654, %656 : vector<16x8xf32>
    %c1632 = arith.constant 1632 : index
    %c0_333 = arith.constant 0 : index
    %658 = vector.load %arg4[%c1632, %c0_333] : memref<1960x128xf32, #tpu.memory_space<vmem>>, vector<32x8xf32>
    %cst_334 = arith.constant dense<0.000000e+00> : vector<16x8xf32>
    %659 = tpu.matmul %579, %658, %cst_334 {dimension_numbers = #tpu.dot_dimension_numbers<[1], [0], [0], [1], [0, 0, 1, 1], [], []>} : vector<16x32xf32>, vector<32x8xf32>, vector<16x8xf32> -> vector<16x8xf32>
    %c1680 = arith.constant 1680 : index
    %c0_335 = arith.constant 0 : index
    %660 = vector.load %arg4[%c1680, %c0_335] : memref<1960x128xf32, #tpu.memory_space<vmem>>, vector<1x8xf32>
    %661 = vector.broadcast %660 : vector<1x8xf32> to vector<16x8xf32>
    %662 = arith.addf %659, %661 : vector<16x8xf32>
    %cst_336 = arith.constant dense<0.000000e+00> : vector<2x16xf32>
    %663 = tpu.matmul %652, %657, %cst_336 {dimension_numbers = #tpu.dot_dimension_numbers<[1], [1], [0], [0], [0, 0, 1, 0], [], []>} : vector<2x8xf32>, vector<16x8xf32>, vector<2x16xf32> -> vector<2x16xf32>
    %664 = arith.addf %663, %195 : vector<2x16xf32>
    %cst_337 = arith.constant dense<0xFF800000> : vector<2xf32>
    %665 = vector.multi_reduction <maximumf>, %664, %cst_337 [1] : vector<2x16xf32> to vector<2xf32>
    %666 = vector.shape_cast %665 : vector<2xf32> to vector<2x1xf32>
    %667 = vector.broadcast %666 : vector<2x1xf32> to vector<2x16xf32>
    %668 = arith.subf %664, %667 : vector<2x16xf32>
    %669 = math.exp %668 : vector<2x16xf32>
    %cst_338 = arith.constant dense<0.000000e+00> : vector<2xf32>
    %670 = vector.multi_reduction <add>, %669, %cst_338 [1] : vector<2x16xf32> to vector<2xf32>
    %671 = vector.shape_cast %670 : vector<2xf32> to vector<2x1xf32>
    %672 = vector.broadcast %671 : vector<2x1xf32> to vector<2x16xf32>
    %673 = arith.divf %669, %672 : vector<2x16xf32>
    %cst_339 = arith.constant dense<0.000000e+00> : vector<2x8xf32>
    %674 = tpu.matmul %673, %662, %cst_339 {dimension_numbers = #tpu.dot_dimension_numbers<[1], [0], [0], [1], [0, 0, 1, 1], [], []>} : vector<2x16xf32>, vector<16x8xf32>, vector<2x8xf32> -> vector<2x8xf32>
    %c1688 = arith.constant 1688 : index
    %c0_340 = arith.constant 0 : index
    %675 = vector.load %arg4[%c1688, %c0_340] : memref<1960x128xf32, #tpu.memory_space<vmem>>, vector<8x32xf32>
    %cst_341 = arith.constant dense<0.000000e+00> : vector<2x32xf32>
    %676 = tpu.matmul %674, %675, %cst_341 {dimension_numbers = #tpu.dot_dimension_numbers<[1], [0], [0], [1], [0, 0, 1, 1], [], []>} : vector<2x8xf32>, vector<8x32xf32>, vector<2x32xf32> -> vector<2x32xf32>
    %677 = arith.addf %645, %676 : vector<2x32xf32>
    %c1696 = arith.constant 1696 : index
    %c0_342 = arith.constant 0 : index
    %678 = vector.load %arg4[%c1696, %c0_342] : memref<1960x128xf32, #tpu.memory_space<vmem>>, vector<32x8xf32>
    %cst_343 = arith.constant dense<0.000000e+00> : vector<2x8xf32>
    %679 = tpu.matmul %582, %678, %cst_343 {dimension_numbers = #tpu.dot_dimension_numbers<[1], [0], [0], [1], [0, 0, 1, 1], [], []>} : vector<2x32xf32>, vector<32x8xf32>, vector<2x8xf32> -> vector<2x8xf32>
    %c1792 = arith.constant 1792 : index
    %c0_344 = arith.constant 0 : index
    %680 = vector.load %arg4[%c1792, %c0_344] : memref<1960x128xf32, #tpu.memory_space<vmem>>, vector<1x8xf32>
    %681 = vector.broadcast %680 : vector<1x8xf32> to vector<2x8xf32>
    %682 = arith.addf %679, %681 : vector<2x8xf32>
    %cst_345 = arith.constant 0.353553385 : f32
    %683 = vector.broadcast %cst_345 : f32 to vector<2x8xf32>
    %684 = arith.mulf %682, %683 : vector<2x8xf32>
    %c1728 = arith.constant 1728 : index
    %c0_346 = arith.constant 0 : index
    %685 = vector.load %arg4[%c1728, %c0_346] : memref<1960x128xf32, #tpu.memory_space<vmem>>, vector<32x8xf32>
    %cst_347 = arith.constant dense<0.000000e+00> : vector<16x8xf32>
    %686 = tpu.matmul %579, %685, %cst_347 {dimension_numbers = #tpu.dot_dimension_numbers<[1], [0], [0], [1], [0, 0, 1, 1], [], []>} : vector<16x32xf32>, vector<32x8xf32>, vector<16x8xf32> -> vector<16x8xf32>
    %c1800 = arith.constant 1800 : index
    %c0_348 = arith.constant 0 : index
    %687 = vector.load %arg4[%c1800, %c0_348] : memref<1960x128xf32, #tpu.memory_space<vmem>>, vector<1x8xf32>
    %688 = vector.broadcast %687 : vector<1x8xf32> to vector<16x8xf32>
    %689 = arith.addf %686, %688 : vector<16x8xf32>
    %c1760 = arith.constant 1760 : index
    %c0_349 = arith.constant 0 : index
    %690 = vector.load %arg4[%c1760, %c0_349] : memref<1960x128xf32, #tpu.memory_space<vmem>>, vector<32x8xf32>
    %cst_350 = arith.constant dense<0.000000e+00> : vector<16x8xf32>
    %691 = tpu.matmul %579, %690, %cst_350 {dimension_numbers = #tpu.dot_dimension_numbers<[1], [0], [0], [1], [0, 0, 1, 1], [], []>} : vector<16x32xf32>, vector<32x8xf32>, vector<16x8xf32> -> vector<16x8xf32>
    %c1808 = arith.constant 1808 : index
    %c0_351 = arith.constant 0 : index
    %692 = vector.load %arg4[%c1808, %c0_351] : memref<1960x128xf32, #tpu.memory_space<vmem>>, vector<1x8xf32>
    %693 = vector.broadcast %692 : vector<1x8xf32> to vector<16x8xf32>
    %694 = arith.addf %691, %693 : vector<16x8xf32>
    %cst_352 = arith.constant dense<0.000000e+00> : vector<2x16xf32>
    %695 = tpu.matmul %684, %689, %cst_352 {dimension_numbers = #tpu.dot_dimension_numbers<[1], [1], [0], [0], [0, 0, 1, 0], [], []>} : vector<2x8xf32>, vector<16x8xf32>, vector<2x16xf32> -> vector<2x16xf32>
    %696 = arith.addf %695, %195 : vector<2x16xf32>
    %cst_353 = arith.constant dense<0xFF800000> : vector<2xf32>
    %697 = vector.multi_reduction <maximumf>, %696, %cst_353 [1] : vector<2x16xf32> to vector<2xf32>
    %698 = vector.shape_cast %697 : vector<2xf32> to vector<2x1xf32>
    %699 = vector.broadcast %698 : vector<2x1xf32> to vector<2x16xf32>
    %700 = arith.subf %696, %699 : vector<2x16xf32>
    %701 = math.exp %700 : vector<2x16xf32>
    %cst_354 = arith.constant dense<0.000000e+00> : vector<2xf32>
    %702 = vector.multi_reduction <add>, %701, %cst_354 [1] : vector<2x16xf32> to vector<2xf32>
    %703 = vector.shape_cast %702 : vector<2xf32> to vector<2x1xf32>
    %704 = vector.broadcast %703 : vector<2x1xf32> to vector<2x16xf32>
    %705 = arith.divf %701, %704 : vector<2x16xf32>
    %cst_355 = arith.constant dense<0.000000e+00> : vector<2x8xf32>
    %706 = tpu.matmul %705, %694, %cst_355 {dimension_numbers = #tpu.dot_dimension_numbers<[1], [0], [0], [1], [0, 0, 1, 1], [], []>} : vector<2x16xf32>, vector<16x8xf32>, vector<2x8xf32> -> vector<2x8xf32>
    %c1816 = arith.constant 1816 : index
    %c0_356 = arith.constant 0 : index
    %707 = vector.load %arg4[%c1816, %c0_356] : memref<1960x128xf32, #tpu.memory_space<vmem>>, vector<8x32xf32>
    %cst_357 = arith.constant dense<0.000000e+00> : vector<2x32xf32>
    %708 = tpu.matmul %706, %707, %cst_357 {dimension_numbers = #tpu.dot_dimension_numbers<[1], [0], [0], [1], [0, 0, 1, 1], [], []>} : vector<2x8xf32>, vector<8x32xf32>, vector<2x32xf32> -> vector<2x32xf32>
    %709 = arith.addf %677, %708 : vector<2x32xf32>
    %c1824 = arith.constant 1824 : index
    %c0_358 = arith.constant 0 : index
    %710 = vector.load %arg4[%c1824, %c0_358] : memref<1960x128xf32, #tpu.memory_space<vmem>>, vector<1x32xf32>
    %711 = vector.broadcast %710 : vector<1x32xf32> to vector<2x32xf32>
    %712 = arith.addf %709, %711 : vector<2x32xf32>
    %713 = arith.addf %712, %582 : vector<2x32xf32>
    %c1832 = arith.constant 1832 : index
    %c0_359 = arith.constant 0 : index
    %714 = vector.load %arg4[%c1832, %c0_359] : memref<1960x128xf32, #tpu.memory_space<vmem>>, vector<1x32xf32>
    %c1840 = arith.constant 1840 : index
    %c0_360 = arith.constant 0 : index
    %715 = vector.load %arg4[%c1840, %c0_360] : memref<1960x128xf32, #tpu.memory_space<vmem>>, vector<1x32xf32>
    %cst_361 = arith.constant dense<0.000000e+00> : vector<2xf32>
    %716 = vector.multi_reduction <add>, %713, %cst_361 [1] : vector<2x32xf32> to vector<2xf32>
    %717 = vector.shape_cast %716 : vector<2xf32> to vector<2x1xf32>
    %cst_362 = arith.constant 3.200000e+01 : f32
    %718 = vector.broadcast %cst_362 : f32 to vector<2x1xf32>
    %719 = arith.divf %717, %718 : vector<2x1xf32>
    %720 = vector.broadcast %719 : vector<2x1xf32> to vector<2x32xf32>
    %721 = arith.subf %713, %720 : vector<2x32xf32>
    %722 = arith.mulf %721, %721 : vector<2x32xf32>
    %cst_363 = arith.constant dense<0.000000e+00> : vector<2xf32>
    %723 = vector.multi_reduction <add>, %722, %cst_363 [1] : vector<2x32xf32> to vector<2xf32>
    %724 = vector.shape_cast %723 : vector<2xf32> to vector<2x1xf32>
    %cst_364 = arith.constant 3.200000e+01 : f32
    %725 = vector.broadcast %cst_364 : f32 to vector<2x1xf32>
    %726 = arith.divf %724, %725 : vector<2x1xf32>
    %727 = vector.broadcast %719 : vector<2x1xf32> to vector<2x32xf32>
    %728 = arith.subf %713, %727 : vector<2x32xf32>
    %cst_365 = arith.constant 9.99999974E-6 : f32
    %729 = vector.broadcast %cst_365 : f32 to vector<2x1xf32>
    %730 = arith.addf %726, %729 : vector<2x1xf32>
    %731 = math.rsqrt %730 : vector<2x1xf32>
    %732 = vector.broadcast %731 : vector<2x1xf32> to vector<2x32xf32>
    %733 = arith.mulf %728, %732 : vector<2x32xf32>
    %734 = vector.broadcast %714 : vector<1x32xf32> to vector<2x32xf32>
    %735 = arith.mulf %733, %734 : vector<2x32xf32>
    %736 = vector.broadcast %715 : vector<1x32xf32> to vector<2x32xf32>
    %737 = arith.addf %735, %736 : vector<2x32xf32>
    %c1848 = arith.constant 1848 : index
    %c0_366 = arith.constant 0 : index
    %738 = vector.load %arg4[%c1848, %c0_366] : memref<1960x128xf32, #tpu.memory_space<vmem>>, vector<32x32xf32>
    %cst_367 = arith.constant dense<0.000000e+00> : vector<2x32xf32>
    %739 = tpu.matmul %737, %738, %cst_367 {dimension_numbers = #tpu.dot_dimension_numbers<[1], [0], [0], [1], [0, 0, 1, 1], [], []>} : vector<2x32xf32>, vector<32x32xf32>, vector<2x32xf32> -> vector<2x32xf32>
    %c1880 = arith.constant 1880 : index
    %c0_368 = arith.constant 0 : index
    %740 = vector.load %arg4[%c1880, %c0_368] : memref<1960x128xf32, #tpu.memory_space<vmem>>, vector<32x32xf32>
    %cst_369 = arith.constant dense<0.000000e+00> : vector<2x32xf32>
    %741 = tpu.matmul %193, %740, %cst_369 {dimension_numbers = #tpu.dot_dimension_numbers<[1], [0], [0], [1], [0, 0, 1, 1], [], []>} : vector<2x32xf32>, vector<32x32xf32>, vector<2x32xf32> -> vector<2x32xf32>
    %742 = arith.addf %739, %741 : vector<2x32xf32>
    %c1912 = arith.constant 1912 : index
    %c0_370 = arith.constant 0 : index
    %743 = vector.load %arg4[%c1912, %c0_370] : memref<1960x128xf32, #tpu.memory_space<vmem>>, vector<1x32xf32>
    %744 = vector.broadcast %743 : vector<1x32xf32> to vector<2x32xf32>
    %745 = arith.addf %742, %744 : vector<2x32xf32>
    %cst_371 = arith.constant 0.000000e+00 : f32
    %746 = vector.broadcast %cst_371 : f32 to vector<2x32xf32>
    %747 = arith.maximumf %745, %746 : vector<2x32xf32>
    %c1920 = arith.constant 1920 : index
    %c0_372 = arith.constant 0 : index
    %748 = vector.load %arg4[%c1920, %c0_372] : memref<1960x128xf32, #tpu.memory_space<vmem>>, vector<32x128xf32>
    %cst_373 = arith.constant dense<0.000000e+00> : vector<2x128xf32>
    %749 = tpu.matmul %747, %748, %cst_373 {dimension_numbers = #tpu.dot_dimension_numbers<[1], [0], [0], [1], [0, 0, 1, 1], [], []>} : vector<2x32xf32>, vector<32x128xf32>, vector<2x128xf32> -> vector<2x128xf32>
    %c1952 = arith.constant 1952 : index
    %c0_374 = arith.constant 0 : index
    %750 = vector.load %arg4[%c1952, %c0_374] : memref<1960x128xf32, #tpu.memory_space<vmem>>, vector<1x128xf32>
    %751 = vector.broadcast %750 : vector<1x128xf32> to vector<2x128xf32>
    %752 = arith.addf %749, %751 : vector<2x128xf32>
    %753 = arith.negf %752 : vector<2x128xf32>
    %754 = math.exp %753 : vector<2x128xf32>
    %cst_375 = arith.constant 1.000000e+00 : f32
    %755 = vector.broadcast %cst_375 : f32 to vector<2x128xf32>
    %756 = arith.addf %755, %754 : vector<2x128xf32>
    %757 = arith.divf %755, %756 : vector<2x128xf32>
    %c0_376 = arith.constant 0 : index
    %c0_377 = arith.constant 0 : index
    %758 = vector.load %arg5[%c0_376, %c0_377] : memref<2x128xf32, #tpu.memory_space<vmem>>, vector<2x128xf32>
    tpu.vector_store %arg5[%c0_376, %c0_377], %757 {strides = array<i32>} : memref<2x128xf32, #tpu.memory_space<vmem>>, vector<2x128xf32>,
    return
  }
  func.func @transform_0(%arg0: i32, %arg1: memref<2x8xi32, #tpu.memory_space<smem>>, %arg2: memref<2x8xi32, #tpu.memory_space<smem>>) -> (i32, i32) {
    %c0_i32 = arith.constant 0 : i32
    %c0_i32_0 = arith.constant 0 : i32
    %c0_i32_1 = arith.constant 0 : i32
    return %c0_i32, %c0_i32_0 : i32, i32
  }
  func.func @transform_1(%arg0: i32, %arg1: memref<2x8xi32, #tpu.memory_space<smem>>, %arg2: memref<2x8xi32, #tpu.memory_space<smem>>) -> (i32, i32) {
    %c0_i32 = arith.constant 0 : i32
    %c0_i32_0 = arith.constant 0 : i32
    %c0_i32_1 = arith.constant 0 : i32
    return %c0_i32, %c0_i32_0 : i32, i32
  }
  func.func @transform_2(%arg0: i32, %arg1: memref<2x8xi32, #tpu.memory_space<smem>>, %arg2: memref<2x8xi32, #tpu.memory_space<smem>>) -> (i32, i32) {
    %c0_i32 = arith.constant 0 : i32
    %c0_i32_0 = arith.constant 0 : i32
    %c0_i32_1 = arith.constant 0 : i32
    return %c0_i32, %c0_i32_0 : i32, i32
  }
}

</mosaic_0001>

<llo_original>
// kernel: tpu_custom_call.1
$region0: #{tpu_custom_call.1}
  #allocation0 [shape = 'u32[]', space=smem, size = 0x4, offset = 0x4, fixed_abs, tag = 'smem constant byte address 0x4 - core index']
  #allocation1 [shape = 'u32[144,128]{1,0:T(1,128)}', space=vmem, size = 0x12000, scoped, tag = 'internal scratch']
  #allocation2 [shape = 'f32[16,32]{1,0:T(8,128)}', space=vmem, size = 0x2000, scoped, tag = 'scratch operand']
  #allocation3 [shape = 's32[1]{0}', space=sflag, size = 0x4, scoped, tag = 'scoped memory for tpu_custom_call.1']
  #allocation4 [shape = 'u8[1024]{0}', space=smem, size = 0x400, scoped, tag = 'prefetched SMEM operand 0']
  #allocation5 [shape = 'u8[1024]{0}', space=smem, size = 0x400, scoped, tag = 'prefetched SMEM operand 1']
  %s0 = inlined_call_operand.vmem [shape: s32[2,8], index: 0, kind: input, shape index: {}]
  %s1 = inlined_call_operand.vmem [shape: s32[2,8], index: 1, kind: input, shape index: {}]
  %s2 = inlined_call_operand.vmem [shape: f32[18,16], index: 2, kind: input, shape index: {}]
  %s3 = inlined_call_operand.hbm [shape: f32[1960,128], index: 3, kind: input, shape index: {}]
  %s4 = inlined_call_operand.hbm [shape: f32[2,128], index: 4, kind: output, shape index: {}]
  %s5 = sld [smem:[#allocation0]]
  $region22: #{tpu_custom_call.1} parent=0
    _
  %s7 = ssub.s32 1, %s5
  %s8 = scalar_select 0, %s7, %s5
  %s9 = sshll.u32 %s0, 4
  %s10 = int_to_ptr.vmem [resolvable:$true] %s9
  %12 = dma.vmem_to_smem %s10, 32, [#allocation4], [#allocation3]
  %s13 = sshll.u32 %s1, 4
  %s14 = int_to_ptr.vmem [resolvable:$true] %s13
  %16 = dma.vmem_to_smem %s14, 32, [#allocation5], [#allocation3]
  %17 = dma.done [#allocation3], 64
  %18 = sfence
  $region1: #{tpu_custom_call.1} parent=0
    #allocation6 [shape = 'u8[1003520]{0}', space=vmem, size = 0xf5000, scoped, tag = 'input window, operand 3, single buffered']
    #allocation7 [shape = 's32[1]{0}', space=sflag, size = 0x4, scoped, tag = 'scoped memory for tpu_custom_call.1']
    #allocation8 [shape = 's32[1]{0}', space=sflag, size = 0x4, scoped, tag = 'scoped memory for tpu_custom_call.1']
    #allocation9 [shape = 'u8[1024]{0}', space=vmem, size = 0x400, scoped, tag = 'output window, operand 0, single buffered']
    %19 = vsyncpa [#allocation7], 0
    %20 = vsyncpa [#allocation8], 0
    // Predicated region
    $region2: #{tpu_custom_call.1} parent=1 // pred_check
      _
    $region3: #{tpu_custom_call.1} parent=1 // pred_check_branch
      %22 = sbr.rel (0) target = $region5
    $region4: #{tpu_custom_call.1} parent=1 // pred_region
      _
    $region5: #{tpu_custom_call.1} parent=1 // pred_fallthru
      _
    // Predicated region
    $region6: #{tpu_custom_call.1} parent=1 // pred_check
      _
    $region7: #{tpu_custom_call.1} parent=1 // pred_check_branch
      %24 = sbr.rel (0) target = $region9
    $region8: #{tpu_custom_call.1} parent=1 // pred_region
      %s26 = ssub.s32 31360, 31360
      %27 = vsyncadd [#allocation7], %s26
      %s28 = sshll.u32 [#allocation6], 4
      %s29 = int_to_ptr.vmem [resolvable:$true] %s28
      %34 = dma.hbm_to_vmem [thread:$0]  %s3, 31360, %s29, [#allocation7], 128, 128, 8
    $region9: #{tpu_custom_call.1} parent=1 // pred_fallthru
      _
    // Predicated region
    $region10: #{tpu_custom_call.1} parent=1 // pred_check
      _
    $region11: #{tpu_custom_call.1} parent=1 // pred_check_branch
      %36 = sbr.rel (0) target = $region13
    $region12: #{tpu_custom_call.1} parent=1 // pred_region
      %37 = dma.done [#allocation7], 31360
    $region13: #{tpu_custom_call.1} parent=1 // pred_fallthru
      _
    %v38 = vld [vmem:[#allocation6 + $0x18] sm:$0x1]
    %v39 = vld [vmem:[#allocation6 + $0x20] sm:$0x1]
    %s40 = sld [smem:[#allocation4]]
    %s41 = sld [smem:[#allocation5]]
    %s42 = scvt.s32.f32 %s41
    %s43 = scalar_lea.vmem [#allocation6], %s40
    %v44 = vld [vmem:[%s43] sm:$0x1]
    %v45 = vstv %s42
    %v46 = vmul.f32 %v45, %v38
    %v47 = vadd.f32 %v44, %v46
    %v48 = vadd.f32 %v47, %v39
    %vm49 = vcmask 253952
    %50 = vst.msk [vmem:[#allocation2] sm:$0x1] %vm49, %v48
    %s51 = sld [smem:[#allocation4 + $0x1]]
    %s52 = sld [smem:[#allocation5 + $0x1]]
    %s53 = scvt.s32.f32 %s52
    %s54 = scalar_lea.vmem [#allocation6], %s51
    %v55 = vld [vmem:[%s54] sm:$0x1]
    %v56 = vstv %s53
    %v57 = vmul.f32 %v56, %v38
    %v58 = vadd.f32 %v55, %v57
    %v59 = vadd.f32 %v58, %v39
    %60 = vst.msk [vmem:[#allocation2 + $0x1] sm:$0x1] %vm49, %v59
    %s61 = sld [smem:[#allocation4 + $0x2]]
    %s62 = sld [smem:[#allocation5 + $0x2]]
    %s63 = scvt.s32.f32 %s62
    %s64 = scalar_lea.vmem [#allocation6], %s61
    %v65 = vld [vmem:[%s64] sm:$0x1]
    %v66 = vstv %s63
    %v67 = vmul.f32 %v66, %v38
    %v68 = vadd.f32 %v65, %v67
    %v69 = vadd.f32 %v68, %v39
    %70 = vst.msk [vmem:[#allocation2 + $0x2] sm:$0x1] %vm49, %v69
    %s71 = sld [smem:[#allocation4 + $0x3]]
    %s72 = sld [smem:[#allocation5 + $0x3]]
    %s73 = scvt.s32.f32 %s72
    %s74 = scalar_lea.vmem [#allocation6], %s71
    %v75 = vld [vmem:[%s74] sm:$0x1]
    %v76 = vstv %s73
    %v77 = vmul.f32 %v76, %v38
    %v78 = vadd.f32 %v75, %v77
    %v79 = vadd.f32 %v78, %v39
    %80 = vst.msk [vmem:[#allocation2 + $0x3] sm:$0x1] %vm49, %v79
    %s81 = sld [smem:[#allocation4 + $0x4]]
    %s82 = sld [smem:[#allocation5 + $0x4]]
    %s83 = scvt.s32.f32 %s82
    %s84 = scalar_lea.vmem [#allocation6], %s81
    %v85 = vld [vmem:[%s84] sm:$0x1]
    %v86 = vstv %s83
    %v87 = vmul.f32 %v86, %v38
    %v88 = vadd.f32 %v85, %v87
    %v89 = vadd.f32 %v88, %v39
    %90 = vst.msk [vmem:[#allocation2 + $0x4] sm:$0x1] %vm49, %v89
    %s91 = sld [smem:[#allocation4 + $0x5]]
    %s92 = sld [smem:[#allocation5 + $0x5]]
    %s93 = scvt.s32.f32 %s92
    %s94 = scalar_lea.vmem [#allocation6], %s91
    %v95 = vld [vmem:[%s94] sm:$0x1]
    %v96 = vstv %s93
    %v97 = vmul.f32 %v96, %v38
    %v98 = vadd.f32 %v95, %v97
    %v99 = vadd.f32 %v98, %v39
    %100 = vst.msk [vmem:[#allocation2 + $0x5] sm:$0x1] %vm49, %v99
    %s101 = sld [smem:[#allocation4 + $0x6]]
    %s102 = sld [smem:[#allocation5 + $0x6]]
    %s103 = scvt.s32.f32 %s102
    %s104 = scalar_lea.vmem [#allocation6], %s101
    %v105 = vld [vmem:[%s104] sm:$0x1]
    %v106 = vstv %s103
    %v107 = vmul.f32 %v106, %v38
    %v108 = vadd.f32 %v105, %v107
    %v109 = vadd.f32 %v108, %v39
    %110 = vst.msk [vmem:[#allocation2 + $0x6] sm:$0x1] %vm49, %v109
    %s111 = sld [smem:[#allocation4 + $0x7]]
    %s112 = sld [smem:[#allocation5 + $0x7]]
    %s113 = scvt.s32.f32 %s112
    %s114 = scalar_lea.vmem [#allocation6], %s111
    %v115 = vld [vmem:[%s114] sm:$0x1]
    %v116 = vstv %s113
    %v117 = vmul.f32 %v116, %v38
    %v118 = vadd.f32 %v115, %v117
    %v119 = vadd.f32 %v118, %v39
    %120 = vst.msk [vmem:[#allocation2 + $0x7] sm:$0x1] %vm49, %v119
    %s121 = sld [smem:[#allocation4 + $0x80]]
    %s122 = sld [smem:[#allocation5 + $0x80]]
    %s123 = scvt.s32.f32 %s122
    %s124 = scalar_lea.vmem [#allocation6], %s121
    %v125 = vld [vmem:[%s124] sm:$0x1]
    %v126 = vstv %s123
    %v127 = vmul.f32 %v126, %v38
    %v128 = vadd.f32 %v125, %v127
    %v129 = vadd.f32 %v128, %v39
    %130 = vst.msk [vmem:[#allocation2 + $0x8] sm:$0x1] %vm49, %v129
    %s131 = sld [smem:[#allocation4 + $0x81]]
    %s132 = sld [smem:[#allocation5 + $0x81]]
    %s133 = scvt.s32.f32 %s132
    %s134 = scalar_lea.vmem [#allocation6], %s131
    %v135 = vld [vmem:[%s134] sm:$0x1]
    %v136 = vstv %s133
    %v137 = vmul.f32 %v136, %v38
    %v138 = vadd.f32 %v135, %v137
    %v139 = vadd.f32 %v138, %v39
    %140 = vst.msk [vmem:[#allocation2 + $0x9] sm:$0x1] %vm49, %v139
    %s141 = sld [smem:[#allocation4 + $0x82]]
    %s142 = sld [smem:[#allocation5 + $0x82]]
    %s143 = scvt.s32.f32 %s142
    %s144 = scalar_lea.vmem [#allocation6], %s141
    %v145 = vld [vmem:[%s144] sm:$0x1]
    %v146 = vstv %s143
    %v147 = vmul.f32 %v146, %v38
    %v148 = vadd.f32 %v145, %v147
    %v149 = vadd.f32 %v148, %v39
    %150 = vst.msk [vmem:[#allocation2 + $0xa] sm:$0x1] %vm49, %v149
    %s151 = sld [smem:[#allocation4 + $0x83]]
    %s152 = sld [smem:[#allocation5 + $0x83]]
    %s153 = scvt.s32.f32 %s152
    %s154 = scalar_lea.vmem [#allocation6], %s151
    %v155 = vld [vmem:[%s154] sm:$0x1]
    %v156 = vstv %s153
    %v157 = vmul.f32 %v156, %v38
    %v158 = vadd.f32 %v155, %v157
    %v159 = vadd.f32 %v158, %v39
    %160 = vst.msk [vmem:[#allocation2 + $0xb] sm:$0x1] %vm49, %v159
    %s161 = sld [smem:[#allocation4 + $0x84]]
    %s162 = sld [smem:[#allocation5 + $0x84]]
    %s163 = scvt.s32.f32 %s162
    %s164 = scalar_lea.vmem [#allocation6], %s161
    %v165 = vld [vmem:[%s164] sm:$0x1]
    %v166 = vstv %s163
    %v167 = vmul.f32 %v166, %v38
    %v168 = vadd.f32 %v165, %v167
    %v169 = vadd.f32 %v168, %v39
    %170 = vst.msk [vmem:[#allocation2 + $0xc] sm:$0x1] %vm49, %v169
    %s171 = sld [smem:[#allocation4 + $0x85]]
    %s172 = sld [smem:[#allocation5 + $0x85]]
    %s173 = scvt.s32.f32 %s172
    %s174 = scalar_lea.vmem [#allocation6], %s171
    %v175 = vld [vmem:[%s174] sm:$0x1]
    %v176 = vstv %s173
    %v177 = vmul.f32 %v176, %v38
    %v178 = vadd.f32 %v175, %v177
    %v179 = vadd.f32 %v178, %v39
    %180 = vst.msk [vmem:[#allocation2 + $0xd] sm:$0x1] %vm49, %v179
    %s181 = sld [smem:[#allocation4 + $0x86]]
    %s182 = sld [smem:[#allocation5 + $0x86]]
    %s183 = scvt.s32.f32 %s182
    %s184 = scalar_lea.vmem [#allocation6], %s181
    %v185 = vld [vmem:[%s184] sm:$0x1]
    %v186 = vstv %s183
    %v187 = vmul.f32 %v186, %v38
    %v188 = vadd.f32 %v185, %v187
    %v189 = vadd.f32 %v188, %v39
    %190 = vst.msk [vmem:[#allocation2 + $0xe] sm:$0x1] %vm49, %v189
    %s191 = sld [smem:[#allocation4 + $0x87]]
    %s192 = sld [smem:[#allocation5 + $0x87]]
    %s193 = scvt.s32.f32 %s192
    %s194 = scalar_lea.vmem [#allocation6], %s191
    %v195 = vld [vmem:[%s194] sm:$0x1]
    %v196 = vstv %s193
    %v197 = vmul.f32 %v196, %v38
    %v198 = vadd.f32 %v195, %v197
    %v199 = vadd.f32 %v198, %v39
    %200 = vst.msk [vmem:[#allocation2 + $0xf] sm:$0x1] %vm49, %v199
    %v201 = vld [vmem:[#allocation2] sm:$0xff]
    %v202 = vld [vmem:[#allocation2 + $0x8] sm:$0xff]
    %v203 = vlaneseq
    %v204 = vshrl.u32 %v203, 7
    %v205 = vlaneseq
    %v206 = vand.u32 %v205, 127
    %v207 = vmul.u32 %v204, 8
    %vm208 = vcmp.ge.s32.totalorder %v206, %v207
    %v209 = vadd.s32 %v204, 1
    %v210 = vmul.u32 %v209, 8
    %vm211 = vcmp.lt.s32.totalorder %v206, %v210
    %vm212 = vmand %vm208, %vm211
    %v213 = vsel %vm212, 0.125, 0.0
    %vm214 = vcmask 130048
    %v216 = vsel %vm214, %v213, 0
    %218 = vmatprep.subr.mxu0 0.0
    %219 = vmatpush1.msra.mxu0 0.0
    %220 = vmatprep.subr.mxu0 0.0
    %221 = vmatpush1.msra.mxu0 0.0
    %222 = vmatprep.subr.mxu0 0.0
    %223 = vmatpush1.msra.mxu0 0.0
    %224 = vmatprep.subr.mxu0 0.0
    %225 = vmatpush1.msra.mxu0 0.0
    %226 = vmatprep.subr.mxu0 0.0
    %227 = vmatpush1.msra.mxu0 0.0
    %228 = vmatprep.subr.mxu0 0.0
    %229 = vmatpush1.msra.mxu0 0.0
    %230 = vmatprep.subr.mxu0 0.0
    %231 = vmatpush1.msra.mxu0 0.0
    %232 = vmatprep.subr.mxu0 0.0
    %233 = vmatpush1.msra.mxu0 0.0
    %234 = vmatprep.subr.mxu0 0.0
    %235 = vmatpush1.msra.mxu0 0.0
    %236 = vmatprep.subr.mxu0 0.0
    %237 = vmatpush1.msra.mxu0 0.0
    %238 = vmatprep.subr.mxu0 0.0
    %239 = vmatpush1.msra.mxu0 0.0
    %240 = vmatprep.subr.mxu0 0.0
    %241 = vmatpush1.msra.mxu0 0.0
    %242 = vmatprep.subr.mxu0 0.0
    %243 = vmatpush1.msra.mxu0 0.0
    %244 = vmatprep.subr.mxu0 0.0
    %245 = vmatpush1.msra.mxu0 0.0
    %246 = vmatprep.subr.mxu0 0.0
    %247 = vmatpush1.msra.mxu0 %v202
    %248 = vmatprep.subr.mxu0 0.0
    %249 = vmatpush1.msra.mxu0 %v201
    %250 = vmatprep.subr.mxu0 0.0
    %251 = vmatpush2.msra.mxu0 0.0
    %252 = vmatprep.subr.mxu0 0.0
    %253 = vmatpush2.msra.mxu0 0.0
    %254 = vmatprep.subr.mxu0 0.0
    %255 = vmatpush2.msra.mxu0 0.0
    %256 = vmatprep.subr.mxu0 0.0
    %257 = vmatpush2.msra.mxu0 0.0
    %258 = vmatprep.subr.mxu0 0.0
    %259 = vmatpush2.msra.mxu0 0.0
    %260 = vmatprep.subr.mxu0 0.0
    %261 = vmatpush2.msra.mxu0 0.0
    %262 = vmatprep.subr.mxu0 0.0
    %263 = vmatpush2.msra.mxu0 0.0
    %264 = vmatprep.subr.mxu0 0.0
    %265 = vmatpush2.msra.mxu0 0.0
    %266 = vmatprep.subr.mxu0 0.0
    %267 = vmatpush2.msra.mxu0 0.0
    %268 = vmatprep.subr.mxu0 0.0
    %269 = vmatpush2.msra.mxu0 0.0
    %270 = vmatprep.subr.mxu0 0.0
    %271 = vmatpush2.msra.mxu0 0.0
    %272 = vmatprep.subr.mxu0 0.0
    %273 = vmatpush2.msra.mxu0 0.0
    %274 = vmatprep.subr.mxu0 0.0
    %275 = vmatpush2.msra.mxu0 0.0
    %276 = vmatprep.subr.mxu0 0.0
    %277 = vmatpush2.msra.mxu0 0.0
    %278 = vmatprep.subr.mxu0 0.0
    %279 = vmatpush2.msra.mxu0 0.0
    %280 = vmatprep.subr.mxu0 0.0
    %281 = vmatpush2.msra.mxu0 0.0
    %282 = vmatprep.mubr.f32.mxu0 0.0
    %283 = vmatmul.mubr.f32.gmra.mxu0 %v216
    %v284 = vpop.f32.mrf.mxu0
    %v285 = vadd.f32 0.0, %v284
    %v286 = vpop.f32.mrf.mxu0
    %287 = vdwg.mxu0
    %v288 = vld [vmem:[%s2] sm:$0xff]
    %v289 = vld [vmem:[%s2 + $0x8] sm:$0xff]
    %v290 = vld [vmem:[%s2 + $0x10] sm:$0x3]
    %v291 = vld [vmem:[#allocation6 + $0x28] sm:$0xff]
    %v292 = vld [vmem:[#allocation6 + $0x30] sm:$0xff]
    %v293 = vld [vmem:[#allocation6 + $0x38] sm:$0xff]
    %v294 = vld [vmem:[#allocation6 + $0x40] sm:$0xff]
    %v295 = vld [vmem:[#allocation6 + $0x88] sm:$0x1]
    %v296 = vlaneseq
    %v297 = vshrl.u32 %v296, 7
    %v298 = vsub.s32 0, %v297
    %v299 = vrot.slane %v295, %v298
    %vm300 = vcmask 261120
    %v302 = vsel %vm300, %v201, 0
    %v305 = vsel %vm300, %v202, 0
    %307 = vmatprep.subr.mxu0 0.0
    %308 = vmatpush1.msra.mxu0 0.0
    %309 = vmatprep.subr.mxu0 0.0
    %310 = vmatpush1.msra.mxu0 0.0
    %311 = vmatprep.subr.mxu0 0.0
    %312 = vmatpush1.msra.mxu0 0.0
    %313 = vmatprep.subr.mxu0 0.0
    %314 = vmatpush1.msra.mxu0 0.0
    %315 = vmatprep.subr.mxu0 0.0
    %316 = vmatpush1.msra.mxu0 0.0
    %317 = vmatprep.subr.mxu0 0.0
    %318 = vmatpush1.msra.mxu0 0.0
    %319 = vmatprep.subr.mxu0 0.0
    %320 = vmatpush1.msra.mxu0 0.0
    %321 = vmatprep.subr.mxu0 0.0
    %322 = vmatpush1.msra.mxu0 0.0
    %323 = vmatprep.subr.mxu0 0.0
    %324 = vmatpush1.msra.mxu0 0.0
    %325 = vmatprep.subr.mxu0 0.0
    %326 = vmatpush1.msra.mxu0 0.0
    %327 = vmatprep.subr.mxu0 0.0
    %328 = vmatpush1.msra.mxu0 0.0
    %329 = vmatprep.subr.mxu0 0.0
    %330 = vmatpush1.msra.mxu0 0.0
    %331 = vmatprep.subr.mxu0 0.0
    %332 = vmatpush1.msra.mxu0 %v294
    %333 = vmatprep.subr.mxu0 0.0
    %334 = vmatpush1.msra.mxu0 %v293
    %335 = vmatprep.subr.mxu0 0.0
    %336 = vmatpush1.msra.mxu0 %v292
    %337 = vmatprep.subr.mxu0 0.0
    %338 = vmatpush1.msra.mxu0 %v291
    %339 = vmatprep.subr.mxu0 0.0
    %340 = vmatpush2.msra.mxu0 0.0
    %341 = vmatprep.subr.mxu0 0.0
    %342 = vmatpush2.msra.mxu0 0.0
    %343 = vmatprep.subr.mxu0 0.0
    %344 = vmatpush2.msra.mxu0 0.0
    %345 = vmatprep.subr.mxu0 0.0
    %346 = vmatpush2.msra.mxu0 0.0
    %347 = vmatprep.subr.mxu0 0.0
    %348 = vmatpush2.msra.mxu0 0.0
    %349 = vmatprep.subr.mxu0 0.0
    %350 = vmatpush2.msra.mxu0 0.0
    %351 = vmatprep.subr.mxu0 0.0
    %352 = vmatpush2.msra.mxu0 0.0
    %353 = vmatprep.subr.mxu0 0.0
    %354 = vmatpush2.msra.mxu0 0.0
    %355 = vmatprep.subr.mxu0 0.0
    %356 = vmatpush2.msra.mxu0 0.0
    %357 = vmatprep.subr.mxu0 0.0
    %358 = vmatpush2.msra.mxu0 0.0
    %359 = vmatprep.subr.mxu0 0.0
    %360 = vmatpush2.msra.mxu0 0.0
    %361 = vmatprep.subr.mxu0 0.0
    %362 = vmatpush2.msra.mxu0 0.0
    %363 = vmatprep.subr.mxu0 0.0
    %364 = vmatpush2.msra.mxu0 0.0
    %365 = vmatprep.subr.mxu0 0.0
    %366 = vmatpush2.msra.mxu0 0.0
    %367 = vmatprep.subr.mxu0 0.0
    %368 = vmatpush2.msra.mxu0 0.0
    %369 = vmatprep.subr.mxu0 0.0
    %370 = vmatpush2.msra.mxu0 0.0
    %371 = vmatprep.mubr.f32.mxu0 0.0
    %372 = vmatmul.mubr.f32.gmra.mxu0 %v302
    %v373 = vpop.f32.mrf.mxu0
    %v374 = vadd.f32 %v299, %v373
    %v375 = vpop.f32.mrf.mxu0
    %376 = vmatprep.mubr.f32.mxu0 0.0
    %377 = vmatmul.mubr.f32.gmra.mxu0 %v305
    %v378 = vpop.f32.mrf.mxu0
    %v379 = vadd.f32 %v299, %v378
    %v380 = vpop.f32.mrf.mxu0
    %381 = vdwg.mxu0
    %v382 = vmul.f32 %v374, 0.35355338
    %v383 = vmul.f32 %v379, 0.35355338
    %v384 = vld [vmem:[#allocation6 + $0x48] sm:$0xff]
    %v385 = vld [vmem:[#allocation6 + $0x50] sm:$0xff]
    %v386 = vld [vmem:[#allocation6 + $0x58] sm:$0xff]
    %v387 = vld [vmem:[#allocation6 + $0x60] sm:$0xff]
    %v388 = vld [vmem:[#allocation6 + $0x90] sm:$0x1]
    %v389 = vlaneseq
    %v390 = vshrl.u32 %v389, 7
    %v391 = vsub.s32 0, %v390
    %v392 = vrot.slane %v388, %v391
    %393 = vmatprep.subr.mxu0 0.0
    %394 = vmatpush1.msra.mxu0 0.0
    %395 = vmatprep.subr.mxu0 0.0
    %396 = vmatpush1.msra.mxu0 0.0
    %397 = vmatprep.subr.mxu0 0.0
    %398 = vmatpush1.msra.mxu0 0.0
    %399 = vmatprep.subr.mxu0 0.0
    %400 = vmatpush1.msra.mxu0 0.0
    %401 = vmatprep.subr.mxu0 0.0
    %402 = vmatpush1.msra.mxu0 0.0
    %403 = vmatprep.subr.mxu0 0.0
    %404 = vmatpush1.msra.mxu0 0.0
    %405 = vmatprep.subr.mxu0 0.0
    %406 = vmatpush1.msra.mxu0 0.0
    %407 = vmatprep.subr.mxu0 0.0
    %408 = vmatpush1.msra.mxu0 0.0
    %409 = vmatprep.subr.mxu0 0.0
    %410 = vmatpush1.msra.mxu0 0.0
    %411 = vmatprep.subr.mxu0 0.0
    %412 = vmatpush1.msra.mxu0 0.0
    %413 = vmatprep.subr.mxu0 0.0
    %414 = vmatpush1.msra.mxu0 0.0
    %415 = vmatprep.subr.mxu0 0.0
    %416 = vmatpush1.msra.mxu0 0.0
    %417 = vmatprep.subr.mxu0 0.0
    %418 = vmatpush1.msra.mxu0 %v387
    %419 = vmatprep.subr.mxu0 0.0
    %420 = vmatpush1.msra.mxu0 %v386
    %421 = vmatprep.subr.mxu0 0.0
    %422 = vmatpush1.msra.mxu0 %v385
    %423 = vmatprep.subr.mxu0 0.0
    %424 = vmatpush1.msra.mxu0 %v384
    %425 = vmatprep.subr.mxu0 0.0
    %426 = vmatpush2.msra.mxu0 0.0
    %427 = vmatprep.subr.mxu0 0.0
    %428 = vmatpush2.msra.mxu0 0.0
    %429 = vmatprep.subr.mxu0 0.0
    %430 = vmatpush2.msra.mxu0 0.0
    %431 = vmatprep.subr.mxu0 0.0
    %432 = vmatpush2.msra.mxu0 0.0
    %433 = vmatprep.subr.mxu0 0.0
    %434 = vmatpush2.msra.mxu0 0.0
    %435 = vmatprep.subr.mxu0 0.0
    %436 = vmatpush2.msra.mxu0 0.0
    %437 = vmatprep.subr.mxu0 0.0
    %438 = vmatpush2.msra.mxu0 0.0
    %439 = vmatprep.subr.mxu0 0.0
    %440 = vmatpush2.msra.mxu0 0.0
    %441 = vmatprep.subr.mxu0 0.0
    %442 = vmatpush2.msra.mxu0 0.0
    %443 = vmatprep.subr.mxu0 0.0
    %444 = vmatpush2.msra.mxu0 0.0
    %445 = vmatprep.subr.mxu0 0.0
    %446 = vmatpush2.msra.mxu0 0.0
    %447 = vmatprep.subr.mxu0 0.0
    %448 = vmatpush2.msra.mxu0 0.0
    %449 = vmatprep.subr.mxu0 0.0
    %450 = vmatpush2.msra.mxu0 0.0
    %451 = vmatprep.subr.mxu0 0.0
    %452 = vmatpush2.msra.mxu0 0.0
    %453 = vmatprep.subr.mxu0 0.0
    %454 = vmatpush2.msra.mxu0 0.0
    %455 = vmatprep.subr.mxu0 0.0
    %456 = vmatpush2.msra.mxu0 0.0
    %457 = vmatprep.mubr.f32.mxu0 0.0
    %458 = vmatmul.mubr.f32.gmra.mxu0 %v302
    %v459 = vpop.f32.mrf.mxu0
    %v460 = vadd.f32 %v392, %v459
    %v461 = vpop.f32.mrf.mxu0
    %462 = vmatprep.mubr.f32.mxu0 0.0
    %463 = vmatmul.mubr.f32.gmra.mxu0 %v305
    %v464 = vpop.f32.mrf.mxu0
    %v465 = vadd.f32 %v392, %v464
    %v466 = vpop.f32.mrf.mxu0
    %467 = vdwg.mxu0
    %v468 = vld [vmem:[#allocation6 + $0x68] sm:$0xff]
    %v469 = vld [vmem:[#allocation6 + $0x70] sm:$0xff]
    %v470 = vld [vmem:[#allocation6 + $0x78] sm:$0xff]
    %v471 = vld [vmem:[#allocation6 + $0x80] sm:$0xff]
    %v472 = vld [vmem:[#allocation6 + $0x98] sm:$0x1]
    %v473 = vlaneseq
    %v474 = vshrl.u32 %v473, 7
    %v475 = vsub.s32 0, %v474
    %v476 = vrot.slane %v472, %v475
    %477 = vmatprep.subr.mxu0 0.0
    %478 = vmatpush1.msra.mxu0 0.0
    %479 = vmatprep.subr.mxu0 0.0
    %480 = vmatpush1.msra.mxu0 0.0
    %481 = vmatprep.subr.mxu0 0.0
    %482 = vmatpush1.msra.mxu0 0.0
    %483 = vmatprep.subr.mxu0 0.0
    %484 = vmatpush1.msra.mxu0 0.0
    %485 = vmatprep.subr.mxu0 0.0
    %486 = vmatpush1.msra.mxu0 0.0
    %487 = vmatprep.subr.mxu0 0.0
    %488 = vmatpush1.msra.mxu0 0.0
    %489 = vmatprep.subr.mxu0 0.0
    %490 = vmatpush1.msra.mxu0 0.0
    %491 = vmatprep.subr.mxu0 0.0
    %492 = vmatpush1.msra.mxu0 0.0
    %493 = vmatprep.subr.mxu0 0.0
    %494 = vmatpush1.msra.mxu0 0.0
    %495 = vmatprep.subr.mxu0 0.0
    %496 = vmatpush1.msra.mxu0 0.0
    %497 = vmatprep.subr.mxu0 0.0
    %498 = vmatpush1.msra.mxu0 0.0
    %499 = vmatprep.subr.mxu0 0.0
    %500 = vmatpush1.msra.mxu0 0.0
    %501 = vmatprep.subr.mxu0 0.0
    %502 = vmatpush1.msra.mxu0 %v471
    %503 = vmatprep.subr.mxu0 0.0
    %504 = vmatpush1.msra.mxu0 %v470
    %505 = vmatprep.subr.mxu0 0.0
    %506 = vmatpush1.msra.mxu0 %v469
    %507 = vmatprep.subr.mxu0 0.0
    %508 = vmatpush1.msra.mxu0 %v468
    %509 = vmatprep.subr.mxu0 0.0
    %510 = vmatpush2.msra.mxu0 0.0
    %511 = vmatprep.subr.mxu0 0.0
    %512 = vmatpush2.msra.mxu0 0.0
    %513 = vmatprep.subr.mxu0 0.0
    %514 = vmatpush2.msra.mxu0 0.0
    %515 = vmatprep.subr.mxu0 0.0
    %516 = vmatpush2.msra.mxu0 0.0
    %517 = vmatprep.subr.mxu0 0.0
    %518 = vmatpush2.msra.mxu0 0.0
    %519 = vmatprep.subr.mxu0 0.0
    %520 = vmatpush2.msra.mxu0 0.0
    %521 = vmatprep.subr.mxu0 0.0
    %522 = vmatpush2.msra.mxu0 0.0
    %523 = vmatprep.subr.mxu0 0.0
    %524 = vmatpush2.msra.mxu0 0.0
    %525 = vmatprep.subr.mxu0 0.0
    %526 = vmatpush2.msra.mxu0 0.0
    %527 = vmatprep.subr.mxu0 0.0
    %528 = vmatpush2.msra.mxu0 0.0
    %529 = vmatprep.subr.mxu0 0.0
    %530 = vmatpush2.msra.mxu0 0.0
    %531 = vmatprep.subr.mxu0 0.0
    %532 = vmatpush2.msra.mxu0 0.0
    %533 = vmatprep.subr.mxu0 0.0
    %534 = vmatpush2.msra.mxu0 0.0
    %535 = vmatprep.subr.mxu0 0.0
    %536 = vmatpush2.msra.mxu0 0.0
    %537 = vmatprep.subr.mxu0 0.0
    %538 = vmatpush2.msra.mxu0 0.0
    %539 = vmatprep.subr.mxu0 0.0
    %540 = vmatpush2.msra.mxu0 0.0
    %541 = vmatprep.mubr.f32.mxu0 0.0
    %542 = vmatmul.mubr.f32.gmra.mxu0 %v302
    %v543 = vpop.f32.mrf.mxu0
    %v544 = vadd.f32 %v476, %v543
    %v545 = vpop.f32.mrf.mxu0
    %546 = vmatprep.mubr.f32.mxu0 0.0
    %547 = vmatmul.mubr.f32.gmra.mxu0 %v305
    %v548 = vpop.f32.mrf.mxu0
    %v549 = vadd.f32 %v476, %v548
    %v550 = vpop.f32.mrf.mxu0
    %551 = vdwg.mxu0
    %vm552 = vcmask 64512
    %v554 = vsel %vm552, %v382, 0
    %v557 = vsel %vm552, %v383, 0
    %v560 = vsel %vm552, %v460, 0
    %v563 = vsel %vm552, %v465, 0
    %565 = vmatprep.subr.mxu0 0.0
    %566 = vmatpush1.xpose.msra.mxu0 0.0
    %567 = vmatprep.subr.mxu0 0.0
    %568 = vmatpush1.xpose.msra.mxu0 0.0
    %569 = vmatprep.subr.mxu0 0.0
    %570 = vmatpush1.xpose.msra.mxu0 0.0
    %571 = vmatprep.subr.mxu0 0.0
    %572 = vmatpush1.xpose.msra.mxu0 0.0
    %573 = vmatprep.subr.mxu0 0.0
    %574 = vmatpush1.xpose.msra.mxu0 0.0
    %575 = vmatprep.subr.mxu0 0.0
    %576 = vmatpush1.xpose.msra.mxu0 0.0
    %577 = vmatprep.subr.mxu0 0.0
    %578 = vmatpush1.xpose.msra.mxu0 0.0
    %579 = vmatprep.subr.mxu0 0.0
    %580 = vmatpush1.xpose.msra.mxu0 0.0
    %581 = vmatprep.subr.mxu0 0.0
    %582 = vmatpush1.xpose.msra.mxu0 0.0
    %583 = vmatprep.subr.mxu0 0.0
    %584 = vmatpush1.xpose.msra.mxu0 0.0
    %585 = vmatprep.subr.mxu0 0.0
    %586 = vmatpush1.xpose.msra.mxu0 0.0
    %587 = vmatprep.subr.mxu0 0.0
    %588 = vmatpush1.xpose.msra.mxu0 0.0
    %589 = vmatprep.subr.mxu0 0.0
    %590 = vmatpush1.xpose.msra.mxu0 0.0
    %591 = vmatprep.subr.mxu0 0.0
    %592 = vmatpush1.xpose.msra.mxu0 0.0
    %593 = vmatprep.subr.mxu0 0.0
    %594 = vmatpush1.xpose.msra.mxu0 %v563
    %595 = vmatprep.subr.mxu0 0.0
    %596 = vmatpush1.xpose.msra.mxu0 %v560
    %597 = vmatprep.subr.mxu0 0.0
    %598 = vmatpush2.xpose.msra.mxu0 0.0
    %599 = vmatprep.subr.mxu0 0.0
    %600 = vmatpush2.xpose.msra.mxu0 0.0
    %601 = vmatprep.subr.mxu0 0.0
    %602 = vmatpush2.xpose.msra.mxu0 0.0
    %603 = vmatprep.subr.mxu0 0.0
    %604 = vmatpush2.xpose.msra.mxu0 0.0
    %605 = vmatprep.subr.mxu0 0.0
    %606 = vmatpush2.xpose.msra.mxu0 0.0
    %607 = vmatprep.subr.mxu0 0.0
    %608 = vmatpush2.xpose.msra.mxu0 0.0
    %609 = vmatprep.subr.mxu0 0.0
    %610 = vmatpush2.xpose.msra.mxu0 0.0
    %611 = vmatprep.subr.mxu0 0.0
    %612 = vmatpush2.xpose.msra.mxu0 0.0
    %613 = vmatprep.subr.mxu0 0.0
    %614 = vmatpush2.xpose.msra.mxu0 0.0
    %615 = vmatprep.subr.mxu0 0.0
    %616 = vmatpush2.xpose.msra.mxu0 0.0
    %617 = vmatprep.subr.mxu0 0.0
    %618 = vmatpush2.xpose.msra.mxu0 0.0
    %619 = vmatprep.subr.mxu0 0.0
    %620 = vmatpush2.xpose.msra.mxu0 0.0
    %621 = vmatprep.subr.mxu0 0.0
    %622 = vmatpush2.xpose.msra.mxu0 0.0
    %623 = vmatprep.subr.mxu0 0.0
    %624 = vmatpush2.xpose.msra.mxu0 0.0
    %625 = vmatprep.subr.mxu0 0.0
    %626 = vmatpush2.xpose.msra.mxu0 0.0
    %627 = vmatprep.subr.mxu0 0.0
    %628 = vmatpush2.xpose.msra.mxu0 0.0
    %629 = vmatprep.mubr.f32.mxu0 0.0
    %630 = vmatmul.mubr.f32.gmra.mxu0 %v554
    %v631 = vpop.f32.mrf.mxu0
    %v632 = vadd.f32 %v288, %v631
    %v633 = vpop.f32.mrf.mxu0
    %634 = vmatprep.mubr.f32.mxu0 0.0
    %635 = vmatmul.mubr.f32.gmra.mxu0 %v557
    %v636 = vpop.f32.mrf.mxu0
    %v637 = vadd.f32 %v289, %v636
    %v638 = vpop.f32.mrf.mxu0
    %639 = vdwg.mxu0
    %v640 = vsel %vm214, %v632, -inf
    %641 = vmax.xlane.f32.xlu0 %v640
    %v642 = vpop.xlane.xlu0 %641
    %v643 = vsel %vm214, %v637, -inf
    %644 = vmax.xlane.f32.xlu0 %v643
    %v645 = vpop.xlane.xlu0 %644
    %v646 = vsub.f32 %v632, %v642
    %v647 = vsub.f32 %v637, %v645
    %v648 = vmul.f32 %v646, 1.442695
    %v649 = vpow.pop %v648
    %v650 = vmul.f32 %v647, 1.442695
    %v651 = vpow.pop %v650
    %v652 = vsel %vm214, %v649, 0.0
    %653 = vadd.xlane.f32.xlu0 %v652
    %v654 = vpop.xlane.xlu0 %653
    %v655 = vsel %vm214, %v651, 0.0
    %656 = vadd.xlane.f32.xlu0 %v655
    %v657 = vpop.xlane.xlu0 %656
    %v658 = vrcp.pop %v654
    %v659 = vmul.f32 %v649, %v658
    %v660 = vrcp.pop %v657
    %v661 = vmul.f32 %v651, %v660
    %v663 = vsel %vm214, %v659, 0
    %v666 = vsel %vm214, %v661, 0
    %668 = vmatprep.subr.mxu0 0.0
    %669 = vmatpush1.msra.mxu0 0.0
    %670 = vmatprep.subr.mxu0 0.0
    %671 = vmatpush1.msra.mxu0 0.0
    %672 = vmatprep.subr.mxu0 0.0
    %673 = vmatpush1.msra.mxu0 0.0
    %674 = vmatprep.subr.mxu0 0.0
    %675 = vmatpush1.msra.mxu0 0.0
    %676 = vmatprep.subr.mxu0 0.0
    %677 = vmatpush1.msra.mxu0 0.0
    %678 = vmatprep.subr.mxu0 0.0
    %679 = vmatpush1.msra.mxu0 0.0
    %680 = vmatprep.subr.mxu0 0.0
    %681 = vmatpush1.msra.mxu0 0.0
    %682 = vmatprep.subr.mxu0 0.0
    %683 = vmatpush1.msra.mxu0 0.0
    %684 = vmatprep.subr.mxu0 0.0
    %685 = vmatpush1.msra.mxu0 0.0
    %686 = vmatprep.subr.mxu0 0.0
    %687 = vmatpush1.msra.mxu0 0.0
    %688 = vmatprep.subr.mxu0 0.0
    %689 = vmatpush1.msra.mxu0 0.0
    %690 = vmatprep.subr.mxu0 0.0
    %691 = vmatpush1.msra.mxu0 0.0
    %692 = vmatprep.subr.mxu0 0.0
    %693 = vmatpush1.msra.mxu0 0.0
    %694 = vmatprep.subr.mxu0 0.0
    %695 = vmatpush1.msra.mxu0 0.0
    %696 = vmatprep.subr.mxu0 0.0
    %697 = vmatpush1.msra.mxu0 %v549
    %698 = vmatprep.subr.mxu0 0.0
    %699 = vmatpush1.msra.mxu0 %v544
    %700 = vmatprep.subr.mxu0 0.0
    %701 = vmatpush2.msra.mxu0 0.0
    %702 = vmatprep.subr.mxu0 0.0
    %703 = vmatpush2.msra.mxu0 0.0
    %704 = vmatprep.subr.mxu0 0.0
    %705 = vmatpush2.msra.mxu0 0.0
    %706 = vmatprep.subr.mxu0 0.0
    %707 = vmatpush2.msra.mxu0 0.0
    %708 = vmatprep.subr.mxu0 0.0
    %709 = vmatpush2.msra.mxu0 0.0
    %710 = vmatprep.subr.mxu0 0.0
    %711 = vmatpush2.msra.mxu0 0.0
    %712 = vmatprep.subr.mxu0 0.0
    %713 = vmatpush2.msra.mxu0 0.0
    %714 = vmatprep.subr.mxu0 0.0
    %715 = vmatpush2.msra.mxu0 0.0
    %716 = vmatprep.subr.mxu0 0.0
    %717 = vmatpush2.msra.mxu0 0.0
    %718 = vmatprep.subr.mxu0 0.0
    %719 = vmatpush2.msra.mxu0 0.0
    %720 = vmatprep.subr.mxu0 0.0
    %721 = vmatpush2.msra.mxu0 0.0
    %722 = vmatprep.subr.mxu0 0.0
    %723 = vmatpush2.msra.mxu0 0.0
    %724 = vmatprep.subr.mxu0 0.0
    %725 = vmatpush2.msra.mxu0 0.0
    %726 = vmatprep.subr.mxu0 0.0
    %727 = vmatpush2.msra.mxu0 0.0
    %728 = vmatprep.subr.mxu0 0.0
    %729 = vmatpush2.msra.mxu0 0.0
    %730 = vmatprep.subr.mxu0 0.0
    %731 = vmatpush2.msra.mxu0 0.0
    %732 = vmatprep.mubr.f32.mxu0 0.0
    %733 = vmatmul.mubr.f32.gmra.mxu0 %v663
    %v734 = vpop.f32.mrf.mxu0
    %v735 = vadd.f32 0.0, %v734
    %v736 = vpop.f32.mrf.mxu0
    %737 = vmatprep.mubr.f32.mxu0 0.0
    %738 = vmatmul.mubr.f32.gmra.mxu0 %v666
    %v739 = vpop.f32.mrf.mxu0
    %v740 = vadd.f32 0.0, %v739
    %v741 = vpop.f32.mrf.mxu0
    %742 = vdwg.mxu0
    %v743 = vld [vmem:[#allocation6 + $0xa0] sm:$0xff]
    %v744 = vld [vmem:[#allocation6 + $0xa8] sm:$0xff]
    %v745 = vld [vmem:[#allocation6 + $0xb0] sm:$0xff]
    %v746 = vld [vmem:[#allocation6 + $0xb8] sm:$0xff]
    %v747 = vld [vmem:[#allocation6 + $0xc0] sm:$0xff]
    %v748 = vld [vmem:[#allocation6 + $0x108] sm:$0x1]
    %v749 = vlaneseq
    %v750 = vshrl.u32 %v749, 7
    %v751 = vsub.s32 0, %v750
    %v752 = vrot.slane %v748, %v751
    %753 = vmatprep.subr.mxu0 0.0
    %754 = vmatpush1.msra.mxu0 0.0
    %755 = vmatprep.subr.mxu0 0.0
    %756 = vmatpush1.msra.mxu0 0.0
    %757 = vmatprep.subr.mxu0 0.0
    %758 = vmatpush1.msra.mxu0 0.0
    %759 = vmatprep.subr.mxu0 0.0
    %760 = vmatpush1.msra.mxu0 0.0
    %761 = vmatprep.subr.mxu0 0.0
    %762 = vmatpush1.msra.mxu0 0.0
    %763 = vmatprep.subr.mxu0 0.0
    %764 = vmatpush1.msra.mxu0 0.0
    %765 = vmatprep.subr.mxu0 0.0
    %766 = vmatpush1.msra.mxu0 0.0
    %767 = vmatprep.subr.mxu0 0.0
    %768 = vmatpush1.msra.mxu0 0.0
    %769 = vmatprep.subr.mxu0 0.0
    %770 = vmatpush1.msra.mxu0 0.0
    %771 = vmatprep.subr.mxu0 0.0
    %772 = vmatpush1.msra.mxu0 0.0
    %773 = vmatprep.subr.mxu0 0.0
    %774 = vmatpush1.msra.mxu0 0.0
    %775 = vmatprep.subr.mxu0 0.0
    %776 = vmatpush1.msra.mxu0 0.0
    %777 = vmatprep.subr.mxu0 0.0
    %778 = vmatpush1.msra.mxu0 %v747
    %779 = vmatprep.subr.mxu0 0.0
    %780 = vmatpush1.msra.mxu0 %v746
    %781 = vmatprep.subr.mxu0 0.0
    %782 = vmatpush1.msra.mxu0 %v745
    %783 = vmatprep.subr.mxu0 0.0
    %784 = vmatpush1.msra.mxu0 %v744
    %785 = vmatprep.subr.mxu0 0.0
    %786 = vmatpush2.msra.mxu0 0.0
    %787 = vmatprep.subr.mxu0 0.0
    %788 = vmatpush2.msra.mxu0 0.0
    %789 = vmatprep.subr.mxu0 0.0
    %790 = vmatpush2.msra.mxu0 0.0
    %791 = vmatprep.subr.mxu0 0.0
    %792 = vmatpush2.msra.mxu0 0.0
    %793 = vmatprep.subr.mxu0 0.0
    %794 = vmatpush2.msra.mxu0 0.0
    %795 = vmatprep.subr.mxu0 0.0
    %796 = vmatpush2.msra.mxu0 0.0
    %797 = vmatprep.subr.mxu0 0.0
    %798 = vmatpush2.msra.mxu0 0.0
    %799 = vmatprep.subr.mxu0 0.0
    %800 = vmatpush2.msra.mxu0 0.0
    %801 = vmatprep.subr.mxu0 0.0
    %802 = vmatpush2.msra.mxu0 0.0
    %803 = vmatprep.subr.mxu0 0.0
    %804 = vmatpush2.msra.mxu0 0.0
    %805 = vmatprep.subr.mxu0 0.0
    %806 = vmatpush2.msra.mxu0 0.0
    %807 = vmatprep.subr.mxu0 0.0
    %808 = vmatpush2.msra.mxu0 0.0
    %809 = vmatprep.subr.mxu0 0.0
    %810 = vmatpush2.msra.mxu0 0.0
    %811 = vmatprep.subr.mxu0 0.0
    %812 = vmatpush2.msra.mxu0 0.0
    %813 = vmatprep.subr.mxu0 0.0
    %814 = vmatpush2.msra.mxu0 0.0
    %815 = vmatprep.subr.mxu0 0.0
    %816 = vmatpush2.msra.mxu0 0.0
    %817 = vmatprep.mubr.f32.mxu0 0.0
    %818 = vmatmul.mubr.f32.gmra.mxu0 %v302
    %v819 = vpop.f32.mrf.mxu0
    %v820 = vadd.f32 %v752, %v819
    %v821 = vpop.f32.mrf.mxu0
    %822 = vmatprep.mubr.f32.mxu0 0.0
    %823 = vmatmul.mubr.f32.gmra.mxu0 %v305
    %v824 = vpop.f32.mrf.mxu0
    %v825 = vadd.f32 %v752, %v824
    %v826 = vpop.f32.mrf.mxu0
    %827 = vdwg.mxu0
    %v828 = vmul.f32 %v820, 0.35355338
    %v829 = vmul.f32 %v825, 0.35355338
    %v830 = vld [vmem:[#allocation6 + $0xc8] sm:$0xff]
    %v831 = vld [vmem:[#allocation6 + $0xd0] sm:$0xff]
    %v832 = vld [vmem:[#allocation6 + $0xd8] sm:$0xff]
    %v833 = vld [vmem:[#allocation6 + $0xe0] sm:$0xff]
    %v834 = vld [vmem:[#allocation6 + $0x110] sm:$0x1]
    %v835 = vlaneseq
    %v836 = vshrl.u32 %v835, 7
    %v837 = vsub.s32 0, %v836
    %v838 = vrot.slane %v834, %v837
    %839 = vmatprep.subr.mxu0 0.0
    %840 = vmatpush1.msra.mxu0 0.0
    %841 = vmatprep.subr.mxu0 0.0
    %842 = vmatpush1.msra.mxu0 0.0
    %843 = vmatprep.subr.mxu0 0.0
    %844 = vmatpush1.msra.mxu0 0.0
    %845 = vmatprep.subr.mxu0 0.0
    %846 = vmatpush1.msra.mxu0 0.0
    %847 = vmatprep.subr.mxu0 0.0
    %848 = vmatpush1.msra.mxu0 0.0
    %849 = vmatprep.subr.mxu0 0.0
    %850 = vmatpush1.msra.mxu0 0.0
    %851 = vmatprep.subr.mxu0 0.0
    %852 = vmatpush1.msra.mxu0 0.0
    %853 = vmatprep.subr.mxu0 0.0
    %854 = vmatpush1.msra.mxu0 0.0
    %855 = vmatprep.subr.mxu0 0.0
    %856 = vmatpush1.msra.mxu0 0.0
    %857 = vmatprep.subr.mxu0 0.0
    %858 = vmatpush1.msra.mxu0 0.0
    %859 = vmatprep.subr.mxu0 0.0
    %860 = vmatpush1.msra.mxu0 0.0
    %861 = vmatprep.subr.mxu0 0.0
    %862 = vmatpush1.msra.mxu0 0.0
    %863 = vmatprep.subr.mxu0 0.0
    %864 = vmatpush1.msra.mxu0 %v833
    %865 = vmatprep.subr.mxu0 0.0
    %866 = vmatpush1.msra.mxu0 %v832
    %867 = vmatprep.subr.mxu0 0.0
    %868 = vmatpush1.msra.mxu0 %v831
    %869 = vmatprep.subr.mxu0 0.0
    %870 = vmatpush1.msra.mxu0 %v830
    %871 = vmatprep.subr.mxu0 0.0
    %872 = vmatpush2.msra.mxu0 0.0
    %873 = vmatprep.subr.mxu0 0.0
    %874 = vmatpush2.msra.mxu0 0.0
    %875 = vmatprep.subr.mxu0 0.0
    %876 = vmatpush2.msra.mxu0 0.0
    %877 = vmatprep.subr.mxu0 0.0
    %878 = vmatpush2.msra.mxu0 0.0
    %879 = vmatprep.subr.mxu0 0.0
    %880 = vmatpush2.msra.mxu0 0.0
    %881 = vmatprep.subr.mxu0 0.0
    %882 = vmatpush2.msra.mxu0 0.0
    %883 = vmatprep.subr.mxu0 0.0
    %884 = vmatpush2.msra.mxu0 0.0
    %885 = vmatprep.subr.mxu0 0.0
    %886 = vmatpush2.msra.mxu0 0.0
    %887 = vmatprep.subr.mxu0 0.0
    %888 = vmatpush2.msra.mxu0 0.0
    %889 = vmatprep.subr.mxu0 0.0
    %890 = vmatpush2.msra.mxu0 0.0
    %891 = vmatprep.subr.mxu0 0.0
    %892 = vmatpush2.msra.mxu0 0.0
    %893 = vmatprep.subr.mxu0 0.0
    %894 = vmatpush2.msra.mxu0 0.0
    %895 = vmatprep.subr.mxu0 0.0
    %896 = vmatpush2.msra.mxu0 0.0
    %897 = vmatprep.subr.mxu0 0.0
    %898 = vmatpush2.msra.mxu0 0.0
    %899 = vmatprep.subr.mxu0 0.0
    %900 = vmatpush2.msra.mxu0 0.0
    %901 = vmatprep.subr.mxu0 0.0
    %902 = vmatpush2.msra.mxu0 0.0
    %903 = vmatprep.mubr.f32.mxu0 0.0
    %904 = vmatmul.mubr.f32.gmra.mxu0 %v302
    %v905 = vpop.f32.mrf.mxu0
    %v906 = vadd.f32 %v838, %v905
    %v907 = vpop.f32.mrf.mxu0
    %908 = vmatprep.mubr.f32.mxu0 0.0
    %909 = vmatmul.mubr.f32.gmra.mxu0 %v305
    %v910 = vpop.f32.mrf.mxu0
    %v911 = vadd.f32 %v838, %v910
    %v912 = vpop.f32.mrf.mxu0
    %913 = vdwg.mxu0
    %v914 = vld [vmem:[#allocation6 + $0xe8] sm:$0xff]
    %v915 = vld [vmem:[#allocation6 + $0xf0] sm:$0xff]
    %v916 = vld [vmem:[#allocation6 + $0xf8] sm:$0xff]
    %v917 = vld [vmem:[#allocation6 + $0x100] sm:$0xff]
    %v918 = vld [vmem:[#allocation6 + $0x118] sm:$0x1]
    %v919 = vlaneseq
    %v920 = vshrl.u32 %v919, 7
    %v921 = vsub.s32 0, %v920
    %v922 = vrot.slane %v918, %v921
    %923 = vmatprep.subr.mxu0 0.0
    %924 = vmatpush1.msra.mxu0 0.0
    %925 = vmatprep.subr.mxu0 0.0
    %926 = vmatpush1.msra.mxu0 0.0
    %927 = vmatprep.subr.mxu0 0.0
    %928 = vmatpush1.msra.mxu0 0.0
    %929 = vmatprep.subr.mxu0 0.0
    %930 = vmatpush1.msra.mxu0 0.0
    %931 = vmatprep.subr.mxu0 0.0
    %932 = vmatpush1.msra.mxu0 0.0
    %933 = vmatprep.subr.mxu0 0.0
    %934 = vmatpush1.msra.mxu0 0.0
    %935 = vmatprep.subr.mxu0 0.0
    %936 = vmatpush1.msra.mxu0 0.0
    %937 = vmatprep.subr.mxu0 0.0
    %938 = vmatpush1.msra.mxu0 0.0
    %939 = vmatprep.subr.mxu0 0.0
    %940 = vmatpush1.msra.mxu0 0.0
    %941 = vmatprep.subr.mxu0 0.0
    %942 = vmatpush1.msra.mxu0 0.0
    %943 = vmatprep.subr.mxu0 0.0
    %944 = vmatpush1.msra.mxu0 0.0
    %945 = vmatprep.subr.mxu0 0.0
    %946 = vmatpush1.msra.mxu0 0.0
    %947 = vmatprep.subr.mxu0 0.0
    %948 = vmatpush1.msra.mxu0 %v917
    %949 = vmatprep.subr.mxu0 0.0
    %950 = vmatpush1.msra.mxu0 %v916
    %951 = vmatprep.subr.mxu0 0.0
    %952 = vmatpush1.msra.mxu0 %v915
    %953 = vmatprep.subr.mxu0 0.0
    %954 = vmatpush1.msra.mxu0 %v914
    %955 = vmatprep.subr.mxu0 0.0
    %956 = vmatpush2.msra.mxu0 0.0
    %957 = vmatprep.subr.mxu0 0.0
    %958 = vmatpush2.msra.mxu0 0.0
    %959 = vmatprep.subr.mxu0 0.0
    %960 = vmatpush2.msra.mxu0 0.0
    %961 = vmatprep.subr.mxu0 0.0
    %962 = vmatpush2.msra.mxu0 0.0
    %963 = vmatprep.subr.mxu0 0.0
    %964 = vmatpush2.msra.mxu0 0.0
    %965 = vmatprep.subr.mxu0 0.0
    %966 = vmatpush2.msra.mxu0 0.0
    %967 = vmatprep.subr.mxu0 0.0
    %968 = vmatpush2.msra.mxu0 0.0
    %969 = vmatprep.subr.mxu0 0.0
    %970 = vmatpush2.msra.mxu0 0.0
    %971 = vmatprep.subr.mxu0 0.0
    %972 = vmatpush2.msra.mxu0 0.0
    %973 = vmatprep.subr.mxu0 0.0
    %974 = vmatpush2.msra.mxu0 0.0
    %975 = vmatprep.subr.mxu0 0.0
    %976 = vmatpush2.msra.mxu0 0.0
    %977 = vmatprep.subr.mxu0 0.0
    %978 = vmatpush2.msra.mxu0 0.0
    %979 = vmatprep.subr.mxu0 0.0
    %980 = vmatpush2.msra.mxu0 0.0
    %981 = vmatprep.subr.mxu0 0.0
    %982 = vmatpush2.msra.mxu0 0.0
    %983 = vmatprep.subr.mxu0 0.0
    %984 = vmatpush2.msra.mxu0 0.0
    %985 = vmatprep.subr.mxu0 0.0
    %986 = vmatpush2.msra.mxu0 0.0
    %987 = vmatprep.mubr.f32.mxu0 0.0
    %988 = vmatmul.mubr.f32.gmra.mxu0 %v302
    %v989 = vpop.f32.mrf.mxu0
    %v990 = vadd.f32 %v922, %v989
    %v991 = vpop.f32.mrf.mxu0
    %992 = vmatprep.mubr.f32.mxu0 0.0
    %993 = vmatmul.mubr.f32.gmra.mxu0 %v305
    %v994 = vpop.f32.mrf.mxu0
    %v995 = vadd.f32 %v922, %v994
    %v996 = vpop.f32.mrf.mxu0
    %997 = vdwg.mxu0
    %v999 = vsel %vm552, %v828, 0
    %v1002 = vsel %vm552, %v829, 0
    %v1005 = vsel %vm552, %v906, 0
    %v1008 = vsel %vm552, %v911, 0
    %1010 = vmatprep.subr.mxu0 0.0
    %1011 = vmatpush1.xpose.msra.mxu0 0.0
    %1012 = vmatprep.subr.mxu0 0.0
    %1013 = vmatpush1.xpose.msra.mxu0 0.0
    %1014 = vmatprep.subr.mxu0 0.0
    %1015 = vmatpush1.xpose.msra.mxu0 0.0
    %1016 = vmatprep.subr.mxu0 0.0
    %1017 = vmatpush1.xpose.msra.mxu0 0.0
    %1018 = vmatprep.subr.mxu0 0.0
    %1019 = vmatpush1.xpose.msra.mxu0 0.0
    %1020 = vmatprep.subr.mxu0 0.0
    %1021 = vmatpush1.xpose.msra.mxu0 0.0
    %1022 = vmatprep.subr.mxu0 0.0
    %1023 = vmatpush1.xpose.msra.mxu0 0.0
    %1024 = vmatprep.subr.mxu0 0.0
    %1025 = vmatpush1.xpose.msra.mxu0 0.0
    %1026 = vmatprep.subr.mxu0 0.0
    %1027 = vmatpush1.xpose.msra.mxu0 0.0
    %1028 = vmatprep.subr.mxu0 0.0
    %1029 = vmatpush1.xpose.msra.mxu0 0.0
    %1030 = vmatprep.subr.mxu0 0.0
    %1031 = vmatpush1.xpose.msra.mxu0 0.0
    %1032 = vmatprep.subr.mxu0 0.0
    %1033 = vmatpush1.xpose.msra.mxu0 0.0
    %1034 = vmatprep.subr.mxu0 0.0
    %1035 = vmatpush1.xpose.msra.mxu0 0.0
    %1036 = vmatprep.subr.mxu0 0.0
    %1037 = vmatpush1.xpose.msra.mxu0 0.0
    %1038 = vmatprep.subr.mxu0 0.0
    %1039 = vmatpush1.xpose.msra.mxu0 %v1008
    %1040 = vmatprep.subr.mxu0 0.0
    %1041 = vmatpush1.xpose.msra.mxu0 %v1005
    %1042 = vmatprep.subr.mxu0 0.0
    %1043 = vmatpush2.xpose.msra.mxu0 0.0
    %1044 = vmatprep.subr.mxu0 0.0
    %1045 = vmatpush2.xpose.msra.mxu0 0.0
    %1046 = vmatprep.subr.mxu0 0.0
    %1047 = vmatpush2.xpose.msra.mxu0 0.0
    %1048 = vmatprep.subr.mxu0 0.0
    %1049 = vmatpush2.xpose.msra.mxu0 0.0
    %1050 = vmatprep.subr.mxu0 0.0
    %1051 = vmatpush2.xpose.msra.mxu0 0.0
    %1052 = vmatprep.subr.mxu0 0.0
    %1053 = vmatpush2.xpose.msra.mxu0 0.0
    %1054 = vmatprep.subr.mxu0 0.0
    %1055 = vmatpush2.xpose.msra.mxu0 0.0
    %1056 = vmatprep.subr.mxu0 0.0
    %1057 = vmatpush2.xpose.msra.mxu0 0.0
    %1058 = vmatprep.subr.mxu0 0.0
    %1059 = vmatpush2.xpose.msra.mxu0 0.0
    %1060 = vmatprep.subr.mxu0 0.0
    %1061 = vmatpush2.xpose.msra.mxu0 0.0
    %1062 = vmatprep.subr.mxu0 0.0
    %1063 = vmatpush2.xpose.msra.mxu0 0.0
    %1064 = vmatprep.subr.mxu0 0.0
    %1065 = vmatpush2.xpose.msra.mxu0 0.0
    %1066 = vmatprep.subr.mxu0 0.0
    %1067 = vmatpush2.xpose.msra.mxu0 0.0
    %1068 = vmatprep.subr.mxu0 0.0
    %1069 = vmatpush2.xpose.msra.mxu0 0.0
    %1070 = vmatprep.subr.mxu0 0.0
    %1071 = vmatpush2.xpose.msra.mxu0 0.0
    %1072 = vmatprep.subr.mxu0 0.0
    %1073 = vmatpush2.xpose.msra.mxu0 0.0
    %1074 = vmatprep.mubr.f32.mxu0 0.0
    %1075 = vmatmul.mubr.f32.gmra.mxu0 %v999
    %v1076 = vpop.f32.mrf.mxu0
    %v1077 = vadd.f32 %v288, %v1076
    %v1078 = vpop.f32.mrf.mxu0
    %1079 = vmatprep.mubr.f32.mxu0 0.0
    %1080 = vmatmul.mubr.f32.gmra.mxu0 %v1002
    %v1081 = vpop.f32.mrf.mxu0
    %v1082 = vadd.f32 %v289, %v1081
    %v1083 = vpop.f32.mrf.mxu0
    %1084 = vdwg.mxu0
    %v1085 = vsel %vm214, %v1077, -inf
    %1086 = vmax.xlane.f32.xlu0 %v1085
    %v1087 = vpop.xlane.xlu0 %1086
    %v1088 = vsel %vm214, %v1082, -inf
    %1089 = vmax.xlane.f32.xlu0 %v1088
    %v1090 = vpop.xlane.xlu0 %1089
    %v1091 = vsub.f32 %v1077, %v1087
    %v1092 = vsub.f32 %v1082, %v1090
    %v1093 = vmul.f32 %v1091, 1.442695
    %v1094 = vpow.pop %v1093
    %v1095 = vmul.f32 %v1092, 1.442695
    %v1096 = vpow.pop %v1095
    %v1097 = vsel %vm214, %v1094, 0.0
    %1098 = vadd.xlane.f32.xlu0 %v1097
    %v1099 = vpop.xlane.xlu0 %1098
    %v1100 = vsel %vm214, %v1096, 0.0
    %1101 = vadd.xlane.f32.xlu0 %v1100
    %v1102 = vpop.xlane.xlu0 %1101
    %v1103 = vrcp.pop %v1099
    %v1104 = vmul.f32 %v1094, %v1103
    %v1105 = vrcp.pop %v1102
    %v1106 = vmul.f32 %v1096, %v1105
    %v1108 = vsel %vm214, %v1104, 0
    %v1111 = vsel %vm214, %v1106, 0
    %1113 = vmatprep.subr.mxu0 0.0
    %1114 = vmatpush1.msra.mxu0 0.0
    %1115 = vmatprep.subr.mxu0 0.0
    %1116 = vmatpush1.msra.mxu0 0.0
    %1117 = vmatprep.subr.mxu0 0.0
    %1118 = vmatpush1.msra.mxu0 0.0
    %1119 = vmatprep.subr.mxu0 0.0
    %1120 = vmatpush1.msra.mxu0 0.0
    %1121 = vmatprep.subr.mxu0 0.0
    %1122 = vmatpush1.msra.mxu0 0.0
    %1123 = vmatprep.subr.mxu0 0.0
    %1124 = vmatpush1.msra.mxu0 0.0
    %1125 = vmatprep.subr.mxu0 0.0
    %1126 = vmatpush1.msra.mxu0 0.0
    %1127 = vmatprep.subr.mxu0 0.0
    %1128 = vmatpush1.msra.mxu0 0.0
    %1129 = vmatprep.subr.mxu0 0.0
    %1130 = vmatpush1.msra.mxu0 0.0
    %1131 = vmatprep.subr.mxu0 0.0
    %1132 = vmatpush1.msra.mxu0 0.0
    %1133 = vmatprep.subr.mxu0 0.0
    %1134 = vmatpush1.msra.mxu0 0.0
    %1135 = vmatprep.subr.mxu0 0.0
    %1136 = vmatpush1.msra.mxu0 0.0
    %1137 = vmatprep.subr.mxu0 0.0
    %1138 = vmatpush1.msra.mxu0 0.0
    %1139 = vmatprep.subr.mxu0 0.0
    %1140 = vmatpush1.msra.mxu0 0.0
    %1141 = vmatprep.subr.mxu0 0.0
    %1142 = vmatpush1.msra.mxu0 %v995
    %1143 = vmatprep.subr.mxu0 0.0
    %1144 = vmatpush1.msra.mxu0 %v990
    %1145 = vmatprep.subr.mxu0 0.0
    %1146 = vmatpush2.msra.mxu0 0.0
    %1147 = vmatprep.subr.mxu0 0.0
    %1148 = vmatpush2.msra.mxu0 0.0
    %1149 = vmatprep.subr.mxu0 0.0
    %1150 = vmatpush2.msra.mxu0 0.0
    %1151 = vmatprep.subr.mxu0 0.0
    %1152 = vmatpush2.msra.mxu0 0.0
    %1153 = vmatprep.subr.mxu0 0.0
    %1154 = vmatpush2.msra.mxu0 0.0
    %1155 = vmatprep.subr.mxu0 0.0
    %1156 = vmatpush2.msra.mxu0 0.0
    %1157 = vmatprep.subr.mxu0 0.0
    %1158 = vmatpush2.msra.mxu0 0.0
    %1159 = vmatprep.subr.mxu0 0.0
    %1160 = vmatpush2.msra.mxu0 0.0
    %1161 = vmatprep.subr.mxu0 0.0
    %1162 = vmatpush2.msra.mxu0 0.0
    %1163 = vmatprep.subr.mxu0 0.0
    %1164 = vmatpush2.msra.mxu0 0.0
    %1165 = vmatprep.subr.mxu0 0.0
    %1166 = vmatpush2.msra.mxu0 0.0
    %1167 = vmatprep.subr.mxu0 0.0
    %1168 = vmatpush2.msra.mxu0 0.0
    %1169 = vmatprep.subr.mxu0 0.0
    %1170 = vmatpush2.msra.mxu0 0.0
    %1171 = vmatprep.subr.mxu0 0.0
    %1172 = vmatpush2.msra.mxu0 0.0
    %1173 = vmatprep.subr.mxu0 0.0
    %1174 = vmatpush2.msra.mxu0 0.0
    %1175 = vmatprep.subr.mxu0 0.0
    %1176 = vmatpush2.msra.mxu0 0.0
    %1177 = vmatprep.mubr.f32.mxu0 0.0
    %1178 = vmatmul.mubr.f32.gmra.mxu0 %v1108
    %v1179 = vpop.f32.mrf.mxu0
    %v1180 = vadd.f32 0.0, %v1179
    %v1181 = vpop.f32.mrf.mxu0
    %1182 = vmatprep.mubr.f32.mxu0 0.0
    %1183 = vmatmul.mubr.f32.gmra.mxu0 %v1111
    %v1184 = vpop.f32.mrf.mxu0
    %v1185 = vadd.f32 0.0, %v1184
    %v1186 = vpop.f32.mrf.mxu0
    %1187 = vdwg.mxu0
    %v1188 = vld [vmem:[#allocation6 + $0x120] sm:$0xff]
    %v1190 = vsel %vm552, %v1180, 0
    %v1193 = vsel %vm552, %v1185, 0
    %1195 = vmatprep.subr.mxu0 0.0
    %1196 = vmatpush1.msra.mxu0 0.0
    %1197 = vmatprep.subr.mxu0 0.0
    %1198 = vmatpush1.msra.mxu0 0.0
    %1199 = vmatprep.subr.mxu0 0.0
    %1200 = vmatpush1.msra.mxu0 0.0
    %1201 = vmatprep.subr.mxu0 0.0
    %1202 = vmatpush1.msra.mxu0 0.0
    %1203 = vmatprep.subr.mxu0 0.0
    %1204 = vmatpush1.msra.mxu0 0.0
    %1205 = vmatprep.subr.mxu0 0.0
    %1206 = vmatpush1.msra.mxu0 0.0
    %1207 = vmatprep.subr.mxu0 0.0
    %1208 = vmatpush1.msra.mxu0 0.0
    %1209 = vmatprep.subr.mxu0 0.0
    %1210 = vmatpush1.msra.mxu0 0.0
    %1211 = vmatprep.subr.mxu0 0.0
    %1212 = vmatpush1.msra.mxu0 0.0
    %1213 = vmatprep.subr.mxu0 0.0
    %1214 = vmatpush1.msra.mxu0 0.0
    %1215 = vmatprep.subr.mxu0 0.0
    %1216 = vmatpush1.msra.mxu0 0.0
    %1217 = vmatprep.subr.mxu0 0.0
    %1218 = vmatpush1.msra.mxu0 0.0
    %1219 = vmatprep.subr.mxu0 0.0
    %1220 = vmatpush1.msra.mxu0 0.0
    %1221 = vmatprep.subr.mxu0 0.0
    %1222 = vmatpush1.msra.mxu0 0.0
    %1223 = vmatprep.subr.mxu0 0.0
    %1224 = vmatpush1.msra.mxu0 0.0
    %1225 = vmatprep.subr.mxu0 0.0
    %1226 = vmatpush1.msra.mxu0 %v1188
    %1227 = vmatprep.subr.mxu0 0.0
    %1228 = vmatpush2.msra.mxu0 0.0
    %1229 = vmatprep.subr.mxu0 0.0
    %1230 = vmatpush2.msra.mxu0 0.0
    %1231 = vmatprep.subr.mxu0 0.0
    %1232 = vmatpush2.msra.mxu0 0.0
    %1233 = vmatprep.subr.mxu0 0.0
    %1234 = vmatpush2.msra.mxu0 0.0
    %1235 = vmatprep.subr.mxu0 0.0
    %1236 = vmatpush2.msra.mxu0 0.0
    %1237 = vmatprep.subr.mxu0 0.0
    %1238 = vmatpush2.msra.mxu0 0.0
    %1239 = vmatprep.subr.mxu0 0.0
    %1240 = vmatpush2.msra.mxu0 0.0
    %1241 = vmatprep.subr.mxu0 0.0
    %1242 = vmatpush2.msra.mxu0 0.0
    %1243 = vmatprep.subr.mxu0 0.0
    %1244 = vmatpush2.msra.mxu0 0.0
    %1245 = vmatprep.subr.mxu0 0.0
    %1246 = vmatpush2.msra.mxu0 0.0
    %1247 = vmatprep.subr.mxu0 0.0
    %1248 = vmatpush2.msra.mxu0 0.0
    %1249 = vmatprep.subr.mxu0 0.0
    %1250 = vmatpush2.msra.mxu0 0.0
    %1251 = vmatprep.subr.mxu0 0.0
    %1252 = vmatpush2.msra.mxu0 0.0
    %1253 = vmatprep.subr.mxu0 0.0
    %1254 = vmatpush2.msra.mxu0 0.0
    %1255 = vmatprep.subr.mxu0 0.0
    %1256 = vmatpush2.msra.mxu0 0.0
    %1257 = vmatprep.subr.mxu0 0.0
    %1258 = vmatpush2.msra.mxu0 0.0
    %1259 = vmatprep.mubr.f32.mxu0 0.0
    %1260 = vmatmul.mubr.f32.gmra.mxu0 %v1190
    %v1261 = vpop.f32.mrf.mxu0
    %v1262 = vadd.f32 0.0, %v1261
    %v1263 = vpop.f32.mrf.mxu0
    %1264 = vmatprep.mubr.f32.mxu0 0.0
    %1265 = vmatmul.mubr.f32.gmra.mxu0 %v1193
    %v1266 = vpop.f32.mrf.mxu0
    %v1267 = vadd.f32 0.0, %v1266
    %v1268 = vpop.f32.mrf.mxu0
    %1269 = vdwg.mxu0
    %v1271 = vsel %vm552, %v735, 0
    %v1274 = vsel %vm552, %v740, 0
    %1276 = vmatprep.subr.mxu0 0.0
    %1277 = vmatpush1.msra.mxu0 0.0
    %1278 = vmatprep.subr.mxu0 0.0
    %1279 = vmatpush1.msra.mxu0 0.0
    %1280 = vmatprep.subr.mxu0 0.0
    %1281 = vmatpush1.msra.mxu0 0.0
    %1282 = vmatprep.subr.mxu0 0.0
    %1283 = vmatpush1.msra.mxu0 0.0
    %1284 = vmatprep.subr.mxu0 0.0
    %1285 = vmatpush1.msra.mxu0 0.0
    %1286 = vmatprep.subr.mxu0 0.0
    %1287 = vmatpush1.msra.mxu0 0.0
    %1288 = vmatprep.subr.mxu0 0.0
    %1289 = vmatpush1.msra.mxu0 0.0
    %1290 = vmatprep.subr.mxu0 0.0
    %1291 = vmatpush1.msra.mxu0 0.0
    %1292 = vmatprep.subr.mxu0 0.0
    %1293 = vmatpush1.msra.mxu0 0.0
    %1294 = vmatprep.subr.mxu0 0.0
    %1295 = vmatpush1.msra.mxu0 0.0
    %1296 = vmatprep.subr.mxu0 0.0
    %1297 = vmatpush1.msra.mxu0 0.0
    %1298 = vmatprep.subr.mxu0 0.0
    %1299 = vmatpush1.msra.mxu0 0.0
    %1300 = vmatprep.subr.mxu0 0.0
    %1301 = vmatpush1.msra.mxu0 0.0
    %1302 = vmatprep.subr.mxu0 0.0
    %1303 = vmatpush1.msra.mxu0 0.0
    %1304 = vmatprep.subr.mxu0 0.0
    %1305 = vmatpush1.msra.mxu0 0.0
    %1306 = vmatprep.subr.mxu0 0.0
    %1307 = vmatpush1.msra.mxu0 %v743
    %1308 = vmatprep.subr.mxu0 0.0
    %1309 = vmatpush2.msra.mxu0 0.0
    %1310 = vmatprep.subr.mxu0 0.0
    %1311 = vmatpush2.msra.mxu0 0.0
    %1312 = vmatprep.subr.mxu0 0.0
    %1313 = vmatpush2.msra.mxu0 0.0
    %1314 = vmatprep.subr.mxu0 0.0
    %1315 = vmatpush2.msra.mxu0 0.0
    %1316 = vmatprep.subr.mxu0 0.0
    %1317 = vmatpush2.msra.mxu0 0.0
    %1318 = vmatprep.subr.mxu0 0.0
    %1319 = vmatpush2.msra.mxu0 0.0
    %1320 = vmatprep.subr.mxu0 0.0
    %1321 = vmatpush2.msra.mxu0 0.0
    %1322 = vmatprep.subr.mxu0 0.0
    %1323 = vmatpush2.msra.mxu0 0.0
    %1324 = vmatprep.subr.mxu0 0.0
    %1325 = vmatpush2.msra.mxu0 0.0
    %1326 = vmatprep.subr.mxu0 0.0
    %1327 = vmatpush2.msra.mxu0 0.0
    %1328 = vmatprep.subr.mxu0 0.0
    %1329 = vmatpush2.msra.mxu0 0.0
    %1330 = vmatprep.subr.mxu0 0.0
    %1331 = vmatpush2.msra.mxu0 0.0
    %1332 = vmatprep.subr.mxu0 0.0
    %1333 = vmatpush2.msra.mxu0 0.0
    %1334 = vmatprep.subr.mxu0 0.0
    %1335 = vmatpush2.msra.mxu0 0.0
    %1336 = vmatprep.subr.mxu0 0.0
    %1337 = vmatpush2.msra.mxu0 0.0
    %1338 = vmatprep.subr.mxu0 0.0
    %1339 = vmatpush2.msra.mxu0 0.0
    %1340 = vmatprep.mubr.f32.mxu0 0.0
    %1341 = vmatmul.mubr.f32.gmra.mxu0 %v1271
    %v1342 = vpop.f32.mrf.mxu0
    %v1343 = vadd.f32 %v1262, %v1342
    %v1344 = vpop.f32.mrf.mxu0
    %1345 = vmatprep.mubr.f32.mxu0 0.0
    %1346 = vmatmul.mubr.f32.gmra.mxu0 %v1274
    %v1347 = vpop.f32.mrf.mxu0
    %v1348 = vadd.f32 %v1267, %v1347
    %v1349 = vpop.f32.mrf.mxu0
    %1350 = vdwg.mxu0
    %v1351 = vld [vmem:[#allocation6 + $0x128] sm:$0xff]
    %v1352 = vld [vmem:[#allocation6 + $0x130] sm:$0xff]
    %v1353 = vld [vmem:[#allocation6 + $0x138] sm:$0xff]
    %v1354 = vld [vmem:[#allocation6 + $0x140] sm:$0xff]
    %v1355 = vld [vmem:[#allocation6 + $0x188] sm:$0x1]
    %v1356 = vlaneseq
    %v1357 = vshrl.u32 %v1356, 7
    %v1358 = vsub.s32 0, %v1357
    %v1359 = vrot.slane %v1355, %v1358
    %1360 = vmatprep.subr.mxu0 0.0
    %1361 = vmatpush1.msra.mxu0 0.0
    %1362 = vmatprep.subr.mxu0 0.0
    %1363 = vmatpush1.msra.mxu0 0.0
    %1364 = vmatprep.subr.mxu0 0.0
    %1365 = vmatpush1.msra.mxu0 0.0
    %1366 = vmatprep.subr.mxu0 0.0
    %1367 = vmatpush1.msra.mxu0 0.0
    %1368 = vmatprep.subr.mxu0 0.0
    %1369 = vmatpush1.msra.mxu0 0.0
    %1370 = vmatprep.subr.mxu0 0.0
    %1371 = vmatpush1.msra.mxu0 0.0
    %1372 = vmatprep.subr.mxu0 0.0
    %1373 = vmatpush1.msra.mxu0 0.0
    %1374 = vmatprep.subr.mxu0 0.0
    %1375 = vmatpush1.msra.mxu0 0.0
    %1376 = vmatprep.subr.mxu0 0.0
    %1377 = vmatpush1.msra.mxu0 0.0
    %1378 = vmatprep.subr.mxu0 0.0
    %1379 = vmatpush1.msra.mxu0 0.0
    %1380 = vmatprep.subr.mxu0 0.0
    %1381 = vmatpush1.msra.mxu0 0.0
    %1382 = vmatprep.subr.mxu0 0.0
    %1383 = vmatpush1.msra.mxu0 0.0
    %1384 = vmatprep.subr.mxu0 0.0
    %1385 = vmatpush1.msra.mxu0 %v1354
    %1386 = vmatprep.subr.mxu0 0.0
    %1387 = vmatpush1.msra.mxu0 %v1353
    %1388 = vmatprep.subr.mxu0 0.0
    %1389 = vmatpush1.msra.mxu0 %v1352
    %1390 = vmatprep.subr.mxu0 0.0
    %1391 = vmatpush1.msra.mxu0 %v1351
    %1392 = vmatprep.subr.mxu0 0.0
    %1393 = vmatpush2.msra.mxu0 0.0
    %1394 = vmatprep.subr.mxu0 0.0
    %1395 = vmatpush2.msra.mxu0 0.0
    %1396 = vmatprep.subr.mxu0 0.0
    %1397 = vmatpush2.msra.mxu0 0.0
    %1398 = vmatprep.subr.mxu0 0.0
    %1399 = vmatpush2.msra.mxu0 0.0
    %1400 = vmatprep.subr.mxu0 0.0
    %1401 = vmatpush2.msra.mxu0 0.0
    %1402 = vmatprep.subr.mxu0 0.0
    %1403 = vmatpush2.msra.mxu0 0.0
    %1404 = vmatprep.subr.mxu0 0.0
    %1405 = vmatpush2.msra.mxu0 0.0
    %1406 = vmatprep.subr.mxu0 0.0
    %1407 = vmatpush2.msra.mxu0 0.0
    %1408 = vmatprep.subr.mxu0 0.0
    %1409 = vmatpush2.msra.mxu0 0.0
    %1410 = vmatprep.subr.mxu0 0.0
    %1411 = vmatpush2.msra.mxu0 0.0
    %1412 = vmatprep.subr.mxu0 0.0
    %1413 = vmatpush2.msra.mxu0 0.0
    %1414 = vmatprep.subr.mxu0 0.0
    %1415 = vmatpush2.msra.mxu0 0.0
    %1416 = vmatprep.subr.mxu0 0.0
    %1417 = vmatpush2.msra.mxu0 0.0
    %1418 = vmatprep.subr.mxu0 0.0
    %1419 = vmatpush2.msra.mxu0 0.0
    %1420 = vmatprep.subr.mxu0 0.0
    %1421 = vmatpush2.msra.mxu0 0.0
    %1422 = vmatprep.subr.mxu0 0.0
    %1423 = vmatpush2.msra.mxu0 0.0
    %1424 = vmatprep.mubr.f32.mxu0 0.0
    %1425 = vmatmul.mubr.f32.gmra.mxu0 %v302
    %v1426 = vpop.f32.mrf.mxu0
    %v1427 = vadd.f32 %v1359, %v1426
    %v1428 = vpop.f32.mrf.mxu0
    %1429 = vmatprep.mubr.f32.mxu0 0.0
    %1430 = vmatmul.mubr.f32.gmra.mxu0 %v305
    %v1431 = vpop.f32.mrf.mxu0
    %v1432 = vadd.f32 %v1359, %v1431
    %v1433 = vpop.f32.mrf.mxu0
    %1434 = vdwg.mxu0
    %v1435 = vmul.f32 %v1427, 0.35355338
    %v1436 = vmul.f32 %v1432, 0.35355338
    %v1437 = vld [vmem:[#allocation6 + $0x148] sm:$0xff]
    %v1438 = vld [vmem:[#allocation6 + $0x150] sm:$0xff]
    %v1439 = vld [vmem:[#allocation6 + $0x158] sm:$0xff]
    %v1440 = vld [vmem:[#allocation6 + $0x160] sm:$0xff]
    %v1441 = vld [vmem:[#allocation6 + $0x190] sm:$0x1]
    %v1442 = vlaneseq
    %v1443 = vshrl.u32 %v1442, 7
    %v1444 = vsub.s32 0, %v1443
    %v1445 = vrot.slane %v1441, %v1444
    %1446 = vmatprep.subr.mxu0 0.0
    %1447 = vmatpush1.msra.mxu0 0.0
    %1448 = vmatprep.subr.mxu0 0.0
    %1449 = vmatpush1.msra.mxu0 0.0
    %1450 = vmatprep.subr.mxu0 0.0
    %1451 = vmatpush1.msra.mxu0 0.0
    %1452 = vmatprep.subr.mxu0 0.0
    %1453 = vmatpush1.msra.mxu0 0.0
    %1454 = vmatprep.subr.mxu0 0.0
    %1455 = vmatpush1.msra.mxu0 0.0
    %1456 = vmatprep.subr.mxu0 0.0
    %1457 = vmatpush1.msra.mxu0 0.0
    %1458 = vmatprep.subr.mxu0 0.0
    %1459 = vmatpush1.msra.mxu0 0.0
    %1460 = vmatprep.subr.mxu0 0.0
    %1461 = vmatpush1.msra.mxu0 0.0
    %1462 = vmatprep.subr.mxu0 0.0
    %1463 = vmatpush1.msra.mxu0 0.0
    %1464 = vmatprep.subr.mxu0 0.0
    %1465 = vmatpush1.msra.mxu0 0.0
    %1466 = vmatprep.subr.mxu0 0.0
    %1467 = vmatpush1.msra.mxu0 0.0
    %1468 = vmatprep.subr.mxu0 0.0
    %1469 = vmatpush1.msra.mxu0 0.0
    %1470 = vmatprep.subr.mxu0 0.0
    %1471 = vmatpush1.msra.mxu0 %v1440
    %1472 = vmatprep.subr.mxu0 0.0
    %1473 = vmatpush1.msra.mxu0 %v1439
    %1474 = vmatprep.subr.mxu0 0.0
    %1475 = vmatpush1.msra.mxu0 %v1438
    %1476 = vmatprep.subr.mxu0 0.0
    %1477 = vmatpush1.msra.mxu0 %v1437
    %1478 = vmatprep.subr.mxu0 0.0
    %1479 = vmatpush2.msra.mxu0 0.0
    %1480 = vmatprep.subr.mxu0 0.0
    %1481 = vmatpush2.msra.mxu0 0.0
    %1482 = vmatprep.subr.mxu0 0.0
    %1483 = vmatpush2.msra.mxu0 0.0
    %1484 = vmatprep.subr.mxu0 0.0
    %1485 = vmatpush2.msra.mxu0 0.0
    %1486 = vmatprep.subr.mxu0 0.0
    %1487 = vmatpush2.msra.mxu0 0.0
    %1488 = vmatprep.subr.mxu0 0.0
    %1489 = vmatpush2.msra.mxu0 0.0
    %1490 = vmatprep.subr.mxu0 0.0
    %1491 = vmatpush2.msra.mxu0 0.0
    %1492 = vmatprep.subr.mxu0 0.0
    %1493 = vmatpush2.msra.mxu0 0.0
    %1494 = vmatprep.subr.mxu0 0.0
    %1495 = vmatpush2.msra.mxu0 0.0
    %1496 = vmatprep.subr.mxu0 0.0
    %1497 = vmatpush2.msra.mxu0 0.0
    %1498 = vmatprep.subr.mxu0 0.0
    %1499 = vmatpush2.msra.mxu0 0.0
    %1500 = vmatprep.subr.mxu0 0.0
    %1501 = vmatpush2.msra.mxu0 0.0
    %1502 = vmatprep.subr.mxu0 0.0
    %1503 = vmatpush2.msra.mxu0 0.0
    %1504 = vmatprep.subr.mxu0 0.0
    %1505 = vmatpush2.msra.mxu0 0.0
    %1506 = vmatprep.subr.mxu0 0.0
    %1507 = vmatpush2.msra.mxu0 0.0
    %1508 = vmatprep.subr.mxu0 0.0
    %1509 = vmatpush2.msra.mxu0 0.0
    %1510 = vmatprep.mubr.f32.mxu0 0.0
    %1511 = vmatmul.mubr.f32.gmra.mxu0 %v302
    %v1512 = vpop.f32.mrf.mxu0
    %v1513 = vadd.f32 %v1445, %v1512
    %v1514 = vpop.f32.mrf.mxu0
    %1515 = vmatprep.mubr.f32.mxu0 0.0
    %1516 = vmatmul.mubr.f32.gmra.mxu0 %v305
    %v1517 = vpop.f32.mrf.mxu0
    %v1518 = vadd.f32 %v1445, %v1517
    %v1519 = vpop.f32.mrf.mxu0
    %1520 = vdwg.mxu0
    %v1521 = vld [vmem:[#allocation6 + $0x168] sm:$0xff]
    %v1522 = vld [vmem:[#allocation6 + $0x170] sm:$0xff]
    %v1523 = vld [vmem:[#allocation6 + $0x178] sm:$0xff]
    %v1524 = vld [vmem:[#allocation6 + $0x180] sm:$0xff]
    %v1525 = vld [vmem:[#allocation6 + $0x198] sm:$0x1]
    %v1526 = vlaneseq
    %v1527 = vshrl.u32 %v1526, 7
    %v1528 = vsub.s32 0, %v1527
    %v1529 = vrot.slane %v1525, %v1528
    %1530 = vmatprep.subr.mxu0 0.0
    %1531 = vmatpush1.msra.mxu0 0.0
    %1532 = vmatprep.subr.mxu0 0.0
    %1533 = vmatpush1.msra.mxu0 0.0
    %1534 = vmatprep.subr.mxu0 0.0
    %1535 = vmatpush1.msra.mxu0 0.0
    %1536 = vmatprep.subr.mxu0 0.0
    %1537 = vmatpush1.msra.mxu0 0.0
    %1538 = vmatprep.subr.mxu0 0.0
    %1539 = vmatpush1.msra.mxu0 0.0
    %1540 = vmatprep.subr.mxu0 0.0
    %1541 = vmatpush1.msra.mxu0 0.0
    %1542 = vmatprep.subr.mxu0 0.0
    %1543 = vmatpush1.msra.mxu0 0.0
    %1544 = vmatprep.subr.mxu0 0.0
    %1545 = vmatpush1.msra.mxu0 0.0
    %1546 = vmatprep.subr.mxu0 0.0
    %1547 = vmatpush1.msra.mxu0 0.0
    %1548 = vmatprep.subr.mxu0 0.0
    %1549 = vmatpush1.msra.mxu0 0.0
    %1550 = vmatprep.subr.mxu0 0.0
    %1551 = vmatpush1.msra.mxu0 0.0
    %1552 = vmatprep.subr.mxu0 0.0
    %1553 = vmatpush1.msra.mxu0 0.0
    %1554 = vmatprep.subr.mxu0 0.0
    %1555 = vmatpush1.msra.mxu0 %v1524
    %1556 = vmatprep.subr.mxu0 0.0
    %1557 = vmatpush1.msra.mxu0 %v1523
    %1558 = vmatprep.subr.mxu0 0.0
    %1559 = vmatpush1.msra.mxu0 %v1522
    %1560 = vmatprep.subr.mxu0 0.0
    %1561 = vmatpush1.msra.mxu0 %v1521
    %1562 = vmatprep.subr.mxu0 0.0
    %1563 = vmatpush2.msra.mxu0 0.0
    %1564 = vmatprep.subr.mxu0 0.0
    %1565 = vmatpush2.msra.mxu0 0.0
    %1566 = vmatprep.subr.mxu0 0.0
    %1567 = vmatpush2.msra.mxu0 0.0
    %1568 = vmatprep.subr.mxu0 0.0
    %1569 = vmatpush2.msra.mxu0 0.0
    %1570 = vmatprep.subr.mxu0 0.0
    %1571 = vmatpush2.msra.mxu0 0.0
    %1572 = vmatprep.subr.mxu0 0.0
    %1573 = vmatpush2.msra.mxu0 0.0
    %1574 = vmatprep.subr.mxu0 0.0
    %1575 = vmatpush2.msra.mxu0 0.0
    %1576 = vmatprep.subr.mxu0 0.0
    %1577 = vmatpush2.msra.mxu0 0.0
    %1578 = vmatprep.subr.mxu0 0.0
    %1579 = vmatpush2.msra.mxu0 0.0
    %1580 = vmatprep.subr.mxu0 0.0
    %1581 = vmatpush2.msra.mxu0 0.0
    %1582 = vmatprep.subr.mxu0 0.0
    %1583 = vmatpush2.msra.mxu0 0.0
    %1584 = vmatprep.subr.mxu0 0.0
    %1585 = vmatpush2.msra.mxu0 0.0
    %1586 = vmatprep.subr.mxu0 0.0
    %1587 = vmatpush2.msra.mxu0 0.0
    %1588 = vmatprep.subr.mxu0 0.0
    %1589 = vmatpush2.msra.mxu0 0.0
    %1590 = vmatprep.subr.mxu0 0.0
    %1591 = vmatpush2.msra.mxu0 0.0
    %1592 = vmatprep.subr.mxu0 0.0
    %1593 = vmatpush2.msra.mxu0 0.0
    %1594 = vmatprep.mubr.f32.mxu0 0.0
    %1595 = vmatmul.mubr.f32.gmra.mxu0 %v302
    %v1596 = vpop.f32.mrf.mxu0
    %v1597 = vadd.f32 %v1529, %v1596
    %v1598 = vpop.f32.mrf.mxu0
    %1599 = vmatprep.mubr.f32.mxu0 0.0
    %1600 = vmatmul.mubr.f32.gmra.mxu0 %v305
    %v1601 = vpop.f32.mrf.mxu0
    %v1602 = vadd.f32 %v1529, %v1601
    %v1603 = vpop.f32.mrf.mxu0
    %1604 = vdwg.mxu0
    %v1606 = vsel %vm552, %v1435, 0
    %v1609 = vsel %vm552, %v1436, 0
    %v1612 = vsel %vm552, %v1513, 0
    %v1615 = vsel %vm552, %v1518, 0
    %1617 = vmatprep.subr.mxu0 0.0
    %1618 = vmatpush1.xpose.msra.mxu0 0.0
    %1619 = vmatprep.subr.mxu0 0.0
    %1620 = vmatpush1.xpose.msra.mxu0 0.0
    %1621 = vmatprep.subr.mxu0 0.0
    %1622 = vmatpush1.xpose.msra.mxu0 0.0
    %1623 = vmatprep.subr.mxu0 0.0
    %1624 = vmatpush1.xpose.msra.mxu0 0.0
    %1625 = vmatprep.subr.mxu0 0.0
    %1626 = vmatpush1.xpose.msra.mxu0 0.0
    %1627 = vmatprep.subr.mxu0 0.0
    %1628 = vmatpush1.xpose.msra.mxu0 0.0
    %1629 = vmatprep.subr.mxu0 0.0
    %1630 = vmatpush1.xpose.msra.mxu0 0.0
    %1631 = vmatprep.subr.mxu0 0.0
    %1632 = vmatpush1.xpose.msra.mxu0 0.0
    %1633 = vmatprep.subr.mxu0 0.0
    %1634 = vmatpush1.xpose.msra.mxu0 0.0
    %1635 = vmatprep.subr.mxu0 0.0
    %1636 = vmatpush1.xpose.msra.mxu0 0.0
    %1637 = vmatprep.subr.mxu0 0.0
    %1638 = vmatpush1.xpose.msra.mxu0 0.0
    %1639 = vmatprep.subr.mxu0 0.0
    %1640 = vmatpush1.xpose.msra.mxu0 0.0
    %1641 = vmatprep.subr.mxu0 0.0
    %1642 = vmatpush1.xpose.msra.mxu0 0.0
    %1643 = vmatprep.subr.mxu0 0.0
    %1644 = vmatpush1.xpose.msra.mxu0 0.0
    %1645 = vmatprep.subr.mxu0 0.0
    %1646 = vmatpush1.xpose.msra.mxu0 %v1615
    %1647 = vmatprep.subr.mxu0 0.0
    %1648 = vmatpush1.xpose.msra.mxu0 %v1612
    %1649 = vmatprep.subr.mxu0 0.0
    %1650 = vmatpush2.xpose.msra.mxu0 0.0
    %1651 = vmatprep.subr.mxu0 0.0
    %1652 = vmatpush2.xpose.msra.mxu0 0.0
    %1653 = vmatprep.subr.mxu0 0.0
    %1654 = vmatpush2.xpose.msra.mxu0 0.0
    %1655 = vmatprep.subr.mxu0 0.0
    %1656 = vmatpush2.xpose.msra.mxu0 0.0
    %1657 = vmatprep.subr.mxu0 0.0
    %1658 = vmatpush2.xpose.msra.mxu0 0.0
    %1659 = vmatprep.subr.mxu0 0.0
    %1660 = vmatpush2.xpose.msra.mxu0 0.0
    %1661 = vmatprep.subr.mxu0 0.0
    %1662 = vmatpush2.xpose.msra.mxu0 0.0
    %1663 = vmatprep.subr.mxu0 0.0
    %1664 = vmatpush2.xpose.msra.mxu0 0.0
    %1665 = vmatprep.subr.mxu0 0.0
    %1666 = vmatpush2.xpose.msra.mxu0 0.0
    %1667 = vmatprep.subr.mxu0 0.0
    %1668 = vmatpush2.xpose.msra.mxu0 0.0
    %1669 = vmatprep.subr.mxu0 0.0
    %1670 = vmatpush2.xpose.msra.mxu0 0.0
    %1671 = vmatprep.subr.mxu0 0.0
    %1672 = vmatpush2.xpose.msra.mxu0 0.0
    %1673 = vmatprep.subr.mxu0 0.0
    %1674 = vmatpush2.xpose.msra.mxu0 0.0
    %1675 = vmatprep.subr.mxu0 0.0
    %1676 = vmatpush2.xpose.msra.mxu0 0.0
    %1677 = vmatprep.subr.mxu0 0.0
    %1678 = vmatpush2.xpose.msra.mxu0 0.0
    %1679 = vmatprep.subr.mxu0 0.0
    %1680 = vmatpush2.xpose.msra.mxu0 0.0
    %1681 = vmatprep.mubr.f32.mxu0 0.0
    %1682 = vmatmul.mubr.f32.gmra.mxu0 %v1606
    %v1683 = vpop.f32.mrf.mxu0
    %v1684 = vadd.f32 %v288, %v1683
    %v1685 = vpop.f32.mrf.mxu0
    %1686 = vmatprep.mubr.f32.mxu0 0.0
    %1687 = vmatmul.mubr.f32.gmra.mxu0 %v1609
    %v1688 = vpop.f32.mrf.mxu0
    %v1689 = vadd.f32 %v289, %v1688
    %v1690 = vpop.f32.mrf.mxu0
    %1691 = vdwg.mxu0
    %v1692 = vsel %vm214, %v1684, -inf
    %1693 = vmax.xlane.f32.xlu0 %v1692
    %v1694 = vpop.xlane.xlu0 %1693
    %v1695 = vsel %vm214, %v1689, -inf
    %1696 = vmax.xlane.f32.xlu0 %v1695
    %v1697 = vpop.xlane.xlu0 %1696
    %v1698 = vsub.f32 %v1684, %v1694
    %v1699 = vsub.f32 %v1689, %v1697
    %v1700 = vmul.f32 %v1698, 1.442695
    %v1701 = vpow.pop %v1700
    %v1702 = vmul.f32 %v1699, 1.442695
    %v1703 = vpow.pop %v1702
    %v1704 = vsel %vm214, %v1701, 0.0
    %1705 = vadd.xlane.f32.xlu0 %v1704
    %v1706 = vpop.xlane.xlu0 %1705
    %v1707 = vsel %vm214, %v1703, 0.0
    %1708 = vadd.xlane.f32.xlu0 %v1707
    %v1709 = vpop.xlane.xlu0 %1708
    %v1710 = vrcp.pop %v1706
    %v1711 = vmul.f32 %v1701, %v1710
    %v1712 = vrcp.pop %v1709
    %v1713 = vmul.f32 %v1703, %v1712
    %v1715 = vsel %vm214, %v1711, 0
    %v1718 = vsel %vm214, %v1713, 0
    %1720 = vmatprep.subr.mxu0 0.0
    %1721 = vmatpush1.msra.mxu0 0.0
    %1722 = vmatprep.subr.mxu0 0.0
    %1723 = vmatpush1.msra.mxu0 0.0
    %1724 = vmatprep.subr.mxu0 0.0
    %1725 = vmatpush1.msra.mxu0 0.0
    %1726 = vmatprep.subr.mxu0 0.0
    %1727 = vmatpush1.msra.mxu0 0.0
    %1728 = vmatprep.subr.mxu0 0.0
    %1729 = vmatpush1.msra.mxu0 0.0
    %1730 = vmatprep.subr.mxu0 0.0
    %1731 = vmatpush1.msra.mxu0 0.0
    %1732 = vmatprep.subr.mxu0 0.0
    %1733 = vmatpush1.msra.mxu0 0.0
    %1734 = vmatprep.subr.mxu0 0.0
    %1735 = vmatpush1.msra.mxu0 0.0
    %1736 = vmatprep.subr.mxu0 0.0
    %1737 = vmatpush1.msra.mxu0 0.0
    %1738 = vmatprep.subr.mxu0 0.0
    %1739 = vmatpush1.msra.mxu0 0.0
    %1740 = vmatprep.subr.mxu0 0.0
    %1741 = vmatpush1.msra.mxu0 0.0
    %1742 = vmatprep.subr.mxu0 0.0
    %1743 = vmatpush1.msra.mxu0 0.0
    %1744 = vmatprep.subr.mxu0 0.0
    %1745 = vmatpush1.msra.mxu0 0.0
    %1746 = vmatprep.subr.mxu0 0.0
    %1747 = vmatpush1.msra.mxu0 0.0
    %1748 = vmatprep.subr.mxu0 0.0
    %1749 = vmatpush1.msra.mxu0 %v1602
    %1750 = vmatprep.subr.mxu0 0.0
    %1751 = vmatpush1.msra.mxu0 %v1597
    %1752 = vmatprep.subr.mxu0 0.0
    %1753 = vmatpush2.msra.mxu0 0.0
    %1754 = vmatprep.subr.mxu0 0.0
    %1755 = vmatpush2.msra.mxu0 0.0
    %1756 = vmatprep.subr.mxu0 0.0
    %1757 = vmatpush2.msra.mxu0 0.0
    %1758 = vmatprep.subr.mxu0 0.0
    %1759 = vmatpush2.msra.mxu0 0.0
    %1760 = vmatprep.subr.mxu0 0.0
    %1761 = vmatpush2.msra.mxu0 0.0
    %1762 = vmatprep.subr.mxu0 0.0
    %1763 = vmatpush2.msra.mxu0 0.0
    %1764 = vmatprep.subr.mxu0 0.0
    %1765 = vmatpush2.msra.mxu0 0.0
    %1766 = vmatprep.subr.mxu0 0.0
    %1767 = vmatpush2.msra.mxu0 0.0
    %1768 = vmatprep.subr.mxu0 0.0
    %1769 = vmatpush2.msra.mxu0 0.0
    %1770 = vmatprep.subr.mxu0 0.0
    %1771 = vmatpush2.msra.mxu0 0.0
    %1772 = vmatprep.subr.mxu0 0.0
    %1773 = vmatpush2.msra.mxu0 0.0
    %1774 = vmatprep.subr.mxu0 0.0
    %1775 = vmatpush2.msra.mxu0 0.0
    %1776 = vmatprep.subr.mxu0 0.0
    %1777 = vmatpush2.msra.mxu0 0.0
    %1778 = vmatprep.subr.mxu0 0.0
    %1779 = vmatpush2.msra.mxu0 0.0
    %1780 = vmatprep.subr.mxu0 0.0
    %1781 = vmatpush2.msra.mxu0 0.0
    %1782 = vmatprep.subr.mxu0 0.0
    %1783 = vmatpush2.msra.mxu0 0.0
    %1784 = vmatprep.mubr.f32.mxu0 0.0
    %1785 = vmatmul.mubr.f32.gmra.mxu0 %v1715
    %v1786 = vpop.f32.mrf.mxu0
    %v1787 = vadd.f32 0.0, %v1786
    %v1788 = vpop.f32.mrf.mxu0
    %1789 = vmatprep.mubr.f32.mxu0 0.0
    %1790 = vmatmul.mubr.f32.gmra.mxu0 %v1718
    %v1791 = vpop.f32.mrf.mxu0
    %v1792 = vadd.f32 0.0, %v1791
    %v1793 = vpop.f32.mrf.mxu0
    %1794 = vdwg.mxu0
    %v1795 = vld [vmem:[#allocation6 + $0x1a0] sm:$0xff]
    %v1797 = vsel %vm552, %v1787, 0
    %v1800 = vsel %vm552, %v1792, 0
    %1802 = vmatprep.subr.mxu0 0.0
    %1803 = vmatpush1.msra.mxu0 0.0
    %1804 = vmatprep.subr.mxu0 0.0
    %1805 = vmatpush1.msra.mxu0 0.0
    %1806 = vmatprep.subr.mxu0 0.0
    %1807 = vmatpush1.msra.mxu0 0.0
    %1808 = vmatprep.subr.mxu0 0.0
    %1809 = vmatpush1.msra.mxu0 0.0
    %1810 = vmatprep.subr.mxu0 0.0
    %1811 = vmatpush1.msra.mxu0 0.0
    %1812 = vmatprep.subr.mxu0 0.0
    %1813 = vmatpush1.msra.mxu0 0.0
    %1814 = vmatprep.subr.mxu0 0.0
    %1815 = vmatpush1.msra.mxu0 0.0
    %1816 = vmatprep.subr.mxu0 0.0
    %1817 = vmatpush1.msra.mxu0 0.0
    %1818 = vmatprep.subr.mxu0 0.0
    %1819 = vmatpush1.msra.mxu0 0.0
    %1820 = vmatprep.subr.mxu0 0.0
    %1821 = vmatpush1.msra.mxu0 0.0
    %1822 = vmatprep.subr.mxu0 0.0
    %1823 = vmatpush1.msra.mxu0 0.0
    %1824 = vmatprep.subr.mxu0 0.0
    %1825 = vmatpush1.msra.mxu0 0.0
    %1826 = vmatprep.subr.mxu0 0.0
    %1827 = vmatpush1.msra.mxu0 0.0
    %1828 = vmatprep.subr.mxu0 0.0
    %1829 = vmatpush1.msra.mxu0 0.0
    %1830 = vmatprep.subr.mxu0 0.0
    %1831 = vmatpush1.msra.mxu0 0.0
    %1832 = vmatprep.subr.mxu0 0.0
    %1833 = vmatpush1.msra.mxu0 %v1795
    %1834 = vmatprep.subr.mxu0 0.0
    %1835 = vmatpush2.msra.mxu0 0.0
    %1836 = vmatprep.subr.mxu0 0.0
    %1837 = vmatpush2.msra.mxu0 0.0
    %1838 = vmatprep.subr.mxu0 0.0
    %1839 = vmatpush2.msra.mxu0 0.0
    %1840 = vmatprep.subr.mxu0 0.0
    %1841 = vmatpush2.msra.mxu0 0.0
    %1842 = vmatprep.subr.mxu0 0.0
    %1843 = vmatpush2.msra.mxu0 0.0
    %1844 = vmatprep.subr.mxu0 0.0
    %1845 = vmatpush2.msra.mxu0 0.0
    %1846 = vmatprep.subr.mxu0 0.0
    %1847 = vmatpush2.msra.mxu0 0.0
    %1848 = vmatprep.subr.mxu0 0.0
    %1849 = vmatpush2.msra.mxu0 0.0
    %1850 = vmatprep.subr.mxu0 0.0
    %1851 = vmatpush2.msra.mxu0 0.0
    %1852 = vmatprep.subr.mxu0 0.0
    %1853 = vmatpush2.msra.mxu0 0.0
    %1854 = vmatprep.subr.mxu0 0.0
    %1855 = vmatpush2.msra.mxu0 0.0
    %1856 = vmatprep.subr.mxu0 0.0
    %1857 = vmatpush2.msra.mxu0 0.0
    %1858 = vmatprep.subr.mxu0 0.0
    %1859 = vmatpush2.msra.mxu0 0.0
    %1860 = vmatprep.subr.mxu0 0.0
    %1861 = vmatpush2.msra.mxu0 0.0
    %1862 = vmatprep.subr.mxu0 0.0
    %1863 = vmatpush2.msra.mxu0 0.0
    %1864 = vmatprep.subr.mxu0 0.0
    %1865 = vmatpush2.msra.mxu0 0.0
    %1866 = vmatprep.mubr.f32.mxu0 0.0
    %1867 = vmatmul.mubr.f32.gmra.mxu0 %v1797
    %v1868 = vpop.f32.mrf.mxu0
    %v1869 = vadd.f32 0.0, %v1868
    %v1870 = vpop.f32.mrf.mxu0
    %1871 = vmatprep.mubr.f32.mxu0 0.0
    %1872 = vmatmul.mubr.f32.gmra.mxu0 %v1800
    %v1873 = vpop.f32.mrf.mxu0
    %v1874 = vadd.f32 0.0, %v1873
    %v1875 = vpop.f32.mrf.mxu0
    %1876 = vdwg.mxu0
    %v1877 = vadd.f32 %v1343, %v1869
    %v1878 = vadd.f32 %v1348, %v1874
    %v1879 = vld [vmem:[#allocation6 + $0x1a8] sm:$0xff]
    %v1880 = vld [vmem:[#allocation6 + $0x1b0] sm:$0xff]
    %v1881 = vld [vmem:[#allocation6 + $0x1b8] sm:$0xff]
    %v1882 = vld [vmem:[#allocation6 + $0x1c0] sm:$0xff]
    %v1883 = vld [vmem:[#allocation6 + $0x208] sm:$0x1]
    %v1884 = vlaneseq
    %v1885 = vshrl.u32 %v1884, 7
    %v1886 = vsub.s32 0, %v1885
    %v1887 = vrot.slane %v1883, %v1886
    %1888 = vmatprep.subr.mxu0 0.0
    %1889 = vmatpush1.msra.mxu0 0.0
    %1890 = vmatprep.subr.mxu0 0.0
    %1891 = vmatpush1.msra.mxu0 0.0
    %1892 = vmatprep.subr.mxu0 0.0
    %1893 = vmatpush1.msra.mxu0 0.0
    %1894 = vmatprep.subr.mxu0 0.0
    %1895 = vmatpush1.msra.mxu0 0.0
    %1896 = vmatprep.subr.mxu0 0.0
    %1897 = vmatpush1.msra.mxu0 0.0
    %1898 = vmatprep.subr.mxu0 0.0
    %1899 = vmatpush1.msra.mxu0 0.0
    %1900 = vmatprep.subr.mxu0 0.0
    %1901 = vmatpush1.msra.mxu0 0.0
    %1902 = vmatprep.subr.mxu0 0.0
    %1903 = vmatpush1.msra.mxu0 0.0
    %1904 = vmatprep.subr.mxu0 0.0
    %1905 = vmatpush1.msra.mxu0 0.0
    %1906 = vmatprep.subr.mxu0 0.0
    %1907 = vmatpush1.msra.mxu0 0.0
    %1908 = vmatprep.subr.mxu0 0.0
    %1909 = vmatpush1.msra.mxu0 0.0
    %1910 = vmatprep.subr.mxu0 0.0
    %1911 = vmatpush1.msra.mxu0 0.0
    %1912 = vmatprep.subr.mxu0 0.0
    %1913 = vmatpush1.msra.mxu0 %v1882
    %1914 = vmatprep.subr.mxu0 0.0
    %1915 = vmatpush1.msra.mxu0 %v1881
    %1916 = vmatprep.subr.mxu0 0.0
    %1917 = vmatpush1.msra.mxu0 %v1880
    %1918 = vmatprep.subr.mxu0 0.0
    %1919 = vmatpush1.msra.mxu0 %v1879
    %1920 = vmatprep.subr.mxu0 0.0
    %1921 = vmatpush2.msra.mxu0 0.0
    %1922 = vmatprep.subr.mxu0 0.0
    %1923 = vmatpush2.msra.mxu0 0.0
    %1924 = vmatprep.subr.mxu0 0.0
    %1925 = vmatpush2.msra.mxu0 0.0
    %1926 = vmatprep.subr.mxu0 0.0
    %1927 = vmatpush2.msra.mxu0 0.0
    %1928 = vmatprep.subr.mxu0 0.0
    %1929 = vmatpush2.msra.mxu0 0.0
    %1930 = vmatprep.subr.mxu0 0.0
    %1931 = vmatpush2.msra.mxu0 0.0
    %1932 = vmatprep.subr.mxu0 0.0
    %1933 = vmatpush2.msra.mxu0 0.0
    %1934 = vmatprep.subr.mxu0 0.0
    %1935 = vmatpush2.msra.mxu0 0.0
    %1936 = vmatprep.subr.mxu0 0.0
    %1937 = vmatpush2.msra.mxu0 0.0
    %1938 = vmatprep.subr.mxu0 0.0
    %1939 = vmatpush2.msra.mxu0 0.0
    %1940 = vmatprep.subr.mxu0 0.0
    %1941 = vmatpush2.msra.mxu0 0.0
    %1942 = vmatprep.subr.mxu0 0.0
    %1943 = vmatpush2.msra.mxu0 0.0
    %1944 = vmatprep.subr.mxu0 0.0
    %1945 = vmatpush2.msra.mxu0 0.0
    %1946 = vmatprep.subr.mxu0 0.0
    %1947 = vmatpush2.msra.mxu0 0.0
    %1948 = vmatprep.subr.mxu0 0.0
    %1949 = vmatpush2.msra.mxu0 0.0
    %1950 = vmatprep.subr.mxu0 0.0
    %1951 = vmatpush2.msra.mxu0 0.0
    %1952 = vmatprep.mubr.f32.mxu0 0.0
    %1953 = vmatmul.mubr.f32.gmra.mxu0 %v302
    %v1954 = vpop.f32.mrf.mxu0
    %v1955 = vadd.f32 %v1887, %v1954
    %v1956 = vpop.f32.mrf.mxu0
    %1957 = vmatprep.mubr.f32.mxu0 0.0
    %1958 = vmatmul.mubr.f32.gmra.mxu0 %v305
    %v1959 = vpop.f32.mrf.mxu0
    %v1960 = vadd.f32 %v1887, %v1959
    %v1961 = vpop.f32.mrf.mxu0
    %1962 = vdwg.mxu0
    %v1963 = vmul.f32 %v1955, 0.35355338
    %v1964 = vmul.f32 %v1960, 0.35355338
    %v1965 = vld [vmem:[#allocation6 + $0x1c8] sm:$0xff]
    %v1966 = vld [vmem:[#allocation6 + $0x1d0] sm:$0xff]
    %v1967 = vld [vmem:[#allocation6 + $0x1d8] sm:$0xff]
    %v1968 = vld [vmem:[#allocation6 + $0x1e0] sm:$0xff]
    %v1969 = vld [vmem:[#allocation6 + $0x210] sm:$0x1]
    %v1970 = vlaneseq
    %v1971 = vshrl.u32 %v1970, 7
    %v1972 = vsub.s32 0, %v1971
    %v1973 = vrot.slane %v1969, %v1972
    %1974 = vmatprep.subr.mxu0 0.0
    %1975 = vmatpush1.msra.mxu0 0.0
    %1976 = vmatprep.subr.mxu0 0.0
    %1977 = vmatpush1.msra.mxu0 0.0
    %1978 = vmatprep.subr.mxu0 0.0
    %1979 = vmatpush1.msra.mxu0 0.0
    %1980 = vmatprep.subr.mxu0 0.0
    %1981 = vmatpush1.msra.mxu0 0.0
    %1982 = vmatprep.subr.mxu0 0.0
    %1983 = vmatpush1.msra.mxu0 0.0
    %1984 = vmatprep.subr.mxu0 0.0
    %1985 = vmatpush1.msra.mxu0 0.0
    %1986 = vmatprep.subr.mxu0 0.0
    %1987 = vmatpush1.msra.mxu0 0.0
    %1988 = vmatprep.subr.mxu0 0.0
    %1989 = vmatpush1.msra.mxu0 0.0
    %1990 = vmatprep.subr.mxu0 0.0
    %1991 = vmatpush1.msra.mxu0 0.0
    %1992 = vmatprep.subr.mxu0 0.0
    %1993 = vmatpush1.msra.mxu0 0.0
    %1994 = vmatprep.subr.mxu0 0.0
    %1995 = vmatpush1.msra.mxu0 0.0
    %1996 = vmatprep.subr.mxu0 0.0
    %1997 = vmatpush1.msra.mxu0 0.0
    %1998 = vmatprep.subr.mxu0 0.0
    %1999 = vmatpush1.msra.mxu0 %v1968
    %2000 = vmatprep.subr.mxu0 0.0
    %2001 = vmatpush1.msra.mxu0 %v1967
    %2002 = vmatprep.subr.mxu0 0.0
    %2003 = vmatpush1.msra.mxu0 %v1966
    %2004 = vmatprep.subr.mxu0 0.0
    %2005 = vmatpush1.msra.mxu0 %v1965
    %2006 = vmatprep.subr.mxu0 0.0
    %2007 = vmatpush2.msra.mxu0 0.0
    %2008 = vmatprep.subr.mxu0 0.0
    %2009 = vmatpush2.msra.mxu0 0.0
    %2010 = vmatprep.subr.mxu0 0.0
    %2011 = vmatpush2.msra.mxu0 0.0
    %2012 = vmatprep.subr.mxu0 0.0
    %2013 = vmatpush2.msra.mxu0 0.0
    %2014 = vmatprep.subr.mxu0 0.0
    %2015 = vmatpush2.msra.mxu0 0.0
    %2016 = vmatprep.subr.mxu0 0.0
    %2017 = vmatpush2.msra.mxu0 0.0
    %2018 = vmatprep.subr.mxu0 0.0
    %2019 = vmatpush2.msra.mxu0 0.0
    %2020 = vmatprep.subr.mxu0 0.0
    %2021 = vmatpush2.msra.mxu0 0.0
    %2022 = vmatprep.subr.mxu0 0.0
    %2023 = vmatpush2.msra.mxu0 0.0
    %2024 = vmatprep.subr.mxu0 0.0
    %2025 = vmatpush2.msra.mxu0 0.0
    %2026 = vmatprep.subr.mxu0 0.0
    %2027 = vmatpush2.msra.mxu0 0.0
    %2028 = vmatprep.subr.mxu0 0.0
    %2029 = vmatpush2.msra.mxu0 0.0
    %2030 = vmatprep.subr.mxu0 0.0
    %2031 = vmatpush2.msra.mxu0 0.0
    %2032 = vmatprep.subr.mxu0 0.0
    %2033 = vmatpush2.msra.mxu0 0.0
    %2034 = vmatprep.subr.mxu0 0.0
    %2035 = vmatpush2.msra.mxu0 0.0
    %2036 = vmatprep.subr.mxu0 0.0
    %2037 = vmatpush2.msra.mxu0 0.0
    %2038 = vmatprep.mubr.f32.mxu0 0.0
    %2039 = vmatmul.mubr.f32.gmra.mxu0 %v302
    %v2040 = vpop.f32.mrf.mxu0
    %v2041 = vadd.f32 %v1973, %v2040
    %v2042 = vpop.f32.mrf.mxu0
    %2043 = vmatprep.mubr.f32.mxu0 0.0
    %2044 = vmatmul.mubr.f32.gmra.mxu0 %v305
    %v2045 = vpop.f32.mrf.mxu0
    %v2046 = vadd.f32 %v1973, %v2045
    %v2047 = vpop.f32.mrf.mxu0
    %2048 = vdwg.mxu0
    %v2049 = vld [vmem:[#allocation6 + $0x1e8] sm:$0xff]
    %v2050 = vld [vmem:[#allocation6 + $0x1f0] sm:$0xff]
    %v2051 = vld [vmem:[#allocation6 + $0x1f8] sm:$0xff]
    %v2052 = vld [vmem:[#allocation6 + $0x200] sm:$0xff]
    %v2053 = vld [vmem:[#allocation6 + $0x218] sm:$0x1]
    %v2054 = vlaneseq
    %v2055 = vshrl.u32 %v2054, 7
    %v2056 = vsub.s32 0, %v2055
    %v2057 = vrot.slane %v2053, %v2056
    %2058 = vmatprep.subr.mxu0 0.0
    %2059 = vmatpush1.msra.mxu0 0.0
    %2060 = vmatprep.subr.mxu0 0.0
    %2061 = vmatpush1.msra.mxu0 0.0
    %2062 = vmatprep.subr.mxu0 0.0
    %2063 = vmatpush1.msra.mxu0 0.0
    %2064 = vmatprep.subr.mxu0 0.0
    %2065 = vmatpush1.msra.mxu0 0.0
    %2066 = vmatprep.subr.mxu0 0.0
    %2067 = vmatpush1.msra.mxu0 0.0
    %2068 = vmatprep.subr.mxu0 0.0
    %2069 = vmatpush1.msra.mxu0 0.0
    %2070 = vmatprep.subr.mxu0 0.0
    %2071 = vmatpush1.msra.mxu0 0.0
    %2072 = vmatprep.subr.mxu0 0.0
    %2073 = vmatpush1.msra.mxu0 0.0
    %2074 = vmatprep.subr.mxu0 0.0
    %2075 = vmatpush1.msra.mxu0 0.0
    %2076 = vmatprep.subr.mxu0 0.0
    %2077 = vmatpush1.msra.mxu0 0.0
    %2078 = vmatprep.subr.mxu0 0.0
    %2079 = vmatpush1.msra.mxu0 0.0
    %2080 = vmatprep.subr.mxu0 0.0
    %2081 = vmatpush1.msra.mxu0 0.0
    %2082 = vmatprep.subr.mxu0 0.0
    %2083 = vmatpush1.msra.mxu0 %v2052
    %2084 = vmatprep.subr.mxu0 0.0
    %2085 = vmatpush1.msra.mxu0 %v2051
    %2086 = vmatprep.subr.mxu0 0.0
    %2087 = vmatpush1.msra.mxu0 %v2050
    %2088 = vmatprep.subr.mxu0 0.0
    %2089 = vmatpush1.msra.mxu0 %v2049
    %2090 = vmatprep.subr.mxu0 0.0
    %2091 = vmatpush2.msra.mxu0 0.0
    %2092 = vmatprep.subr.mxu0 0.0
    %2093 = vmatpush2.msra.mxu0 0.0
    %2094 = vmatprep.subr.mxu0 0.0
    %2095 = vmatpush2.msra.mxu0 0.0
    %2096 = vmatprep.subr.mxu0 0.0
    %2097 = vmatpush2.msra.mxu0 0.0
    %2098 = vmatprep.subr.mxu0 0.0
    %2099 = vmatpush2.msra.mxu0 0.0
    %2100 = vmatprep.subr.mxu0 0.0
    %2101 = vmatpush2.msra.mxu0 0.0
    %2102 = vmatprep.subr.mxu0 0.0
    %2103 = vmatpush2.msra.mxu0 0.0
    %2104 = vmatprep.subr.mxu0 0.0
    %2105 = vmatpush2.msra.mxu0 0.0
    %2106 = vmatprep.subr.mxu0 0.0
    %2107 = vmatpush2.msra.mxu0 0.0
    %2108 = vmatprep.subr.mxu0 0.0
    %2109 = vmatpush2.msra.mxu0 0.0
    %2110 = vmatprep.subr.mxu0 0.0
    %2111 = vmatpush2.msra.mxu0 0.0
    %2112 = vmatprep.subr.mxu0 0.0
    %2113 = vmatpush2.msra.mxu0 0.0
    %2114 = vmatprep.subr.mxu0 0.0
    %2115 = vmatpush2.msra.mxu0 0.0
    %2116 = vmatprep.subr.mxu0 0.0
    %2117 = vmatpush2.msra.mxu0 0.0
    %2118 = vmatprep.subr.mxu0 0.0
    %2119 = vmatpush2.msra.mxu0 0.0
    %2120 = vmatprep.subr.mxu0 0.0
    %2121 = vmatpush2.msra.mxu0 0.0
    %2122 = vmatprep.mubr.f32.mxu0 0.0
    %2123 = vmatmul.mubr.f32.gmra.mxu0 %v302
    %v2124 = vpop.f32.mrf.mxu0
    %v2125 = vadd.f32 %v2057, %v2124
    %v2126 = vpop.f32.mrf.mxu0
    %2127 = vmatprep.mubr.f32.mxu0 0.0
    %2128 = vmatmul.mubr.f32.gmra.mxu0 %v305
    %v2129 = vpop.f32.mrf.mxu0
    %v2130 = vadd.f32 %v2057, %v2129
    %v2131 = vpop.f32.mrf.mxu0
    %2132 = vdwg.mxu0
    %v2134 = vsel %vm552, %v1963, 0
    %v2137 = vsel %vm552, %v1964, 0
    %v2140 = vsel %vm552, %v2041, 0
    %v2143 = vsel %vm552, %v2046, 0
    %2145 = vmatprep.subr.mxu0 0.0
    %2146 = vmatpush1.xpose.msra.mxu0 0.0
    %2147 = vmatprep.subr.mxu0 0.0
    %2148 = vmatpush1.xpose.msra.mxu0 0.0
    %2149 = vmatprep.subr.mxu0 0.0
    %2150 = vmatpush1.xpose.msra.mxu0 0.0
    %2151 = vmatprep.subr.mxu0 0.0
    %2152 = vmatpush1.xpose.msra.mxu0 0.0
    %2153 = vmatprep.subr.mxu0 0.0
    %2154 = vmatpush1.xpose.msra.mxu0 0.0
    %2155 = vmatprep.subr.mxu0 0.0
    %2156 = vmatpush1.xpose.msra.mxu0 0.0
    %2157 = vmatprep.subr.mxu0 0.0
    %2158 = vmatpush1.xpose.msra.mxu0 0.0
    %2159 = vmatprep.subr.mxu0 0.0
    %2160 = vmatpush1.xpose.msra.mxu0 0.0
    %2161 = vmatprep.subr.mxu0 0.0
    %2162 = vmatpush1.xpose.msra.mxu0 0.0
    %2163 = vmatprep.subr.mxu0 0.0
    %2164 = vmatpush1.xpose.msra.mxu0 0.0
    %2165 = vmatprep.subr.mxu0 0.0
    %2166 = vmatpush1.xpose.msra.mxu0 0.0
    %2167 = vmatprep.subr.mxu0 0.0
    %2168 = vmatpush1.xpose.msra.mxu0 0.0
    %2169 = vmatprep.subr.mxu0 0.0
    %2170 = vmatpush1.xpose.msra.mxu0 0.0
    %2171 = vmatprep.subr.mxu0 0.0
    %2172 = vmatpush1.xpose.msra.mxu0 0.0
    %2173 = vmatprep.subr.mxu0 0.0
    %2174 = vmatpush1.xpose.msra.mxu0 %v2143
    %2175 = vmatprep.subr.mxu0 0.0
    %2176 = vmatpush1.xpose.msra.mxu0 %v2140
    %2177 = vmatprep.subr.mxu0 0.0
    %2178 = vmatpush2.xpose.msra.mxu0 0.0
    %2179 = vmatprep.subr.mxu0 0.0
    %2180 = vmatpush2.xpose.msra.mxu0 0.0
    %2181 = vmatprep.subr.mxu0 0.0
    %2182 = vmatpush2.xpose.msra.mxu0 0.0
    %2183 = vmatprep.subr.mxu0 0.0
    %2184 = vmatpush2.xpose.msra.mxu0 0.0
    %2185 = vmatprep.subr.mxu0 0.0
    %2186 = vmatpush2.xpose.msra.mxu0 0.0
    %2187 = vmatprep.subr.mxu0 0.0
    %2188 = vmatpush2.xpose.msra.mxu0 0.0
    %2189 = vmatprep.subr.mxu0 0.0
    %2190 = vmatpush2.xpose.msra.mxu0 0.0
    %2191 = vmatprep.subr.mxu0 0.0
    %2192 = vmatpush2.xpose.msra.mxu0 0.0
    %2193 = vmatprep.subr.mxu0 0.0
    %2194 = vmatpush2.xpose.msra.mxu0 0.0
    %2195 = vmatprep.subr.mxu0 0.0
    %2196 = vmatpush2.xpose.msra.mxu0 0.0
    %2197 = vmatprep.subr.mxu0 0.0
    %2198 = vmatpush2.xpose.msra.mxu0 0.0
    %2199 = vmatprep.subr.mxu0 0.0
    %2200 = vmatpush2.xpose.msra.mxu0 0.0
    %2201 = vmatprep.subr.mxu0 0.0
    %2202 = vmatpush2.xpose.msra.mxu0 0.0
    %2203 = vmatprep.subr.mxu0 0.0
    %2204 = vmatpush2.xpose.msra.mxu0 0.0
    %2205 = vmatprep.subr.mxu0 0.0
    %2206 = vmatpush2.xpose.msra.mxu0 0.0
    %2207 = vmatprep.subr.mxu0 0.0
    %2208 = vmatpush2.xpose.msra.mxu0 0.0
    %2209 = vmatprep.mubr.f32.mxu0 0.0
    %2210 = vmatmul.mubr.f32.gmra.mxu0 %v2134
    %v2211 = vpop.f32.mrf.mxu0
    %v2212 = vadd.f32 %v288, %v2211
    %v2213 = vpop.f32.mrf.mxu0
    %2214 = vmatprep.mubr.f32.mxu0 0.0
    %2215 = vmatmul.mubr.f32.gmra.mxu0 %v2137
    %v2216 = vpop.f32.mrf.mxu0
    %v2217 = vadd.f32 %v289, %v2216
    %v2218 = vpop.f32.mrf.mxu0
    %2219 = vdwg.mxu0
    %v2220 = vsel %vm214, %v2212, -inf
    %2221 = vmax.xlane.f32.xlu0 %v2220
    %v2222 = vpop.xlane.xlu0 %2221
    %v2223 = vsel %vm214, %v2217, -inf
    %2224 = vmax.xlane.f32.xlu0 %v2223
    %v2225 = vpop.xlane.xlu0 %2224
    %v2226 = vsub.f32 %v2212, %v2222
    %v2227 = vsub.f32 %v2217, %v2225
    %v2228 = vmul.f32 %v2226, 1.442695
    %v2229 = vpow.pop %v2228
    %v2230 = vmul.f32 %v2227, 1.442695
    %v2231 = vpow.pop %v2230
    %v2232 = vsel %vm214, %v2229, 0.0
    %2233 = vadd.xlane.f32.xlu0 %v2232
    %v2234 = vpop.xlane.xlu0 %2233
    %v2235 = vsel %vm214, %v2231, 0.0
    %2236 = vadd.xlane.f32.xlu0 %v2235
    %v2237 = vpop.xlane.xlu0 %2236
    %v2238 = vrcp.pop %v2234
    %v2239 = vmul.f32 %v2229, %v2238
    %v2240 = vrcp.pop %v2237
    %v2241 = vmul.f32 %v2231, %v2240
    %v2243 = vsel %vm214, %v2239, 0
    %v2246 = vsel %vm214, %v2241, 0
    %2248 = vmatprep.subr.mxu0 0.0
    %2249 = vmatpush1.msra.mxu0 0.0
    %2250 = vmatprep.subr.mxu0 0.0
    %2251 = vmatpush1.msra.mxu0 0.0
    %2252 = vmatprep.subr.mxu0 0.0
    %2253 = vmatpush1.msra.mxu0 0.0
    %2254 = vmatprep.subr.mxu0 0.0
    %2255 = vmatpush1.msra.mxu0 0.0
    %2256 = vmatprep.subr.mxu0 0.0
    %2257 = vmatpush1.msra.mxu0 0.0
    %2258 = vmatprep.subr.mxu0 0.0
    %2259 = vmatpush1.msra.mxu0 0.0
    %2260 = vmatprep.subr.mxu0 0.0
    %2261 = vmatpush1.msra.mxu0 0.0
    %2262 = vmatprep.subr.mxu0 0.0
    %2263 = vmatpush1.msra.mxu0 0.0
    %2264 = vmatprep.subr.mxu0 0.0
    %2265 = vmatpush1.msra.mxu0 0.0
    %2266 = vmatprep.subr.mxu0 0.0
    %2267 = vmatpush1.msra.mxu0 0.0
    %2268 = vmatprep.subr.mxu0 0.0
    %2269 = vmatpush1.msra.mxu0 0.0
    %2270 = vmatprep.subr.mxu0 0.0
    %2271 = vmatpush1.msra.mxu0 0.0
    %2272 = vmatprep.subr.mxu0 0.0
    %2273 = vmatpush1.msra.mxu0 0.0
    %2274 = vmatprep.subr.mxu0 0.0
    %2275 = vmatpush1.msra.mxu0 0.0
    %2276 = vmatprep.subr.mxu0 0.0
    %2277 = vmatpush1.msra.mxu0 %v2130
    %2278 = vmatprep.subr.mxu0 0.0
    %2279 = vmatpush1.msra.mxu0 %v2125
    %2280 = vmatprep.subr.mxu0 0.0
    %2281 = vmatpush2.msra.mxu0 0.0
    %2282 = vmatprep.subr.mxu0 0.0
    %2283 = vmatpush2.msra.mxu0 0.0
    %2284 = vmatprep.subr.mxu0 0.0
    %2285 = vmatpush2.msra.mxu0 0.0
    %2286 = vmatprep.subr.mxu0 0.0
    %2287 = vmatpush2.msra.mxu0 0.0
    %2288 = vmatprep.subr.mxu0 0.0
    %2289 = vmatpush2.msra.mxu0 0.0
    %2290 = vmatprep.subr.mxu0 0.0
    %2291 = vmatpush2.msra.mxu0 0.0
    %2292 = vmatprep.subr.mxu0 0.0
    %2293 = vmatpush2.msra.mxu0 0.0
    %2294 = vmatprep.subr.mxu0 0.0
    %2295 = vmatpush2.msra.mxu0 0.0
    %2296 = vmatprep.subr.mxu0 0.0
    %2297 = vmatpush2.msra.mxu0 0.0
    %2298 = vmatprep.subr.mxu0 0.0
    %2299 = vmatpush2.msra.mxu0 0.0
    %2300 = vmatprep.subr.mxu0 0.0
    %2301 = vmatpush2.msra.mxu0 0.0
    %2302 = vmatprep.subr.mxu0 0.0
    %2303 = vmatpush2.msra.mxu0 0.0
    %2304 = vmatprep.subr.mxu0 0.0
    %2305 = vmatpush2.msra.mxu0 0.0
    %2306 = vmatprep.subr.mxu0 0.0
    %2307 = vmatpush2.msra.mxu0 0.0
    %2308 = vmatprep.subr.mxu0 0.0
    %2309 = vmatpush2.msra.mxu0 0.0
    %2310 = vmatprep.subr.mxu0 0.0
    %2311 = vmatpush2.msra.mxu0 0.0
    %2312 = vmatprep.mubr.f32.mxu0 0.0
    %2313 = vmatmul.mubr.f32.gmra.mxu0 %v2243
    %v2314 = vpop.f32.mrf.mxu0
    %v2315 = vadd.f32 0.0, %v2314
    %v2316 = vpop.f32.mrf.mxu0
    %2317 = vmatprep.mubr.f32.mxu0 0.0
    %2318 = vmatmul.mubr.f32.gmra.mxu0 %v2246
    %v2319 = vpop.f32.mrf.mxu0
    %v2320 = vadd.f32 0.0, %v2319
    %v2321 = vpop.f32.mrf.mxu0
    %2322 = vdwg.mxu0
    %v2323 = vld [vmem:[#allocation6 + $0x220] sm:$0xff]
    %v2325 = vsel %vm552, %v2315, 0
    %v2328 = vsel %vm552, %v2320, 0
    %2330 = vmatprep.subr.mxu0 0.0
    %2331 = vmatpush1.msra.mxu0 0.0
    %2332 = vmatprep.subr.mxu0 0.0
    %2333 = vmatpush1.msra.mxu0 0.0
    %2334 = vmatprep.subr.mxu0 0.0
    %2335 = vmatpush1.msra.mxu0 0.0
    %2336 = vmatprep.subr.mxu0 0.0
    %2337 = vmatpush1.msra.mxu0 0.0
    %2338 = vmatprep.subr.mxu0 0.0
    %2339 = vmatpush1.msra.mxu0 0.0
    %2340 = vmatprep.subr.mxu0 0.0
    %2341 = vmatpush1.msra.mxu0 0.0
    %2342 = vmatprep.subr.mxu0 0.0
    %2343 = vmatpush1.msra.mxu0 0.0
    %2344 = vmatprep.subr.mxu0 0.0
    %2345 = vmatpush1.msra.mxu0 0.0
    %2346 = vmatprep.subr.mxu0 0.0
    %2347 = vmatpush1.msra.mxu0 0.0
    %2348 = vmatprep.subr.mxu0 0.0
    %2349 = vmatpush1.msra.mxu0 0.0
    %2350 = vmatprep.subr.mxu0 0.0
    %2351 = vmatpush1.msra.mxu0 0.0
    %2352 = vmatprep.subr.mxu0 0.0
    %2353 = vmatpush1.msra.mxu0 0.0
    %2354 = vmatprep.subr.mxu0 0.0
    %2355 = vmatpush1.msra.mxu0 0.0
    %2356 = vmatprep.subr.mxu0 0.0
    %2357 = vmatpush1.msra.mxu0 0.0
    %2358 = vmatprep.subr.mxu0 0.0
    %2359 = vmatpush1.msra.mxu0 0.0
    %2360 = vmatprep.subr.mxu0 0.0
    %2361 = vmatpush1.msra.mxu0 %v2323
    %2362 = vmatprep.subr.mxu0 0.0
    %2363 = vmatpush2.msra.mxu0 0.0
    %2364 = vmatprep.subr.mxu0 0.0
    %2365 = vmatpush2.msra.mxu0 0.0
    %2366 = vmatprep.subr.mxu0 0.0
    %2367 = vmatpush2.msra.mxu0 0.0
    %2368 = vmatprep.subr.mxu0 0.0
    %2369 = vmatpush2.msra.mxu0 0.0
    %2370 = vmatprep.subr.mxu0 0.0
    %2371 = vmatpush2.msra.mxu0 0.0
    %2372 = vmatprep.subr.mxu0 0.0
    %2373 = vmatpush2.msra.mxu0 0.0
    %2374 = vmatprep.subr.mxu0 0.0
    %2375 = vmatpush2.msra.mxu0 0.0
    %2376 = vmatprep.subr.mxu0 0.0
    %2377 = vmatpush2.msra.mxu0 0.0
    %2378 = vmatprep.subr.mxu0 0.0
    %2379 = vmatpush2.msra.mxu0 0.0
    %2380 = vmatprep.subr.mxu0 0.0
    %2381 = vmatpush2.msra.mxu0 0.0
    %2382 = vmatprep.subr.mxu0 0.0
    %2383 = vmatpush2.msra.mxu0 0.0
    %2384 = vmatprep.subr.mxu0 0.0
    %2385 = vmatpush2.msra.mxu0 0.0
    %2386 = vmatprep.subr.mxu0 0.0
    %2387 = vmatpush2.msra.mxu0 0.0
    %2388 = vmatprep.subr.mxu0 0.0
    %2389 = vmatpush2.msra.mxu0 0.0
    %2390 = vmatprep.subr.mxu0 0.0
    %2391 = vmatpush2.msra.mxu0 0.0
    %2392 = vmatprep.subr.mxu0 0.0
    %2393 = vmatpush2.msra.mxu0 0.0
    %2394 = vmatprep.mubr.f32.mxu0 0.0
    %2395 = vmatmul.mubr.f32.gmra.mxu0 %v2325
    %v2396 = vpop.f32.mrf.mxu0
    %v2397 = vadd.f32 0.0, %v2396
    %v2398 = vpop.f32.mrf.mxu0
    %2399 = vmatprep.mubr.f32.mxu0 0.0
    %2400 = vmatmul.mubr.f32.gmra.mxu0 %v2328
    %v2401 = vpop.f32.mrf.mxu0
    %v2402 = vadd.f32 0.0, %v2401
    %v2403 = vpop.f32.mrf.mxu0
    %2404 = vdwg.mxu0
    %v2405 = vadd.f32 %v1877, %v2397
    %v2406 = vadd.f32 %v1878, %v2402
    %v2407 = vld [vmem:[#allocation6 + $0x228] sm:$0x1]
    %v2408 = vlaneseq
    %v2409 = vshrl.u32 %v2408, 7
    %v2410 = vsub.s32 0, %v2409
    %v2411 = vrot.slane %v2407, %v2410
    %v2412 = vadd.f32 %v2405, %v2411
    %v2413 = vadd.f32 %v2406, %v2411
    %v2414 = vadd.f32 %v201, %v2412
    %v2415 = vadd.f32 %v202, %v2413
    %v2416 = vld [vmem:[#allocation6 + $0x230] sm:$0x1]
    %v2417 = vld [vmem:[#allocation6 + $0x238] sm:$0x1]
    %v2418 = vsel %vm300, %v2414, 0.0
    %2419 = vadd.xlane.f32.xlu0 %v2418
    %v2420 = vpop.xlane.xlu0 %2419
    %v2421 = vsel %vm300, %v2415, 0.0
    %2422 = vadd.xlane.f32.xlu0 %v2421
    %v2423 = vpop.xlane.xlu0 %2422
    %v2424 = vrcp.pop 32.0
    %v2425 = vmul.f32 %v2420, %v2424
    %v2426 = vmul.f32 %v2423, %v2424
    %v2427 = vsub.f32 %v2414, %v2425
    %v2428 = vsub.f32 %v2415, %v2426
    %v2429 = vmul.f32 %v2427, %v2427
    %v2430 = vmul.f32 %v2428, %v2428
    %v2431 = vsel %vm300, %v2429, 0.0
    %2432 = vadd.xlane.f32.xlu0 %v2431
    %v2433 = vpop.xlane.xlu0 %2432
    %v2434 = vsel %vm300, %v2430, 0.0
    %2435 = vadd.xlane.f32.xlu0 %v2434
    %v2436 = vpop.xlane.xlu0 %2435
    %v2437 = vmul.f32 %v2433, %v2424
    %v2438 = vmul.f32 %v2436, %v2424
    %v2439 = vadd.f32 %v2437, 1e-05
    %v2440 = vadd.f32 %v2438, 1e-05
    %v2441 = vrsqrt.pop %v2439
    %v2442 = vrsqrt.pop %v2440
    %v2443 = vmul.f32 %v2427, %v2441
    %v2444 = vmul.f32 %v2428, %v2442
    %v2445 = vlaneseq
    %v2446 = vshrl.u32 %v2445, 7
    %v2447 = vsub.s32 0, %v2446
    %v2448 = vrot.slane %v2416, %v2447
    %v2449 = vmul.f32 %v2443, %v2448
    %v2450 = vmul.f32 %v2444, %v2448
    %v2451 = vlaneseq
    %v2452 = vshrl.u32 %v2451, 7
    %v2453 = vsub.s32 0, %v2452
    %v2454 = vrot.slane %v2417, %v2453
    %v2455 = vadd.f32 %v2449, %v2454
    %v2456 = vadd.f32 %v2450, %v2454
    %v2457 = vld [vmem:[#allocation6 + $0x240] sm:$0xff]
    %v2458 = vld [vmem:[#allocation6 + $0x248] sm:$0xff]
    %v2459 = vld [vmem:[#allocation6 + $0x250] sm:$0xff]
    %v2460 = vld [vmem:[#allocation6 + $0x258] sm:$0xff]
    %v2461 = vld [vmem:[#allocation6 + $0x260] sm:$0x1]
    %v2462 = vlaneseq
    %v2463 = vshrl.u32 %v2462, 7
    %v2464 = vsub.s32 0, %v2463
    %v2465 = vrot.slane %v2461, %v2464
    %v2467 = vsel %vm300, %v2455, 0
    %v2470 = vsel %vm300, %v2456, 0
    %2472 = vmatprep.subr.mxu0 0.0
    %2473 = vmatpush1.msra.mxu0 0.0
    %2474 = vmatprep.subr.mxu0 0.0
    %2475 = vmatpush1.msra.mxu0 0.0
    %2476 = vmatprep.subr.mxu0 0.0
    %2477 = vmatpush1.msra.mxu0 0.0
    %2478 = vmatprep.subr.mxu0 0.0
    %2479 = vmatpush1.msra.mxu0 0.0
    %2480 = vmatprep.subr.mxu0 0.0
    %2481 = vmatpush1.msra.mxu0 0.0
    %2482 = vmatprep.subr.mxu0 0.0
    %2483 = vmatpush1.msra.mxu0 0.0
    %2484 = vmatprep.subr.mxu0 0.0
    %2485 = vmatpush1.msra.mxu0 0.0
    %2486 = vmatprep.subr.mxu0 0.0
    %2487 = vmatpush1.msra.mxu0 0.0
    %2488 = vmatprep.subr.mxu0 0.0
    %2489 = vmatpush1.msra.mxu0 0.0
    %2490 = vmatprep.subr.mxu0 0.0
    %2491 = vmatpush1.msra.mxu0 0.0
    %2492 = vmatprep.subr.mxu0 0.0
    %2493 = vmatpush1.msra.mxu0 0.0
    %2494 = vmatprep.subr.mxu0 0.0
    %2495 = vmatpush1.msra.mxu0 0.0
    %2496 = vmatprep.subr.mxu0 0.0
    %2497 = vmatpush1.msra.mxu0 %v2460
    %2498 = vmatprep.subr.mxu0 0.0
    %2499 = vmatpush1.msra.mxu0 %v2459
    %2500 = vmatprep.subr.mxu0 0.0
    %2501 = vmatpush1.msra.mxu0 %v2458
    %2502 = vmatprep.subr.mxu0 0.0
    %2503 = vmatpush1.msra.mxu0 %v2457
    %2504 = vmatprep.subr.mxu0 0.0
    %2505 = vmatpush2.msra.mxu0 0.0
    %2506 = vmatprep.subr.mxu0 0.0
    %2507 = vmatpush2.msra.mxu0 0.0
    %2508 = vmatprep.subr.mxu0 0.0
    %2509 = vmatpush2.msra.mxu0 0.0
    %2510 = vmatprep.subr.mxu0 0.0
    %2511 = vmatpush2.msra.mxu0 0.0
    %2512 = vmatprep.subr.mxu0 0.0
    %2513 = vmatpush2.msra.mxu0 0.0
    %2514 = vmatprep.subr.mxu0 0.0
    %2515 = vmatpush2.msra.mxu0 0.0
    %2516 = vmatprep.subr.mxu0 0.0
    %2517 = vmatpush2.msra.mxu0 0.0
    %2518 = vmatprep.subr.mxu0 0.0
    %2519 = vmatpush2.msra.mxu0 0.0
    %2520 = vmatprep.subr.mxu0 0.0
    %2521 = vmatpush2.msra.mxu0 0.0
    %2522 = vmatprep.subr.mxu0 0.0
    %2523 = vmatpush2.msra.mxu0 0.0
    %2524 = vmatprep.subr.mxu0 0.0
    %2525 = vmatpush2.msra.mxu0 0.0
    %2526 = vmatprep.subr.mxu0 0.0
    %2527 = vmatpush2.msra.mxu0 0.0
    %2528 = vmatprep.subr.mxu0 0.0
    %2529 = vmatpush2.msra.mxu0 0.0
    %2530 = vmatprep.subr.mxu0 0.0
    %2531 = vmatpush2.msra.mxu0 0.0
    %2532 = vmatprep.subr.mxu0 0.0
    %2533 = vmatpush2.msra.mxu0 0.0
    %2534 = vmatprep.subr.mxu0 0.0
    %2535 = vmatpush2.msra.mxu0 0.0
    %2536 = vmatprep.mubr.f32.mxu0 0.0
    %2537 = vmatmul.mubr.f32.gmra.mxu0 %v2467
    %v2538 = vpop.f32.mrf.mxu0
    %v2539 = vadd.f32 %v2465, %v2538
    %v2540 = vpop.f32.mrf.mxu0
    %2541 = vmatprep.mubr.f32.mxu0 0.0
    %2542 = vmatmul.mubr.f32.gmra.mxu0 %v2470
    %v2543 = vpop.f32.mrf.mxu0
    %v2544 = vadd.f32 %v2465, %v2543
    %v2545 = vpop.f32.mrf.mxu0
    %2546 = vdwg.mxu0
    %v2547 = vmax.f32 %v2539, 0.0
    %v2548 = vmax.f32 %v2544, 0.0
    %v2549 = vld [vmem:[#allocation6 + $0x268] sm:$0xff]
    %v2550 = vld [vmem:[#allocation6 + $0x270] sm:$0xff]
    %v2551 = vld [vmem:[#allocation6 + $0x278] sm:$0xff]
    %v2552 = vld [vmem:[#allocation6 + $0x280] sm:$0xff]
    %v2553 = vld [vmem:[#allocation6 + $0x288] sm:$0x1]
    %v2554 = vlaneseq
    %v2555 = vshrl.u32 %v2554, 7
    %v2556 = vsub.s32 0, %v2555
    %v2557 = vrot.slane %v2553, %v2556
    %v2559 = vsel %vm300, %v2547, 0
    %v2562 = vsel %vm300, %v2548, 0
    %2564 = vmatprep.subr.mxu0 0.0
    %2565 = vmatpush1.msra.mxu0 0.0
    %2566 = vmatprep.subr.mxu0 0.0
    %2567 = vmatpush1.msra.mxu0 0.0
    %2568 = vmatprep.subr.mxu0 0.0
    %2569 = vmatpush1.msra.mxu0 0.0
    %2570 = vmatprep.subr.mxu0 0.0
    %2571 = vmatpush1.msra.mxu0 0.0
    %2572 = vmatprep.subr.mxu0 0.0
    %2573 = vmatpush1.msra.mxu0 0.0
    %2574 = vmatprep.subr.mxu0 0.0
    %2575 = vmatpush1.msra.mxu0 0.0
    %2576 = vmatprep.subr.mxu0 0.0
    %2577 = vmatpush1.msra.mxu0 0.0
    %2578 = vmatprep.subr.mxu0 0.0
    %2579 = vmatpush1.msra.mxu0 0.0
    %2580 = vmatprep.subr.mxu0 0.0
    %2581 = vmatpush1.msra.mxu0 0.0
    %2582 = vmatprep.subr.mxu0 0.0
    %2583 = vmatpush1.msra.mxu0 0.0
    %2584 = vmatprep.subr.mxu0 0.0
    %2585 = vmatpush1.msra.mxu0 0.0
    %2586 = vmatprep.subr.mxu0 0.0
    %2587 = vmatpush1.msra.mxu0 0.0
    %2588 = vmatprep.subr.mxu0 0.0
    %2589 = vmatpush1.msra.mxu0 %v2552
    %2590 = vmatprep.subr.mxu0 0.0
    %2591 = vmatpush1.msra.mxu0 %v2551
    %2592 = vmatprep.subr.mxu0 0.0
    %2593 = vmatpush1.msra.mxu0 %v2550
    %2594 = vmatprep.subr.mxu0 0.0
    %2595 = vmatpush1.msra.mxu0 %v2549
    %2596 = vmatprep.subr.mxu0 0.0
    %2597 = vmatpush2.msra.mxu0 0.0
    %2598 = vmatprep.subr.mxu0 0.0
    %2599 = vmatpush2.msra.mxu0 0.0
    %2600 = vmatprep.subr.mxu0 0.0
    %2601 = vmatpush2.msra.mxu0 0.0
    %2602 = vmatprep.subr.mxu0 0.0
    %2603 = vmatpush2.msra.mxu0 0.0
    %2604 = vmatprep.subr.mxu0 0.0
    %2605 = vmatpush2.msra.mxu0 0.0
    %2606 = vmatprep.subr.mxu0 0.0
    %2607 = vmatpush2.msra.mxu0 0.0
    %2608 = vmatprep.subr.mxu0 0.0
    %2609 = vmatpush2.msra.mxu0 0.0
    %2610 = vmatprep.subr.mxu0 0.0
    %2611 = vmatpush2.msra.mxu0 0.0
    %2612 = vmatprep.subr.mxu0 0.0
    %2613 = vmatpush2.msra.mxu0 0.0
    %2614 = vmatprep.subr.mxu0 0.0
    %2615 = vmatpush2.msra.mxu0 0.0
    %2616 = vmatprep.subr.mxu0 0.0
    %2617 = vmatpush2.msra.mxu0 0.0
    %2618 = vmatprep.subr.mxu0 0.0
    %2619 = vmatpush2.msra.mxu0 0.0
    %2620 = vmatprep.subr.mxu0 0.0
    %2621 = vmatpush2.msra.mxu0 0.0
    %2622 = vmatprep.subr.mxu0 0.0
    %2623 = vmatpush2.msra.mxu0 0.0
    %2624 = vmatprep.subr.mxu0 0.0
    %2625 = vmatpush2.msra.mxu0 0.0
    %2626 = vmatprep.subr.mxu0 0.0
    %2627 = vmatpush2.msra.mxu0 0.0
    %2628 = vmatprep.mubr.f32.mxu0 0.0
    %2629 = vmatmul.mubr.f32.gmra.mxu0 %v2559
    %v2630 = vpop.f32.mrf.mxu0
    %v2631 = vadd.f32 %v2557, %v2630
    %v2632 = vpop.f32.mrf.mxu0
    %2633 = vmatprep.mubr.f32.mxu0 0.0
    %2634 = vmatmul.mubr.f32.gmra.mxu0 %v2562
    %v2635 = vpop.f32.mrf.mxu0
    %v2636 = vadd.f32 %v2557, %v2635
    %v2637 = vpop.f32.mrf.mxu0
    %2638 = vdwg.mxu0
    %v2639 = vadd.f32 %v2455, %v2631
    %v2640 = vadd.f32 %v2456, %v2636
    %v2641 = vld [vmem:[#allocation6 + $0x290] sm:$0x1]
    %v2642 = vld [vmem:[#allocation6 + $0x298] sm:$0x1]
    %v2643 = vsel %vm300, %v2639, 0.0
    %2644 = vadd.xlane.f32.xlu0 %v2643
    %v2645 = vpop.xlane.xlu0 %2644
    %v2646 = vsel %vm300, %v2640, 0.0
    %2647 = vadd.xlane.f32.xlu0 %v2646
    %v2648 = vpop.xlane.xlu0 %2647
    %v2649 = vmul.f32 %v2645, %v2424
    %v2650 = vmul.f32 %v2648, %v2424
    %v2651 = vsub.f32 %v2639, %v2649
    %v2652 = vsub.f32 %v2640, %v2650
    %v2653 = vmul.f32 %v2651, %v2651
    %v2654 = vmul.f32 %v2652, %v2652
    %v2655 = vsel %vm300, %v2653, 0.0
    %2656 = vadd.xlane.f32.xlu0 %v2655
    %v2657 = vpop.xlane.xlu0 %2656
    %v2658 = vsel %vm300, %v2654, 0.0
    %2659 = vadd.xlane.f32.xlu0 %v2658
    %v2660 = vpop.xlane.xlu0 %2659
    %v2661 = vmul.f32 %v2657, %v2424
    %v2662 = vmul.f32 %v2660, %v2424
    %v2663 = vadd.f32 %v2661, 1e-05
    %v2664 = vadd.f32 %v2662, 1e-05
    %v2665 = vrsqrt.pop %v2663
    %v2666 = vrsqrt.pop %v2664
    %v2667 = vmul.f32 %v2651, %v2665
    %v2668 = vmul.f32 %v2652, %v2666
    %v2669 = vlaneseq
    %v2670 = vshrl.u32 %v2669, 7
    %v2671 = vsub.s32 0, %v2670
    %v2672 = vrot.slane %v2641, %v2671
    %v2673 = vmul.f32 %v2667, %v2672
    %v2674 = vmul.f32 %v2668, %v2672
    %v2675 = vlaneseq
    %v2676 = vshrl.u32 %v2675, 7
    %v2677 = vsub.s32 0, %v2676
    %v2678 = vrot.slane %v2642, %v2677
    %v2679 = vadd.f32 %v2673, %v2678
    %v2680 = vadd.f32 %v2674, %v2678
    %v2681 = vld [vmem:[#allocation6 + $0x2a0] sm:$0xff]
    %v2682 = vld [vmem:[#allocation6 + $0x2a8] sm:$0xff]
    %v2683 = vld [vmem:[#allocation6 + $0x2b0] sm:$0xff]
    %v2684 = vld [vmem:[#allocation6 + $0x2b8] sm:$0xff]
    %v2685 = vld [vmem:[#allocation6 + $0x300] sm:$0x1]
    %v2686 = vlaneseq
    %v2687 = vshrl.u32 %v2686, 7
    %v2688 = vsub.s32 0, %v2687
    %v2689 = vrot.slane %v2685, %v2688
    %v2691 = vsel %vm300, %v2679, 0
    %v2694 = vsel %vm300, %v2680, 0
    %2696 = vmatprep.subr.mxu0 0.0
    %2697 = vmatpush1.msra.mxu0 0.0
    %2698 = vmatprep.subr.mxu0 0.0
    %2699 = vmatpush1.msra.mxu0 0.0
    %2700 = vmatprep.subr.mxu0 0.0
    %2701 = vmatpush1.msra.mxu0 0.0
    %2702 = vmatprep.subr.mxu0 0.0
    %2703 = vmatpush1.msra.mxu0 0.0
    %2704 = vmatprep.subr.mxu0 0.0
    %2705 = vmatpush1.msra.mxu0 0.0
    %2706 = vmatprep.subr.mxu0 0.0
    %2707 = vmatpush1.msra.mxu0 0.0
    %2708 = vmatprep.subr.mxu0 0.0
    %2709 = vmatpush1.msra.mxu0 0.0
    %2710 = vmatprep.subr.mxu0 0.0
    %2711 = vmatpush1.msra.mxu0 0.0
    %2712 = vmatprep.subr.mxu0 0.0
    %2713 = vmatpush1.msra.mxu0 0.0
    %2714 = vmatprep.subr.mxu0 0.0
    %2715 = vmatpush1.msra.mxu0 0.0
    %2716 = vmatprep.subr.mxu0 0.0
    %2717 = vmatpush1.msra.mxu0 0.0
    %2718 = vmatprep.subr.mxu0 0.0
    %2719 = vmatpush1.msra.mxu0 0.0
    %2720 = vmatprep.subr.mxu0 0.0
    %2721 = vmatpush1.msra.mxu0 %v2684
    %2722 = vmatprep.subr.mxu0 0.0
    %2723 = vmatpush1.msra.mxu0 %v2683
    %2724 = vmatprep.subr.mxu0 0.0
    %2725 = vmatpush1.msra.mxu0 %v2682
    %2726 = vmatprep.subr.mxu0 0.0
    %2727 = vmatpush1.msra.mxu0 %v2681
    %2728 = vmatprep.subr.mxu0 0.0
    %2729 = vmatpush2.msra.mxu0 0.0
    %2730 = vmatprep.subr.mxu0 0.0
    %2731 = vmatpush2.msra.mxu0 0.0
    %2732 = vmatprep.subr.mxu0 0.0
    %2733 = vmatpush2.msra.mxu0 0.0
    %2734 = vmatprep.subr.mxu0 0.0
    %2735 = vmatpush2.msra.mxu0 0.0
    %2736 = vmatprep.subr.mxu0 0.0
    %2737 = vmatpush2.msra.mxu0 0.0
    %2738 = vmatprep.subr.mxu0 0.0
    %2739 = vmatpush2.msra.mxu0 0.0
    %2740 = vmatprep.subr.mxu0 0.0
    %2741 = vmatpush2.msra.mxu0 0.0
    %2742 = vmatprep.subr.mxu0 0.0
    %2743 = vmatpush2.msra.mxu0 0.0
    %2744 = vmatprep.subr.mxu0 0.0
    %2745 = vmatpush2.msra.mxu0 0.0
    %2746 = vmatprep.subr.mxu0 0.0
    %2747 = vmatpush2.msra.mxu0 0.0
    %2748 = vmatprep.subr.mxu0 0.0
    %2749 = vmatpush2.msra.mxu0 0.0
    %2750 = vmatprep.subr.mxu0 0.0
    %2751 = vmatpush2.msra.mxu0 0.0
    %2752 = vmatprep.subr.mxu0 0.0
    %2753 = vmatpush2.msra.mxu0 0.0
    %2754 = vmatprep.subr.mxu0 0.0
    %2755 = vmatpush2.msra.mxu0 0.0
    %2756 = vmatprep.subr.mxu0 0.0
    %2757 = vmatpush2.msra.mxu0 0.0
    %2758 = vmatprep.subr.mxu0 0.0
    %2759 = vmatpush2.msra.mxu0 0.0
    %2760 = vmatprep.mubr.f32.mxu0 0.0
    %2761 = vmatmul.mubr.f32.gmra.mxu0 %v2691
    %v2762 = vpop.f32.mrf.mxu0
    %v2763 = vadd.f32 %v2689, %v2762
    %v2764 = vpop.f32.mrf.mxu0
    %2765 = vmatprep.mubr.f32.mxu0 0.0
    %2766 = vmatmul.mubr.f32.gmra.mxu0 %v2694
    %v2767 = vpop.f32.mrf.mxu0
    %v2768 = vadd.f32 %v2689, %v2767
    %v2769 = vpop.f32.mrf.mxu0
    %2770 = vdwg.mxu0
    %v2771 = vmul.f32 %v2763, 0.35355338
    %v2772 = vmul.f32 %v2768, 0.35355338
    %v2773 = vld [vmem:[#allocation6 + $0x2c0] sm:$0xff]
    %v2774 = vld [vmem:[#allocation6 + $0x2c8] sm:$0xff]
    %v2775 = vld [vmem:[#allocation6 + $0x2d0] sm:$0xff]
    %v2776 = vld [vmem:[#allocation6 + $0x2d8] sm:$0xff]
    %v2777 = vld [vmem:[#allocation6 + $0x308] sm:$0x1]
    %v2778 = vlaneseq
    %v2779 = vshrl.u32 %v2778, 7
    %v2780 = vsub.s32 0, %v2779
    %v2781 = vrot.slane %v2777, %v2780
    %2782 = vmatprep.subr.mxu0 0.0
    %2783 = vmatpush1.msra.mxu0 0.0
    %2784 = vmatprep.subr.mxu0 0.0
    %2785 = vmatpush1.msra.mxu0 0.0
    %2786 = vmatprep.subr.mxu0 0.0
    %2787 = vmatpush1.msra.mxu0 0.0
    %2788 = vmatprep.subr.mxu0 0.0
    %2789 = vmatpush1.msra.mxu0 0.0
    %2790 = vmatprep.subr.mxu0 0.0
    %2791 = vmatpush1.msra.mxu0 0.0
    %2792 = vmatprep.subr.mxu0 0.0
    %2793 = vmatpush1.msra.mxu0 0.0
    %2794 = vmatprep.subr.mxu0 0.0
    %2795 = vmatpush1.msra.mxu0 0.0
    %2796 = vmatprep.subr.mxu0 0.0
    %2797 = vmatpush1.msra.mxu0 0.0
    %2798 = vmatprep.subr.mxu0 0.0
    %2799 = vmatpush1.msra.mxu0 0.0
    %2800 = vmatprep.subr.mxu0 0.0
    %2801 = vmatpush1.msra.mxu0 0.0
    %2802 = vmatprep.subr.mxu0 0.0
    %2803 = vmatpush1.msra.mxu0 0.0
    %2804 = vmatprep.subr.mxu0 0.0
    %2805 = vmatpush1.msra.mxu0 0.0
    %2806 = vmatprep.subr.mxu0 0.0
    %2807 = vmatpush1.msra.mxu0 %v2776
    %2808 = vmatprep.subr.mxu0 0.0
    %2809 = vmatpush1.msra.mxu0 %v2775
    %2810 = vmatprep.subr.mxu0 0.0
    %2811 = vmatpush1.msra.mxu0 %v2774
    %2812 = vmatprep.subr.mxu0 0.0
    %2813 = vmatpush1.msra.mxu0 %v2773
    %2814 = vmatprep.subr.mxu0 0.0
    %2815 = vmatpush2.msra.mxu0 0.0
    %2816 = vmatprep.subr.mxu0 0.0
    %2817 = vmatpush2.msra.mxu0 0.0
    %2818 = vmatprep.subr.mxu0 0.0
    %2819 = vmatpush2.msra.mxu0 0.0
    %2820 = vmatprep.subr.mxu0 0.0
    %2821 = vmatpush2.msra.mxu0 0.0
    %2822 = vmatprep.subr.mxu0 0.0
    %2823 = vmatpush2.msra.mxu0 0.0
    %2824 = vmatprep.subr.mxu0 0.0
    %2825 = vmatpush2.msra.mxu0 0.0
    %2826 = vmatprep.subr.mxu0 0.0
    %2827 = vmatpush2.msra.mxu0 0.0
    %2828 = vmatprep.subr.mxu0 0.0
    %2829 = vmatpush2.msra.mxu0 0.0
    %2830 = vmatprep.subr.mxu0 0.0
    %2831 = vmatpush2.msra.mxu0 0.0
    %2832 = vmatprep.subr.mxu0 0.0
    %2833 = vmatpush2.msra.mxu0 0.0
    %2834 = vmatprep.subr.mxu0 0.0
    %2835 = vmatpush2.msra.mxu0 0.0
    %2836 = vmatprep.subr.mxu0 0.0
    %2837 = vmatpush2.msra.mxu0 0.0
    %2838 = vmatprep.subr.mxu0 0.0
    %2839 = vmatpush2.msra.mxu0 0.0
    %2840 = vmatprep.subr.mxu0 0.0
    %2841 = vmatpush2.msra.mxu0 0.0
    %2842 = vmatprep.subr.mxu0 0.0
    %2843 = vmatpush2.msra.mxu0 0.0
    %2844 = vmatprep.subr.mxu0 0.0
    %2845 = vmatpush2.msra.mxu0 0.0
    %2846 = vmatprep.mubr.f32.mxu0 0.0
    %2847 = vmatmul.mubr.f32.gmra.mxu0 %v2691
    %v2848 = vpop.f32.mrf.mxu0
    %v2849 = vadd.f32 %v2781, %v2848
    %v2850 = vpop.f32.mrf.mxu0
    %2851 = vmatprep.mubr.f32.mxu0 0.0
    %2852 = vmatmul.mubr.f32.gmra.mxu0 %v2694
    %v2853 = vpop.f32.mrf.mxu0
    %v2854 = vadd.f32 %v2781, %v2853
    %v2855 = vpop.f32.mrf.mxu0
    %2856 = vdwg.mxu0
    %v2857 = vld [vmem:[#allocation6 + $0x2e0] sm:$0xff]
    %v2858 = vld [vmem:[#allocation6 + $0x2e8] sm:$0xff]
    %v2859 = vld [vmem:[#allocation6 + $0x2f0] sm:$0xff]
    %v2860 = vld [vmem:[#allocation6 + $0x2f8] sm:$0xff]
    %v2861 = vld [vmem:[#allocation6 + $0x310] sm:$0x1]
    %v2862 = vlaneseq
    %v2863 = vshrl.u32 %v2862, 7
    %v2864 = vsub.s32 0, %v2863
    %v2865 = vrot.slane %v2861, %v2864
    %2866 = vmatprep.subr.mxu0 0.0
    %2867 = vmatpush1.msra.mxu0 0.0
    %2868 = vmatprep.subr.mxu0 0.0
    %2869 = vmatpush1.msra.mxu0 0.0
    %2870 = vmatprep.subr.mxu0 0.0
    %2871 = vmatpush1.msra.mxu0 0.0
    %2872 = vmatprep.subr.mxu0 0.0
    %2873 = vmatpush1.msra.mxu0 0.0
    %2874 = vmatprep.subr.mxu0 0.0
    %2875 = vmatpush1.msra.mxu0 0.0
    %2876 = vmatprep.subr.mxu0 0.0
    %2877 = vmatpush1.msra.mxu0 0.0
    %2878 = vmatprep.subr.mxu0 0.0
    %2879 = vmatpush1.msra.mxu0 0.0
    %2880 = vmatprep.subr.mxu0 0.0
    %2881 = vmatpush1.msra.mxu0 0.0
    %2882 = vmatprep.subr.mxu0 0.0
    %2883 = vmatpush1.msra.mxu0 0.0
    %2884 = vmatprep.subr.mxu0 0.0
    %2885 = vmatpush1.msra.mxu0 0.0
    %2886 = vmatprep.subr.mxu0 0.0
    %2887 = vmatpush1.msra.mxu0 0.0
    %2888 = vmatprep.subr.mxu0 0.0
    %2889 = vmatpush1.msra.mxu0 0.0
    %2890 = vmatprep.subr.mxu0 0.0
    %2891 = vmatpush1.msra.mxu0 %v2860
    %2892 = vmatprep.subr.mxu0 0.0
    %2893 = vmatpush1.msra.mxu0 %v2859
    %2894 = vmatprep.subr.mxu0 0.0
    %2895 = vmatpush1.msra.mxu0 %v2858
    %2896 = vmatprep.subr.mxu0 0.0
    %2897 = vmatpush1.msra.mxu0 %v2857
    %2898 = vmatprep.subr.mxu0 0.0
    %2899 = vmatpush2.msra.mxu0 0.0
    %2900 = vmatprep.subr.mxu0 0.0
    %2901 = vmatpush2.msra.mxu0 0.0
    %2902 = vmatprep.subr.mxu0 0.0
    %2903 = vmatpush2.msra.mxu0 0.0
    %2904 = vmatprep.subr.mxu0 0.0
    %2905 = vmatpush2.msra.mxu0 0.0
    %2906 = vmatprep.subr.mxu0 0.0
    %2907 = vmatpush2.msra.mxu0 0.0
    %2908 = vmatprep.subr.mxu0 0.0
    %2909 = vmatpush2.msra.mxu0 0.0
    %2910 = vmatprep.subr.mxu0 0.0
    %2911 = vmatpush2.msra.mxu0 0.0
    %2912 = vmatprep.subr.mxu0 0.0
    %2913 = vmatpush2.msra.mxu0 0.0
    %2914 = vmatprep.subr.mxu0 0.0
    %2915 = vmatpush2.msra.mxu0 0.0
    %2916 = vmatprep.subr.mxu0 0.0
    %2917 = vmatpush2.msra.mxu0 0.0
    %2918 = vmatprep.subr.mxu0 0.0
    %2919 = vmatpush2.msra.mxu0 0.0
    %2920 = vmatprep.subr.mxu0 0.0
    %2921 = vmatpush2.msra.mxu0 0.0
    %2922 = vmatprep.subr.mxu0 0.0
    %2923 = vmatpush2.msra.mxu0 0.0
    %2924 = vmatprep.subr.mxu0 0.0
    %2925 = vmatpush2.msra.mxu0 0.0
    %2926 = vmatprep.subr.mxu0 0.0
    %2927 = vmatpush2.msra.mxu0 0.0
    %2928 = vmatprep.subr.mxu0 0.0
    %2929 = vmatpush2.msra.mxu0 0.0
    %2930 = vmatprep.mubr.f32.mxu0 0.0
    %2931 = vmatmul.mubr.f32.gmra.mxu0 %v2691
    %v2932 = vpop.f32.mrf.mxu0
    %v2933 = vadd.f32 %v2865, %v2932
    %v2934 = vpop.f32.mrf.mxu0
    %2935 = vmatprep.mubr.f32.mxu0 0.0
    %2936 = vmatmul.mubr.f32.gmra.mxu0 %v2694
    %v2937 = vpop.f32.mrf.mxu0
    %v2938 = vadd.f32 %v2865, %v2937
    %v2939 = vpop.f32.mrf.mxu0
    %2940 = vdwg.mxu0
    %v2942 = vsel %vm552, %v2771, 0
    %v2945 = vsel %vm552, %v2772, 0
    %v2948 = vsel %vm552, %v2849, 0
    %v2951 = vsel %vm552, %v2854, 0
    %2953 = vmatprep.subr.mxu0 0.0
    %2954 = vmatpush1.xpose.msra.mxu0 0.0
    %2955 = vmatprep.subr.mxu0 0.0
    %2956 = vmatpush1.xpose.msra.mxu0 0.0
    %2957 = vmatprep.subr.mxu0 0.0
    %2958 = vmatpush1.xpose.msra.mxu0 0.0
    %2959 = vmatprep.subr.mxu0 0.0
    %2960 = vmatpush1.xpose.msra.mxu0 0.0
    %2961 = vmatprep.subr.mxu0 0.0
    %2962 = vmatpush1.xpose.msra.mxu0 0.0
    %2963 = vmatprep.subr.mxu0 0.0
    %2964 = vmatpush1.xpose.msra.mxu0 0.0
    %2965 = vmatprep.subr.mxu0 0.0
    %2966 = vmatpush1.xpose.msra.mxu0 0.0
    %2967 = vmatprep.subr.mxu0 0.0
    %2968 = vmatpush1.xpose.msra.mxu0 0.0
    %2969 = vmatprep.subr.mxu0 0.0
    %2970 = vmatpush1.xpose.msra.mxu0 0.0
    %2971 = vmatprep.subr.mxu0 0.0
    %2972 = vmatpush1.xpose.msra.mxu0 0.0
    %2973 = vmatprep.subr.mxu0 0.0
    %2974 = vmatpush1.xpose.msra.mxu0 0.0
    %2975 = vmatprep.subr.mxu0 0.0
    %2976 = vmatpush1.xpose.msra.mxu0 0.0
    %2977 = vmatprep.subr.mxu0 0.0
    %2978 = vmatpush1.xpose.msra.mxu0 0.0
    %2979 = vmatprep.subr.mxu0 0.0
    %2980 = vmatpush1.xpose.msra.mxu0 0.0
    %2981 = vmatprep.subr.mxu0 0.0
    %2982 = vmatpush1.xpose.msra.mxu0 %v2951
    %2983 = vmatprep.subr.mxu0 0.0
    %2984 = vmatpush1.xpose.msra.mxu0 %v2948
    %2985 = vmatprep.subr.mxu0 0.0
    %2986 = vmatpush2.xpose.msra.mxu0 0.0
    %2987 = vmatprep.subr.mxu0 0.0
    %2988 = vmatpush2.xpose.msra.mxu0 0.0
    %2989 = vmatprep.subr.mxu0 0.0
    %2990 = vmatpush2.xpose.msra.mxu0 0.0
    %2991 = vmatprep.subr.mxu0 0.0
    %2992 = vmatpush2.xpose.msra.mxu0 0.0
    %2993 = vmatprep.subr.mxu0 0.0
    %2994 = vmatpush2.xpose.msra.mxu0 0.0
    %2995 = vmatprep.subr.mxu0 0.0
    %2996 = vmatpush2.xpose.msra.mxu0 0.0
    %2997 = vmatprep.subr.mxu0 0.0
    %2998 = vmatpush2.xpose.msra.mxu0 0.0
    %2999 = vmatprep.subr.mxu0 0.0
    %3000 = vmatpush2.xpose.msra.mxu0 0.0
    %3001 = vmatprep.subr.mxu0 0.0
    %3002 = vmatpush2.xpose.msra.mxu0 0.0
    %3003 = vmatprep.subr.mxu0 0.0
    %3004 = vmatpush2.xpose.msra.mxu0 0.0
    %3005 = vmatprep.subr.mxu0 0.0
    %3006 = vmatpush2.xpose.msra.mxu0 0.0
    %3007 = vmatprep.subr.mxu0 0.0
    %3008 = vmatpush2.xpose.msra.mxu0 0.0
    %3009 = vmatprep.subr.mxu0 0.0
    %3010 = vmatpush2.xpose.msra.mxu0 0.0
    %3011 = vmatprep.subr.mxu0 0.0
    %3012 = vmatpush2.xpose.msra.mxu0 0.0
    %3013 = vmatprep.subr.mxu0 0.0
    %3014 = vmatpush2.xpose.msra.mxu0 0.0
    %3015 = vmatprep.subr.mxu0 0.0
    %3016 = vmatpush2.xpose.msra.mxu0 0.0
    %3017 = vmatprep.mubr.f32.mxu0 0.0
    %3018 = vmatmul.mubr.f32.gmra.mxu0 %v2942
    %v3019 = vpop.f32.mrf.mxu0
    %v3020 = vadd.f32 %v288, %v3019
    %v3021 = vpop.f32.mrf.mxu0
    %3022 = vmatprep.mubr.f32.mxu0 0.0
    %3023 = vmatmul.mubr.f32.gmra.mxu0 %v2945
    %v3024 = vpop.f32.mrf.mxu0
    %v3025 = vadd.f32 %v289, %v3024
    %v3026 = vpop.f32.mrf.mxu0
    %3027 = vdwg.mxu0
    %v3028 = vsel %vm214, %v3020, -inf
    %3029 = vmax.xlane.f32.xlu0 %v3028
    %v3030 = vpop.xlane.xlu0 %3029
    %v3031 = vsel %vm214, %v3025, -inf
    %3032 = vmax.xlane.f32.xlu0 %v3031
    %v3033 = vpop.xlane.xlu0 %3032
    %v3034 = vsub.f32 %v3020, %v3030
    %v3035 = vsub.f32 %v3025, %v3033
    %v3036 = vmul.f32 %v3034, 1.442695
    %v3037 = vpow.pop %v3036
    %v3038 = vmul.f32 %v3035, 1.442695
    %v3039 = vpow.pop %v3038
    %v3040 = vsel %vm214, %v3037, 0.0
    %3041 = vadd.xlane.f32.xlu0 %v3040
    %v3042 = vpop.xlane.xlu0 %3041
    %v3043 = vsel %vm214, %v3039, 0.0
    %3044 = vadd.xlane.f32.xlu0 %v3043
    %v3045 = vpop.xlane.xlu0 %3044
    %v3046 = vrcp.pop %v3042
    %v3047 = vmul.f32 %v3037, %v3046
    %v3048 = vrcp.pop %v3045
    %v3049 = vmul.f32 %v3039, %v3048
    %v3051 = vsel %vm214, %v3047, 0
    %v3054 = vsel %vm214, %v3049, 0
    %3056 = vmatprep.subr.mxu0 0.0
    %3057 = vmatpush1.msra.mxu0 0.0
    %3058 = vmatprep.subr.mxu0 0.0
    %3059 = vmatpush1.msra.mxu0 0.0
    %3060 = vmatprep.subr.mxu0 0.0
    %3061 = vmatpush1.msra.mxu0 0.0
    %3062 = vmatprep.subr.mxu0 0.0
    %3063 = vmatpush1.msra.mxu0 0.0
    %3064 = vmatprep.subr.mxu0 0.0
    %3065 = vmatpush1.msra.mxu0 0.0
    %3066 = vmatprep.subr.mxu0 0.0
    %3067 = vmatpush1.msra.mxu0 0.0
    %3068 = vmatprep.subr.mxu0 0.0
    %3069 = vmatpush1.msra.mxu0 0.0
    %3070 = vmatprep.subr.mxu0 0.0
    %3071 = vmatpush1.msra.mxu0 0.0
    %3072 = vmatprep.subr.mxu0 0.0
    %3073 = vmatpush1.msra.mxu0 0.0
    %3074 = vmatprep.subr.mxu0 0.0
    %3075 = vmatpush1.msra.mxu0 0.0
    %3076 = vmatprep.subr.mxu0 0.0
    %3077 = vmatpush1.msra.mxu0 0.0
    %3078 = vmatprep.subr.mxu0 0.0
    %3079 = vmatpush1.msra.mxu0 0.0
    %3080 = vmatprep.subr.mxu0 0.0
    %3081 = vmatpush1.msra.mxu0 0.0
    %3082 = vmatprep.subr.mxu0 0.0
    %3083 = vmatpush1.msra.mxu0 0.0
    %3084 = vmatprep.subr.mxu0 0.0
    %3085 = vmatpush1.msra.mxu0 %v2938
    %3086 = vmatprep.subr.mxu0 0.0
    %3087 = vmatpush1.msra.mxu0 %v2933
    %3088 = vmatprep.subr.mxu0 0.0
    %3089 = vmatpush2.msra.mxu0 0.0
    %3090 = vmatprep.subr.mxu0 0.0
    %3091 = vmatpush2.msra.mxu0 0.0
    %3092 = vmatprep.subr.mxu0 0.0
    %3093 = vmatpush2.msra.mxu0 0.0
    %3094 = vmatprep.subr.mxu0 0.0
    %3095 = vmatpush2.msra.mxu0 0.0
    %3096 = vmatprep.subr.mxu0 0.0
    %3097 = vmatpush2.msra.mxu0 0.0
    %3098 = vmatprep.subr.mxu0 0.0
    %3099 = vmatpush2.msra.mxu0 0.0
    %3100 = vmatprep.subr.mxu0 0.0
    %3101 = vmatpush2.msra.mxu0 0.0
    %3102 = vmatprep.subr.mxu0 0.0
    %3103 = vmatpush2.msra.mxu0 0.0
    %3104 = vmatprep.subr.mxu0 0.0
    %3105 = vmatpush2.msra.mxu0 0.0
    %3106 = vmatprep.subr.mxu0 0.0
    %3107 = vmatpush2.msra.mxu0 0.0
    %3108 = vmatprep.subr.mxu0 0.0
    %3109 = vmatpush2.msra.mxu0 0.0
    %3110 = vmatprep.subr.mxu0 0.0
    %3111 = vmatpush2.msra.mxu0 0.0
    %3112 = vmatprep.subr.mxu0 0.0
    %3113 = vmatpush2.msra.mxu0 0.0
    %3114 = vmatprep.subr.mxu0 0.0
    %3115 = vmatpush2.msra.mxu0 0.0
    %3116 = vmatprep.subr.mxu0 0.0
    %3117 = vmatpush2.msra.mxu0 0.0
    %3118 = vmatprep.subr.mxu0 0.0
    %3119 = vmatpush2.msra.mxu0 0.0
    %3120 = vmatprep.mubr.f32.mxu0 0.0
    %3121 = vmatmul.mubr.f32.gmra.mxu0 %v3051
    %v3122 = vpop.f32.mrf.mxu0
    %v3123 = vadd.f32 0.0, %v3122
    %v3124 = vpop.f32.mrf.mxu0
    %3125 = vmatprep.mubr.f32.mxu0 0.0
    %3126 = vmatmul.mubr.f32.gmra.mxu0 %v3054
    %v3127 = vpop.f32.mrf.mxu0
    %v3128 = vadd.f32 0.0, %v3127
    %v3129 = vpop.f32.mrf.mxu0
    %3130 = vdwg.mxu0
    %v3131 = vld [vmem:[#allocation6 + $0x318] sm:$0xff]
    %v3132 = vld [vmem:[#allocation6 + $0x320] sm:$0xff]
    %v3133 = vld [vmem:[#allocation6 + $0x328] sm:$0xff]
    %v3134 = vld [vmem:[#allocation6 + $0x330] sm:$0xff]
    %v3135 = vld [vmem:[#allocation6 + $0x338] sm:$0xff]
    %v3136 = vld [vmem:[#allocation6 + $0x380] sm:$0x1]
    %v3137 = vlaneseq
    %v3138 = vshrl.u32 %v3137, 7
    %v3139 = vsub.s32 0, %v3138
    %v3140 = vrot.slane %v3136, %v3139
    %3141 = vmatprep.subr.mxu0 0.0
    %3142 = vmatpush1.msra.mxu0 0.0
    %3143 = vmatprep.subr.mxu0 0.0
    %3144 = vmatpush1.msra.mxu0 0.0
    %3145 = vmatprep.subr.mxu0 0.0
    %3146 = vmatpush1.msra.mxu0 0.0
    %3147 = vmatprep.subr.mxu0 0.0
    %3148 = vmatpush1.msra.mxu0 0.0
    %3149 = vmatprep.subr.mxu0 0.0
    %3150 = vmatpush1.msra.mxu0 0.0
    %3151 = vmatprep.subr.mxu0 0.0
    %3152 = vmatpush1.msra.mxu0 0.0
    %3153 = vmatprep.subr.mxu0 0.0
    %3154 = vmatpush1.msra.mxu0 0.0
    %3155 = vmatprep.subr.mxu0 0.0
    %3156 = vmatpush1.msra.mxu0 0.0
    %3157 = vmatprep.subr.mxu0 0.0
    %3158 = vmatpush1.msra.mxu0 0.0
    %3159 = vmatprep.subr.mxu0 0.0
    %3160 = vmatpush1.msra.mxu0 0.0
    %3161 = vmatprep.subr.mxu0 0.0
    %3162 = vmatpush1.msra.mxu0 0.0
    %3163 = vmatprep.subr.mxu0 0.0
    %3164 = vmatpush1.msra.mxu0 0.0
    %3165 = vmatprep.subr.mxu0 0.0
    %3166 = vmatpush1.msra.mxu0 %v3135
    %3167 = vmatprep.subr.mxu0 0.0
    %3168 = vmatpush1.msra.mxu0 %v3134
    %3169 = vmatprep.subr.mxu0 0.0
    %3170 = vmatpush1.msra.mxu0 %v3133
    %3171 = vmatprep.subr.mxu0 0.0
    %3172 = vmatpush1.msra.mxu0 %v3132
    %3173 = vmatprep.subr.mxu0 0.0
    %3174 = vmatpush2.msra.mxu0 0.0
    %3175 = vmatprep.subr.mxu0 0.0
    %3176 = vmatpush2.msra.mxu0 0.0
    %3177 = vmatprep.subr.mxu0 0.0
    %3178 = vmatpush2.msra.mxu0 0.0
    %3179 = vmatprep.subr.mxu0 0.0
    %3180 = vmatpush2.msra.mxu0 0.0
    %3181 = vmatprep.subr.mxu0 0.0
    %3182 = vmatpush2.msra.mxu0 0.0
    %3183 = vmatprep.subr.mxu0 0.0
    %3184 = vmatpush2.msra.mxu0 0.0
    %3185 = vmatprep.subr.mxu0 0.0
    %3186 = vmatpush2.msra.mxu0 0.0
    %3187 = vmatprep.subr.mxu0 0.0
    %3188 = vmatpush2.msra.mxu0 0.0
    %3189 = vmatprep.subr.mxu0 0.0
    %3190 = vmatpush2.msra.mxu0 0.0
    %3191 = vmatprep.subr.mxu0 0.0
    %3192 = vmatpush2.msra.mxu0 0.0
    %3193 = vmatprep.subr.mxu0 0.0
    %3194 = vmatpush2.msra.mxu0 0.0
    %3195 = vmatprep.subr.mxu0 0.0
    %3196 = vmatpush2.msra.mxu0 0.0
    %3197 = vmatprep.subr.mxu0 0.0
    %3198 = vmatpush2.msra.mxu0 0.0
    %3199 = vmatprep.subr.mxu0 0.0
    %3200 = vmatpush2.msra.mxu0 0.0
    %3201 = vmatprep.subr.mxu0 0.0
    %3202 = vmatpush2.msra.mxu0 0.0
    %3203 = vmatprep.subr.mxu0 0.0
    %3204 = vmatpush2.msra.mxu0 0.0
    %3205 = vmatprep.mubr.f32.mxu0 0.0
    %3206 = vmatmul.mubr.f32.gmra.mxu0 %v2691
    %v3207 = vpop.f32.mrf.mxu0
    %v3208 = vadd.f32 %v3140, %v3207
    %v3209 = vpop.f32.mrf.mxu0
    %3210 = vmatprep.mubr.f32.mxu0 0.0
    %3211 = vmatmul.mubr.f32.gmra.mxu0 %v2694
    %v3212 = vpop.f32.mrf.mxu0
    %v3213 = vadd.f32 %v3140, %v3212
    %v3214 = vpop.f32.mrf.mxu0
    %3215 = vdwg.mxu0
    %v3216 = vmul.f32 %v3208, 0.35355338
    %v3217 = vmul.f32 %v3213, 0.35355338
    %v3218 = vld [vmem:[#allocation6 + $0x340] sm:$0xff]
    %v3219 = vld [vmem:[#allocation6 + $0x348] sm:$0xff]
    %v3220 = vld [vmem:[#allocation6 + $0x350] sm:$0xff]
    %v3221 = vld [vmem:[#allocation6 + $0x358] sm:$0xff]
    %v3222 = vld [vmem:[#allocation6 + $0x388] sm:$0x1]
    %v3223 = vlaneseq
    %v3224 = vshrl.u32 %v3223, 7
    %v3225 = vsub.s32 0, %v3224
    %v3226 = vrot.slane %v3222, %v3225
    %3227 = vmatprep.subr.mxu0 0.0
    %3228 = vmatpush1.msra.mxu0 0.0
    %3229 = vmatprep.subr.mxu0 0.0
    %3230 = vmatpush1.msra.mxu0 0.0
    %3231 = vmatprep.subr.mxu0 0.0
    %3232 = vmatpush1.msra.mxu0 0.0
    %3233 = vmatprep.subr.mxu0 0.0
    %3234 = vmatpush1.msra.mxu0 0.0
    %3235 = vmatprep.subr.mxu0 0.0
    %3236 = vmatpush1.msra.mxu0 0.0
    %3237 = vmatprep.subr.mxu0 0.0
    %3238 = vmatpush1.msra.mxu0 0.0
    %3239 = vmatprep.subr.mxu0 0.0
    %3240 = vmatpush1.msra.mxu0 0.0
    %3241 = vmatprep.subr.mxu0 0.0
    %3242 = vmatpush1.msra.mxu0 0.0
    %3243 = vmatprep.subr.mxu0 0.0
    %3244 = vmatpush1.msra.mxu0 0.0
    %3245 = vmatprep.subr.mxu0 0.0
    %3246 = vmatpush1.msra.mxu0 0.0
    %3247 = vmatprep.subr.mxu0 0.0
    %3248 = vmatpush1.msra.mxu0 0.0
    %3249 = vmatprep.subr.mxu0 0.0
    %3250 = vmatpush1.msra.mxu0 0.0
    %3251 = vmatprep.subr.mxu0 0.0
    %3252 = vmatpush1.msra.mxu0 %v3221
    %3253 = vmatprep.subr.mxu0 0.0
    %3254 = vmatpush1.msra.mxu0 %v3220
    %3255 = vmatprep.subr.mxu0 0.0
    %3256 = vmatpush1.msra.mxu0 %v3219
    %3257 = vmatprep.subr.mxu0 0.0
    %3258 = vmatpush1.msra.mxu0 %v3218
    %3259 = vmatprep.subr.mxu0 0.0
    %3260 = vmatpush2.msra.mxu0 0.0
    %3261 = vmatprep.subr.mxu0 0.0
    %3262 = vmatpush2.msra.mxu0 0.0
    %3263 = vmatprep.subr.mxu0 0.0
    %3264 = vmatpush2.msra.mxu0 0.0
    %3265 = vmatprep.subr.mxu0 0.0
    %3266 = vmatpush2.msra.mxu0 0.0
    %3267 = vmatprep.subr.mxu0 0.0
    %3268 = vmatpush2.msra.mxu0 0.0
    %3269 = vmatprep.subr.mxu0 0.0
    %3270 = vmatpush2.msra.mxu0 0.0
    %3271 = vmatprep.subr.mxu0 0.0
    %3272 = vmatpush2.msra.mxu0 0.0
    %3273 = vmatprep.subr.mxu0 0.0
    %3274 = vmatpush2.msra.mxu0 0.0
    %3275 = vmatprep.subr.mxu0 0.0
    %3276 = vmatpush2.msra.mxu0 0.0
    %3277 = vmatprep.subr.mxu0 0.0
    %3278 = vmatpush2.msra.mxu0 0.0
    %3279 = vmatprep.subr.mxu0 0.0
    %3280 = vmatpush2.msra.mxu0 0.0
    %3281 = vmatprep.subr.mxu0 0.0
    %3282 = vmatpush2.msra.mxu0 0.0
    %3283 = vmatprep.subr.mxu0 0.0
    %3284 = vmatpush2.msra.mxu0 0.0
    %3285 = vmatprep.subr.mxu0 0.0
    %3286 = vmatpush2.msra.mxu0 0.0
    %3287 = vmatprep.subr.mxu0 0.0
    %3288 = vmatpush2.msra.mxu0 0.0
    %3289 = vmatprep.subr.mxu0 0.0
    %3290 = vmatpush2.msra.mxu0 0.0
    %3291 = vmatprep.mubr.f32.mxu0 0.0
    %3292 = vmatmul.mubr.f32.gmra.mxu0 %v2691
    %v3293 = vpop.f32.mrf.mxu0
    %v3294 = vadd.f32 %v3226, %v3293
    %v3295 = vpop.f32.mrf.mxu0
    %3296 = vmatprep.mubr.f32.mxu0 0.0
    %3297 = vmatmul.mubr.f32.gmra.mxu0 %v2694
    %v3298 = vpop.f32.mrf.mxu0
    %v3299 = vadd.f32 %v3226, %v3298
    %v3300 = vpop.f32.mrf.mxu0
    %3301 = vdwg.mxu0
    %v3302 = vld [vmem:[#allocation6 + $0x360] sm:$0xff]
    %v3303 = vld [vmem:[#allocation6 + $0x368] sm:$0xff]
    %v3304 = vld [vmem:[#allocation6 + $0x370] sm:$0xff]
    %v3305 = vld [vmem:[#allocation6 + $0x378] sm:$0xff]
    %v3306 = vld [vmem:[#allocation6 + $0x390] sm:$0x1]
    %v3307 = vlaneseq
    %v3308 = vshrl.u32 %v3307, 7
    %v3309 = vsub.s32 0, %v3308
    %v3310 = vrot.slane %v3306, %v3309
    %3311 = vmatprep.subr.mxu0 0.0
    %3312 = vmatpush1.msra.mxu0 0.0
    %3313 = vmatprep.subr.mxu0 0.0
    %3314 = vmatpush1.msra.mxu0 0.0
    %3315 = vmatprep.subr.mxu0 0.0
    %3316 = vmatpush1.msra.mxu0 0.0
    %3317 = vmatprep.subr.mxu0 0.0
    %3318 = vmatpush1.msra.mxu0 0.0
    %3319 = vmatprep.subr.mxu0 0.0
    %3320 = vmatpush1.msra.mxu0 0.0
    %3321 = vmatprep.subr.mxu0 0.0
    %3322 = vmatpush1.msra.mxu0 0.0
    %3323 = vmatprep.subr.mxu0 0.0
    %3324 = vmatpush1.msra.mxu0 0.0
    %3325 = vmatprep.subr.mxu0 0.0
    %3326 = vmatpush1.msra.mxu0 0.0
    %3327 = vmatprep.subr.mxu0 0.0
    %3328 = vmatpush1.msra.mxu0 0.0
    %3329 = vmatprep.subr.mxu0 0.0
    %3330 = vmatpush1.msra.mxu0 0.0
    %3331 = vmatprep.subr.mxu0 0.0
    %3332 = vmatpush1.msra.mxu0 0.0
    %3333 = vmatprep.subr.mxu0 0.0
    %3334 = vmatpush1.msra.mxu0 0.0
    %3335 = vmatprep.subr.mxu0 0.0
    %3336 = vmatpush1.msra.mxu0 %v3305
    %3337 = vmatprep.subr.mxu0 0.0
    %3338 = vmatpush1.msra.mxu0 %v3304
    %3339 = vmatprep.subr.mxu0 0.0
    %3340 = vmatpush1.msra.mxu0 %v3303
    %3341 = vmatprep.subr.mxu0 0.0
    %3342 = vmatpush1.msra.mxu0 %v3302
    %3343 = vmatprep.subr.mxu0 0.0
    %3344 = vmatpush2.msra.mxu0 0.0
    %3345 = vmatprep.subr.mxu0 0.0
    %3346 = vmatpush2.msra.mxu0 0.0
    %3347 = vmatprep.subr.mxu0 0.0
    %3348 = vmatpush2.msra.mxu0 0.0
    %3349 = vmatprep.subr.mxu0 0.0
    %3350 = vmatpush2.msra.mxu0 0.0
    %3351 = vmatprep.subr.mxu0 0.0
    %3352 = vmatpush2.msra.mxu0 0.0
    %3353 = vmatprep.subr.mxu0 0.0
    %3354 = vmatpush2.msra.mxu0 0.0
    %3355 = vmatprep.subr.mxu0 0.0
    %3356 = vmatpush2.msra.mxu0 0.0
    %3357 = vmatprep.subr.mxu0 0.0
    %3358 = vmatpush2.msra.mxu0 0.0
    %3359 = vmatprep.subr.mxu0 0.0
    %3360 = vmatpush2.msra.mxu0 0.0
    %3361 = vmatprep.subr.mxu0 0.0
    %3362 = vmatpush2.msra.mxu0 0.0
    %3363 = vmatprep.subr.mxu0 0.0
    %3364 = vmatpush2.msra.mxu0 0.0
    %3365 = vmatprep.subr.mxu0 0.0
    %3366 = vmatpush2.msra.mxu0 0.0
    %3367 = vmatprep.subr.mxu0 0.0
    %3368 = vmatpush2.msra.mxu0 0.0
    %3369 = vmatprep.subr.mxu0 0.0
    %3370 = vmatpush2.msra.mxu0 0.0
    %3371 = vmatprep.subr.mxu0 0.0
    %3372 = vmatpush2.msra.mxu0 0.0
    %3373 = vmatprep.subr.mxu0 0.0
    %3374 = vmatpush2.msra.mxu0 0.0
    %3375 = vmatprep.mubr.f32.mxu0 0.0
    %3376 = vmatmul.mubr.f32.gmra.mxu0 %v2691
    %v3377 = vpop.f32.mrf.mxu0
    %v3378 = vadd.f32 %v3310, %v3377
    %v3379 = vpop.f32.mrf.mxu0
    %3380 = vmatprep.mubr.f32.mxu0 0.0
    %3381 = vmatmul.mubr.f32.gmra.mxu0 %v2694
    %v3382 = vpop.f32.mrf.mxu0
    %v3383 = vadd.f32 %v3310, %v3382
    %v3384 = vpop.f32.mrf.mxu0
    %3385 = vdwg.mxu0
    %v3387 = vsel %vm552, %v3216, 0
    %v3390 = vsel %vm552, %v3217, 0
    %v3393 = vsel %vm552, %v3294, 0
    %v3396 = vsel %vm552, %v3299, 0
    %3398 = vmatprep.subr.mxu0 0.0
    %3399 = vmatpush1.xpose.msra.mxu0 0.0
    %3400 = vmatprep.subr.mxu0 0.0
    %3401 = vmatpush1.xpose.msra.mxu0 0.0
    %3402 = vmatprep.subr.mxu0 0.0
    %3403 = vmatpush1.xpose.msra.mxu0 0.0
    %3404 = vmatprep.subr.mxu0 0.0
    %3405 = vmatpush1.xpose.msra.mxu0 0.0
    %3406 = vmatprep.subr.mxu0 0.0
    %3407 = vmatpush1.xpose.msra.mxu0 0.0
    %3408 = vmatprep.subr.mxu0 0.0
    %3409 = vmatpush1.xpose.msra.mxu0 0.0
    %3410 = vmatprep.subr.mxu0 0.0
    %3411 = vmatpush1.xpose.msra.mxu0 0.0
    %3412 = vmatprep.subr.mxu0 0.0
    %3413 = vmatpush1.xpose.msra.mxu0 0.0
    %3414 = vmatprep.subr.mxu0 0.0
    %3415 = vmatpush1.xpose.msra.mxu0 0.0
    %3416 = vmatprep.subr.mxu0 0.0
    %3417 = vmatpush1.xpose.msra.mxu0 0.0
    %3418 = vmatprep.subr.mxu0 0.0
    %3419 = vmatpush1.xpose.msra.mxu0 0.0
    %3420 = vmatprep.subr.mxu0 0.0
    %3421 = vmatpush1.xpose.msra.mxu0 0.0
    %3422 = vmatprep.subr.mxu0 0.0
    %3423 = vmatpush1.xpose.msra.mxu0 0.0
    %3424 = vmatprep.subr.mxu0 0.0
    %3425 = vmatpush1.xpose.msra.mxu0 0.0
    %3426 = vmatprep.subr.mxu0 0.0
    %3427 = vmatpush1.xpose.msra.mxu0 %v3396
    %3428 = vmatprep.subr.mxu0 0.0
    %3429 = vmatpush1.xpose.msra.mxu0 %v3393
    %3430 = vmatprep.subr.mxu0 0.0
    %3431 = vmatpush2.xpose.msra.mxu0 0.0
    %3432 = vmatprep.subr.mxu0 0.0
    %3433 = vmatpush2.xpose.msra.mxu0 0.0
    %3434 = vmatprep.subr.mxu0 0.0
    %3435 = vmatpush2.xpose.msra.mxu0 0.0
    %3436 = vmatprep.subr.mxu0 0.0
    %3437 = vmatpush2.xpose.msra.mxu0 0.0
    %3438 = vmatprep.subr.mxu0 0.0
    %3439 = vmatpush2.xpose.msra.mxu0 0.0
    %3440 = vmatprep.subr.mxu0 0.0
    %3441 = vmatpush2.xpose.msra.mxu0 0.0
    %3442 = vmatprep.subr.mxu0 0.0
    %3443 = vmatpush2.xpose.msra.mxu0 0.0
    %3444 = vmatprep.subr.mxu0 0.0
    %3445 = vmatpush2.xpose.msra.mxu0 0.0
    %3446 = vmatprep.subr.mxu0 0.0
    %3447 = vmatpush2.xpose.msra.mxu0 0.0
    %3448 = vmatprep.subr.mxu0 0.0
    %3449 = vmatpush2.xpose.msra.mxu0 0.0
    %3450 = vmatprep.subr.mxu0 0.0
    %3451 = vmatpush2.xpose.msra.mxu0 0.0
    %3452 = vmatprep.subr.mxu0 0.0
    %3453 = vmatpush2.xpose.msra.mxu0 0.0
    %3454 = vmatprep.subr.mxu0 0.0
    %3455 = vmatpush2.xpose.msra.mxu0 0.0
    %3456 = vmatprep.subr.mxu0 0.0
    %3457 = vmatpush2.xpose.msra.mxu0 0.0
    %3458 = vmatprep.subr.mxu0 0.0
    %3459 = vmatpush2.xpose.msra.mxu0 0.0
    %3460 = vmatprep.subr.mxu0 0.0
    %3461 = vmatpush2.xpose.msra.mxu0 0.0
    %3462 = vmatprep.mubr.f32.mxu0 0.0
    %3463 = vmatmul.mubr.f32.gmra.mxu0 %v3387
    %v3464 = vpop.f32.mrf.mxu0
    %v3465 = vadd.f32 %v288, %v3464
    %v3466 = vpop.f32.mrf.mxu0
    %3467 = vmatprep.mubr.f32.mxu0 0.0
    %3468 = vmatmul.mubr.f32.gmra.mxu0 %v3390
    %v3469 = vpop.f32.mrf.mxu0
    %v3470 = vadd.f32 %v289, %v3469
    %v3471 = vpop.f32.mrf.mxu0
    %3472 = vdwg.mxu0
    %v3473 = vsel %vm214, %v3465, -inf
    %3474 = vmax.xlane.f32.xlu0 %v3473
    %v3475 = vpop.xlane.xlu0 %3474
    %v3476 = vsel %vm214, %v3470, -inf
    %3477 = vmax.xlane.f32.xlu0 %v3476
    %v3478 = vpop.xlane.xlu0 %3477
    %v3479 = vsub.f32 %v3465, %v3475
    %v3480 = vsub.f32 %v3470, %v3478
    %v3481 = vmul.f32 %v3479, 1.442695
    %v3482 = vpow.pop %v3481
    %v3483 = vmul.f32 %v3480, 1.442695
    %v3484 = vpow.pop %v3483
    %v3485 = vsel %vm214, %v3482, 0.0
    %3486 = vadd.xlane.f32.xlu0 %v3485
    %v3487 = vpop.xlane.xlu0 %3486
    %v3488 = vsel %vm214, %v3484, 0.0
    %3489 = vadd.xlane.f32.xlu0 %v3488
    %v3490 = vpop.xlane.xlu0 %3489
    %v3491 = vrcp.pop %v3487
    %v3492 = vmul.f32 %v3482, %v3491
    %v3493 = vrcp.pop %v3490
    %v3494 = vmul.f32 %v3484, %v3493
    %v3496 = vsel %vm214, %v3492, 0
    %v3499 = vsel %vm214, %v3494, 0
    %3501 = vmatprep.subr.mxu0 0.0
    %3502 = vmatpush1.msra.mxu0 0.0
    %3503 = vmatprep.subr.mxu0 0.0
    %3504 = vmatpush1.msra.mxu0 0.0
    %3505 = vmatprep.subr.mxu0 0.0
    %3506 = vmatpush1.msra.mxu0 0.0
    %3507 = vmatprep.subr.mxu0 0.0
    %3508 = vmatpush1.msra.mxu0 0.0
    %3509 = vmatprep.subr.mxu0 0.0
    %3510 = vmatpush1.msra.mxu0 0.0
    %3511 = vmatprep.subr.mxu0 0.0
    %3512 = vmatpush1.msra.mxu0 0.0
    %3513 = vmatprep.subr.mxu0 0.0
    %3514 = vmatpush1.msra.mxu0 0.0
    %3515 = vmatprep.subr.mxu0 0.0
    %3516 = vmatpush1.msra.mxu0 0.0
    %3517 = vmatprep.subr.mxu0 0.0
    %3518 = vmatpush1.msra.mxu0 0.0
    %3519 = vmatprep.subr.mxu0 0.0
    %3520 = vmatpush1.msra.mxu0 0.0
    %3521 = vmatprep.subr.mxu0 0.0
    %3522 = vmatpush1.msra.mxu0 0.0
    %3523 = vmatprep.subr.mxu0 0.0
    %3524 = vmatpush1.msra.mxu0 0.0
    %3525 = vmatprep.subr.mxu0 0.0
    %3526 = vmatpush1.msra.mxu0 0.0
    %3527 = vmatprep.subr.mxu0 0.0
    %3528 = vmatpush1.msra.mxu0 0.0
    %3529 = vmatprep.subr.mxu0 0.0
    %3530 = vmatpush1.msra.mxu0 %v3383
    %3531 = vmatprep.subr.mxu0 0.0
    %3532 = vmatpush1.msra.mxu0 %v3378
    %3533 = vmatprep.subr.mxu0 0.0
    %3534 = vmatpush2.msra.mxu0 0.0
    %3535 = vmatprep.subr.mxu0 0.0
    %3536 = vmatpush2.msra.mxu0 0.0
    %3537 = vmatprep.subr.mxu0 0.0
    %3538 = vmatpush2.msra.mxu0 0.0
    %3539 = vmatprep.subr.mxu0 0.0
    %3540 = vmatpush2.msra.mxu0 0.0
    %3541 = vmatprep.subr.mxu0 0.0
    %3542 = vmatpush2.msra.mxu0 0.0
    %3543 = vmatprep.subr.mxu0 0.0
    %3544 = vmatpush2.msra.mxu0 0.0
    %3545 = vmatprep.subr.mxu0 0.0
    %3546 = vmatpush2.msra.mxu0 0.0
    %3547 = vmatprep.subr.mxu0 0.0
    %3548 = vmatpush2.msra.mxu0 0.0
    %3549 = vmatprep.subr.mxu0 0.0
    %3550 = vmatpush2.msra.mxu0 0.0
    %3551 = vmatprep.subr.mxu0 0.0
    %3552 = vmatpush2.msra.mxu0 0.0
    %3553 = vmatprep.subr.mxu0 0.0
    %3554 = vmatpush2.msra.mxu0 0.0
    %3555 = vmatprep.subr.mxu0 0.0
    %3556 = vmatpush2.msra.mxu0 0.0
    %3557 = vmatprep.subr.mxu0 0.0
    %3558 = vmatpush2.msra.mxu0 0.0
    %3559 = vmatprep.subr.mxu0 0.0
    %3560 = vmatpush2.msra.mxu0 0.0
    %3561 = vmatprep.subr.mxu0 0.0
    %3562 = vmatpush2.msra.mxu0 0.0
    %3563 = vmatprep.subr.mxu0 0.0
    %3564 = vmatpush2.msra.mxu0 0.0
    %3565 = vmatprep.mubr.f32.mxu0 0.0
    %3566 = vmatmul.mubr.f32.gmra.mxu0 %v3496
    %v3567 = vpop.f32.mrf.mxu0
    %v3568 = vadd.f32 0.0, %v3567
    %v3569 = vpop.f32.mrf.mxu0
    %3570 = vmatprep.mubr.f32.mxu0 0.0
    %3571 = vmatmul.mubr.f32.gmra.mxu0 %v3499
    %v3572 = vpop.f32.mrf.mxu0
    %v3573 = vadd.f32 0.0, %v3572
    %v3574 = vpop.f32.mrf.mxu0
    %3575 = vdwg.mxu0
    %v3576 = vld [vmem:[#allocation6 + $0x398] sm:$0xff]
    %v3578 = vsel %vm552, %v3568, 0
    %v3581 = vsel %vm552, %v3573, 0
    %3583 = vmatprep.subr.mxu0 0.0
    %3584 = vmatpush1.msra.mxu0 0.0
    %3585 = vmatprep.subr.mxu0 0.0
    %3586 = vmatpush1.msra.mxu0 0.0
    %3587 = vmatprep.subr.mxu0 0.0
    %3588 = vmatpush1.msra.mxu0 0.0
    %3589 = vmatprep.subr.mxu0 0.0
    %3590 = vmatpush1.msra.mxu0 0.0
    %3591 = vmatprep.subr.mxu0 0.0
    %3592 = vmatpush1.msra.mxu0 0.0
    %3593 = vmatprep.subr.mxu0 0.0
    %3594 = vmatpush1.msra.mxu0 0.0
    %3595 = vmatprep.subr.mxu0 0.0
    %3596 = vmatpush1.msra.mxu0 0.0
    %3597 = vmatprep.subr.mxu0 0.0
    %3598 = vmatpush1.msra.mxu0 0.0
    %3599 = vmatprep.subr.mxu0 0.0
    %3600 = vmatpush1.msra.mxu0 0.0
    %3601 = vmatprep.subr.mxu0 0.0
    %3602 = vmatpush1.msra.mxu0 0.0
    %3603 = vmatprep.subr.mxu0 0.0
    %3604 = vmatpush1.msra.mxu0 0.0
    %3605 = vmatprep.subr.mxu0 0.0
    %3606 = vmatpush1.msra.mxu0 0.0
    %3607 = vmatprep.subr.mxu0 0.0
    %3608 = vmatpush1.msra.mxu0 0.0
    %3609 = vmatprep.subr.mxu0 0.0
    %3610 = vmatpush1.msra.mxu0 0.0
    %3611 = vmatprep.subr.mxu0 0.0
    %3612 = vmatpush1.msra.mxu0 0.0
    %3613 = vmatprep.subr.mxu0 0.0
    %3614 = vmatpush1.msra.mxu0 %v3576
    %3615 = vmatprep.subr.mxu0 0.0
    %3616 = vmatpush2.msra.mxu0 0.0
    %3617 = vmatprep.subr.mxu0 0.0
    %3618 = vmatpush2.msra.mxu0 0.0
    %3619 = vmatprep.subr.mxu0 0.0
    %3620 = vmatpush2.msra.mxu0 0.0
    %3621 = vmatprep.subr.mxu0 0.0
    %3622 = vmatpush2.msra.mxu0 0.0
    %3623 = vmatprep.subr.mxu0 0.0
    %3624 = vmatpush2.msra.mxu0 0.0
    %3625 = vmatprep.subr.mxu0 0.0
    %3626 = vmatpush2.msra.mxu0 0.0
    %3627 = vmatprep.subr.mxu0 0.0
    %3628 = vmatpush2.msra.mxu0 0.0
    %3629 = vmatprep.subr.mxu0 0.0
    %3630 = vmatpush2.msra.mxu0 0.0
    %3631 = vmatprep.subr.mxu0 0.0
    %3632 = vmatpush2.msra.mxu0 0.0
    %3633 = vmatprep.subr.mxu0 0.0
    %3634 = vmatpush2.msra.mxu0 0.0
    %3635 = vmatprep.subr.mxu0 0.0
    %3636 = vmatpush2.msra.mxu0 0.0
    %3637 = vmatprep.subr.mxu0 0.0
    %3638 = vmatpush2.msra.mxu0 0.0
    %3639 = vmatprep.subr.mxu0 0.0
    %3640 = vmatpush2.msra.mxu0 0.0
    %3641 = vmatprep.subr.mxu0 0.0
    %3642 = vmatpush2.msra.mxu0 0.0
    %3643 = vmatprep.subr.mxu0 0.0
    %3644 = vmatpush2.msra.mxu0 0.0
    %3645 = vmatprep.subr.mxu0 0.0
    %3646 = vmatpush2.msra.mxu0 0.0
    %3647 = vmatprep.mubr.f32.mxu0 0.0
    %3648 = vmatmul.mubr.f32.gmra.mxu0 %v3578
    %v3649 = vpop.f32.mrf.mxu0
    %v3650 = vadd.f32 0.0, %v3649
    %v3651 = vpop.f32.mrf.mxu0
    %3652 = vmatprep.mubr.f32.mxu0 0.0
    %3653 = vmatmul.mubr.f32.gmra.mxu0 %v3581
    %v3654 = vpop.f32.mrf.mxu0
    %v3655 = vadd.f32 0.0, %v3654
    %v3656 = vpop.f32.mrf.mxu0
    %3657 = vdwg.mxu0
    %v3659 = vsel %vm552, %v3123, 0
    %v3662 = vsel %vm552, %v3128, 0
    %3664 = vmatprep.subr.mxu0 0.0
    %3665 = vmatpush1.msra.mxu0 0.0
    %3666 = vmatprep.subr.mxu0 0.0
    %3667 = vmatpush1.msra.mxu0 0.0
    %3668 = vmatprep.subr.mxu0 0.0
    %3669 = vmatpush1.msra.mxu0 0.0
    %3670 = vmatprep.subr.mxu0 0.0
    %3671 = vmatpush1.msra.mxu0 0.0
    %3672 = vmatprep.subr.mxu0 0.0
    %3673 = vmatpush1.msra.mxu0 0.0
    %3674 = vmatprep.subr.mxu0 0.0
    %3675 = vmatpush1.msra.mxu0 0.0
    %3676 = vmatprep.subr.mxu0 0.0
    %3677 = vmatpush1.msra.mxu0 0.0
    %3678 = vmatprep.subr.mxu0 0.0
    %3679 = vmatpush1.msra.mxu0 0.0
    %3680 = vmatprep.subr.mxu0 0.0
    %3681 = vmatpush1.msra.mxu0 0.0
    %3682 = vmatprep.subr.mxu0 0.0
    %3683 = vmatpush1.msra.mxu0 0.0
    %3684 = vmatprep.subr.mxu0 0.0
    %3685 = vmatpush1.msra.mxu0 0.0
    %3686 = vmatprep.subr.mxu0 0.0
    %3687 = vmatpush1.msra.mxu0 0.0
    %3688 = vmatprep.subr.mxu0 0.0
    %3689 = vmatpush1.msra.mxu0 0.0
    %3690 = vmatprep.subr.mxu0 0.0
    %3691 = vmatpush1.msra.mxu0 0.0
    %3692 = vmatprep.subr.mxu0 0.0
    %3693 = vmatpush1.msra.mxu0 0.0
    %3694 = vmatprep.subr.mxu0 0.0
    %3695 = vmatpush1.msra.mxu0 %v3131
    %3696 = vmatprep.subr.mxu0 0.0
    %3697 = vmatpush2.msra.mxu0 0.0
    %3698 = vmatprep.subr.mxu0 0.0
    %3699 = vmatpush2.msra.mxu0 0.0
    %3700 = vmatprep.subr.mxu0 0.0
    %3701 = vmatpush2.msra.mxu0 0.0
    %3702 = vmatprep.subr.mxu0 0.0
    %3703 = vmatpush2.msra.mxu0 0.0
    %3704 = vmatprep.subr.mxu0 0.0
    %3705 = vmatpush2.msra.mxu0 0.0
    %3706 = vmatprep.subr.mxu0 0.0
    %3707 = vmatpush2.msra.mxu0 0.0
    %3708 = vmatprep.subr.mxu0 0.0
    %3709 = vmatpush2.msra.mxu0 0.0
    %3710 = vmatprep.subr.mxu0 0.0
    %3711 = vmatpush2.msra.mxu0 0.0
    %3712 = vmatprep.subr.mxu0 0.0
    %3713 = vmatpush2.msra.mxu0 0.0
    %3714 = vmatprep.subr.mxu0 0.0
    %3715 = vmatpush2.msra.mxu0 0.0
    %3716 = vmatprep.subr.mxu0 0.0
    %3717 = vmatpush2.msra.mxu0 0.0
    %3718 = vmatprep.subr.mxu0 0.0
    %3719 = vmatpush2.msra.mxu0 0.0
    %3720 = vmatprep.subr.mxu0 0.0
    %3721 = vmatpush2.msra.mxu0 0.0
    %3722 = vmatprep.subr.mxu0 0.0
    %3723 = vmatpush2.msra.mxu0 0.0
    %3724 = vmatprep.subr.mxu0 0.0
    %3725 = vmatpush2.msra.mxu0 0.0
    %3726 = vmatprep.subr.mxu0 0.0
    %3727 = vmatpush2.msra.mxu0 0.0
    %3728 = vmatprep.mubr.f32.mxu0 0.0
    %3729 = vmatmul.mubr.f32.gmra.mxu0 %v3659
    %v3730 = vpop.f32.mrf.mxu0
    %v3731 = vadd.f32 %v3650, %v3730
    %v3732 = vpop.f32.mrf.mxu0
    %3733 = vmatprep.mubr.f32.mxu0 0.0
    %3734 = vmatmul.mubr.f32.gmra.mxu0 %v3662
    %v3735 = vpop.f32.mrf.mxu0
    %v3736 = vadd.f32 %v3655, %v3735
    %v3737 = vpop.f32.mrf.mxu0
    %3738 = vdwg.mxu0
    %v3739 = vld [vmem:[#allocation6 + $0x3a0] sm:$0xff]
    %v3740 = vld [vmem:[#allocation6 + $0x3a8] sm:$0xff]
    %v3741 = vld [vmem:[#allocation6 + $0x3b0] sm:$0xff]
    %v3742 = vld [vmem:[#allocation6 + $0x3b8] sm:$0xff]
    %v3743 = vld [vmem:[#allocation6 + $0x400] sm:$0x1]
    %v3744 = vlaneseq
    %v3745 = vshrl.u32 %v3744, 7
    %v3746 = vsub.s32 0, %v3745
    %v3747 = vrot.slane %v3743, %v3746
    %3748 = vmatprep.subr.mxu0 0.0
    %3749 = vmatpush1.msra.mxu0 0.0
    %3750 = vmatprep.subr.mxu0 0.0
    %3751 = vmatpush1.msra.mxu0 0.0
    %3752 = vmatprep.subr.mxu0 0.0
    %3753 = vmatpush1.msra.mxu0 0.0
    %3754 = vmatprep.subr.mxu0 0.0
    %3755 = vmatpush1.msra.mxu0 0.0
    %3756 = vmatprep.subr.mxu0 0.0
    %3757 = vmatpush1.msra.mxu0 0.0
    %3758 = vmatprep.subr.mxu0 0.0
    %3759 = vmatpush1.msra.mxu0 0.0
    %3760 = vmatprep.subr.mxu0 0.0
    %3761 = vmatpush1.msra.mxu0 0.0
    %3762 = vmatprep.subr.mxu0 0.0
    %3763 = vmatpush1.msra.mxu0 0.0
    %3764 = vmatprep.subr.mxu0 0.0
    %3765 = vmatpush1.msra.mxu0 0.0
    %3766 = vmatprep.subr.mxu0 0.0
    %3767 = vmatpush1.msra.mxu0 0.0
    %3768 = vmatprep.subr.mxu0 0.0
    %3769 = vmatpush1.msra.mxu0 0.0
    %3770 = vmatprep.subr.mxu0 0.0
    %3771 = vmatpush1.msra.mxu0 0.0
    %3772 = vmatprep.subr.mxu0 0.0
    %3773 = vmatpush1.msra.mxu0 %v3742
    %3774 = vmatprep.subr.mxu0 0.0
    %3775 = vmatpush1.msra.mxu0 %v3741
    %3776 = vmatprep.subr.mxu0 0.0
    %3777 = vmatpush1.msra.mxu0 %v3740
    %3778 = vmatprep.subr.mxu0 0.0
    %3779 = vmatpush1.msra.mxu0 %v3739
    %3780 = vmatprep.subr.mxu0 0.0
    %3781 = vmatpush2.msra.mxu0 0.0
    %3782 = vmatprep.subr.mxu0 0.0
    %3783 = vmatpush2.msra.mxu0 0.0
    %3784 = vmatprep.subr.mxu0 0.0
    %3785 = vmatpush2.msra.mxu0 0.0
    %3786 = vmatprep.subr.mxu0 0.0
    %3787 = vmatpush2.msra.mxu0 0.0
    %3788 = vmatprep.subr.mxu0 0.0
    %3789 = vmatpush2.msra.mxu0 0.0
    %3790 = vmatprep.subr.mxu0 0.0
    %3791 = vmatpush2.msra.mxu0 0.0
    %3792 = vmatprep.subr.mxu0 0.0
    %3793 = vmatpush2.msra.mxu0 0.0
    %3794 = vmatprep.subr.mxu0 0.0
    %3795 = vmatpush2.msra.mxu0 0.0
    %3796 = vmatprep.subr.mxu0 0.0
    %3797 = vmatpush2.msra.mxu0 0.0
    %3798 = vmatprep.subr.mxu0 0.0
    %3799 = vmatpush2.msra.mxu0 0.0
    %3800 = vmatprep.subr.mxu0 0.0
    %3801 = vmatpush2.msra.mxu0 0.0
    %3802 = vmatprep.subr.mxu0 0.0
    %3803 = vmatpush2.msra.mxu0 0.0
    %3804 = vmatprep.subr.mxu0 0.0
    %3805 = vmatpush2.msra.mxu0 0.0
    %3806 = vmatprep.subr.mxu0 0.0
    %3807 = vmatpush2.msra.mxu0 0.0
    %3808 = vmatprep.subr.mxu0 0.0
    %3809 = vmatpush2.msra.mxu0 0.0
    %3810 = vmatprep.subr.mxu0 0.0
    %3811 = vmatpush2.msra.mxu0 0.0
    %3812 = vmatprep.mubr.f32.mxu0 0.0
    %3813 = vmatmul.mubr.f32.gmra.mxu0 %v2691
    %v3814 = vpop.f32.mrf.mxu0
    %v3815 = vadd.f32 %v3747, %v3814
    %v3816 = vpop.f32.mrf.mxu0
    %3817 = vmatprep.mubr.f32.mxu0 0.0
    %3818 = vmatmul.mubr.f32.gmra.mxu0 %v2694
    %v3819 = vpop.f32.mrf.mxu0
    %v3820 = vadd.f32 %v3747, %v3819
    %v3821 = vpop.f32.mrf.mxu0
    %3822 = vdwg.mxu0
    %v3823 = vmul.f32 %v3815, 0.35355338
    %v3824 = vmul.f32 %v3820, 0.35355338
    %v3825 = vld [vmem:[#allocation6 + $0x3c0] sm:$0xff]
    %v3826 = vld [vmem:[#allocation6 + $0x3c8] sm:$0xff]
    %v3827 = vld [vmem:[#allocation6 + $0x3d0] sm:$0xff]
    %v3828 = vld [vmem:[#allocation6 + $0x3d8] sm:$0xff]
    %v3829 = vld [vmem:[#allocation6 + $0x408] sm:$0x1]
    %v3830 = vlaneseq
    %v3831 = vshrl.u32 %v3830, 7
    %v3832 = vsub.s32 0, %v3831
    %v3833 = vrot.slane %v3829, %v3832
    %3834 = vmatprep.subr.mxu0 0.0
    %3835 = vmatpush1.msra.mxu0 0.0
    %3836 = vmatprep.subr.mxu0 0.0
    %3837 = vmatpush1.msra.mxu0 0.0
    %3838 = vmatprep.subr.mxu0 0.0
    %3839 = vmatpush1.msra.mxu0 0.0
    %3840 = vmatprep.subr.mxu0 0.0
    %3841 = vmatpush1.msra.mxu0 0.0
    %3842 = vmatprep.subr.mxu0 0.0
    %3843 = vmatpush1.msra.mxu0 0.0
    %3844 = vmatprep.subr.mxu0 0.0
    %3845 = vmatpush1.msra.mxu0 0.0
    %3846 = vmatprep.subr.mxu0 0.0
    %3847 = vmatpush1.msra.mxu0 0.0
    %3848 = vmatprep.subr.mxu0 0.0
    %3849 = vmatpush1.msra.mxu0 0.0
    %3850 = vmatprep.subr.mxu0 0.0
    %3851 = vmatpush1.msra.mxu0 0.0
    %3852 = vmatprep.subr.mxu0 0.0
    %3853 = vmatpush1.msra.mxu0 0.0
    %3854 = vmatprep.subr.mxu0 0.0
    %3855 = vmatpush1.msra.mxu0 0.0
    %3856 = vmatprep.subr.mxu0 0.0
    %3857 = vmatpush1.msra.mxu0 0.0
    %3858 = vmatprep.subr.mxu0 0.0
    %3859 = vmatpush1.msra.mxu0 %v3828
    %3860 = vmatprep.subr.mxu0 0.0
    %3861 = vmatpush1.msra.mxu0 %v3827
    %3862 = vmatprep.subr.mxu0 0.0
    %3863 = vmatpush1.msra.mxu0 %v3826
    %3864 = vmatprep.subr.mxu0 0.0
    %3865 = vmatpush1.msra.mxu0 %v3825
    %3866 = vmatprep.subr.mxu0 0.0
    %3867 = vmatpush2.msra.mxu0 0.0
    %3868 = vmatprep.subr.mxu0 0.0
    %3869 = vmatpush2.msra.mxu0 0.0
    %3870 = vmatprep.subr.mxu0 0.0
    %3871 = vmatpush2.msra.mxu0 0.0
    %3872 = vmatprep.subr.mxu0 0.0
    %3873 = vmatpush2.msra.mxu0 0.0
    %3874 = vmatprep.subr.mxu0 0.0
    %3875 = vmatpush2.msra.mxu0 0.0
    %3876 = vmatprep.subr.mxu0 0.0
    %3877 = vmatpush2.msra.mxu0 0.0
    %3878 = vmatprep.subr.mxu0 0.0
    %3879 = vmatpush2.msra.mxu0 0.0
    %3880 = vmatprep.subr.mxu0 0.0
    %3881 = vmatpush2.msra.mxu0 0.0
    %3882 = vmatprep.subr.mxu0 0.0
    %3883 = vmatpush2.msra.mxu0 0.0
    %3884 = vmatprep.subr.mxu0 0.0
    %3885 = vmatpush2.msra.mxu0 0.0
    %3886 = vmatprep.subr.mxu0 0.0
    %3887 = vmatpush2.msra.mxu0 0.0
    %3888 = vmatprep.subr.mxu0 0.0
    %3889 = vmatpush2.msra.mxu0 0.0
    %3890 = vmatprep.subr.mxu0 0.0
    %3891 = vmatpush2.msra.mxu0 0.0
    %3892 = vmatprep.subr.mxu0 0.0
    %3893 = vmatpush2.msra.mxu0 0.0
    %3894 = vmatprep.subr.mxu0 0.0
    %3895 = vmatpush2.msra.mxu0 0.0
    %3896 = vmatprep.subr.mxu0 0.0
    %3897 = vmatpush2.msra.mxu0 0.0
    %3898 = vmatprep.mubr.f32.mxu0 0.0
    %3899 = vmatmul.mubr.f32.gmra.mxu0 %v2691
    %v3900 = vpop.f32.mrf.mxu0
    %v3901 = vadd.f32 %v3833, %v3900
    %v3902 = vpop.f32.mrf.mxu0
    %3903 = vmatprep.mubr.f32.mxu0 0.0
    %3904 = vmatmul.mubr.f32.gmra.mxu0 %v2694
    %v3905 = vpop.f32.mrf.mxu0
    %v3906 = vadd.f32 %v3833, %v3905
    %v3907 = vpop.f32.mrf.mxu0
    %3908 = vdwg.mxu0
    %v3909 = vld [vmem:[#allocation6 + $0x3e0] sm:$0xff]
    %v3910 = vld [vmem:[#allocation6 + $0x3e8] sm:$0xff]
    %v3911 = vld [vmem:[#allocation6 + $0x3f0] sm:$0xff]
    %v3912 = vld [vmem:[#allocation6 + $0x3f8] sm:$0xff]
    %v3913 = vld [vmem:[#allocation6 + $0x410] sm:$0x1]
    %v3914 = vlaneseq
    %v3915 = vshrl.u32 %v3914, 7
    %v3916 = vsub.s32 0, %v3915
    %v3917 = vrot.slane %v3913, %v3916
    %3918 = vmatprep.subr.mxu0 0.0
    %3919 = vmatpush1.msra.mxu0 0.0
    %3920 = vmatprep.subr.mxu0 0.0
    %3921 = vmatpush1.msra.mxu0 0.0
    %3922 = vmatprep.subr.mxu0 0.0
    %3923 = vmatpush1.msra.mxu0 0.0
    %3924 = vmatprep.subr.mxu0 0.0
    %3925 = vmatpush1.msra.mxu0 0.0
    %3926 = vmatprep.subr.mxu0 0.0
    %3927 = vmatpush1.msra.mxu0 0.0
    %3928 = vmatprep.subr.mxu0 0.0
    %3929 = vmatpush1.msra.mxu0 0.0
    %3930 = vmatprep.subr.mxu0 0.0
    %3931 = vmatpush1.msra.mxu0 0.0
    %3932 = vmatprep.subr.mxu0 0.0
    %3933 = vmatpush1.msra.mxu0 0.0
    %3934 = vmatprep.subr.mxu0 0.0
    %3935 = vmatpush1.msra.mxu0 0.0
    %3936 = vmatprep.subr.mxu0 0.0
    %3937 = vmatpush1.msra.mxu0 0.0
    %3938 = vmatprep.subr.mxu0 0.0
    %3939 = vmatpush1.msra.mxu0 0.0
    %3940 = vmatprep.subr.mxu0 0.0
    %3941 = vmatpush1.msra.mxu0 0.0
    %3942 = vmatprep.subr.mxu0 0.0
    %3943 = vmatpush1.msra.mxu0 %v3912
    %3944 = vmatprep.subr.mxu0 0.0
    %3945 = vmatpush1.msra.mxu0 %v3911
    %3946 = vmatprep.subr.mxu0 0.0
    %3947 = vmatpush1.msra.mxu0 %v3910
    %3948 = vmatprep.subr.mxu0 0.0
    %3949 = vmatpush1.msra.mxu0 %v3909
    %3950 = vmatprep.subr.mxu0 0.0
    %3951 = vmatpush2.msra.mxu0 0.0
    %3952 = vmatprep.subr.mxu0 0.0
    %3953 = vmatpush2.msra.mxu0 0.0
    %3954 = vmatprep.subr.mxu0 0.0
    %3955 = vmatpush2.msra.mxu0 0.0
    %3956 = vmatprep.subr.mxu0 0.0
    %3957 = vmatpush2.msra.mxu0 0.0
    %3958 = vmatprep.subr.mxu0 0.0
    %3959 = vmatpush2.msra.mxu0 0.0
    %3960 = vmatprep.subr.mxu0 0.0
    %3961 = vmatpush2.msra.mxu0 0.0
    %3962 = vmatprep.subr.mxu0 0.0
    %3963 = vmatpush2.msra.mxu0 0.0
    %3964 = vmatprep.subr.mxu0 0.0
    %3965 = vmatpush2.msra.mxu0 0.0
    %3966 = vmatprep.subr.mxu0 0.0
    %3967 = vmatpush2.msra.mxu0 0.0
    %3968 = vmatprep.subr.mxu0 0.0
    %3969 = vmatpush2.msra.mxu0 0.0
    %3970 = vmatprep.subr.mxu0 0.0
    %3971 = vmatpush2.msra.mxu0 0.0
    %3972 = vmatprep.subr.mxu0 0.0
    %3973 = vmatpush2.msra.mxu0 0.0
    %3974 = vmatprep.subr.mxu0 0.0
    %3975 = vmatpush2.msra.mxu0 0.0
    %3976 = vmatprep.subr.mxu0 0.0
    %3977 = vmatpush2.msra.mxu0 0.0
    %3978 = vmatprep.subr.mxu0 0.0
    %3979 = vmatpush2.msra.mxu0 0.0
    %3980 = vmatprep.subr.mxu0 0.0
    %3981 = vmatpush2.msra.mxu0 0.0
    %3982 = vmatprep.mubr.f32.mxu0 0.0
    %3983 = vmatmul.mubr.f32.gmra.mxu0 %v2691
    %v3984 = vpop.f32.mrf.mxu0
    %v3985 = vadd.f32 %v3917, %v3984
    %v3986 = vpop.f32.mrf.mxu0
    %3987 = vmatprep.mubr.f32.mxu0 0.0
    %3988 = vmatmul.mubr.f32.gmra.mxu0 %v2694
    %v3989 = vpop.f32.mrf.mxu0
    %v3990 = vadd.f32 %v3917, %v3989
    %v3991 = vpop.f32.mrf.mxu0
    %3992 = vdwg.mxu0
    %v3994 = vsel %vm552, %v3823, 0
    %v3997 = vsel %vm552, %v3824, 0
    %v4000 = vsel %vm552, %v3901, 0
    %v4003 = vsel %vm552, %v3906, 0
    %4005 = vmatprep.subr.mxu0 0.0
    %4006 = vmatpush1.xpose.msra.mxu0 0.0
    %4007 = vmatprep.subr.mxu0 0.0
    %4008 = vmatpush1.xpose.msra.mxu0 0.0
    %4009 = vmatprep.subr.mxu0 0.0
    %4010 = vmatpush1.xpose.msra.mxu0 0.0
    %4011 = vmatprep.subr.mxu0 0.0
    %4012 = vmatpush1.xpose.msra.mxu0 0.0
    %4013 = vmatprep.subr.mxu0 0.0
    %4014 = vmatpush1.xpose.msra.mxu0 0.0
    %4015 = vmatprep.subr.mxu0 0.0
    %4016 = vmatpush1.xpose.msra.mxu0 0.0
    %4017 = vmatprep.subr.mxu0 0.0
    %4018 = vmatpush1.xpose.msra.mxu0 0.0
    %4019 = vmatprep.subr.mxu0 0.0
    %4020 = vmatpush1.xpose.msra.mxu0 0.0
    %4021 = vmatprep.subr.mxu0 0.0
    %4022 = vmatpush1.xpose.msra.mxu0 0.0
    %4023 = vmatprep.subr.mxu0 0.0
    %4024 = vmatpush1.xpose.msra.mxu0 0.0
    %4025 = vmatprep.subr.mxu0 0.0
    %4026 = vmatpush1.xpose.msra.mxu0 0.0
    %4027 = vmatprep.subr.mxu0 0.0
    %4028 = vmatpush1.xpose.msra.mxu0 0.0
    %4029 = vmatprep.subr.mxu0 0.0
    %4030 = vmatpush1.xpose.msra.mxu0 0.0
    %4031 = vmatprep.subr.mxu0 0.0
    %4032 = vmatpush1.xpose.msra.mxu0 0.0
    %4033 = vmatprep.subr.mxu0 0.0
    %4034 = vmatpush1.xpose.msra.mxu0 %v4003
    %4035 = vmatprep.subr.mxu0 0.0
    %4036 = vmatpush1.xpose.msra.mxu0 %v4000
    %4037 = vmatprep.subr.mxu0 0.0
    %4038 = vmatpush2.xpose.msra.mxu0 0.0
    %4039 = vmatprep.subr.mxu0 0.0
    %4040 = vmatpush2.xpose.msra.mxu0 0.0
    %4041 = vmatprep.subr.mxu0 0.0
    %4042 = vmatpush2.xpose.msra.mxu0 0.0
    %4043 = vmatprep.subr.mxu0 0.0
    %4044 = vmatpush2.xpose.msra.mxu0 0.0
    %4045 = vmatprep.subr.mxu0 0.0
    %4046 = vmatpush2.xpose.msra.mxu0 0.0
    %4047 = vmatprep.subr.mxu0 0.0
    %4048 = vmatpush2.xpose.msra.mxu0 0.0
    %4049 = vmatprep.subr.mxu0 0.0
    %4050 = vmatpush2.xpose.msra.mxu0 0.0
    %4051 = vmatprep.subr.mxu0 0.0
    %4052 = vmatpush2.xpose.msra.mxu0 0.0
    %4053 = vmatprep.subr.mxu0 0.0
    %4054 = vmatpush2.xpose.msra.mxu0 0.0
    %4055 = vmatprep.subr.mxu0 0.0
    %4056 = vmatpush2.xpose.msra.mxu0 0.0
    %4057 = vmatprep.subr.mxu0 0.0
    %4058 = vmatpush2.xpose.msra.mxu0 0.0
    %4059 = vmatprep.subr.mxu0 0.0
    %4060 = vmatpush2.xpose.msra.mxu0 0.0
    %4061 = vmatprep.subr.mxu0 0.0
    %4062 = vmatpush2.xpose.msra.mxu0 0.0
    %4063 = vmatprep.subr.mxu0 0.0
    %4064 = vmatpush2.xpose.msra.mxu0 0.0
    %4065 = vmatprep.subr.mxu0 0.0
    %4066 = vmatpush2.xpose.msra.mxu0 0.0
    %4067 = vmatprep.subr.mxu0 0.0
    %4068 = vmatpush2.xpose.msra.mxu0 0.0
    %4069 = vmatprep.mubr.f32.mxu0 0.0
    %4070 = vmatmul.mubr.f32.gmra.mxu0 %v3994
    %v4071 = vpop.f32.mrf.mxu0
    %v4072 = vadd.f32 %v288, %v4071
    %v4073 = vpop.f32.mrf.mxu0
    %4074 = vmatprep.mubr.f32.mxu0 0.0
    %4075 = vmatmul.mubr.f32.gmra.mxu0 %v3997
    %v4076 = vpop.f32.mrf.mxu0
    %v4077 = vadd.f32 %v289, %v4076
    %v4078 = vpop.f32.mrf.mxu0
    %4079 = vdwg.mxu0
    %v4080 = vsel %vm214, %v4072, -inf
    %4081 = vmax.xlane.f32.xlu0 %v4080
    %v4082 = vpop.xlane.xlu0 %4081
    %v4083 = vsel %vm214, %v4077, -inf
    %4084 = vmax.xlane.f32.xlu0 %v4083
    %v4085 = vpop.xlane.xlu0 %4084
    %v4086 = vsub.f32 %v4072, %v4082
    %v4087 = vsub.f32 %v4077, %v4085
    %v4088 = vmul.f32 %v4086, 1.442695
    %v4089 = vpow.pop %v4088
    %v4090 = vmul.f32 %v4087, 1.442695
    %v4091 = vpow.pop %v4090
    %v4092 = vsel %vm214, %v4089, 0.0
    %4093 = vadd.xlane.f32.xlu0 %v4092
    %v4094 = vpop.xlane.xlu0 %4093
    %v4095 = vsel %vm214, %v4091, 0.0
    %4096 = vadd.xlane.f32.xlu0 %v4095
    %v4097 = vpop.xlane.xlu0 %4096
    %v4098 = vrcp.pop %v4094
    %v4099 = vmul.f32 %v4089, %v4098
    %v4100 = vrcp.pop %v4097
    %v4101 = vmul.f32 %v4091, %v4100
    %v4103 = vsel %vm214, %v4099, 0
    %v4106 = vsel %vm214, %v4101, 0
    %4108 = vmatprep.subr.mxu0 0.0
    %4109 = vmatpush1.msra.mxu0 0.0
    %4110 = vmatprep.subr.mxu0 0.0
    %4111 = vmatpush1.msra.mxu0 0.0
    %4112 = vmatprep.subr.mxu0 0.0
    %4113 = vmatpush1.msra.mxu0 0.0
    %4114 = vmatprep.subr.mxu0 0.0
    %4115 = vmatpush1.msra.mxu0 0.0
    %4116 = vmatprep.subr.mxu0 0.0
    %4117 = vmatpush1.msra.mxu0 0.0
    %4118 = vmatprep.subr.mxu0 0.0
    %4119 = vmatpush1.msra.mxu0 0.0
    %4120 = vmatprep.subr.mxu0 0.0
    %4121 = vmatpush1.msra.mxu0 0.0
    %4122 = vmatprep.subr.mxu0 0.0
    %4123 = vmatpush1.msra.mxu0 0.0
    %4124 = vmatprep.subr.mxu0 0.0
    %4125 = vmatpush1.msra.mxu0 0.0
    %4126 = vmatprep.subr.mxu0 0.0
    %4127 = vmatpush1.msra.mxu0 0.0
    %4128 = vmatprep.subr.mxu0 0.0
    %4129 = vmatpush1.msra.mxu0 0.0
    %4130 = vmatprep.subr.mxu0 0.0
    %4131 = vmatpush1.msra.mxu0 0.0
    %4132 = vmatprep.subr.mxu0 0.0
    %4133 = vmatpush1.msra.mxu0 0.0
    %4134 = vmatprep.subr.mxu0 0.0
    %4135 = vmatpush1.msra.mxu0 0.0
    %4136 = vmatprep.subr.mxu0 0.0
    %4137 = vmatpush1.msra.mxu0 %v3990
    %4138 = vmatprep.subr.mxu0 0.0
    %4139 = vmatpush1.msra.mxu0 %v3985
    %4140 = vmatprep.subr.mxu0 0.0
    %4141 = vmatpush2.msra.mxu0 0.0
    %4142 = vmatprep.subr.mxu0 0.0
    %4143 = vmatpush2.msra.mxu0 0.0
    %4144 = vmatprep.subr.mxu0 0.0
    %4145 = vmatpush2.msra.mxu0 0.0
    %4146 = vmatprep.subr.mxu0 0.0
    %4147 = vmatpush2.msra.mxu0 0.0
    %4148 = vmatprep.subr.mxu0 0.0
    %4149 = vmatpush2.msra.mxu0 0.0
    %4150 = vmatprep.subr.mxu0 0.0
    %4151 = vmatpush2.msra.mxu0 0.0
    %4152 = vmatprep.subr.mxu0 0.0
    %4153 = vmatpush2.msra.mxu0 0.0
    %4154 = vmatprep.subr.mxu0 0.0
    %4155 = vmatpush2.msra.mxu0 0.0
    %4156 = vmatprep.subr.mxu0 0.0
    %4157 = vmatpush2.msra.mxu0 0.0
    %4158 = vmatprep.subr.mxu0 0.0
    %4159 = vmatpush2.msra.mxu0 0.0
    %4160 = vmatprep.subr.mxu0 0.0
    %4161 = vmatpush2.msra.mxu0 0.0
    %4162 = vmatprep.subr.mxu0 0.0
    %4163 = vmatpush2.msra.mxu0 0.0
    %4164 = vmatprep.subr.mxu0 0.0
    %4165 = vmatpush2.msra.mxu0 0.0
    %4166 = vmatprep.subr.mxu0 0.0
    %4167 = vmatpush2.msra.mxu0 0.0
    %4168 = vmatprep.subr.mxu0 0.0
    %4169 = vmatpush2.msra.mxu0 0.0
    %4170 = vmatprep.subr.mxu0 0.0
    %4171 = vmatpush2.msra.mxu0 0.0
    %4172 = vmatprep.mubr.f32.mxu0 0.0
    %4173 = vmatmul.mubr.f32.gmra.mxu0 %v4103
    %v4174 = vpop.f32.mrf.mxu0
    %v4175 = vadd.f32 0.0, %v4174
    %v4176 = vpop.f32.mrf.mxu0
    %4177 = vmatprep.mubr.f32.mxu0 0.0
    %4178 = vmatmul.mubr.f32.gmra.mxu0 %v4106
    %v4179 = vpop.f32.mrf.mxu0
    %v4180 = vadd.f32 0.0, %v4179
    %v4181 = vpop.f32.mrf.mxu0
    %4182 = vdwg.mxu0
    %v4183 = vld [vmem:[#allocation6 + $0x418] sm:$0xff]
    %v4185 = vsel %vm552, %v4175, 0
    %v4188 = vsel %vm552, %v4180, 0
    %4190 = vmatprep.subr.mxu0 0.0
    %4191 = vmatpush1.msra.mxu0 0.0
    %4192 = vmatprep.subr.mxu0 0.0
    %4193 = vmatpush1.msra.mxu0 0.0
    %4194 = vmatprep.subr.mxu0 0.0
    %4195 = vmatpush1.msra.mxu0 0.0
    %4196 = vmatprep.subr.mxu0 0.0
    %4197 = vmatpush1.msra.mxu0 0.0
    %4198 = vmatprep.subr.mxu0 0.0
    %4199 = vmatpush1.msra.mxu0 0.0
    %4200 = vmatprep.subr.mxu0 0.0
    %4201 = vmatpush1.msra.mxu0 0.0
    %4202 = vmatprep.subr.mxu0 0.0
    %4203 = vmatpush1.msra.mxu0 0.0
    %4204 = vmatprep.subr.mxu0 0.0
    %4205 = vmatpush1.msra.mxu0 0.0
    %4206 = vmatprep.subr.mxu0 0.0
    %4207 = vmatpush1.msra.mxu0 0.0
    %4208 = vmatprep.subr.mxu0 0.0
    %4209 = vmatpush1.msra.mxu0 0.0
    %4210 = vmatprep.subr.mxu0 0.0
    %4211 = vmatpush1.msra.mxu0 0.0
    %4212 = vmatprep.subr.mxu0 0.0
    %4213 = vmatpush1.msra.mxu0 0.0
    %4214 = vmatprep.subr.mxu0 0.0
    %4215 = vmatpush1.msra.mxu0 0.0
    %4216 = vmatprep.subr.mxu0 0.0
    %4217 = vmatpush1.msra.mxu0 0.0
    %4218 = vmatprep.subr.mxu0 0.0
    %4219 = vmatpush1.msra.mxu0 0.0
    %4220 = vmatprep.subr.mxu0 0.0
    %4221 = vmatpush1.msra.mxu0 %v4183
    %4222 = vmatprep.subr.mxu0 0.0
    %4223 = vmatpush2.msra.mxu0 0.0
    %4224 = vmatprep.subr.mxu0 0.0
    %4225 = vmatpush2.msra.mxu0 0.0
    %4226 = vmatprep.subr.mxu0 0.0
    %4227 = vmatpush2.msra.mxu0 0.0
    %4228 = vmatprep.subr.mxu0 0.0
    %4229 = vmatpush2.msra.mxu0 0.0
    %4230 = vmatprep.subr.mxu0 0.0
    %4231 = vmatpush2.msra.mxu0 0.0
    %4232 = vmatprep.subr.mxu0 0.0
    %4233 = vmatpush2.msra.mxu0 0.0
    %4234 = vmatprep.subr.mxu0 0.0
    %4235 = vmatpush2.msra.mxu0 0.0
    %4236 = vmatprep.subr.mxu0 0.0
    %4237 = vmatpush2.msra.mxu0 0.0
    %4238 = vmatprep.subr.mxu0 0.0
    %4239 = vmatpush2.msra.mxu0 0.0
    %4240 = vmatprep.subr.mxu0 0.0
    %4241 = vmatpush2.msra.mxu0 0.0
    %4242 = vmatprep.subr.mxu0 0.0
    %4243 = vmatpush2.msra.mxu0 0.0
    %4244 = vmatprep.subr.mxu0 0.0
    %4245 = vmatpush2.msra.mxu0 0.0
    %4246 = vmatprep.subr.mxu0 0.0
    %4247 = vmatpush2.msra.mxu0 0.0
    %4248 = vmatprep.subr.mxu0 0.0
    %4249 = vmatpush2.msra.mxu0 0.0
    %4250 = vmatprep.subr.mxu0 0.0
    %4251 = vmatpush2.msra.mxu0 0.0
    %4252 = vmatprep.subr.mxu0 0.0
    %4253 = vmatpush2.msra.mxu0 0.0
    %4254 = vmatprep.mubr.f32.mxu0 0.0
    %4255 = vmatmul.mubr.f32.gmra.mxu0 %v4185
    %v4256 = vpop.f32.mrf.mxu0
    %v4257 = vadd.f32 0.0, %v4256
    %v4258 = vpop.f32.mrf.mxu0
    %4259 = vmatprep.mubr.f32.mxu0 0.0
    %4260 = vmatmul.mubr.f32.gmra.mxu0 %v4188
    %v4261 = vpop.f32.mrf.mxu0
    %v4262 = vadd.f32 0.0, %v4261
    %v4263 = vpop.f32.mrf.mxu0
    %4264 = vdwg.mxu0
    %v4265 = vadd.f32 %v3731, %v4257
    %v4266 = vadd.f32 %v3736, %v4262
    %v4267 = vld [vmem:[#allocation6 + $0x420] sm:$0xff]
    %v4268 = vld [vmem:[#allocation6 + $0x428] sm:$0xff]
    %v4269 = vld [vmem:[#allocation6 + $0x430] sm:$0xff]
    %v4270 = vld [vmem:[#allocation6 + $0x438] sm:$0xff]
    %v4271 = vld [vmem:[#allocation6 + $0x480] sm:$0x1]
    %v4272 = vlaneseq
    %v4273 = vshrl.u32 %v4272, 7
    %v4274 = vsub.s32 0, %v4273
    %v4275 = vrot.slane %v4271, %v4274
    %4276 = vmatprep.subr.mxu0 0.0
    %4277 = vmatpush1.msra.mxu0 0.0
    %4278 = vmatprep.subr.mxu0 0.0
    %4279 = vmatpush1.msra.mxu0 0.0
    %4280 = vmatprep.subr.mxu0 0.0
    %4281 = vmatpush1.msra.mxu0 0.0
    %4282 = vmatprep.subr.mxu0 0.0
    %4283 = vmatpush1.msra.mxu0 0.0
    %4284 = vmatprep.subr.mxu0 0.0
    %4285 = vmatpush1.msra.mxu0 0.0
    %4286 = vmatprep.subr.mxu0 0.0
    %4287 = vmatpush1.msra.mxu0 0.0
    %4288 = vmatprep.subr.mxu0 0.0
    %4289 = vmatpush1.msra.mxu0 0.0
    %4290 = vmatprep.subr.mxu0 0.0
    %4291 = vmatpush1.msra.mxu0 0.0
    %4292 = vmatprep.subr.mxu0 0.0
    %4293 = vmatpush1.msra.mxu0 0.0
    %4294 = vmatprep.subr.mxu0 0.0
    %4295 = vmatpush1.msra.mxu0 0.0
    %4296 = vmatprep.subr.mxu0 0.0
    %4297 = vmatpush1.msra.mxu0 0.0
    %4298 = vmatprep.subr.mxu0 0.0
    %4299 = vmatpush1.msra.mxu0 0.0
    %4300 = vmatprep.subr.mxu0 0.0
    %4301 = vmatpush1.msra.mxu0 %v4270
    %4302 = vmatprep.subr.mxu0 0.0
    %4303 = vmatpush1.msra.mxu0 %v4269
    %4304 = vmatprep.subr.mxu0 0.0
    %4305 = vmatpush1.msra.mxu0 %v4268
    %4306 = vmatprep.subr.mxu0 0.0
    %4307 = vmatpush1.msra.mxu0 %v4267
    %4308 = vmatprep.subr.mxu0 0.0
    %4309 = vmatpush2.msra.mxu0 0.0
    %4310 = vmatprep.subr.mxu0 0.0
    %4311 = vmatpush2.msra.mxu0 0.0
    %4312 = vmatprep.subr.mxu0 0.0
    %4313 = vmatpush2.msra.mxu0 0.0
    %4314 = vmatprep.subr.mxu0 0.0
    %4315 = vmatpush2.msra.mxu0 0.0
    %4316 = vmatprep.subr.mxu0 0.0
    %4317 = vmatpush2.msra.mxu0 0.0
    %4318 = vmatprep.subr.mxu0 0.0
    %4319 = vmatpush2.msra.mxu0 0.0
    %4320 = vmatprep.subr.mxu0 0.0
    %4321 = vmatpush2.msra.mxu0 0.0
    %4322 = vmatprep.subr.mxu0 0.0
    %4323 = vmatpush2.msra.mxu0 0.0
    %4324 = vmatprep.subr.mxu0 0.0
    %4325 = vmatpush2.msra.mxu0 0.0
    %4326 = vmatprep.subr.mxu0 0.0
    %4327 = vmatpush2.msra.mxu0 0.0
    %4328 = vmatprep.subr.mxu0 0.0
    %4329 = vmatpush2.msra.mxu0 0.0
    %4330 = vmatprep.subr.mxu0 0.0
    %4331 = vmatpush2.msra.mxu0 0.0
    %4332 = vmatprep.subr.mxu0 0.0
    %4333 = vmatpush2.msra.mxu0 0.0
    %4334 = vmatprep.subr.mxu0 0.0
    %4335 = vmatpush2.msra.mxu0 0.0
    %4336 = vmatprep.subr.mxu0 0.0
    %4337 = vmatpush2.msra.mxu0 0.0
    %4338 = vmatprep.subr.mxu0 0.0
    %4339 = vmatpush2.msra.mxu0 0.0
    %4340 = vmatprep.mubr.f32.mxu0 0.0
    %4341 = vmatmul.mubr.f32.gmra.mxu0 %v2691
    %v4342 = vpop.f32.mrf.mxu0
    %v4343 = vadd.f32 %v4275, %v4342
    %v4344 = vpop.f32.mrf.mxu0
    %4345 = vmatprep.mubr.f32.mxu0 0.0
    %4346 = vmatmul.mubr.f32.gmra.mxu0 %v2694
    %v4347 = vpop.f32.mrf.mxu0
    %v4348 = vadd.f32 %v4275, %v4347
    %v4349 = vpop.f32.mrf.mxu0
    %4350 = vdwg.mxu0
    %v4351 = vmul.f32 %v4343, 0.35355338
    %v4352 = vmul.f32 %v4348, 0.35355338
    %v4353 = vld [vmem:[#allocation6 + $0x440] sm:$0xff]
    %v4354 = vld [vmem:[#allocation6 + $0x448] sm:$0xff]
    %v4355 = vld [vmem:[#allocation6 + $0x450] sm:$0xff]
    %v4356 = vld [vmem:[#allocation6 + $0x458] sm:$0xff]
    %v4357 = vld [vmem:[#allocation6 + $0x488] sm:$0x1]
    %v4358 = vlaneseq
    %v4359 = vshrl.u32 %v4358, 7
    %v4360 = vsub.s32 0, %v4359
    %v4361 = vrot.slane %v4357, %v4360
    %4362 = vmatprep.subr.mxu0 0.0
    %4363 = vmatpush1.msra.mxu0 0.0
    %4364 = vmatprep.subr.mxu0 0.0
    %4365 = vmatpush1.msra.mxu0 0.0
    %4366 = vmatprep.subr.mxu0 0.0
    %4367 = vmatpush1.msra.mxu0 0.0
    %4368 = vmatprep.subr.mxu0 0.0
    %4369 = vmatpush1.msra.mxu0 0.0
    %4370 = vmatprep.subr.mxu0 0.0
    %4371 = vmatpush1.msra.mxu0 0.0
    %4372 = vmatprep.subr.mxu0 0.0
    %4373 = vmatpush1.msra.mxu0 0.0
    %4374 = vmatprep.subr.mxu0 0.0
    %4375 = vmatpush1.msra.mxu0 0.0
    %4376 = vmatprep.subr.mxu0 0.0
    %4377 = vmatpush1.msra.mxu0 0.0
    %4378 = vmatprep.subr.mxu0 0.0
    %4379 = vmatpush1.msra.mxu0 0.0
    %4380 = vmatprep.subr.mxu0 0.0
    %4381 = vmatpush1.msra.mxu0 0.0
    %4382 = vmatprep.subr.mxu0 0.0
    %4383 = vmatpush1.msra.mxu0 0.0
    %4384 = vmatprep.subr.mxu0 0.0
    %4385 = vmatpush1.msra.mxu0 0.0
    %4386 = vmatprep.subr.mxu0 0.0
    %4387 = vmatpush1.msra.mxu0 %v4356
    %4388 = vmatprep.subr.mxu0 0.0
    %4389 = vmatpush1.msra.mxu0 %v4355
    %4390 = vmatprep.subr.mxu0 0.0
    %4391 = vmatpush1.msra.mxu0 %v4354
    %4392 = vmatprep.subr.mxu0 0.0
    %4393 = vmatpush1.msra.mxu0 %v4353
    %4394 = vmatprep.subr.mxu0 0.0
    %4395 = vmatpush2.msra.mxu0 0.0
    %4396 = vmatprep.subr.mxu0 0.0
    %4397 = vmatpush2.msra.mxu0 0.0
    %4398 = vmatprep.subr.mxu0 0.0
    %4399 = vmatpush2.msra.mxu0 0.0
    %4400 = vmatprep.subr.mxu0 0.0
    %4401 = vmatpush2.msra.mxu0 0.0
    %4402 = vmatprep.subr.mxu0 0.0
    %4403 = vmatpush2.msra.mxu0 0.0
    %4404 = vmatprep.subr.mxu0 0.0
    %4405 = vmatpush2.msra.mxu0 0.0
    %4406 = vmatprep.subr.mxu0 0.0
    %4407 = vmatpush2.msra.mxu0 0.0
    %4408 = vmatprep.subr.mxu0 0.0
    %4409 = vmatpush2.msra.mxu0 0.0
    %4410 = vmatprep.subr.mxu0 0.0
    %4411 = vmatpush2.msra.mxu0 0.0
    %4412 = vmatprep.subr.mxu0 0.0
    %4413 = vmatpush2.msra.mxu0 0.0
    %4414 = vmatprep.subr.mxu0 0.0
    %4415 = vmatpush2.msra.mxu0 0.0
    %4416 = vmatprep.subr.mxu0 0.0
    %4417 = vmatpush2.msra.mxu0 0.0
    %4418 = vmatprep.subr.mxu0 0.0
    %4419 = vmatpush2.msra.mxu0 0.0
    %4420 = vmatprep.subr.mxu0 0.0
    %4421 = vmatpush2.msra.mxu0 0.0
    %4422 = vmatprep.subr.mxu0 0.0
    %4423 = vmatpush2.msra.mxu0 0.0
    %4424 = vmatprep.subr.mxu0 0.0
    %4425 = vmatpush2.msra.mxu0 0.0
    %4426 = vmatprep.mubr.f32.mxu0 0.0
    %4427 = vmatmul.mubr.f32.gmra.mxu0 %v2691
    %v4428 = vpop.f32.mrf.mxu0
    %v4429 = vadd.f32 %v4361, %v4428
    %v4430 = vpop.f32.mrf.mxu0
    %4431 = vmatprep.mubr.f32.mxu0 0.0
    %4432 = vmatmul.mubr.f32.gmra.mxu0 %v2694
    %v4433 = vpop.f32.mrf.mxu0
    %v4434 = vadd.f32 %v4361, %v4433
    %v4435 = vpop.f32.mrf.mxu0
    %4436 = vdwg.mxu0
    %v4437 = vld [vmem:[#allocation6 + $0x460] sm:$0xff]
    %v4438 = vld [vmem:[#allocation6 + $0x468] sm:$0xff]
    %v4439 = vld [vmem:[#allocation6 + $0x470] sm:$0xff]
    %v4440 = vld [vmem:[#allocation6 + $0x478] sm:$0xff]
    %v4441 = vld [vmem:[#allocation6 + $0x490] sm:$0x1]
    %v4442 = vlaneseq
    %v4443 = vshrl.u32 %v4442, 7
    %v4444 = vsub.s32 0, %v4443
    %v4445 = vrot.slane %v4441, %v4444
    %4446 = vmatprep.subr.mxu0 0.0
    %4447 = vmatpush1.msra.mxu0 0.0
    %4448 = vmatprep.subr.mxu0 0.0
    %4449 = vmatpush1.msra.mxu0 0.0
    %4450 = vmatprep.subr.mxu0 0.0
    %4451 = vmatpush1.msra.mxu0 0.0
    %4452 = vmatprep.subr.mxu0 0.0
    %4453 = vmatpush1.msra.mxu0 0.0
    %4454 = vmatprep.subr.mxu0 0.0
    %4455 = vmatpush1.msra.mxu0 0.0
    %4456 = vmatprep.subr.mxu0 0.0
    %4457 = vmatpush1.msra.mxu0 0.0
    %4458 = vmatprep.subr.mxu0 0.0
    %4459 = vmatpush1.msra.mxu0 0.0
    %4460 = vmatprep.subr.mxu0 0.0
    %4461 = vmatpush1.msra.mxu0 0.0
    %4462 = vmatprep.subr.mxu0 0.0
    %4463 = vmatpush1.msra.mxu0 0.0
    %4464 = vmatprep.subr.mxu0 0.0
    %4465 = vmatpush1.msra.mxu0 0.0
    %4466 = vmatprep.subr.mxu0 0.0
    %4467 = vmatpush1.msra.mxu0 0.0
    %4468 = vmatprep.subr.mxu0 0.0
    %4469 = vmatpush1.msra.mxu0 0.0
    %4470 = vmatprep.subr.mxu0 0.0
    %4471 = vmatpush1.msra.mxu0 %v4440
    %4472 = vmatprep.subr.mxu0 0.0
    %4473 = vmatpush1.msra.mxu0 %v4439
    %4474 = vmatprep.subr.mxu0 0.0
    %4475 = vmatpush1.msra.mxu0 %v4438
    %4476 = vmatprep.subr.mxu0 0.0
    %4477 = vmatpush1.msra.mxu0 %v4437
    %4478 = vmatprep.subr.mxu0 0.0
    %4479 = vmatpush2.msra.mxu0 0.0
    %4480 = vmatprep.subr.mxu0 0.0
    %4481 = vmatpush2.msra.mxu0 0.0
    %4482 = vmatprep.subr.mxu0 0.0
    %4483 = vmatpush2.msra.mxu0 0.0
    %4484 = vmatprep.subr.mxu0 0.0
    %4485 = vmatpush2.msra.mxu0 0.0
    %4486 = vmatprep.subr.mxu0 0.0
    %4487 = vmatpush2.msra.mxu0 0.0
    %4488 = vmatprep.subr.mxu0 0.0
    %4489 = vmatpush2.msra.mxu0 0.0
    %4490 = vmatprep.subr.mxu0 0.0
    %4491 = vmatpush2.msra.mxu0 0.0
    %4492 = vmatprep.subr.mxu0 0.0
    %4493 = vmatpush2.msra.mxu0 0.0
    %4494 = vmatprep.subr.mxu0 0.0
    %4495 = vmatpush2.msra.mxu0 0.0
    %4496 = vmatprep.subr.mxu0 0.0
    %4497 = vmatpush2.msra.mxu0 0.0
    %4498 = vmatprep.subr.mxu0 0.0
    %4499 = vmatpush2.msra.mxu0 0.0
    %4500 = vmatprep.subr.mxu0 0.0
    %4501 = vmatpush2.msra.mxu0 0.0
    %4502 = vmatprep.subr.mxu0 0.0
    %4503 = vmatpush2.msra.mxu0 0.0
    %4504 = vmatprep.subr.mxu0 0.0
    %4505 = vmatpush2.msra.mxu0 0.0
    %4506 = vmatprep.subr.mxu0 0.0
    %4507 = vmatpush2.msra.mxu0 0.0
    %4508 = vmatprep.subr.mxu0 0.0
    %4509 = vmatpush2.msra.mxu0 0.0
    %4510 = vmatprep.mubr.f32.mxu0 0.0
    %4511 = vmatmul.mubr.f32.gmra.mxu0 %v2691
    %v4512 = vpop.f32.mrf.mxu0
    %v4513 = vadd.f32 %v4445, %v4512
    %v4514 = vpop.f32.mrf.mxu0
    %4515 = vmatprep.mubr.f32.mxu0 0.0
    %4516 = vmatmul.mubr.f32.gmra.mxu0 %v2694
    %v4517 = vpop.f32.mrf.mxu0
    %v4518 = vadd.f32 %v4445, %v4517
    %v4519 = vpop.f32.mrf.mxu0
    %4520 = vdwg.mxu0
    %v4522 = vsel %vm552, %v4351, 0
    %v4525 = vsel %vm552, %v4352, 0
    %v4528 = vsel %vm552, %v4429, 0
    %v4531 = vsel %vm552, %v4434, 0
    %4533 = vmatprep.subr.mxu0 0.0
    %4534 = vmatpush1.xpose.msra.mxu0 0.0
    %4535 = vmatprep.subr.mxu0 0.0
    %4536 = vmatpush1.xpose.msra.mxu0 0.0
    %4537 = vmatprep.subr.mxu0 0.0
    %4538 = vmatpush1.xpose.msra.mxu0 0.0
    %4539 = vmatprep.subr.mxu0 0.0
    %4540 = vmatpush1.xpose.msra.mxu0 0.0
    %4541 = vmatprep.subr.mxu0 0.0
    %4542 = vmatpush1.xpose.msra.mxu0 0.0
    %4543 = vmatprep.subr.mxu0 0.0
    %4544 = vmatpush1.xpose.msra.mxu0 0.0
    %4545 = vmatprep.subr.mxu0 0.0
    %4546 = vmatpush1.xpose.msra.mxu0 0.0
    %4547 = vmatprep.subr.mxu0 0.0
    %4548 = vmatpush1.xpose.msra.mxu0 0.0
    %4549 = vmatprep.subr.mxu0 0.0
    %4550 = vmatpush1.xpose.msra.mxu0 0.0
    %4551 = vmatprep.subr.mxu0 0.0
    %4552 = vmatpush1.xpose.msra.mxu0 0.0
    %4553 = vmatprep.subr.mxu0 0.0
    %4554 = vmatpush1.xpose.msra.mxu0 0.0
    %4555 = vmatprep.subr.mxu0 0.0
    %4556 = vmatpush1.xpose.msra.mxu0 0.0
    %4557 = vmatprep.subr.mxu0 0.0
    %4558 = vmatpush1.xpose.msra.mxu0 0.0
    %4559 = vmatprep.subr.mxu0 0.0
    %4560 = vmatpush1.xpose.msra.mxu0 0.0
    %4561 = vmatprep.subr.mxu0 0.0
    %4562 = vmatpush1.xpose.msra.mxu0 %v4531
    %4563 = vmatprep.subr.mxu0 0.0
    %4564 = vmatpush1.xpose.msra.mxu0 %v4528
    %4565 = vmatprep.subr.mxu0 0.0
    %4566 = vmatpush2.xpose.msra.mxu0 0.0
    %4567 = vmatprep.subr.mxu0 0.0
    %4568 = vmatpush2.xpose.msra.mxu0 0.0
    %4569 = vmatprep.subr.mxu0 0.0
    %4570 = vmatpush2.xpose.msra.mxu0 0.0
    %4571 = vmatprep.subr.mxu0 0.0
    %4572 = vmatpush2.xpose.msra.mxu0 0.0
    %4573 = vmatprep.subr.mxu0 0.0
    %4574 = vmatpush2.xpose.msra.mxu0 0.0
    %4575 = vmatprep.subr.mxu0 0.0
    %4576 = vmatpush2.xpose.msra.mxu0 0.0
    %4577 = vmatprep.subr.mxu0 0.0
    %4578 = vmatpush2.xpose.msra.mxu0 0.0
    %4579 = vmatprep.subr.mxu0 0.0
    %4580 = vmatpush2.xpose.msra.mxu0 0.0
    %4581 = vmatprep.subr.mxu0 0.0
    %4582 = vmatpush2.xpose.msra.mxu0 0.0
    %4583 = vmatprep.subr.mxu0 0.0
    %4584 = vmatpush2.xpose.msra.mxu0 0.0
    %4585 = vmatprep.subr.mxu0 0.0
    %4586 = vmatpush2.xpose.msra.mxu0 0.0
    %4587 = vmatprep.subr.mxu0 0.0
    %4588 = vmatpush2.xpose.msra.mxu0 0.0
    %4589 = vmatprep.subr.mxu0 0.0
    %4590 = vmatpush2.xpose.msra.mxu0 0.0
    %4591 = vmatprep.subr.mxu0 0.0
    %4592 = vmatpush2.xpose.msra.mxu0 0.0
    %4593 = vmatprep.subr.mxu0 0.0
    %4594 = vmatpush2.xpose.msra.mxu0 0.0
    %4595 = vmatprep.subr.mxu0 0.0
    %4596 = vmatpush2.xpose.msra.mxu0 0.0
    %4597 = vmatprep.mubr.f32.mxu0 0.0
    %4598 = vmatmul.mubr.f32.gmra.mxu0 %v4522
    %v4599 = vpop.f32.mrf.mxu0
    %v4600 = vadd.f32 %v288, %v4599
    %v4601 = vpop.f32.mrf.mxu0
    %4602 = vmatprep.mubr.f32.mxu0 0.0
    %4603 = vmatmul.mubr.f32.gmra.mxu0 %v4525
    %v4604 = vpop.f32.mrf.mxu0
    %v4605 = vadd.f32 %v289, %v4604
    %v4606 = vpop.f32.mrf.mxu0
    %4607 = vdwg.mxu0
    %v4608 = vsel %vm214, %v4600, -inf
    %4609 = vmax.xlane.f32.xlu0 %v4608
    %v4610 = vpop.xlane.xlu0 %4609
    %v4611 = vsel %vm214, %v4605, -inf
    %4612 = vmax.xlane.f32.xlu0 %v4611
    %v4613 = vpop.xlane.xlu0 %4612
    %v4614 = vsub.f32 %v4600, %v4610
    %v4615 = vsub.f32 %v4605, %v4613
    %v4616 = vmul.f32 %v4614, 1.442695
    %v4617 = vpow.pop %v4616
    %v4618 = vmul.f32 %v4615, 1.442695
    %v4619 = vpow.pop %v4618
    %v4620 = vsel %vm214, %v4617, 0.0
    %4621 = vadd.xlane.f32.xlu0 %v4620
    %v4622 = vpop.xlane.xlu0 %4621
    %v4623 = vsel %vm214, %v4619, 0.0
    %4624 = vadd.xlane.f32.xlu0 %v4623
    %v4625 = vpop.xlane.xlu0 %4624
    %v4626 = vrcp.pop %v4622
    %v4627 = vmul.f32 %v4617, %v4626
    %v4628 = vrcp.pop %v4625
    %v4629 = vmul.f32 %v4619, %v4628
    %v4631 = vsel %vm214, %v4627, 0
    %v4634 = vsel %vm214, %v4629, 0
    %4636 = vmatprep.subr.mxu0 0.0
    %4637 = vmatpush1.msra.mxu0 0.0
    %4638 = vmatprep.subr.mxu0 0.0
    %4639 = vmatpush1.msra.mxu0 0.0
    %4640 = vmatprep.subr.mxu0 0.0
    %4641 = vmatpush1.msra.mxu0 0.0
    %4642 = vmatprep.subr.mxu0 0.0
    %4643 = vmatpush1.msra.mxu0 0.0
    %4644 = vmatprep.subr.mxu0 0.0
    %4645 = vmatpush1.msra.mxu0 0.0
    %4646 = vmatprep.subr.mxu0 0.0
    %4647 = vmatpush1.msra.mxu0 0.0
    %4648 = vmatprep.subr.mxu0 0.0
    %4649 = vmatpush1.msra.mxu0 0.0
    %4650 = vmatprep.subr.mxu0 0.0
    %4651 = vmatpush1.msra.mxu0 0.0
    %4652 = vmatprep.subr.mxu0 0.0
    %4653 = vmatpush1.msra.mxu0 0.0
    %4654 = vmatprep.subr.mxu0 0.0
    %4655 = vmatpush1.msra.mxu0 0.0
    %4656 = vmatprep.subr.mxu0 0.0
    %4657 = vmatpush1.msra.mxu0 0.0
    %4658 = vmatprep.subr.mxu0 0.0
    %4659 = vmatpush1.msra.mxu0 0.0
    %4660 = vmatprep.subr.mxu0 0.0
    %4661 = vmatpush1.msra.mxu0 0.0
    %4662 = vmatprep.subr.mxu0 0.0
    %4663 = vmatpush1.msra.mxu0 0.0
    %4664 = vmatprep.subr.mxu0 0.0
    %4665 = vmatpush1.msra.mxu0 %v4518
    %4666 = vmatprep.subr.mxu0 0.0
    %4667 = vmatpush1.msra.mxu0 %v4513
    %4668 = vmatprep.subr.mxu0 0.0
    %4669 = vmatpush2.msra.mxu0 0.0
    %4670 = vmatprep.subr.mxu0 0.0
    %4671 = vmatpush2.msra.mxu0 0.0
    %4672 = vmatprep.subr.mxu0 0.0
    %4673 = vmatpush2.msra.mxu0 0.0
    %4674 = vmatprep.subr.mxu0 0.0
    %4675 = vmatpush2.msra.mxu0 0.0
    %4676 = vmatprep.subr.mxu0 0.0
    %4677 = vmatpush2.msra.mxu0 0.0
    %4678 = vmatprep.subr.mxu0 0.0
    %4679 = vmatpush2.msra.mxu0 0.0
    %4680 = vmatprep.subr.mxu0 0.0
    %4681 = vmatpush2.msra.mxu0 0.0
    %4682 = vmatprep.subr.mxu0 0.0
    %4683 = vmatpush2.msra.mxu0 0.0
    %4684 = vmatprep.subr.mxu0 0.0
    %4685 = vmatpush2.msra.mxu0 0.0
    %4686 = vmatprep.subr.mxu0 0.0
    %4687 = vmatpush2.msra.mxu0 0.0
    %4688 = vmatprep.subr.mxu0 0.0
    %4689 = vmatpush2.msra.mxu0 0.0
    %4690 = vmatprep.subr.mxu0 0.0
    %4691 = vmatpush2.msra.mxu0 0.0
    %4692 = vmatprep.subr.mxu0 0.0
    %4693 = vmatpush2.msra.mxu0 0.0
    %4694 = vmatprep.subr.mxu0 0.0
    %4695 = vmatpush2.msra.mxu0 0.0
    %4696 = vmatprep.subr.mxu0 0.0
    %4697 = vmatpush2.msra.mxu0 0.0
    %4698 = vmatprep.subr.mxu0 0.0
    %4699 = vmatpush2.msra.mxu0 0.0
    %4700 = vmatprep.mubr.f32.mxu0 0.0
    %4701 = vmatmul.mubr.f32.gmra.mxu0 %v4631
    %v4702 = vpop.f32.mrf.mxu0
    %v4703 = vadd.f32 0.0, %v4702
    %v4704 = vpop.f32.mrf.mxu0
    %4705 = vmatprep.mubr.f32.mxu0 0.0
    %4706 = vmatmul.mubr.f32.gmra.mxu0 %v4634
    %v4707 = vpop.f32.mrf.mxu0
    %v4708 = vadd.f32 0.0, %v4707
    %v4709 = vpop.f32.mrf.mxu0
    %4710 = vdwg.mxu0
    %v4711 = vld [vmem:[#allocation6 + $0x498] sm:$0xff]
    %v4713 = vsel %vm552, %v4703, 0
    %v4716 = vsel %vm552, %v4708, 0
    %4718 = vmatprep.subr.mxu0 0.0
    %4719 = vmatpush1.msra.mxu0 0.0
    %4720 = vmatprep.subr.mxu0 0.0
    %4721 = vmatpush1.msra.mxu0 0.0
    %4722 = vmatprep.subr.mxu0 0.0
    %4723 = vmatpush1.msra.mxu0 0.0
    %4724 = vmatprep.subr.mxu0 0.0
    %4725 = vmatpush1.msra.mxu0 0.0
    %4726 = vmatprep.subr.mxu0 0.0
    %4727 = vmatpush1.msra.mxu0 0.0
    %4728 = vmatprep.subr.mxu0 0.0
    %4729 = vmatpush1.msra.mxu0 0.0
    %4730 = vmatprep.subr.mxu0 0.0
    %4731 = vmatpush1.msra.mxu0 0.0
    %4732 = vmatprep.subr.mxu0 0.0
    %4733 = vmatpush1.msra.mxu0 0.0
    %4734 = vmatprep.subr.mxu0 0.0
    %4735 = vmatpush1.msra.mxu0 0.0
    %4736 = vmatprep.subr.mxu0 0.0
    %4737 = vmatpush1.msra.mxu0 0.0
    %4738 = vmatprep.subr.mxu0 0.0
    %4739 = vmatpush1.msra.mxu0 0.0
    %4740 = vmatprep.subr.mxu0 0.0
    %4741 = vmatpush1.msra.mxu0 0.0
    %4742 = vmatprep.subr.mxu0 0.0
    %4743 = vmatpush1.msra.mxu0 0.0
    %4744 = vmatprep.subr.mxu0 0.0
    %4745 = vmatpush1.msra.mxu0 0.0
    %4746 = vmatprep.subr.mxu0 0.0
    %4747 = vmatpush1.msra.mxu0 0.0
    %4748 = vmatprep.subr.mxu0 0.0
    %4749 = vmatpush1.msra.mxu0 %v4711
    %4750 = vmatprep.subr.mxu0 0.0
    %4751 = vmatpush2.msra.mxu0 0.0
    %4752 = vmatprep.subr.mxu0 0.0
    %4753 = vmatpush2.msra.mxu0 0.0
    %4754 = vmatprep.subr.mxu0 0.0
    %4755 = vmatpush2.msra.mxu0 0.0
    %4756 = vmatprep.subr.mxu0 0.0
    %4757 = vmatpush2.msra.mxu0 0.0
    %4758 = vmatprep.subr.mxu0 0.0
    %4759 = vmatpush2.msra.mxu0 0.0
    %4760 = vmatprep.subr.mxu0 0.0
    %4761 = vmatpush2.msra.mxu0 0.0
    %4762 = vmatprep.subr.mxu0 0.0
    %4763 = vmatpush2.msra.mxu0 0.0
    %4764 = vmatprep.subr.mxu0 0.0
    %4765 = vmatpush2.msra.mxu0 0.0
    %4766 = vmatprep.subr.mxu0 0.0
    %4767 = vmatpush2.msra.mxu0 0.0
    %4768 = vmatprep.subr.mxu0 0.0
    %4769 = vmatpush2.msra.mxu0 0.0
    %4770 = vmatprep.subr.mxu0 0.0
    %4771 = vmatpush2.msra.mxu0 0.0
    %4772 = vmatprep.subr.mxu0 0.0
    %4773 = vmatpush2.msra.mxu0 0.0
    %4774 = vmatprep.subr.mxu0 0.0
    %4775 = vmatpush2.msra.mxu0 0.0
    %4776 = vmatprep.subr.mxu0 0.0
    %4777 = vmatpush2.msra.mxu0 0.0
    %4778 = vmatprep.subr.mxu0 0.0
    %4779 = vmatpush2.msra.mxu0 0.0
    %4780 = vmatprep.subr.mxu0 0.0
    %4781 = vmatpush2.msra.mxu0 0.0
    %4782 = vmatprep.mubr.f32.mxu0 0.0
    %4783 = vmatmul.mubr.f32.gmra.mxu0 %v4713
    %v4784 = vpop.f32.mrf.mxu0
    %v4785 = vadd.f32 0.0, %v4784
    %v4786 = vpop.f32.mrf.mxu0
    %4787 = vmatprep.mubr.f32.mxu0 0.0
    %4788 = vmatmul.mubr.f32.gmra.mxu0 %v4716
    %v4789 = vpop.f32.mrf.mxu0
    %v4790 = vadd.f32 0.0, %v4789
    %v4791 = vpop.f32.mrf.mxu0
    %4792 = vdwg.mxu0
    %v4793 = vadd.f32 %v4265, %v4785
    %v4794 = vadd.f32 %v4266, %v4790
    %v4795 = vld [vmem:[#allocation6 + $0x4a0] sm:$0x1]
    %v4796 = vlaneseq
    %v4797 = vshrl.u32 %v4796, 7
    %v4798 = vsub.s32 0, %v4797
    %v4799 = vrot.slane %v4795, %v4798
    %v4800 = vadd.f32 %v4793, %v4799
    %v4801 = vadd.f32 %v4794, %v4799
    %v4802 = vadd.f32 %v2679, %v4800
    %v4803 = vadd.f32 %v2680, %v4801
    %v4804 = vld [vmem:[#allocation6 + $0x4a8] sm:$0x1]
    %v4805 = vld [vmem:[#allocation6 + $0x4b0] sm:$0x1]
    %v4806 = vsel %vm300, %v4802, 0.0
    %4807 = vadd.xlane.f32.xlu0 %v4806
    %v4808 = vpop.xlane.xlu0 %4807
    %v4809 = vsel %vm300, %v4803, 0.0
    %4810 = vadd.xlane.f32.xlu0 %v4809
    %v4811 = vpop.xlane.xlu0 %4810
    %v4812 = vmul.f32 %v4808, %v2424
    %v4813 = vmul.f32 %v4811, %v2424
    %v4814 = vsub.f32 %v4802, %v4812
    %v4815 = vsub.f32 %v4803, %v4813
    %v4816 = vmul.f32 %v4814, %v4814
    %v4817 = vmul.f32 %v4815, %v4815
    %v4818 = vsel %vm300, %v4816, 0.0
    %4819 = vadd.xlane.f32.xlu0 %v4818
    %v4820 = vpop.xlane.xlu0 %4819
    %v4821 = vsel %vm300, %v4817, 0.0
    %4822 = vadd.xlane.f32.xlu0 %v4821
    %v4823 = vpop.xlane.xlu0 %4822
    %v4824 = vmul.f32 %v4820, %v2424
    %v4825 = vmul.f32 %v4823, %v2424
    %v4826 = vadd.f32 %v4824, 1e-05
    %v4827 = vadd.f32 %v4825, 1e-05
    %v4828 = vrsqrt.pop %v4826
    %v4829 = vrsqrt.pop %v4827
    %v4830 = vmul.f32 %v4814, %v4828
    %v4831 = vmul.f32 %v4815, %v4829
    %v4832 = vlaneseq
    %v4833 = vshrl.u32 %v4832, 7
    %v4834 = vsub.s32 0, %v4833
    %v4835 = vrot.slane %v4804, %v4834
    %v4836 = vmul.f32 %v4830, %v4835
    %v4837 = vmul.f32 %v4831, %v4835
    %v4838 = vlaneseq
    %v4839 = vshrl.u32 %v4838, 7
    %v4840 = vsub.s32 0, %v4839
    %v4841 = vrot.slane %v4805, %v4840
    %v4842 = vadd.f32 %v4836, %v4841
    %v4843 = vadd.f32 %v4837, %v4841
    %v4844 = vld [vmem:[#allocation6 + $0x4b8] sm:$0xff]
    %v4845 = vld [vmem:[#allocation6 + $0x4c0] sm:$0xff]
    %v4846 = vld [vmem:[#allocation6 + $0x4c8] sm:$0xff]
    %v4847 = vld [vmem:[#allocation6 + $0x4d0] sm:$0xff]
    %v4848 = vld [vmem:[#allocation6 + $0x4d8] sm:$0x1]
    %v4849 = vlaneseq
    %v4850 = vshrl.u32 %v4849, 7
    %v4851 = vsub.s32 0, %v4850
    %v4852 = vrot.slane %v4848, %v4851
    %v4854 = vsel %vm300, %v4842, 0
    %v4857 = vsel %vm300, %v4843, 0
    %4859 = vmatprep.subr.mxu0 0.0
    %4860 = vmatpush1.msra.mxu0 0.0
    %4861 = vmatprep.subr.mxu0 0.0
    %4862 = vmatpush1.msra.mxu0 0.0
    %4863 = vmatprep.subr.mxu0 0.0
    %4864 = vmatpush1.msra.mxu0 0.0
    %4865 = vmatprep.subr.mxu0 0.0
    %4866 = vmatpush1.msra.mxu0 0.0
    %4867 = vmatprep.subr.mxu0 0.0
    %4868 = vmatpush1.msra.mxu0 0.0
    %4869 = vmatprep.subr.mxu0 0.0
    %4870 = vmatpush1.msra.mxu0 0.0
    %4871 = vmatprep.subr.mxu0 0.0
    %4872 = vmatpush1.msra.mxu0 0.0
    %4873 = vmatprep.subr.mxu0 0.0
    %4874 = vmatpush1.msra.mxu0 0.0
    %4875 = vmatprep.subr.mxu0 0.0
    %4876 = vmatpush1.msra.mxu0 0.0
    %4877 = vmatprep.subr.mxu0 0.0
    %4878 = vmatpush1.msra.mxu0 0.0
    %4879 = vmatprep.subr.mxu0 0.0
    %4880 = vmatpush1.msra.mxu0 0.0
    %4881 = vmatprep.subr.mxu0 0.0
    %4882 = vmatpush1.msra.mxu0 0.0
    %4883 = vmatprep.subr.mxu0 0.0
    %4884 = vmatpush1.msra.mxu0 %v4847
    %4885 = vmatprep.subr.mxu0 0.0
    %4886 = vmatpush1.msra.mxu0 %v4846
    %4887 = vmatprep.subr.mxu0 0.0
    %4888 = vmatpush1.msra.mxu0 %v4845
    %4889 = vmatprep.subr.mxu0 0.0
    %4890 = vmatpush1.msra.mxu0 %v4844
    %4891 = vmatprep.subr.mxu0 0.0
    %4892 = vmatpush2.msra.mxu0 0.0
    %4893 = vmatprep.subr.mxu0 0.0
    %4894 = vmatpush2.msra.mxu0 0.0
    %4895 = vmatprep.subr.mxu0 0.0
    %4896 = vmatpush2.msra.mxu0 0.0
    %4897 = vmatprep.subr.mxu0 0.0
    %4898 = vmatpush2.msra.mxu0 0.0
    %4899 = vmatprep.subr.mxu0 0.0
    %4900 = vmatpush2.msra.mxu0 0.0
    %4901 = vmatprep.subr.mxu0 0.0
    %4902 = vmatpush2.msra.mxu0 0.0
    %4903 = vmatprep.subr.mxu0 0.0
    %4904 = vmatpush2.msra.mxu0 0.0
    %4905 = vmatprep.subr.mxu0 0.0
    %4906 = vmatpush2.msra.mxu0 0.0
    %4907 = vmatprep.subr.mxu0 0.0
    %4908 = vmatpush2.msra.mxu0 0.0
    %4909 = vmatprep.subr.mxu0 0.0
    %4910 = vmatpush2.msra.mxu0 0.0
    %4911 = vmatprep.subr.mxu0 0.0
    %4912 = vmatpush2.msra.mxu0 0.0
    %4913 = vmatprep.subr.mxu0 0.0
    %4914 = vmatpush2.msra.mxu0 0.0
    %4915 = vmatprep.subr.mxu0 0.0
    %4916 = vmatpush2.msra.mxu0 0.0
    %4917 = vmatprep.subr.mxu0 0.0
    %4918 = vmatpush2.msra.mxu0 0.0
    %4919 = vmatprep.subr.mxu0 0.0
    %4920 = vmatpush2.msra.mxu0 0.0
    %4921 = vmatprep.subr.mxu0 0.0
    %4922 = vmatpush2.msra.mxu0 0.0
    %4923 = vmatprep.mubr.f32.mxu0 0.0
    %4924 = vmatmul.mubr.f32.gmra.mxu0 %v4854
    %v4925 = vpop.f32.mrf.mxu0
    %v4926 = vadd.f32 %v4852, %v4925
    %v4927 = vpop.f32.mrf.mxu0
    %4928 = vmatprep.mubr.f32.mxu0 0.0
    %4929 = vmatmul.mubr.f32.gmra.mxu0 %v4857
    %v4930 = vpop.f32.mrf.mxu0
    %v4931 = vadd.f32 %v4852, %v4930
    %v4932 = vpop.f32.mrf.mxu0
    %4933 = vdwg.mxu0
    %v4934 = vmax.f32 %v4926, 0.0
    %v4935 = vmax.f32 %v4931, 0.0
    %v4936 = vld [vmem:[#allocation6 + $0x4e0] sm:$0xff]
    %v4937 = vld [vmem:[#allocation6 + $0x4e8] sm:$0xff]
    %v4938 = vld [vmem:[#allocation6 + $0x4f0] sm:$0xff]
    %v4939 = vld [vmem:[#allocation6 + $0x4f8] sm:$0xff]
    %v4940 = vld [vmem:[#allocation6 + $0x500] sm:$0x1]
    %v4941 = vlaneseq
    %v4942 = vshrl.u32 %v4941, 7
    %v4943 = vsub.s32 0, %v4942
    %v4944 = vrot.slane %v4940, %v4943
    %v4946 = vsel %vm300, %v4934, 0
    %v4949 = vsel %vm300, %v4935, 0
    %4951 = vmatprep.subr.mxu0 0.0
    %4952 = vmatpush1.msra.mxu0 0.0
    %4953 = vmatprep.subr.mxu0 0.0
    %4954 = vmatpush1.msra.mxu0 0.0
    %4955 = vmatprep.subr.mxu0 0.0
    %4956 = vmatpush1.msra.mxu0 0.0
    %4957 = vmatprep.subr.mxu0 0.0
    %4958 = vmatpush1.msra.mxu0 0.0
    %4959 = vmatprep.subr.mxu0 0.0
    %4960 = vmatpush1.msra.mxu0 0.0
    %4961 = vmatprep.subr.mxu0 0.0
    %4962 = vmatpush1.msra.mxu0 0.0
    %4963 = vmatprep.subr.mxu0 0.0
    %4964 = vmatpush1.msra.mxu0 0.0
    %4965 = vmatprep.subr.mxu0 0.0
    %4966 = vmatpush1.msra.mxu0 0.0
    %4967 = vmatprep.subr.mxu0 0.0
    %4968 = vmatpush1.msra.mxu0 0.0
    %4969 = vmatprep.subr.mxu0 0.0
    %4970 = vmatpush1.msra.mxu0 0.0
    %4971 = vmatprep.subr.mxu0 0.0
    %4972 = vmatpush1.msra.mxu0 0.0
    %4973 = vmatprep.subr.mxu0 0.0
    %4974 = vmatpush1.msra.mxu0 0.0
    %4975 = vmatprep.subr.mxu0 0.0
    %4976 = vmatpush1.msra.mxu0 %v4939
    %4977 = vmatprep.subr.mxu0 0.0
    %4978 = vmatpush1.msra.mxu0 %v4938
    %4979 = vmatprep.subr.mxu0 0.0
    %4980 = vmatpush1.msra.mxu0 %v4937
    %4981 = vmatprep.subr.mxu0 0.0
    %4982 = vmatpush1.msra.mxu0 %v4936
    %4983 = vmatprep.subr.mxu0 0.0
    %4984 = vmatpush2.msra.mxu0 0.0
    %4985 = vmatprep.subr.mxu0 0.0
    %4986 = vmatpush2.msra.mxu0 0.0
    %4987 = vmatprep.subr.mxu0 0.0
    %4988 = vmatpush2.msra.mxu0 0.0
    %4989 = vmatprep.subr.mxu0 0.0
    %4990 = vmatpush2.msra.mxu0 0.0
    %4991 = vmatprep.subr.mxu0 0.0
    %4992 = vmatpush2.msra.mxu0 0.0
    %4993 = vmatprep.subr.mxu0 0.0
    %4994 = vmatpush2.msra.mxu0 0.0
    %4995 = vmatprep.subr.mxu0 0.0
    %4996 = vmatpush2.msra.mxu0 0.0
    %4997 = vmatprep.subr.mxu0 0.0
    %4998 = vmatpush2.msra.mxu0 0.0
    %4999 = vmatprep.subr.mxu0 0.0
    %5000 = vmatpush2.msra.mxu0 0.0
    %5001 = vmatprep.subr.mxu0 0.0
    %5002 = vmatpush2.msra.mxu0 0.0
    %5003 = vmatprep.subr.mxu0 0.0
    %5004 = vmatpush2.msra.mxu0 0.0
    %5005 = vmatprep.subr.mxu0 0.0
    %5006 = vmatpush2.msra.mxu0 0.0
    %5007 = vmatprep.subr.mxu0 0.0
    %5008 = vmatpush2.msra.mxu0 0.0
    %5009 = vmatprep.subr.mxu0 0.0
    %5010 = vmatpush2.msra.mxu0 0.0
    %5011 = vmatprep.subr.mxu0 0.0
    %5012 = vmatpush2.msra.mxu0 0.0
    %5013 = vmatprep.subr.mxu0 0.0
    %5014 = vmatpush2.msra.mxu0 0.0
    %5015 = vmatprep.mubr.f32.mxu0 0.0
    %5016 = vmatmul.mubr.f32.gmra.mxu0 %v4946
    %v5017 = vpop.f32.mrf.mxu0
    %v5018 = vadd.f32 %v4944, %v5017
    %v5019 = vpop.f32.mrf.mxu0
    %5020 = vmatprep.mubr.f32.mxu0 0.0
    %5021 = vmatmul.mubr.f32.gmra.mxu0 %v4949
    %v5022 = vpop.f32.mrf.mxu0
    %v5023 = vadd.f32 %v4944, %v5022
    %v5024 = vpop.f32.mrf.mxu0
    %5025 = vdwg.mxu0
    %v5026 = vadd.f32 %v4842, %v5018
    %v5027 = vadd.f32 %v4843, %v5023
    %v5028 = vld [vmem:[#allocation6 + $0x508] sm:$0x1]
    %v5029 = vld [vmem:[#allocation6 + $0x510] sm:$0x1]
    %v5030 = vsel %vm300, %v5026, 0.0
    %5031 = vadd.xlane.f32.xlu0 %v5030
    %v5032 = vpop.xlane.xlu0 %5031
    %v5033 = vsel %vm300, %v5027, 0.0
    %5034 = vadd.xlane.f32.xlu0 %v5033
    %v5035 = vpop.xlane.xlu0 %5034
    %v5036 = vmul.f32 %v5032, %v2424
    %v5037 = vmul.f32 %v5035, %v2424
    %v5038 = vsub.f32 %v5026, %v5036
    %v5039 = vsub.f32 %v5027, %v5037
    %v5040 = vmul.f32 %v5038, %v5038
    %v5041 = vmul.f32 %v5039, %v5039
    %v5042 = vsel %vm300, %v5040, 0.0
    %5043 = vadd.xlane.f32.xlu0 %v5042
    %v5044 = vpop.xlane.xlu0 %5043
    %v5045 = vsel %vm300, %v5041, 0.0
    %5046 = vadd.xlane.f32.xlu0 %v5045
    %v5047 = vpop.xlane.xlu0 %5046
    %v5048 = vmul.f32 %v5044, %v2424
    %v5049 = vmul.f32 %v5047, %v2424
    %v5050 = vadd.f32 %v5048, 1e-05
    %v5051 = vadd.f32 %v5049, 1e-05
    %v5052 = vrsqrt.pop %v5050
    %v5053 = vrsqrt.pop %v5051
    %v5054 = vmul.f32 %v5038, %v5052
    %v5055 = vmul.f32 %v5039, %v5053
    %v5056 = vlaneseq
    %v5057 = vshrl.u32 %v5056, 7
    %v5058 = vsub.s32 0, %v5057
    %v5059 = vrot.slane %v5028, %v5058
    %v5060 = vmul.f32 %v5054, %v5059
    %v5061 = vmul.f32 %v5055, %v5059
    %v5062 = vlaneseq
    %v5063 = vshrl.u32 %v5062, 7
    %v5064 = vsub.s32 0, %v5063
    %v5065 = vrot.slane %v5029, %v5064
    %v5066 = vadd.f32 %v5060, %v5065
    %v5067 = vadd.f32 %v5061, %v5065
    %v5068 = vld [vmem:[#allocation6 + $0x518] sm:$0x1]
    %v5069 = vlaneseq
    %v5070 = vshrl.u32 %v5069, 7
    %v5071 = vsub.s32 0, %v5070
    %v5072 = vrot.slane %v5068, %v5071
    %v5073 = vld [vmem:[#allocation6 + $0x520] sm:$0xff]
    %v5074 = vld [vmem:[#allocation6 + $0x528] sm:$0xff]
    %v5075 = vld [vmem:[#allocation6 + $0x530] sm:$0xff]
    %v5076 = vld [vmem:[#allocation6 + $0x538] sm:$0xff]
    %v5077 = vld [vmem:[#allocation6 + $0x580] sm:$0x1]
    %v5078 = vlaneseq
    %v5079 = vshrl.u32 %v5078, 7
    %v5080 = vsub.s32 0, %v5079
    %v5081 = vrot.slane %v5077, %v5080
    %v5083 = vsel %vm300, %v5072, 0
    %5085 = vmatprep.subr.mxu0 0.0
    %5086 = vmatpush1.msra.mxu0 0.0
    %5087 = vmatprep.subr.mxu0 0.0
    %5088 = vmatpush1.msra.mxu0 0.0
    %5089 = vmatprep.subr.mxu0 0.0
    %5090 = vmatpush1.msra.mxu0 0.0
    %5091 = vmatprep.subr.mxu0 0.0
    %5092 = vmatpush1.msra.mxu0 0.0
    %5093 = vmatprep.subr.mxu0 0.0
    %5094 = vmatpush1.msra.mxu0 0.0
    %5095 = vmatprep.subr.mxu0 0.0
    %5096 = vmatpush1.msra.mxu0 0.0
    %5097 = vmatprep.subr.mxu0 0.0
    %5098 = vmatpush1.msra.mxu0 0.0
    %5099 = vmatprep.subr.mxu0 0.0
    %5100 = vmatpush1.msra.mxu0 0.0
    %5101 = vmatprep.subr.mxu0 0.0
    %5102 = vmatpush1.msra.mxu0 0.0
    %5103 = vmatprep.subr.mxu0 0.0
    %5104 = vmatpush1.msra.mxu0 0.0
    %5105 = vmatprep.subr.mxu0 0.0
    %5106 = vmatpush1.msra.mxu0 0.0
    %5107 = vmatprep.subr.mxu0 0.0
    %5108 = vmatpush1.msra.mxu0 0.0
    %5109 = vmatprep.subr.mxu0 0.0
    %5110 = vmatpush1.msra.mxu0 %v5076
    %5111 = vmatprep.subr.mxu0 0.0
    %5112 = vmatpush1.msra.mxu0 %v5075
    %5113 = vmatprep.subr.mxu0 0.0
    %5114 = vmatpush1.msra.mxu0 %v5074
    %5115 = vmatprep.subr.mxu0 0.0
    %5116 = vmatpush1.msra.mxu0 %v5073
    %5117 = vmatprep.subr.mxu0 0.0
    %5118 = vmatpush2.msra.mxu0 0.0
    %5119 = vmatprep.subr.mxu0 0.0
    %5120 = vmatpush2.msra.mxu0 0.0
    %5121 = vmatprep.subr.mxu0 0.0
    %5122 = vmatpush2.msra.mxu0 0.0
    %5123 = vmatprep.subr.mxu0 0.0
    %5124 = vmatpush2.msra.mxu0 0.0
    %5125 = vmatprep.subr.mxu0 0.0
    %5126 = vmatpush2.msra.mxu0 0.0
    %5127 = vmatprep.subr.mxu0 0.0
    %5128 = vmatpush2.msra.mxu0 0.0
    %5129 = vmatprep.subr.mxu0 0.0
    %5130 = vmatpush2.msra.mxu0 0.0
    %5131 = vmatprep.subr.mxu0 0.0
    %5132 = vmatpush2.msra.mxu0 0.0
    %5133 = vmatprep.subr.mxu0 0.0
    %5134 = vmatpush2.msra.mxu0 0.0
    %5135 = vmatprep.subr.mxu0 0.0
    %5136 = vmatpush2.msra.mxu0 0.0
    %5137 = vmatprep.subr.mxu0 0.0
    %5138 = vmatpush2.msra.mxu0 0.0
    %5139 = vmatprep.subr.mxu0 0.0
    %5140 = vmatpush2.msra.mxu0 0.0
    %5141 = vmatprep.subr.mxu0 0.0
    %5142 = vmatpush2.msra.mxu0 0.0
    %5143 = vmatprep.subr.mxu0 0.0
    %5144 = vmatpush2.msra.mxu0 0.0
    %5145 = vmatprep.subr.mxu0 0.0
    %5146 = vmatpush2.msra.mxu0 0.0
    %5147 = vmatprep.subr.mxu0 0.0
    %5148 = vmatpush2.msra.mxu0 0.0
    %5149 = vmatprep.mubr.f32.mxu0 0.0
    %5150 = vmatmul.mubr.f32.gmra.mxu0 %v5083
    %v5151 = vpop.f32.mrf.mxu0
    %v5152 = vadd.f32 %v5081, %v5151
    %v5153 = vpop.f32.mrf.mxu0
    %5154 = vdwg.mxu0
    %v5155 = vmul.f32 %v5152, 0.35355338
    %v5156 = vld [vmem:[#allocation6 + $0x540] sm:$0xff]
    %v5157 = vld [vmem:[#allocation6 + $0x548] sm:$0xff]
    %v5158 = vld [vmem:[#allocation6 + $0x550] sm:$0xff]
    %v5159 = vld [vmem:[#allocation6 + $0x558] sm:$0xff]
    %v5160 = vld [vmem:[#allocation6 + $0x588] sm:$0x1]
    %v5161 = vlaneseq
    %v5162 = vshrl.u32 %v5161, 7
    %v5163 = vsub.s32 0, %v5162
    %v5164 = vrot.slane %v5160, %v5163
    %v5166 = vsel %vm300, %v5066, 0
    %v5169 = vsel %vm300, %v5067, 0
    %5171 = vmatprep.subr.mxu0 0.0
    %5172 = vmatpush1.msra.mxu0 0.0
    %5173 = vmatprep.subr.mxu0 0.0
    %5174 = vmatpush1.msra.mxu0 0.0
    %5175 = vmatprep.subr.mxu0 0.0
    %5176 = vmatpush1.msra.mxu0 0.0
    %5177 = vmatprep.subr.mxu0 0.0
    %5178 = vmatpush1.msra.mxu0 0.0
    %5179 = vmatprep.subr.mxu0 0.0
    %5180 = vmatpush1.msra.mxu0 0.0
    %5181 = vmatprep.subr.mxu0 0.0
    %5182 = vmatpush1.msra.mxu0 0.0
    %5183 = vmatprep.subr.mxu0 0.0
    %5184 = vmatpush1.msra.mxu0 0.0
    %5185 = vmatprep.subr.mxu0 0.0
    %5186 = vmatpush1.msra.mxu0 0.0
    %5187 = vmatprep.subr.mxu0 0.0
    %5188 = vmatpush1.msra.mxu0 0.0
    %5189 = vmatprep.subr.mxu0 0.0
    %5190 = vmatpush1.msra.mxu0 0.0
    %5191 = vmatprep.subr.mxu0 0.0
    %5192 = vmatpush1.msra.mxu0 0.0
    %5193 = vmatprep.subr.mxu0 0.0
    %5194 = vmatpush1.msra.mxu0 0.0
    %5195 = vmatprep.subr.mxu0 0.0
    %5196 = vmatpush1.msra.mxu0 %v5159
    %5197 = vmatprep.subr.mxu0 0.0
    %5198 = vmatpush1.msra.mxu0 %v5158
    %5199 = vmatprep.subr.mxu0 0.0
    %5200 = vmatpush1.msra.mxu0 %v5157
    %5201 = vmatprep.subr.mxu0 0.0
    %5202 = vmatpush1.msra.mxu0 %v5156
    %5203 = vmatprep.subr.mxu0 0.0
    %5204 = vmatpush2.msra.mxu0 0.0
    %5205 = vmatprep.subr.mxu0 0.0
    %5206 = vmatpush2.msra.mxu0 0.0
    %5207 = vmatprep.subr.mxu0 0.0
    %5208 = vmatpush2.msra.mxu0 0.0
    %5209 = vmatprep.subr.mxu0 0.0
    %5210 = vmatpush2.msra.mxu0 0.0
    %5211 = vmatprep.subr.mxu0 0.0
    %5212 = vmatpush2.msra.mxu0 0.0
    %5213 = vmatprep.subr.mxu0 0.0
    %5214 = vmatpush2.msra.mxu0 0.0
    %5215 = vmatprep.subr.mxu0 0.0
    %5216 = vmatpush2.msra.mxu0 0.0
    %5217 = vmatprep.subr.mxu0 0.0
    %5218 = vmatpush2.msra.mxu0 0.0
    %5219 = vmatprep.subr.mxu0 0.0
    %5220 = vmatpush2.msra.mxu0 0.0
    %5221 = vmatprep.subr.mxu0 0.0
    %5222 = vmatpush2.msra.mxu0 0.0
    %5223 = vmatprep.subr.mxu0 0.0
    %5224 = vmatpush2.msra.mxu0 0.0
    %5225 = vmatprep.subr.mxu0 0.0
    %5226 = vmatpush2.msra.mxu0 0.0
    %5227 = vmatprep.subr.mxu0 0.0
    %5228 = vmatpush2.msra.mxu0 0.0
    %5229 = vmatprep.subr.mxu0 0.0
    %5230 = vmatpush2.msra.mxu0 0.0
    %5231 = vmatprep.subr.mxu0 0.0
    %5232 = vmatpush2.msra.mxu0 0.0
    %5233 = vmatprep.subr.mxu0 0.0
    %5234 = vmatpush2.msra.mxu0 0.0
    %5235 = vmatprep.mubr.f32.mxu0 0.0
    %5236 = vmatmul.mubr.f32.gmra.mxu0 %v5166
    %v5237 = vpop.f32.mrf.mxu0
    %v5238 = vadd.f32 %v5164, %v5237
    %v5239 = vpop.f32.mrf.mxu0
    %5240 = vmatprep.mubr.f32.mxu0 0.0
    %5241 = vmatmul.mubr.f32.gmra.mxu0 %v5169
    %v5242 = vpop.f32.mrf.mxu0
    %v5243 = vadd.f32 %v5164, %v5242
    %v5244 = vpop.f32.mrf.mxu0
    %5245 = vdwg.mxu0
    %v5246 = vld [vmem:[#allocation6 + $0x560] sm:$0xff]
    %v5247 = vld [vmem:[#allocation6 + $0x568] sm:$0xff]
    %v5248 = vld [vmem:[#allocation6 + $0x570] sm:$0xff]
    %v5249 = vld [vmem:[#allocation6 + $0x578] sm:$0xff]
    %v5250 = vld [vmem:[#allocation6 + $0x590] sm:$0x1]
    %v5251 = vlaneseq
    %v5252 = vshrl.u32 %v5251, 7
    %v5253 = vsub.s32 0, %v5252
    %v5254 = vrot.slane %v5250, %v5253
    %5255 = vmatprep.subr.mxu0 0.0
    %5256 = vmatpush1.msra.mxu0 0.0
    %5257 = vmatprep.subr.mxu0 0.0
    %5258 = vmatpush1.msra.mxu0 0.0
    %5259 = vmatprep.subr.mxu0 0.0
    %5260 = vmatpush1.msra.mxu0 0.0
    %5261 = vmatprep.subr.mxu0 0.0
    %5262 = vmatpush1.msra.mxu0 0.0
    %5263 = vmatprep.subr.mxu0 0.0
    %5264 = vmatpush1.msra.mxu0 0.0
    %5265 = vmatprep.subr.mxu0 0.0
    %5266 = vmatpush1.msra.mxu0 0.0
    %5267 = vmatprep.subr.mxu0 0.0
    %5268 = vmatpush1.msra.mxu0 0.0
    %5269 = vmatprep.subr.mxu0 0.0
    %5270 = vmatpush1.msra.mxu0 0.0
    %5271 = vmatprep.subr.mxu0 0.0
    %5272 = vmatpush1.msra.mxu0 0.0
    %5273 = vmatprep.subr.mxu0 0.0
    %5274 = vmatpush1.msra.mxu0 0.0
    %5275 = vmatprep.subr.mxu0 0.0
    %5276 = vmatpush1.msra.mxu0 0.0
    %5277 = vmatprep.subr.mxu0 0.0
    %5278 = vmatpush1.msra.mxu0 0.0
    %5279 = vmatprep.subr.mxu0 0.0
    %5280 = vmatpush1.msra.mxu0 %v5249
    %5281 = vmatprep.subr.mxu0 0.0
    %5282 = vmatpush1.msra.mxu0 %v5248
    %5283 = vmatprep.subr.mxu0 0.0
    %5284 = vmatpush1.msra.mxu0 %v5247
    %5285 = vmatprep.subr.mxu0 0.0
    %5286 = vmatpush1.msra.mxu0 %v5246
    %5287 = vmatprep.subr.mxu0 0.0
    %5288 = vmatpush2.msra.mxu0 0.0
    %5289 = vmatprep.subr.mxu0 0.0
    %5290 = vmatpush2.msra.mxu0 0.0
    %5291 = vmatprep.subr.mxu0 0.0
    %5292 = vmatpush2.msra.mxu0 0.0
    %5293 = vmatprep.subr.mxu0 0.0
    %5294 = vmatpush2.msra.mxu0 0.0
    %5295 = vmatprep.subr.mxu0 0.0
    %5296 = vmatpush2.msra.mxu0 0.0
    %5297 = vmatprep.subr.mxu0 0.0
    %5298 = vmatpush2.msra.mxu0 0.0
    %5299 = vmatprep.subr.mxu0 0.0
    %5300 = vmatpush2.msra.mxu0 0.0
    %5301 = vmatprep.subr.mxu0 0.0
    %5302 = vmatpush2.msra.mxu0 0.0
    %5303 = vmatprep.subr.mxu0 0.0
    %5304 = vmatpush2.msra.mxu0 0.0
    %5305 = vmatprep.subr.mxu0 0.0
    %5306 = vmatpush2.msra.mxu0 0.0
    %5307 = vmatprep.subr.mxu0 0.0
    %5308 = vmatpush2.msra.mxu0 0.0
    %5309 = vmatprep.subr.mxu0 0.0
    %5310 = vmatpush2.msra.mxu0 0.0
    %5311 = vmatprep.subr.mxu0 0.0
    %5312 = vmatpush2.msra.mxu0 0.0
    %5313 = vmatprep.subr.mxu0 0.0
    %5314 = vmatpush2.msra.mxu0 0.0
    %5315 = vmatprep.subr.mxu0 0.0
    %5316 = vmatpush2.msra.mxu0 0.0
    %5317 = vmatprep.subr.mxu0 0.0
    %5318 = vmatpush2.msra.mxu0 0.0
    %5319 = vmatprep.mubr.f32.mxu0 0.0
    %5320 = vmatmul.mubr.f32.gmra.mxu0 %v5166
    %v5321 = vpop.f32.mrf.mxu0
    %v5322 = vadd.f32 %v5254, %v5321
    %v5323 = vpop.f32.mrf.mxu0
    %5324 = vmatprep.mubr.f32.mxu0 0.0
    %5325 = vmatmul.mubr.f32.gmra.mxu0 %v5169
    %v5326 = vpop.f32.mrf.mxu0
    %v5327 = vadd.f32 %v5254, %v5326
    %v5328 = vpop.f32.mrf.mxu0
    %5329 = vdwg.mxu0
    %v5331 = vsel %vm552, %v5155, 0
    %v5334 = vsel %vm552, %v5238, 0
    %v5337 = vsel %vm552, %v5243, 0
    %5339 = vmatprep.subr.mxu0 0.0
    %5340 = vmatpush1.xpose.msra.mxu0 0.0
    %5341 = vmatprep.subr.mxu0 0.0
    %5342 = vmatpush1.xpose.msra.mxu0 0.0
    %5343 = vmatprep.subr.mxu0 0.0
    %5344 = vmatpush1.xpose.msra.mxu0 0.0
    %5345 = vmatprep.subr.mxu0 0.0
    %5346 = vmatpush1.xpose.msra.mxu0 0.0
    %5347 = vmatprep.subr.mxu0 0.0
    %5348 = vmatpush1.xpose.msra.mxu0 0.0
    %5349 = vmatprep.subr.mxu0 0.0
    %5350 = vmatpush1.xpose.msra.mxu0 0.0
    %5351 = vmatprep.subr.mxu0 0.0
    %5352 = vmatpush1.xpose.msra.mxu0 0.0
    %5353 = vmatprep.subr.mxu0 0.0
    %5354 = vmatpush1.xpose.msra.mxu0 0.0
    %5355 = vmatprep.subr.mxu0 0.0
    %5356 = vmatpush1.xpose.msra.mxu0 0.0
    %5357 = vmatprep.subr.mxu0 0.0
    %5358 = vmatpush1.xpose.msra.mxu0 0.0
    %5359 = vmatprep.subr.mxu0 0.0
    %5360 = vmatpush1.xpose.msra.mxu0 0.0
    %5361 = vmatprep.subr.mxu0 0.0
    %5362 = vmatpush1.xpose.msra.mxu0 0.0
    %5363 = vmatprep.subr.mxu0 0.0
    %5364 = vmatpush1.xpose.msra.mxu0 0.0
    %5365 = vmatprep.subr.mxu0 0.0
    %5366 = vmatpush1.xpose.msra.mxu0 0.0
    %5367 = vmatprep.subr.mxu0 0.0
    %5368 = vmatpush1.xpose.msra.mxu0 %v5337
    %5369 = vmatprep.subr.mxu0 0.0
    %5370 = vmatpush1.xpose.msra.mxu0 %v5334
    %5371 = vmatprep.subr.mxu0 0.0
    %5372 = vmatpush2.xpose.msra.mxu0 0.0
    %5373 = vmatprep.subr.mxu0 0.0
    %5374 = vmatpush2.xpose.msra.mxu0 0.0
    %5375 = vmatprep.subr.mxu0 0.0
    %5376 = vmatpush2.xpose.msra.mxu0 0.0
    %5377 = vmatprep.subr.mxu0 0.0
    %5378 = vmatpush2.xpose.msra.mxu0 0.0
    %5379 = vmatprep.subr.mxu0 0.0
    %5380 = vmatpush2.xpose.msra.mxu0 0.0
    %5381 = vmatprep.subr.mxu0 0.0
    %5382 = vmatpush2.xpose.msra.mxu0 0.0
    %5383 = vmatprep.subr.mxu0 0.0
    %5384 = vmatpush2.xpose.msra.mxu0 0.0
    %5385 = vmatprep.subr.mxu0 0.0
    %5386 = vmatpush2.xpose.msra.mxu0 0.0
    %5387 = vmatprep.subr.mxu0 0.0
    %5388 = vmatpush2.xpose.msra.mxu0 0.0
    %5389 = vmatprep.subr.mxu0 0.0
    %5390 = vmatpush2.xpose.msra.mxu0 0.0
    %5391 = vmatprep.subr.mxu0 0.0
    %5392 = vmatpush2.xpose.msra.mxu0 0.0
    %5393 = vmatprep.subr.mxu0 0.0
    %5394 = vmatpush2.xpose.msra.mxu0 0.0
    %5395 = vmatprep.subr.mxu0 0.0
    %5396 = vmatpush2.xpose.msra.mxu0 0.0
    %5397 = vmatprep.subr.mxu0 0.0
    %5398 = vmatpush2.xpose.msra.mxu0 0.0
    %5399 = vmatprep.subr.mxu0 0.0
    %5400 = vmatpush2.xpose.msra.mxu0 0.0
    %5401 = vmatprep.subr.mxu0 0.0
    %5402 = vmatpush2.xpose.msra.mxu0 0.0
    %5403 = vmatprep.mubr.f32.mxu0 0.0
    %5404 = vmatmul.mubr.f32.gmra.mxu0 %v5331
    %v5405 = vpop.f32.mrf.mxu0
    %v5406 = vadd.f32 %v290, %v5405
    %v5407 = vpop.f32.mrf.mxu0
    %5408 = vdwg.mxu0
    %vm5409 = vcmask 123904
    %v5410 = vsel %vm5409, %v5406, -inf
    %5411 = vmax.xlane.f32.xlu0 %v5410
    %v5412 = vpop.xlane.xlu0 %5411
    %v5413 = vsub.f32 %v5406, %v5412
    %v5414 = vmul.f32 %v5413, 1.442695
    %v5415 = vpow.pop %v5414
    %v5416 = vsel %vm5409, %v5415, 0.0
    %5417 = vadd.xlane.f32.xlu0 %v5416
    %v5418 = vpop.xlane.xlu0 %5417
    %v5419 = vrcp.pop %v5418
    %v5420 = vmul.f32 %v5415, %v5419
    %v5422 = vsel %vm214, %v5420, 0
    %5424 = vmatprep.subr.mxu0 0.0
    %5425 = vmatpush1.msra.mxu0 0.0
    %5426 = vmatprep.subr.mxu0 0.0
    %5427 = vmatpush1.msra.mxu0 0.0
    %5428 = vmatprep.subr.mxu0 0.0
    %5429 = vmatpush1.msra.mxu0 0.0
    %5430 = vmatprep.subr.mxu0 0.0
    %5431 = vmatpush1.msra.mxu0 0.0
    %5432 = vmatprep.subr.mxu0 0.0
    %5433 = vmatpush1.msra.mxu0 0.0
    %5434 = vmatprep.subr.mxu0 0.0
    %5435 = vmatpush1.msra.mxu0 0.0
    %5436 = vmatprep.subr.mxu0 0.0
    %5437 = vmatpush1.msra.mxu0 0.0
    %5438 = vmatprep.subr.mxu0 0.0
    %5439 = vmatpush1.msra.mxu0 0.0
    %5440 = vmatprep.subr.mxu0 0.0
    %5441 = vmatpush1.msra.mxu0 0.0
    %5442 = vmatprep.subr.mxu0 0.0
    %5443 = vmatpush1.msra.mxu0 0.0
    %5444 = vmatprep.subr.mxu0 0.0
    %5445 = vmatpush1.msra.mxu0 0.0
    %5446 = vmatprep.subr.mxu0 0.0
    %5447 = vmatpush1.msra.mxu0 0.0
    %5448 = vmatprep.subr.mxu0 0.0
    %5449 = vmatpush1.msra.mxu0 0.0
    %5450 = vmatprep.subr.mxu0 0.0
    %5451 = vmatpush1.msra.mxu0 0.0
    %5452 = vmatprep.subr.mxu0 0.0
    %5453 = vmatpush1.msra.mxu0 %v5327
    %5454 = vmatprep.subr.mxu0 0.0
    %5455 = vmatpush1.msra.mxu0 %v5322
    %5456 = vmatprep.subr.mxu0 0.0
    %5457 = vmatpush2.msra.mxu0 0.0
    %5458 = vmatprep.subr.mxu0 0.0
    %5459 = vmatpush2.msra.mxu0 0.0
    %5460 = vmatprep.subr.mxu0 0.0
    %5461 = vmatpush2.msra.mxu0 0.0
    %5462 = vmatprep.subr.mxu0 0.0
    %5463 = vmatpush2.msra.mxu0 0.0
    %5464 = vmatprep.subr.mxu0 0.0
    %5465 = vmatpush2.msra.mxu0 0.0
    %5466 = vmatprep.subr.mxu0 0.0
    %5467 = vmatpush2.msra.mxu0 0.0
    %5468 = vmatprep.subr.mxu0 0.0
    %5469 = vmatpush2.msra.mxu0 0.0
    %5470 = vmatprep.subr.mxu0 0.0
    %5471 = vmatpush2.msra.mxu0 0.0
    %5472 = vmatprep.subr.mxu0 0.0
    %5473 = vmatpush2.msra.mxu0 0.0
    %5474 = vmatprep.subr.mxu0 0.0
    %5475 = vmatpush2.msra.mxu0 0.0
    %5476 = vmatprep.subr.mxu0 0.0
    %5477 = vmatpush2.msra.mxu0 0.0
    %5478 = vmatprep.subr.mxu0 0.0
    %5479 = vmatpush2.msra.mxu0 0.0
    %5480 = vmatprep.subr.mxu0 0.0
    %5481 = vmatpush2.msra.mxu0 0.0
    %5482 = vmatprep.subr.mxu0 0.0
    %5483 = vmatpush2.msra.mxu0 0.0
    %5484 = vmatprep.subr.mxu0 0.0
    %5485 = vmatpush2.msra.mxu0 0.0
    %5486 = vmatprep.subr.mxu0 0.0
    %5487 = vmatpush2.msra.mxu0 0.0
    %5488 = vmatprep.mubr.f32.mxu0 0.0
    %5489 = vmatmul.mubr.f32.gmra.mxu0 %v5422
    %v5490 = vpop.f32.mrf.mxu0
    %v5491 = vadd.f32 0.0, %v5490
    %v5492 = vpop.f32.mrf.mxu0
    %5493 = vdwg.mxu0
    %v5494 = vld [vmem:[#allocation6 + $0x598] sm:$0xff]
    %v5495 = vld [vmem:[#allocation6 + $0x5a0] sm:$0xff]
    %v5496 = vld [vmem:[#allocation6 + $0x5a8] sm:$0xff]
    %v5497 = vld [vmem:[#allocation6 + $0x5b0] sm:$0xff]
    %v5498 = vld [vmem:[#allocation6 + $0x5b8] sm:$0xff]
    %v5499 = vld [vmem:[#allocation6 + $0x600] sm:$0x1]
    %v5500 = vlaneseq
    %v5501 = vshrl.u32 %v5500, 7
    %v5502 = vsub.s32 0, %v5501
    %v5503 = vrot.slane %v5499, %v5502
    %5504 = vmatprep.subr.mxu0 0.0
    %5505 = vmatpush1.msra.mxu0 0.0
    %5506 = vmatprep.subr.mxu0 0.0
    %5507 = vmatpush1.msra.mxu0 0.0
    %5508 = vmatprep.subr.mxu0 0.0
    %5509 = vmatpush1.msra.mxu0 0.0
    %5510 = vmatprep.subr.mxu0 0.0
    %5511 = vmatpush1.msra.mxu0 0.0
    %5512 = vmatprep.subr.mxu0 0.0
    %5513 = vmatpush1.msra.mxu0 0.0
    %5514 = vmatprep.subr.mxu0 0.0
    %5515 = vmatpush1.msra.mxu0 0.0
    %5516 = vmatprep.subr.mxu0 0.0
    %5517 = vmatpush1.msra.mxu0 0.0
    %5518 = vmatprep.subr.mxu0 0.0
    %5519 = vmatpush1.msra.mxu0 0.0
    %5520 = vmatprep.subr.mxu0 0.0
    %5521 = vmatpush1.msra.mxu0 0.0
    %5522 = vmatprep.subr.mxu0 0.0
    %5523 = vmatpush1.msra.mxu0 0.0
    %5524 = vmatprep.subr.mxu0 0.0
    %5525 = vmatpush1.msra.mxu0 0.0
    %5526 = vmatprep.subr.mxu0 0.0
    %5527 = vmatpush1.msra.mxu0 0.0
    %5528 = vmatprep.subr.mxu0 0.0
    %5529 = vmatpush1.msra.mxu0 %v5498
    %5530 = vmatprep.subr.mxu0 0.0
    %5531 = vmatpush1.msra.mxu0 %v5497
    %5532 = vmatprep.subr.mxu0 0.0
    %5533 = vmatpush1.msra.mxu0 %v5496
    %5534 = vmatprep.subr.mxu0 0.0
    %5535 = vmatpush1.msra.mxu0 %v5495
    %5536 = vmatprep.subr.mxu0 0.0
    %5537 = vmatpush2.msra.mxu0 0.0
    %5538 = vmatprep.subr.mxu0 0.0
    %5539 = vmatpush2.msra.mxu0 0.0
    %5540 = vmatprep.subr.mxu0 0.0
    %5541 = vmatpush2.msra.mxu0 0.0
    %5542 = vmatprep.subr.mxu0 0.0
    %5543 = vmatpush2.msra.mxu0 0.0
    %5544 = vmatprep.subr.mxu0 0.0
    %5545 = vmatpush2.msra.mxu0 0.0
    %5546 = vmatprep.subr.mxu0 0.0
    %5547 = vmatpush2.msra.mxu0 0.0
    %5548 = vmatprep.subr.mxu0 0.0
    %5549 = vmatpush2.msra.mxu0 0.0
    %5550 = vmatprep.subr.mxu0 0.0
    %5551 = vmatpush2.msra.mxu0 0.0
    %5552 = vmatprep.subr.mxu0 0.0
    %5553 = vmatpush2.msra.mxu0 0.0
    %5554 = vmatprep.subr.mxu0 0.0
    %5555 = vmatpush2.msra.mxu0 0.0
    %5556 = vmatprep.subr.mxu0 0.0
    %5557 = vmatpush2.msra.mxu0 0.0
    %5558 = vmatprep.subr.mxu0 0.0
    %5559 = vmatpush2.msra.mxu0 0.0
    %5560 = vmatprep.subr.mxu0 0.0
    %5561 = vmatpush2.msra.mxu0 0.0
    %5562 = vmatprep.subr.mxu0 0.0
    %5563 = vmatpush2.msra.mxu0 0.0
    %5564 = vmatprep.subr.mxu0 0.0
    %5565 = vmatpush2.msra.mxu0 0.0
    %5566 = vmatprep.subr.mxu0 0.0
    %5567 = vmatpush2.msra.mxu0 0.0
    %5568 = vmatprep.mubr.f32.mxu0 0.0
    %5569 = vmatmul.mubr.f32.gmra.mxu0 %v5083
    %v5570 = vpop.f32.mrf.mxu0
    %v5571 = vadd.f32 %v5503, %v5570
    %v5572 = vpop.f32.mrf.mxu0
    %5573 = vdwg.mxu0
    %v5574 = vmul.f32 %v5571, 0.35355338
    %v5575 = vld [vmem:[#allocation6 + $0x5c0] sm:$0xff]
    %v5576 = vld [vmem:[#allocation6 + $0x5c8] sm:$0xff]
    %v5577 = vld [vmem:[#allocation6 + $0x5d0] sm:$0xff]
    %v5578 = vld [vmem:[#allocation6 + $0x5d8] sm:$0xff]
    %v5579 = vld [vmem:[#allocation6 + $0x608] sm:$0x1]
    %v5580 = vlaneseq
    %v5581 = vshrl.u32 %v5580, 7
    %v5582 = vsub.s32 0, %v5581
    %v5583 = vrot.slane %v5579, %v5582
    %5584 = vmatprep.subr.mxu0 0.0
    %5585 = vmatpush1.msra.mxu0 0.0
    %5586 = vmatprep.subr.mxu0 0.0
    %5587 = vmatpush1.msra.mxu0 0.0
    %5588 = vmatprep.subr.mxu0 0.0
    %5589 = vmatpush1.msra.mxu0 0.0
    %5590 = vmatprep.subr.mxu0 0.0
    %5591 = vmatpush1.msra.mxu0 0.0
    %5592 = vmatprep.subr.mxu0 0.0
    %5593 = vmatpush1.msra.mxu0 0.0
    %5594 = vmatprep.subr.mxu0 0.0
    %5595 = vmatpush1.msra.mxu0 0.0
    %5596 = vmatprep.subr.mxu0 0.0
    %5597 = vmatpush1.msra.mxu0 0.0
    %5598 = vmatprep.subr.mxu0 0.0
    %5599 = vmatpush1.msra.mxu0 0.0
    %5600 = vmatprep.subr.mxu0 0.0
    %5601 = vmatpush1.msra.mxu0 0.0
    %5602 = vmatprep.subr.mxu0 0.0
    %5603 = vmatpush1.msra.mxu0 0.0
    %5604 = vmatprep.subr.mxu0 0.0
    %5605 = vmatpush1.msra.mxu0 0.0
    %5606 = vmatprep.subr.mxu0 0.0
    %5607 = vmatpush1.msra.mxu0 0.0
    %5608 = vmatprep.subr.mxu0 0.0
    %5609 = vmatpush1.msra.mxu0 %v5578
    %5610 = vmatprep.subr.mxu0 0.0
    %5611 = vmatpush1.msra.mxu0 %v5577
    %5612 = vmatprep.subr.mxu0 0.0
    %5613 = vmatpush1.msra.mxu0 %v5576
    %5614 = vmatprep.subr.mxu0 0.0
    %5615 = vmatpush1.msra.mxu0 %v5575
    %5616 = vmatprep.subr.mxu0 0.0
    %5617 = vmatpush2.msra.mxu0 0.0
    %5618 = vmatprep.subr.mxu0 0.0
    %5619 = vmatpush2.msra.mxu0 0.0
    %5620 = vmatprep.subr.mxu0 0.0
    %5621 = vmatpush2.msra.mxu0 0.0
    %5622 = vmatprep.subr.mxu0 0.0
    %5623 = vmatpush2.msra.mxu0 0.0
    %5624 = vmatprep.subr.mxu0 0.0
    %5625 = vmatpush2.msra.mxu0 0.0
    %5626 = vmatprep.subr.mxu0 0.0
    %5627 = vmatpush2.msra.mxu0 0.0
    %5628 = vmatprep.subr.mxu0 0.0
    %5629 = vmatpush2.msra.mxu0 0.0
    %5630 = vmatprep.subr.mxu0 0.0
    %5631 = vmatpush2.msra.mxu0 0.0
    %5632 = vmatprep.subr.mxu0 0.0
    %5633 = vmatpush2.msra.mxu0 0.0
    %5634 = vmatprep.subr.mxu0 0.0
    %5635 = vmatpush2.msra.mxu0 0.0
    %5636 = vmatprep.subr.mxu0 0.0
    %5637 = vmatpush2.msra.mxu0 0.0
    %5638 = vmatprep.subr.mxu0 0.0
    %5639 = vmatpush2.msra.mxu0 0.0
    %5640 = vmatprep.subr.mxu0 0.0
    %5641 = vmatpush2.msra.mxu0 0.0
    %5642 = vmatprep.subr.mxu0 0.0
    %5643 = vmatpush2.msra.mxu0 0.0
    %5644 = vmatprep.subr.mxu0 0.0
    %5645 = vmatpush2.msra.mxu0 0.0
    %5646 = vmatprep.subr.mxu0 0.0
    %5647 = vmatpush2.msra.mxu0 0.0
    %5648 = vmatprep.mubr.f32.mxu0 0.0
    %5649 = vmatmul.mubr.f32.gmra.mxu0 %v5166
    %v5650 = vpop.f32.mrf.mxu0
    %v5651 = vadd.f32 %v5583, %v5650
    %v5652 = vpop.f32.mrf.mxu0
    %5653 = vmatprep.mubr.f32.mxu0 0.0
    %5654 = vmatmul.mubr.f32.gmra.mxu0 %v5169
    %v5655 = vpop.f32.mrf.mxu0
    %v5656 = vadd.f32 %v5583, %v5655
    %v5657 = vpop.f32.mrf.mxu0
    %5658 = vdwg.mxu0
    %v5659 = vld [vmem:[#allocation6 + $0x5e0] sm:$0xff]
    %v5660 = vld [vmem:[#allocation6 + $0x5e8] sm:$0xff]
    %v5661 = vld [vmem:[#allocation6 + $0x5f0] sm:$0xff]
    %v5662 = vld [vmem:[#allocation6 + $0x5f8] sm:$0xff]
    %v5663 = vld [vmem:[#allocation6 + $0x610] sm:$0x1]
    %v5664 = vlaneseq
    %v5665 = vshrl.u32 %v5664, 7
    %v5666 = vsub.s32 0, %v5665
    %v5667 = vrot.slane %v5663, %v5666
    %5668 = vmatprep.subr.mxu0 0.0
    %5669 = vmatpush1.msra.mxu0 0.0
    %5670 = vmatprep.subr.mxu0 0.0
    %5671 = vmatpush1.msra.mxu0 0.0
    %5672 = vmatprep.subr.mxu0 0.0
    %5673 = vmatpush1.msra.mxu0 0.0
    %5674 = vmatprep.subr.mxu0 0.0
    %5675 = vmatpush1.msra.mxu0 0.0
    %5676 = vmatprep.subr.mxu0 0.0
    %5677 = vmatpush1.msra.mxu0 0.0
    %5678 = vmatprep.subr.mxu0 0.0
    %5679 = vmatpush1.msra.mxu0 0.0
    %5680 = vmatprep.subr.mxu0 0.0
    %5681 = vmatpush1.msra.mxu0 0.0
    %5682 = vmatprep.subr.mxu0 0.0
    %5683 = vmatpush1.msra.mxu0 0.0
    %5684 = vmatprep.subr.mxu0 0.0
    %5685 = vmatpush1.msra.mxu0 0.0
    %5686 = vmatprep.subr.mxu0 0.0
    %5687 = vmatpush1.msra.mxu0 0.0
    %5688 = vmatprep.subr.mxu0 0.0
    %5689 = vmatpush1.msra.mxu0 0.0
    %5690 = vmatprep.subr.mxu0 0.0
    %5691 = vmatpush1.msra.mxu0 0.0
    %5692 = vmatprep.subr.mxu0 0.0
    %5693 = vmatpush1.msra.mxu0 %v5662
    %5694 = vmatprep.subr.mxu0 0.0
    %5695 = vmatpush1.msra.mxu0 %v5661
    %5696 = vmatprep.subr.mxu0 0.0
    %5697 = vmatpush1.msra.mxu0 %v5660
    %5698 = vmatprep.subr.mxu0 0.0
    %5699 = vmatpush1.msra.mxu0 %v5659
    %5700 = vmatprep.subr.mxu0 0.0
    %5701 = vmatpush2.msra.mxu0 0.0
    %5702 = vmatprep.subr.mxu0 0.0
    %5703 = vmatpush2.msra.mxu0 0.0
    %5704 = vmatprep.subr.mxu0 0.0
    %5705 = vmatpush2.msra.mxu0 0.0
    %5706 = vmatprep.subr.mxu0 0.0
    %5707 = vmatpush2.msra.mxu0 0.0
    %5708 = vmatprep.subr.mxu0 0.0
    %5709 = vmatpush2.msra.mxu0 0.0
    %5710 = vmatprep.subr.mxu0 0.0
    %5711 = vmatpush2.msra.mxu0 0.0
    %5712 = vmatprep.subr.mxu0 0.0
    %5713 = vmatpush2.msra.mxu0 0.0
    %5714 = vmatprep.subr.mxu0 0.0
    %5715 = vmatpush2.msra.mxu0 0.0
    %5716 = vmatprep.subr.mxu0 0.0
    %5717 = vmatpush2.msra.mxu0 0.0
    %5718 = vmatprep.subr.mxu0 0.0
    %5719 = vmatpush2.msra.mxu0 0.0
    %5720 = vmatprep.subr.mxu0 0.0
    %5721 = vmatpush2.msra.mxu0 0.0
    %5722 = vmatprep.subr.mxu0 0.0
    %5723 = vmatpush2.msra.mxu0 0.0
    %5724 = vmatprep.subr.mxu0 0.0
    %5725 = vmatpush2.msra.mxu0 0.0
    %5726 = vmatprep.subr.mxu0 0.0
    %5727 = vmatpush2.msra.mxu0 0.0
    %5728 = vmatprep.subr.mxu0 0.0
    %5729 = vmatpush2.msra.mxu0 0.0
    %5730 = vmatprep.subr.mxu0 0.0
    %5731 = vmatpush2.msra.mxu0 0.0
    %5732 = vmatprep.mubr.f32.mxu0 0.0
    %5733 = vmatmul.mubr.f32.gmra.mxu0 %v5166
    %v5734 = vpop.f32.mrf.mxu0
    %v5735 = vadd.f32 %v5667, %v5734
    %v5736 = vpop.f32.mrf.mxu0
    %5737 = vmatprep.mubr.f32.mxu0 0.0
    %5738 = vmatmul.mubr.f32.gmra.mxu0 %v5169
    %v5739 = vpop.f32.mrf.mxu0
    %v5740 = vadd.f32 %v5667, %v5739
    %v5741 = vpop.f32.mrf.mxu0
    %5742 = vdwg.mxu0
    %v5744 = vsel %vm552, %v5574, 0
    %v5747 = vsel %vm552, %v5651, 0
    %v5750 = vsel %vm552, %v5656, 0
    %5752 = vmatprep.subr.mxu0 0.0
    %5753 = vmatpush1.xpose.msra.mxu0 0.0
    %5754 = vmatprep.subr.mxu0 0.0
    %5755 = vmatpush1.xpose.msra.mxu0 0.0
    %5756 = vmatprep.subr.mxu0 0.0
    %5757 = vmatpush1.xpose.msra.mxu0 0.0
    %5758 = vmatprep.subr.mxu0 0.0
    %5759 = vmatpush1.xpose.msra.mxu0 0.0
    %5760 = vmatprep.subr.mxu0 0.0
    %5761 = vmatpush1.xpose.msra.mxu0 0.0
    %5762 = vmatprep.subr.mxu0 0.0
    %5763 = vmatpush1.xpose.msra.mxu0 0.0
    %5764 = vmatprep.subr.mxu0 0.0
    %5765 = vmatpush1.xpose.msra.mxu0 0.0
    %5766 = vmatprep.subr.mxu0 0.0
    %5767 = vmatpush1.xpose.msra.mxu0 0.0
    %5768 = vmatprep.subr.mxu0 0.0
    %5769 = vmatpush1.xpose.msra.mxu0 0.0
    %5770 = vmatprep.subr.mxu0 0.0
    %5771 = vmatpush1.xpose.msra.mxu0 0.0
    %5772 = vmatprep.subr.mxu0 0.0
    %5773 = vmatpush1.xpose.msra.mxu0 0.0
    %5774 = vmatprep.subr.mxu0 0.0
    %5775 = vmatpush1.xpose.msra.mxu0 0.0
    %5776 = vmatprep.subr.mxu0 0.0
    %5777 = vmatpush1.xpose.msra.mxu0 0.0
    %5778 = vmatprep.subr.mxu0 0.0
    %5779 = vmatpush1.xpose.msra.mxu0 0.0
    %5780 = vmatprep.subr.mxu0 0.0
    %5781 = vmatpush1.xpose.msra.mxu0 %v5750
    %5782 = vmatprep.subr.mxu0 0.0
    %5783 = vmatpush1.xpose.msra.mxu0 %v5747
    %5784 = vmatprep.subr.mxu0 0.0
    %5785 = vmatpush2.xpose.msra.mxu0 0.0
    %5786 = vmatprep.subr.mxu0 0.0
    %5787 = vmatpush2.xpose.msra.mxu0 0.0
    %5788 = vmatprep.subr.mxu0 0.0
    %5789 = vmatpush2.xpose.msra.mxu0 0.0
    %5790 = vmatprep.subr.mxu0 0.0
    %5791 = vmatpush2.xpose.msra.mxu0 0.0
    %5792 = vmatprep.subr.mxu0 0.0
    %5793 = vmatpush2.xpose.msra.mxu0 0.0
    %5794 = vmatprep.subr.mxu0 0.0
    %5795 = vmatpush2.xpose.msra.mxu0 0.0
    %5796 = vmatprep.subr.mxu0 0.0
    %5797 = vmatpush2.xpose.msra.mxu0 0.0
    %5798 = vmatprep.subr.mxu0 0.0
    %5799 = vmatpush2.xpose.msra.mxu0 0.0
    %5800 = vmatprep.subr.mxu0 0.0
    %5801 = vmatpush2.xpose.msra.mxu0 0.0
    %5802 = vmatprep.subr.mxu0 0.0
    %5803 = vmatpush2.xpose.msra.mxu0 0.0
    %5804 = vmatprep.subr.mxu0 0.0
    %5805 = vmatpush2.xpose.msra.mxu0 0.0
    %5806 = vmatprep.subr.mxu0 0.0
    %5807 = vmatpush2.xpose.msra.mxu0 0.0
    %5808 = vmatprep.subr.mxu0 0.0
    %5809 = vmatpush2.xpose.msra.mxu0 0.0
    %5810 = vmatprep.subr.mxu0 0.0
    %5811 = vmatpush2.xpose.msra.mxu0 0.0
    %5812 = vmatprep.subr.mxu0 0.0
    %5813 = vmatpush2.xpose.msra.mxu0 0.0
    %5814 = vmatprep.subr.mxu0 0.0
    %5815 = vmatpush2.xpose.msra.mxu0 0.0
    %5816 = vmatprep.mubr.f32.mxu0 0.0
    %5817 = vmatmul.mubr.f32.gmra.mxu0 %v5744
    %v5818 = vpop.f32.mrf.mxu0
    %v5819 = vadd.f32 %v290, %v5818
    %v5820 = vpop.f32.mrf.mxu0
    %5821 = vdwg.mxu0
    %v5822 = vsel %vm5409, %v5819, -inf
    %5823 = vmax.xlane.f32.xlu0 %v5822
    %v5824 = vpop.xlane.xlu0 %5823
    %v5825 = vsub.f32 %v5819, %v5824
    %v5826 = vmul.f32 %v5825, 1.442695
    %v5827 = vpow.pop %v5826
    %v5828 = vsel %vm5409, %v5827, 0.0
    %5829 = vadd.xlane.f32.xlu0 %v5828
    %v5830 = vpop.xlane.xlu0 %5829
    %v5831 = vrcp.pop %v5830
    %v5832 = vmul.f32 %v5827, %v5831
    %v5834 = vsel %vm214, %v5832, 0
    %5836 = vmatprep.subr.mxu0 0.0
    %5837 = vmatpush1.msra.mxu0 0.0
    %5838 = vmatprep.subr.mxu0 0.0
    %5839 = vmatpush1.msra.mxu0 0.0
    %5840 = vmatprep.subr.mxu0 0.0
    %5841 = vmatpush1.msra.mxu0 0.0
    %5842 = vmatprep.subr.mxu0 0.0
    %5843 = vmatpush1.msra.mxu0 0.0
    %5844 = vmatprep.subr.mxu0 0.0
    %5845 = vmatpush1.msra.mxu0 0.0
    %5846 = vmatprep.subr.mxu0 0.0
    %5847 = vmatpush1.msra.mxu0 0.0
    %5848 = vmatprep.subr.mxu0 0.0
    %5849 = vmatpush1.msra.mxu0 0.0
    %5850 = vmatprep.subr.mxu0 0.0
    %5851 = vmatpush1.msra.mxu0 0.0
    %5852 = vmatprep.subr.mxu0 0.0
    %5853 = vmatpush1.msra.mxu0 0.0
    %5854 = vmatprep.subr.mxu0 0.0
    %5855 = vmatpush1.msra.mxu0 0.0
    %5856 = vmatprep.subr.mxu0 0.0
    %5857 = vmatpush1.msra.mxu0 0.0
    %5858 = vmatprep.subr.mxu0 0.0
    %5859 = vmatpush1.msra.mxu0 0.0
    %5860 = vmatprep.subr.mxu0 0.0
    %5861 = vmatpush1.msra.mxu0 0.0
    %5862 = vmatprep.subr.mxu0 0.0
    %5863 = vmatpush1.msra.mxu0 0.0
    %5864 = vmatprep.subr.mxu0 0.0
    %5865 = vmatpush1.msra.mxu0 %v5740
    %5866 = vmatprep.subr.mxu0 0.0
    %5867 = vmatpush1.msra.mxu0 %v5735
    %5868 = vmatprep.subr.mxu0 0.0
    %5869 = vmatpush2.msra.mxu0 0.0
    %5870 = vmatprep.subr.mxu0 0.0
    %5871 = vmatpush2.msra.mxu0 0.0
    %5872 = vmatprep.subr.mxu0 0.0
    %5873 = vmatpush2.msra.mxu0 0.0
    %5874 = vmatprep.subr.mxu0 0.0
    %5875 = vmatpush2.msra.mxu0 0.0
    %5876 = vmatprep.subr.mxu0 0.0
    %5877 = vmatpush2.msra.mxu0 0.0
    %5878 = vmatprep.subr.mxu0 0.0
    %5879 = vmatpush2.msra.mxu0 0.0
    %5880 = vmatprep.subr.mxu0 0.0
    %5881 = vmatpush2.msra.mxu0 0.0
    %5882 = vmatprep.subr.mxu0 0.0
    %5883 = vmatpush2.msra.mxu0 0.0
    %5884 = vmatprep.subr.mxu0 0.0
    %5885 = vmatpush2.msra.mxu0 0.0
    %5886 = vmatprep.subr.mxu0 0.0
    %5887 = vmatpush2.msra.mxu0 0.0
    %5888 = vmatprep.subr.mxu0 0.0
    %5889 = vmatpush2.msra.mxu0 0.0
    %5890 = vmatprep.subr.mxu0 0.0
    %5891 = vmatpush2.msra.mxu0 0.0
    %5892 = vmatprep.subr.mxu0 0.0
    %5893 = vmatpush2.msra.mxu0 0.0
    %5894 = vmatprep.subr.mxu0 0.0
    %5895 = vmatpush2.msra.mxu0 0.0
    %5896 = vmatprep.subr.mxu0 0.0
    %5897 = vmatpush2.msra.mxu0 0.0
    %5898 = vmatprep.subr.mxu0 0.0
    %5899 = vmatpush2.msra.mxu0 0.0
    %5900 = vmatprep.mubr.f32.mxu0 0.0
    %5901 = vmatmul.mubr.f32.gmra.mxu0 %v5834
    %v5902 = vpop.f32.mrf.mxu0
    %v5903 = vadd.f32 0.0, %v5902
    %v5904 = vpop.f32.mrf.mxu0
    %5905 = vdwg.mxu0
    %v5906 = vld [vmem:[#allocation6 + $0x618] sm:$0xff]
    %v5908 = vsel %vm552, %v5903, 0
    %5910 = vmatprep.subr.mxu0 0.0
    %5911 = vmatpush1.msra.mxu0 0.0
    %5912 = vmatprep.subr.mxu0 0.0
    %5913 = vmatpush1.msra.mxu0 0.0
    %5914 = vmatprep.subr.mxu0 0.0
    %5915 = vmatpush1.msra.mxu0 0.0
    %5916 = vmatprep.subr.mxu0 0.0
    %5917 = vmatpush1.msra.mxu0 0.0
    %5918 = vmatprep.subr.mxu0 0.0
    %5919 = vmatpush1.msra.mxu0 0.0
    %5920 = vmatprep.subr.mxu0 0.0
    %5921 = vmatpush1.msra.mxu0 0.0
    %5922 = vmatprep.subr.mxu0 0.0
    %5923 = vmatpush1.msra.mxu0 0.0
    %5924 = vmatprep.subr.mxu0 0.0
    %5925 = vmatpush1.msra.mxu0 0.0
    %5926 = vmatprep.subr.mxu0 0.0
    %5927 = vmatpush1.msra.mxu0 0.0
    %5928 = vmatprep.subr.mxu0 0.0
    %5929 = vmatpush1.msra.mxu0 0.0
    %5930 = vmatprep.subr.mxu0 0.0
    %5931 = vmatpush1.msra.mxu0 0.0
    %5932 = vmatprep.subr.mxu0 0.0
    %5933 = vmatpush1.msra.mxu0 0.0
    %5934 = vmatprep.subr.mxu0 0.0
    %5935 = vmatpush1.msra.mxu0 0.0
    %5936 = vmatprep.subr.mxu0 0.0
    %5937 = vmatpush1.msra.mxu0 0.0
    %5938 = vmatprep.subr.mxu0 0.0
    %5939 = vmatpush1.msra.mxu0 0.0
    %5940 = vmatprep.subr.mxu0 0.0
    %5941 = vmatpush1.msra.mxu0 %v5906
    %5942 = vmatprep.subr.mxu0 0.0
    %5943 = vmatpush2.msra.mxu0 0.0
    %5944 = vmatprep.subr.mxu0 0.0
    %5945 = vmatpush2.msra.mxu0 0.0
    %5946 = vmatprep.subr.mxu0 0.0
    %5947 = vmatpush2.msra.mxu0 0.0
    %5948 = vmatprep.subr.mxu0 0.0
    %5949 = vmatpush2.msra.mxu0 0.0
    %5950 = vmatprep.subr.mxu0 0.0
    %5951 = vmatpush2.msra.mxu0 0.0
    %5952 = vmatprep.subr.mxu0 0.0
    %5953 = vmatpush2.msra.mxu0 0.0
    %5954 = vmatprep.subr.mxu0 0.0
    %5955 = vmatpush2.msra.mxu0 0.0
    %5956 = vmatprep.subr.mxu0 0.0
    %5957 = vmatpush2.msra.mxu0 0.0
    %5958 = vmatprep.subr.mxu0 0.0
    %5959 = vmatpush2.msra.mxu0 0.0
    %5960 = vmatprep.subr.mxu0 0.0
    %5961 = vmatpush2.msra.mxu0 0.0
    %5962 = vmatprep.subr.mxu0 0.0
    %5963 = vmatpush2.msra.mxu0 0.0
    %5964 = vmatprep.subr.mxu0 0.0
    %5965 = vmatpush2.msra.mxu0 0.0
    %5966 = vmatprep.subr.mxu0 0.0
    %5967 = vmatpush2.msra.mxu0 0.0
    %5968 = vmatprep.subr.mxu0 0.0
    %5969 = vmatpush2.msra.mxu0 0.0
    %5970 = vmatprep.subr.mxu0 0.0
    %5971 = vmatpush2.msra.mxu0 0.0
    %5972 = vmatprep.subr.mxu0 0.0
    %5973 = vmatpush2.msra.mxu0 0.0
    %5974 = vmatprep.mubr.f32.mxu0 0.0
    %5975 = vmatmul.mubr.f32.gmra.mxu0 %v5908
    %v5976 = vpop.f32.mrf.mxu0
    %v5977 = vadd.f32 0.0, %v5976
    %v5978 = vpop.f32.mrf.mxu0
    %5979 = vdwg.mxu0
    %v5981 = vsel %vm552, %v5491, 0
    %5983 = vmatprep.subr.mxu0 0.0
    %5984 = vmatpush1.msra.mxu0 0.0
    %5985 = vmatprep.subr.mxu0 0.0
    %5986 = vmatpush1.msra.mxu0 0.0
    %5987 = vmatprep.subr.mxu0 0.0
    %5988 = vmatpush1.msra.mxu0 0.0
    %5989 = vmatprep.subr.mxu0 0.0
    %5990 = vmatpush1.msra.mxu0 0.0
    %5991 = vmatprep.subr.mxu0 0.0
    %5992 = vmatpush1.msra.mxu0 0.0
    %5993 = vmatprep.subr.mxu0 0.0
    %5994 = vmatpush1.msra.mxu0 0.0
    %5995 = vmatprep.subr.mxu0 0.0
    %5996 = vmatpush1.msra.mxu0 0.0
    %5997 = vmatprep.subr.mxu0 0.0
    %5998 = vmatpush1.msra.mxu0 0.0
    %5999 = vmatprep.subr.mxu0 0.0
    %6000 = vmatpush1.msra.mxu0 0.0
    %6001 = vmatprep.subr.mxu0 0.0
    %6002 = vmatpush1.msra.mxu0 0.0
    %6003 = vmatprep.subr.mxu0 0.0
    %6004 = vmatpush1.msra.mxu0 0.0
    %6005 = vmatprep.subr.mxu0 0.0
    %6006 = vmatpush1.msra.mxu0 0.0
    %6007 = vmatprep.subr.mxu0 0.0
    %6008 = vmatpush1.msra.mxu0 0.0
    %6009 = vmatprep.subr.mxu0 0.0
    %6010 = vmatpush1.msra.mxu0 0.0
    %6011 = vmatprep.subr.mxu0 0.0
    %6012 = vmatpush1.msra.mxu0 0.0
    %6013 = vmatprep.subr.mxu0 0.0
    %6014 = vmatpush1.msra.mxu0 %v5494
    %6015 = vmatprep.subr.mxu0 0.0
    %6016 = vmatpush2.msra.mxu0 0.0
    %6017 = vmatprep.subr.mxu0 0.0
    %6018 = vmatpush2.msra.mxu0 0.0
    %6019 = vmatprep.subr.mxu0 0.0
    %6020 = vmatpush2.msra.mxu0 0.0
    %6021 = vmatprep.subr.mxu0 0.0
    %6022 = vmatpush2.msra.mxu0 0.0
    %6023 = vmatprep.subr.mxu0 0.0
    %6024 = vmatpush2.msra.mxu0 0.0
    %6025 = vmatprep.subr.mxu0 0.0
    %6026 = vmatpush2.msra.mxu0 0.0
    %6027 = vmatprep.subr.mxu0 0.0
    %6028 = vmatpush2.msra.mxu0 0.0
    %6029 = vmatprep.subr.mxu0 0.0
    %6030 = vmatpush2.msra.mxu0 0.0
    %6031 = vmatprep.subr.mxu0 0.0
    %6032 = vmatpush2.msra.mxu0 0.0
    %6033 = vmatprep.subr.mxu0 0.0
    %6034 = vmatpush2.msra.mxu0 0.0
    %6035 = vmatprep.subr.mxu0 0.0
    %6036 = vmatpush2.msra.mxu0 0.0
    %6037 = vmatprep.subr.mxu0 0.0
    %6038 = vmatpush2.msra.mxu0 0.0
    %6039 = vmatprep.subr.mxu0 0.0
    %6040 = vmatpush2.msra.mxu0 0.0
    %6041 = vmatprep.subr.mxu0 0.0
    %6042 = vmatpush2.msra.mxu0 0.0
    %6043 = vmatprep.subr.mxu0 0.0
    %6044 = vmatpush2.msra.mxu0 0.0
    %6045 = vmatprep.subr.mxu0 0.0
    %6046 = vmatpush2.msra.mxu0 0.0
    %6047 = vmatprep.mubr.f32.mxu0 0.0
    %6048 = vmatmul.mubr.f32.gmra.mxu0 %v5981
    %v6049 = vpop.f32.mrf.mxu0
    %v6050 = vadd.f32 %v5977, %v6049
    %v6051 = vpop.f32.mrf.mxu0
    %6052 = vdwg.mxu0
    %v6053 = vld [vmem:[#allocation6 + $0x620] sm:$0xff]
    %v6054 = vld [vmem:[#allocation6 + $0x628] sm:$0xff]
    %v6055 = vld [vmem:[#allocation6 + $0x630] sm:$0xff]
    %v6056 = vld [vmem:[#allocation6 + $0x638] sm:$0xff]
    %v6057 = vld [vmem:[#allocation6 + $0x680] sm:$0x1]
    %v6058 = vlaneseq
    %v6059 = vshrl.u32 %v6058, 7
    %v6060 = vsub.s32 0, %v6059
    %v6061 = vrot.slane %v6057, %v6060
    %6062 = vmatprep.subr.mxu0 0.0
    %6063 = vmatpush1.msra.mxu0 0.0
    %6064 = vmatprep.subr.mxu0 0.0
    %6065 = vmatpush1.msra.mxu0 0.0
    %6066 = vmatprep.subr.mxu0 0.0
    %6067 = vmatpush1.msra.mxu0 0.0
    %6068 = vmatprep.subr.mxu0 0.0
    %6069 = vmatpush1.msra.mxu0 0.0
    %6070 = vmatprep.subr.mxu0 0.0
    %6071 = vmatpush1.msra.mxu0 0.0
    %6072 = vmatprep.subr.mxu0 0.0
    %6073 = vmatpush1.msra.mxu0 0.0
    %6074 = vmatprep.subr.mxu0 0.0
    %6075 = vmatpush1.msra.mxu0 0.0
    %6076 = vmatprep.subr.mxu0 0.0
    %6077 = vmatpush1.msra.mxu0 0.0
    %6078 = vmatprep.subr.mxu0 0.0
    %6079 = vmatpush1.msra.mxu0 0.0
    %6080 = vmatprep.subr.mxu0 0.0
    %6081 = vmatpush1.msra.mxu0 0.0
    %6082 = vmatprep.subr.mxu0 0.0
    %6083 = vmatpush1.msra.mxu0 0.0
    %6084 = vmatprep.subr.mxu0 0.0
    %6085 = vmatpush1.msra.mxu0 0.0
    %6086 = vmatprep.subr.mxu0 0.0
    %6087 = vmatpush1.msra.mxu0 %v6056
    %6088 = vmatprep.subr.mxu0 0.0
    %6089 = vmatpush1.msra.mxu0 %v6055
    %6090 = vmatprep.subr.mxu0 0.0
    %6091 = vmatpush1.msra.mxu0 %v6054
    %6092 = vmatprep.subr.mxu0 0.0
    %6093 = vmatpush1.msra.mxu0 %v6053
    %6094 = vmatprep.subr.mxu0 0.0
    %6095 = vmatpush2.msra.mxu0 0.0
    %6096 = vmatprep.subr.mxu0 0.0
    %6097 = vmatpush2.msra.mxu0 0.0
    %6098 = vmatprep.subr.mxu0 0.0
    %6099 = vmatpush2.msra.mxu0 0.0
    %6100 = vmatprep.subr.mxu0 0.0
    %6101 = vmatpush2.msra.mxu0 0.0
    %6102 = vmatprep.subr.mxu0 0.0
    %6103 = vmatpush2.msra.mxu0 0.0
    %6104 = vmatprep.subr.mxu0 0.0
    %6105 = vmatpush2.msra.mxu0 0.0
    %6106 = vmatprep.subr.mxu0 0.0
    %6107 = vmatpush2.msra.mxu0 0.0
    %6108 = vmatprep.subr.mxu0 0.0
    %6109 = vmatpush2.msra.mxu0 0.0
    %6110 = vmatprep.subr.mxu0 0.0
    %6111 = vmatpush2.msra.mxu0 0.0
    %6112 = vmatprep.subr.mxu0 0.0
    %6113 = vmatpush2.msra.mxu0 0.0
    %6114 = vmatprep.subr.mxu0 0.0
    %6115 = vmatpush2.msra.mxu0 0.0
    %6116 = vmatprep.subr.mxu0 0.0
    %6117 = vmatpush2.msra.mxu0 0.0
    %6118 = vmatprep.subr.mxu0 0.0
    %6119 = vmatpush2.msra.mxu0 0.0
    %6120 = vmatprep.subr.mxu0 0.0
    %6121 = vmatpush2.msra.mxu0 0.0
    %6122 = vmatprep.subr.mxu0 0.0
    %6123 = vmatpush2.msra.mxu0 0.0
    %6124 = vmatprep.subr.mxu0 0.0
    %6125 = vmatpush2.msra.mxu0 0.0
    %6126 = vmatprep.mubr.f32.mxu0 0.0
    %6127 = vmatmul.mubr.f32.gmra.mxu0 %v5083
    %v6128 = vpop.f32.mrf.mxu0
    %v6129 = vadd.f32 %v6061, %v6128
    %v6130 = vpop.f32.mrf.mxu0
    %6131 = vdwg.mxu0
    %v6132 = vmul.f32 %v6129, 0.35355338
    %v6133 = vld [vmem:[#allocation6 + $0x640] sm:$0xff]
    %v6134 = vld [vmem:[#allocation6 + $0x648] sm:$0xff]
    %v6135 = vld [vmem:[#allocation6 + $0x650] sm:$0xff]
    %v6136 = vld [vmem:[#allocation6 + $0x658] sm:$0xff]
    %v6137 = vld [vmem:[#allocation6 + $0x688] sm:$0x1]
    %v6138 = vlaneseq
    %v6139 = vshrl.u32 %v6138, 7
    %v6140 = vsub.s32 0, %v6139
    %v6141 = vrot.slane %v6137, %v6140
    %6142 = vmatprep.subr.mxu0 0.0
    %6143 = vmatpush1.msra.mxu0 0.0
    %6144 = vmatprep.subr.mxu0 0.0
    %6145 = vmatpush1.msra.mxu0 0.0
    %6146 = vmatprep.subr.mxu0 0.0
    %6147 = vmatpush1.msra.mxu0 0.0
    %6148 = vmatprep.subr.mxu0 0.0
    %6149 = vmatpush1.msra.mxu0 0.0
    %6150 = vmatprep.subr.mxu0 0.0
    %6151 = vmatpush1.msra.mxu0 0.0
    %6152 = vmatprep.subr.mxu0 0.0
    %6153 = vmatpush1.msra.mxu0 0.0
    %6154 = vmatprep.subr.mxu0 0.0
    %6155 = vmatpush1.msra.mxu0 0.0
    %6156 = vmatprep.subr.mxu0 0.0
    %6157 = vmatpush1.msra.mxu0 0.0
    %6158 = vmatprep.subr.mxu0 0.0
    %6159 = vmatpush1.msra.mxu0 0.0
    %6160 = vmatprep.subr.mxu0 0.0
    %6161 = vmatpush1.msra.mxu0 0.0
    %6162 = vmatprep.subr.mxu0 0.0
    %6163 = vmatpush1.msra.mxu0 0.0
    %6164 = vmatprep.subr.mxu0 0.0
    %6165 = vmatpush1.msra.mxu0 0.0
    %6166 = vmatprep.subr.mxu0 0.0
    %6167 = vmatpush1.msra.mxu0 %v6136
    %6168 = vmatprep.subr.mxu0 0.0
    %6169 = vmatpush1.msra.mxu0 %v6135
    %6170 = vmatprep.subr.mxu0 0.0
    %6171 = vmatpush1.msra.mxu0 %v6134
    %6172 = vmatprep.subr.mxu0 0.0
    %6173 = vmatpush1.msra.mxu0 %v6133
    %6174 = vmatprep.subr.mxu0 0.0
    %6175 = vmatpush2.msra.mxu0 0.0
    %6176 = vmatprep.subr.mxu0 0.0
    %6177 = vmatpush2.msra.mxu0 0.0
    %6178 = vmatprep.subr.mxu0 0.0
    %6179 = vmatpush2.msra.mxu0 0.0
    %6180 = vmatprep.subr.mxu0 0.0
    %6181 = vmatpush2.msra.mxu0 0.0
    %6182 = vmatprep.subr.mxu0 0.0
    %6183 = vmatpush2.msra.mxu0 0.0
    %6184 = vmatprep.subr.mxu0 0.0
    %6185 = vmatpush2.msra.mxu0 0.0
    %6186 = vmatprep.subr.mxu0 0.0
    %6187 = vmatpush2.msra.mxu0 0.0
    %6188 = vmatprep.subr.mxu0 0.0
    %6189 = vmatpush2.msra.mxu0 0.0
    %6190 = vmatprep.subr.mxu0 0.0
    %6191 = vmatpush2.msra.mxu0 0.0
    %6192 = vmatprep.subr.mxu0 0.0
    %6193 = vmatpush2.msra.mxu0 0.0
    %6194 = vmatprep.subr.mxu0 0.0
    %6195 = vmatpush2.msra.mxu0 0.0
    %6196 = vmatprep.subr.mxu0 0.0
    %6197 = vmatpush2.msra.mxu0 0.0
    %6198 = vmatprep.subr.mxu0 0.0
    %6199 = vmatpush2.msra.mxu0 0.0
    %6200 = vmatprep.subr.mxu0 0.0
    %6201 = vmatpush2.msra.mxu0 0.0
    %6202 = vmatprep.subr.mxu0 0.0
    %6203 = vmatpush2.msra.mxu0 0.0
    %6204 = vmatprep.subr.mxu0 0.0
    %6205 = vmatpush2.msra.mxu0 0.0
    %6206 = vmatprep.mubr.f32.mxu0 0.0
    %6207 = vmatmul.mubr.f32.gmra.mxu0 %v5166
    %v6208 = vpop.f32.mrf.mxu0
    %v6209 = vadd.f32 %v6141, %v6208
    %v6210 = vpop.f32.mrf.mxu0
    %6211 = vmatprep.mubr.f32.mxu0 0.0
    %6212 = vmatmul.mubr.f32.gmra.mxu0 %v5169
    %v6213 = vpop.f32.mrf.mxu0
    %v6214 = vadd.f32 %v6141, %v6213
    %v6215 = vpop.f32.mrf.mxu0
    %6216 = vdwg.mxu0
    %v6217 = vld [vmem:[#allocation6 + $0x660] sm:$0xff]
    %v6218 = vld [vmem:[#allocation6 + $0x668] sm:$0xff]
    %v6219 = vld [vmem:[#allocation6 + $0x670] sm:$0xff]
    %v6220 = vld [vmem:[#allocation6 + $0x678] sm:$0xff]
    %v6221 = vld [vmem:[#allocation6 + $0x690] sm:$0x1]
    %v6222 = vlaneseq
    %v6223 = vshrl.u32 %v6222, 7
    %v6224 = vsub.s32 0, %v6223
    %v6225 = vrot.slane %v6221, %v6224
    %6226 = vmatprep.subr.mxu0 0.0
    %6227 = vmatpush1.msra.mxu0 0.0
    %6228 = vmatprep.subr.mxu0 0.0
    %6229 = vmatpush1.msra.mxu0 0.0
    %6230 = vmatprep.subr.mxu0 0.0
    %6231 = vmatpush1.msra.mxu0 0.0
    %6232 = vmatprep.subr.mxu0 0.0
    %6233 = vmatpush1.msra.mxu0 0.0
    %6234 = vmatprep.subr.mxu0 0.0
    %6235 = vmatpush1.msra.mxu0 0.0
    %6236 = vmatprep.subr.mxu0 0.0
    %6237 = vmatpush1.msra.mxu0 0.0
    %6238 = vmatprep.subr.mxu0 0.0
    %6239 = vmatpush1.msra.mxu0 0.0
    %6240 = vmatprep.subr.mxu0 0.0
    %6241 = vmatpush1.msra.mxu0 0.0
    %6242 = vmatprep.subr.mxu0 0.0
    %6243 = vmatpush1.msra.mxu0 0.0
    %6244 = vmatprep.subr.mxu0 0.0
    %6245 = vmatpush1.msra.mxu0 0.0
    %6246 = vmatprep.subr.mxu0 0.0
    %6247 = vmatpush1.msra.mxu0 0.0
    %6248 = vmatprep.subr.mxu0 0.0
    %6249 = vmatpush1.msra.mxu0 0.0
    %6250 = vmatprep.subr.mxu0 0.0
    %6251 = vmatpush1.msra.mxu0 %v6220
    %6252 = vmatprep.subr.mxu0 0.0
    %6253 = vmatpush1.msra.mxu0 %v6219
    %6254 = vmatprep.subr.mxu0 0.0
    %6255 = vmatpush1.msra.mxu0 %v6218
    %6256 = vmatprep.subr.mxu0 0.0
    %6257 = vmatpush1.msra.mxu0 %v6217
    %6258 = vmatprep.subr.mxu0 0.0
    %6259 = vmatpush2.msra.mxu0 0.0
    %6260 = vmatprep.subr.mxu0 0.0
    %6261 = vmatpush2.msra.mxu0 0.0
    %6262 = vmatprep.subr.mxu0 0.0
    %6263 = vmatpush2.msra.mxu0 0.0
    %6264 = vmatprep.subr.mxu0 0.0
    %6265 = vmatpush2.msra.mxu0 0.0
    %6266 = vmatprep.subr.mxu0 0.0
    %6267 = vmatpush2.msra.mxu0 0.0
    %6268 = vmatprep.subr.mxu0 0.0
    %6269 = vmatpush2.msra.mxu0 0.0
    %6270 = vmatprep.subr.mxu0 0.0
    %6271 = vmatpush2.msra.mxu0 0.0
    %6272 = vmatprep.subr.mxu0 0.0
    %6273 = vmatpush2.msra.mxu0 0.0
    %6274 = vmatprep.subr.mxu0 0.0
    %6275 = vmatpush2.msra.mxu0 0.0
    %6276 = vmatprep.subr.mxu0 0.0
    %6277 = vmatpush2.msra.mxu0 0.0
    %6278 = vmatprep.subr.mxu0 0.0
    %6279 = vmatpush2.msra.mxu0 0.0
    %6280 = vmatprep.subr.mxu0 0.0
    %6281 = vmatpush2.msra.mxu0 0.0
    %6282 = vmatprep.subr.mxu0 0.0
    %6283 = vmatpush2.msra.mxu0 0.0
    %6284 = vmatprep.subr.mxu0 0.0
    %6285 = vmatpush2.msra.mxu0 0.0
    %6286 = vmatprep.subr.mxu0 0.0
    %6287 = vmatpush2.msra.mxu0 0.0
    %6288 = vmatprep.subr.mxu0 0.0
    %6289 = vmatpush2.msra.mxu0 0.0
    %6290 = vmatprep.mubr.f32.mxu0 0.0
    %6291 = vmatmul.mubr.f32.gmra.mxu0 %v5166
    %v6292 = vpop.f32.mrf.mxu0
    %v6293 = vadd.f32 %v6225, %v6292
    %v6294 = vpop.f32.mrf.mxu0
    %6295 = vmatprep.mubr.f32.mxu0 0.0
    %6296 = vmatmul.mubr.f32.gmra.mxu0 %v5169
    %v6297 = vpop.f32.mrf.mxu0
    %v6298 = vadd.f32 %v6225, %v6297
    %v6299 = vpop.f32.mrf.mxu0
    %6300 = vdwg.mxu0
    %v6302 = vsel %vm552, %v6132, 0
    %v6305 = vsel %vm552, %v6209, 0
    %v6308 = vsel %vm552, %v6214, 0
    %6310 = vmatprep.subr.mxu0 0.0
    %6311 = vmatpush1.xpose.msra.mxu0 0.0
    %6312 = vmatprep.subr.mxu0 0.0
    %6313 = vmatpush1.xpose.msra.mxu0 0.0
    %6314 = vmatprep.subr.mxu0 0.0
    %6315 = vmatpush1.xpose.msra.mxu0 0.0
    %6316 = vmatprep.subr.mxu0 0.0
    %6317 = vmatpush1.xpose.msra.mxu0 0.0
    %6318 = vmatprep.subr.mxu0 0.0
    %6319 = vmatpush1.xpose.msra.mxu0 0.0
    %6320 = vmatprep.subr.mxu0 0.0
    %6321 = vmatpush1.xpose.msra.mxu0 0.0
    %6322 = vmatprep.subr.mxu0 0.0
    %6323 = vmatpush1.xpose.msra.mxu0 0.0
    %6324 = vmatprep.subr.mxu0 0.0
    %6325 = vmatpush1.xpose.msra.mxu0 0.0
    %6326 = vmatprep.subr.mxu0 0.0
    %6327 = vmatpush1.xpose.msra.mxu0 0.0
    %6328 = vmatprep.subr.mxu0 0.0
    %6329 = vmatpush1.xpose.msra.mxu0 0.0
    %6330 = vmatprep.subr.mxu0 0.0
    %6331 = vmatpush1.xpose.msra.mxu0 0.0
    %6332 = vmatprep.subr.mxu0 0.0
    %6333 = vmatpush1.xpose.msra.mxu0 0.0
    %6334 = vmatprep.subr.mxu0 0.0
    %6335 = vmatpush1.xpose.msra.mxu0 0.0
    %6336 = vmatprep.subr.mxu0 0.0
    %6337 = vmatpush1.xpose.msra.mxu0 0.0
    %6338 = vmatprep.subr.mxu0 0.0
    %6339 = vmatpush1.xpose.msra.mxu0 %v6308
    %6340 = vmatprep.subr.mxu0 0.0
    %6341 = vmatpush1.xpose.msra.mxu0 %v6305
    %6342 = vmatprep.subr.mxu0 0.0
    %6343 = vmatpush2.xpose.msra.mxu0 0.0
    %6344 = vmatprep.subr.mxu0 0.0
    %6345 = vmatpush2.xpose.msra.mxu0 0.0
    %6346 = vmatprep.subr.mxu0 0.0
    %6347 = vmatpush2.xpose.msra.mxu0 0.0
    %6348 = vmatprep.subr.mxu0 0.0
    %6349 = vmatpush2.xpose.msra.mxu0 0.0
    %6350 = vmatprep.subr.mxu0 0.0
    %6351 = vmatpush2.xpose.msra.mxu0 0.0
    %6352 = vmatprep.subr.mxu0 0.0
    %6353 = vmatpush2.xpose.msra.mxu0 0.0
    %6354 = vmatprep.subr.mxu0 0.0
    %6355 = vmatpush2.xpose.msra.mxu0 0.0
    %6356 = vmatprep.subr.mxu0 0.0
    %6357 = vmatpush2.xpose.msra.mxu0 0.0
    %6358 = vmatprep.subr.mxu0 0.0
    %6359 = vmatpush2.xpose.msra.mxu0 0.0
    %6360 = vmatprep.subr.mxu0 0.0
    %6361 = vmatpush2.xpose.msra.mxu0 0.0
    %6362 = vmatprep.subr.mxu0 0.0
    %6363 = vmatpush2.xpose.msra.mxu0 0.0
    %6364 = vmatprep.subr.mxu0 0.0
    %6365 = vmatpush2.xpose.msra.mxu0 0.0
    %6366 = vmatprep.subr.mxu0 0.0
    %6367 = vmatpush2.xpose.msra.mxu0 0.0
    %6368 = vmatprep.subr.mxu0 0.0
    %6369 = vmatpush2.xpose.msra.mxu0 0.0
    %6370 = vmatprep.subr.mxu0 0.0
    %6371 = vmatpush2.xpose.msra.mxu0 0.0
    %6372 = vmatprep.subr.mxu0 0.0
    %6373 = vmatpush2.xpose.msra.mxu0 0.0
    %6374 = vmatprep.mubr.f32.mxu0 0.0
    %6375 = vmatmul.mubr.f32.gmra.mxu0 %v6302
    %v6376 = vpop.f32.mrf.mxu0
    %v6377 = vadd.f32 %v290, %v6376
    %v6378 = vpop.f32.mrf.mxu0
    %6379 = vdwg.mxu0
    %v6380 = vsel %vm5409, %v6377, -inf
    %6381 = vmax.xlane.f32.xlu0 %v6380
    %v6382 = vpop.xlane.xlu0 %6381
    %v6383 = vsub.f32 %v6377, %v6382
    %v6384 = vmul.f32 %v6383, 1.442695
    %v6385 = vpow.pop %v6384
    %v6386 = vsel %vm5409, %v6385, 0.0
    %6387 = vadd.xlane.f32.xlu0 %v6386
    %v6388 = vpop.xlane.xlu0 %6387
    %v6389 = vrcp.pop %v6388
    %v6390 = vmul.f32 %v6385, %v6389
    %v6392 = vsel %vm214, %v6390, 0
    %6394 = vmatprep.subr.mxu0 0.0
    %6395 = vmatpush1.msra.mxu0 0.0
    %6396 = vmatprep.subr.mxu0 0.0
    %6397 = vmatpush1.msra.mxu0 0.0
    %6398 = vmatprep.subr.mxu0 0.0
    %6399 = vmatpush1.msra.mxu0 0.0
    %6400 = vmatprep.subr.mxu0 0.0
    %6401 = vmatpush1.msra.mxu0 0.0
    %6402 = vmatprep.subr.mxu0 0.0
    %6403 = vmatpush1.msra.mxu0 0.0
    %6404 = vmatprep.subr.mxu0 0.0
    %6405 = vmatpush1.msra.mxu0 0.0
    %6406 = vmatprep.subr.mxu0 0.0
    %6407 = vmatpush1.msra.mxu0 0.0
    %6408 = vmatprep.subr.mxu0 0.0
    %6409 = vmatpush1.msra.mxu0 0.0
    %6410 = vmatprep.subr.mxu0 0.0
    %6411 = vmatpush1.msra.mxu0 0.0
    %6412 = vmatprep.subr.mxu0 0.0
    %6413 = vmatpush1.msra.mxu0 0.0
    %6414 = vmatprep.subr.mxu0 0.0
    %6415 = vmatpush1.msra.mxu0 0.0
    %6416 = vmatprep.subr.mxu0 0.0
    %6417 = vmatpush1.msra.mxu0 0.0
    %6418 = vmatprep.subr.mxu0 0.0
    %6419 = vmatpush1.msra.mxu0 0.0
    %6420 = vmatprep.subr.mxu0 0.0
    %6421 = vmatpush1.msra.mxu0 0.0
    %6422 = vmatprep.subr.mxu0 0.0
    %6423 = vmatpush1.msra.mxu0 %v6298
    %6424 = vmatprep.subr.mxu0 0.0
    %6425 = vmatpush1.msra.mxu0 %v6293
    %6426 = vmatprep.subr.mxu0 0.0
    %6427 = vmatpush2.msra.mxu0 0.0
    %6428 = vmatprep.subr.mxu0 0.0
    %6429 = vmatpush2.msra.mxu0 0.0
    %6430 = vmatprep.subr.mxu0 0.0
    %6431 = vmatpush2.msra.mxu0 0.0
    %6432 = vmatprep.subr.mxu0 0.0
    %6433 = vmatpush2.msra.mxu0 0.0
    %6434 = vmatprep.subr.mxu0 0.0
    %6435 = vmatpush2.msra.mxu0 0.0
    %6436 = vmatprep.subr.mxu0 0.0
    %6437 = vmatpush2.msra.mxu0 0.0
    %6438 = vmatprep.subr.mxu0 0.0
    %6439 = vmatpush2.msra.mxu0 0.0
    %6440 = vmatprep.subr.mxu0 0.0
    %6441 = vmatpush2.msra.mxu0 0.0
    %6442 = vmatprep.subr.mxu0 0.0
    %6443 = vmatpush2.msra.mxu0 0.0
    %6444 = vmatprep.subr.mxu0 0.0
    %6445 = vmatpush2.msra.mxu0 0.0
    %6446 = vmatprep.subr.mxu0 0.0
    %6447 = vmatpush2.msra.mxu0 0.0
    %6448 = vmatprep.subr.mxu0 0.0
    %6449 = vmatpush2.msra.mxu0 0.0
    %6450 = vmatprep.subr.mxu0 0.0
    %6451 = vmatpush2.msra.mxu0 0.0
    %6452 = vmatprep.subr.mxu0 0.0
    %6453 = vmatpush2.msra.mxu0 0.0
    %6454 = vmatprep.subr.mxu0 0.0
    %6455 = vmatpush2.msra.mxu0 0.0
    %6456 = vmatprep.subr.mxu0 0.0
    %6457 = vmatpush2.msra.mxu0 0.0
    %6458 = vmatprep.mubr.f32.mxu0 0.0
    %6459 = vmatmul.mubr.f32.gmra.mxu0 %v6392
    %v6460 = vpop.f32.mrf.mxu0
    %v6461 = vadd.f32 0.0, %v6460
    %v6462 = vpop.f32.mrf.mxu0
    %6463 = vdwg.mxu0
    %v6464 = vld [vmem:[#allocation6 + $0x698] sm:$0xff]
    %v6466 = vsel %vm552, %v6461, 0
    %6468 = vmatprep.subr.mxu0 0.0
    %6469 = vmatpush1.msra.mxu0 0.0
    %6470 = vmatprep.subr.mxu0 0.0
    %6471 = vmatpush1.msra.mxu0 0.0
    %6472 = vmatprep.subr.mxu0 0.0
    %6473 = vmatpush1.msra.mxu0 0.0
    %6474 = vmatprep.subr.mxu0 0.0
    %6475 = vmatpush1.msra.mxu0 0.0
    %6476 = vmatprep.subr.mxu0 0.0
    %6477 = vmatpush1.msra.mxu0 0.0
    %6478 = vmatprep.subr.mxu0 0.0
    %6479 = vmatpush1.msra.mxu0 0.0
    %6480 = vmatprep.subr.mxu0 0.0
    %6481 = vmatpush1.msra.mxu0 0.0
    %6482 = vmatprep.subr.mxu0 0.0
    %6483 = vmatpush1.msra.mxu0 0.0
    %6484 = vmatprep.subr.mxu0 0.0
    %6485 = vmatpush1.msra.mxu0 0.0
    %6486 = vmatprep.subr.mxu0 0.0
    %6487 = vmatpush1.msra.mxu0 0.0
    %6488 = vmatprep.subr.mxu0 0.0
    %6489 = vmatpush1.msra.mxu0 0.0
    %6490 = vmatprep.subr.mxu0 0.0
    %6491 = vmatpush1.msra.mxu0 0.0
    %6492 = vmatprep.subr.mxu0 0.0
    %6493 = vmatpush1.msra.mxu0 0.0
    %6494 = vmatprep.subr.mxu0 0.0
    %6495 = vmatpush1.msra.mxu0 0.0
    %6496 = vmatprep.subr.mxu0 0.0
    %6497 = vmatpush1.msra.mxu0 0.0
    %6498 = vmatprep.subr.mxu0 0.0
    %6499 = vmatpush1.msra.mxu0 %v6464
    %6500 = vmatprep.subr.mxu0 0.0
    %6501 = vmatpush2.msra.mxu0 0.0
    %6502 = vmatprep.subr.mxu0 0.0
    %6503 = vmatpush2.msra.mxu0 0.0
    %6504 = vmatprep.subr.mxu0 0.0
    %6505 = vmatpush2.msra.mxu0 0.0
    %6506 = vmatprep.subr.mxu0 0.0
    %6507 = vmatpush2.msra.mxu0 0.0
    %6508 = vmatprep.subr.mxu0 0.0
    %6509 = vmatpush2.msra.mxu0 0.0
    %6510 = vmatprep.subr.mxu0 0.0
    %6511 = vmatpush2.msra.mxu0 0.0
    %6512 = vmatprep.subr.mxu0 0.0
    %6513 = vmatpush2.msra.mxu0 0.0
    %6514 = vmatprep.subr.mxu0 0.0
    %6515 = vmatpush2.msra.mxu0 0.0
    %6516 = vmatprep.subr.mxu0 0.0
    %6517 = vmatpush2.msra.mxu0 0.0
    %6518 = vmatprep.subr.mxu0 0.0
    %6519 = vmatpush2.msra.mxu0 0.0
    %6520 = vmatprep.subr.mxu0 0.0
    %6521 = vmatpush2.msra.mxu0 0.0
    %6522 = vmatprep.subr.mxu0 0.0
    %6523 = vmatpush2.msra.mxu0 0.0
    %6524 = vmatprep.subr.mxu0 0.0
    %6525 = vmatpush2.msra.mxu0 0.0
    %6526 = vmatprep.subr.mxu0 0.0
    %6527 = vmatpush2.msra.mxu0 0.0
    %6528 = vmatprep.subr.mxu0 0.0
    %6529 = vmatpush2.msra.mxu0 0.0
    %6530 = vmatprep.subr.mxu0 0.0
    %6531 = vmatpush2.msra.mxu0 0.0
    %6532 = vmatprep.mubr.f32.mxu0 0.0
    %6533 = vmatmul.mubr.f32.gmra.mxu0 %v6466
    %v6534 = vpop.f32.mrf.mxu0
    %v6535 = vadd.f32 0.0, %v6534
    %v6536 = vpop.f32.mrf.mxu0
    %6537 = vdwg.mxu0
    %v6538 = vadd.f32 %v6050, %v6535
    %v6539 = vld [vmem:[#allocation6 + $0x6a0] sm:$0xff]
    %v6540 = vld [vmem:[#allocation6 + $0x6a8] sm:$0xff]
    %v6541 = vld [vmem:[#allocation6 + $0x6b0] sm:$0xff]
    %v6542 = vld [vmem:[#allocation6 + $0x6b8] sm:$0xff]
    %v6543 = vld [vmem:[#allocation6 + $0x700] sm:$0x1]
    %v6544 = vlaneseq
    %v6545 = vshrl.u32 %v6544, 7
    %v6546 = vsub.s32 0, %v6545
    %v6547 = vrot.slane %v6543, %v6546
    %6548 = vmatprep.subr.mxu0 0.0
    %6549 = vmatpush1.msra.mxu0 0.0
    %6550 = vmatprep.subr.mxu0 0.0
    %6551 = vmatpush1.msra.mxu0 0.0
    %6552 = vmatprep.subr.mxu0 0.0
    %6553 = vmatpush1.msra.mxu0 0.0
    %6554 = vmatprep.subr.mxu0 0.0
    %6555 = vmatpush1.msra.mxu0 0.0
    %6556 = vmatprep.subr.mxu0 0.0
    %6557 = vmatpush1.msra.mxu0 0.0
    %6558 = vmatprep.subr.mxu0 0.0
    %6559 = vmatpush1.msra.mxu0 0.0
    %6560 = vmatprep.subr.mxu0 0.0
    %6561 = vmatpush1.msra.mxu0 0.0
    %6562 = vmatprep.subr.mxu0 0.0
    %6563 = vmatpush1.msra.mxu0 0.0
    %6564 = vmatprep.subr.mxu0 0.0
    %6565 = vmatpush1.msra.mxu0 0.0
    %6566 = vmatprep.subr.mxu0 0.0
    %6567 = vmatpush1.msra.mxu0 0.0
    %6568 = vmatprep.subr.mxu0 0.0
    %6569 = vmatpush1.msra.mxu0 0.0
    %6570 = vmatprep.subr.mxu0 0.0
    %6571 = vmatpush1.msra.mxu0 0.0
    %6572 = vmatprep.subr.mxu0 0.0
    %6573 = vmatpush1.msra.mxu0 %v6542
    %6574 = vmatprep.subr.mxu0 0.0
    %6575 = vmatpush1.msra.mxu0 %v6541
    %6576 = vmatprep.subr.mxu0 0.0
    %6577 = vmatpush1.msra.mxu0 %v6540
    %6578 = vmatprep.subr.mxu0 0.0
    %6579 = vmatpush1.msra.mxu0 %v6539
    %6580 = vmatprep.subr.mxu0 0.0
    %6581 = vmatpush2.msra.mxu0 0.0
    %6582 = vmatprep.subr.mxu0 0.0
    %6583 = vmatpush2.msra.mxu0 0.0
    %6584 = vmatprep.subr.mxu0 0.0
    %6585 = vmatpush2.msra.mxu0 0.0
    %6586 = vmatprep.subr.mxu0 0.0
    %6587 = vmatpush2.msra.mxu0 0.0
    %6588 = vmatprep.subr.mxu0 0.0
    %6589 = vmatpush2.msra.mxu0 0.0
    %6590 = vmatprep.subr.mxu0 0.0
    %6591 = vmatpush2.msra.mxu0 0.0
    %6592 = vmatprep.subr.mxu0 0.0
    %6593 = vmatpush2.msra.mxu0 0.0
    %6594 = vmatprep.subr.mxu0 0.0
    %6595 = vmatpush2.msra.mxu0 0.0
    %6596 = vmatprep.subr.mxu0 0.0
    %6597 = vmatpush2.msra.mxu0 0.0
    %6598 = vmatprep.subr.mxu0 0.0
    %6599 = vmatpush2.msra.mxu0 0.0
    %6600 = vmatprep.subr.mxu0 0.0
    %6601 = vmatpush2.msra.mxu0 0.0
    %6602 = vmatprep.subr.mxu0 0.0
    %6603 = vmatpush2.msra.mxu0 0.0
    %6604 = vmatprep.subr.mxu0 0.0
    %6605 = vmatpush2.msra.mxu0 0.0
    %6606 = vmatprep.subr.mxu0 0.0
    %6607 = vmatpush2.msra.mxu0 0.0
    %6608 = vmatprep.subr.mxu0 0.0
    %6609 = vmatpush2.msra.mxu0 0.0
    %6610 = vmatprep.subr.mxu0 0.0
    %6611 = vmatpush2.msra.mxu0 0.0
    %6612 = vmatprep.mubr.f32.mxu0 0.0
    %6613 = vmatmul.mubr.f32.gmra.mxu0 %v5083
    %v6614 = vpop.f32.mrf.mxu0
    %v6615 = vadd.f32 %v6547, %v6614
    %v6616 = vpop.f32.mrf.mxu0
    %6617 = vdwg.mxu0
    %v6618 = vmul.f32 %v6615, 0.35355338
    %v6619 = vld [vmem:[#allocation6 + $0x6c0] sm:$0xff]
    %v6620 = vld [vmem:[#allocation6 + $0x6c8] sm:$0xff]
    %v6621 = vld [vmem:[#allocation6 + $0x6d0] sm:$0xff]
    %v6622 = vld [vmem:[#allocation6 + $0x6d8] sm:$0xff]
    %v6623 = vld [vmem:[#allocation6 + $0x708] sm:$0x1]
    %v6624 = vlaneseq
    %v6625 = vshrl.u32 %v6624, 7
    %v6626 = vsub.s32 0, %v6625
    %v6627 = vrot.slane %v6623, %v6626
    %6628 = vmatprep.subr.mxu0 0.0
    %6629 = vmatpush1.msra.mxu0 0.0
    %6630 = vmatprep.subr.mxu0 0.0
    %6631 = vmatpush1.msra.mxu0 0.0
    %6632 = vmatprep.subr.mxu0 0.0
    %6633 = vmatpush1.msra.mxu0 0.0
    %6634 = vmatprep.subr.mxu0 0.0
    %6635 = vmatpush1.msra.mxu0 0.0
    %6636 = vmatprep.subr.mxu0 0.0
    %6637 = vmatpush1.msra.mxu0 0.0
    %6638 = vmatprep.subr.mxu0 0.0
    %6639 = vmatpush1.msra.mxu0 0.0
    %6640 = vmatprep.subr.mxu0 0.0
    %6641 = vmatpush1.msra.mxu0 0.0
    %6642 = vmatprep.subr.mxu0 0.0
    %6643 = vmatpush1.msra.mxu0 0.0
    %6644 = vmatprep.subr.mxu0 0.0
    %6645 = vmatpush1.msra.mxu0 0.0
    %6646 = vmatprep.subr.mxu0 0.0
    %6647 = vmatpush1.msra.mxu0 0.0
    %6648 = vmatprep.subr.mxu0 0.0
    %6649 = vmatpush1.msra.mxu0 0.0
    %6650 = vmatprep.subr.mxu0 0.0
    %6651 = vmatpush1.msra.mxu0 0.0
    %6652 = vmatprep.subr.mxu0 0.0
    %6653 = vmatpush1.msra.mxu0 %v6622
    %6654 = vmatprep.subr.mxu0 0.0
    %6655 = vmatpush1.msra.mxu0 %v6621
    %6656 = vmatprep.subr.mxu0 0.0
    %6657 = vmatpush1.msra.mxu0 %v6620
    %6658 = vmatprep.subr.mxu0 0.0
    %6659 = vmatpush1.msra.mxu0 %v6619
    %6660 = vmatprep.subr.mxu0 0.0
    %6661 = vmatpush2.msra.mxu0 0.0
    %6662 = vmatprep.subr.mxu0 0.0
    %6663 = vmatpush2.msra.mxu0 0.0
    %6664 = vmatprep.subr.mxu0 0.0
    %6665 = vmatpush2.msra.mxu0 0.0
    %6666 = vmatprep.subr.mxu0 0.0
    %6667 = vmatpush2.msra.mxu0 0.0
    %6668 = vmatprep.subr.mxu0 0.0
    %6669 = vmatpush2.msra.mxu0 0.0
    %6670 = vmatprep.subr.mxu0 0.0
    %6671 = vmatpush2.msra.mxu0 0.0
    %6672 = vmatprep.subr.mxu0 0.0
    %6673 = vmatpush2.msra.mxu0 0.0
    %6674 = vmatprep.subr.mxu0 0.0
    %6675 = vmatpush2.msra.mxu0 0.0
    %6676 = vmatprep.subr.mxu0 0.0
    %6677 = vmatpush2.msra.mxu0 0.0
    %6678 = vmatprep.subr.mxu0 0.0
    %6679 = vmatpush2.msra.mxu0 0.0
    %6680 = vmatprep.subr.mxu0 0.0
    %6681 = vmatpush2.msra.mxu0 0.0
    %6682 = vmatprep.subr.mxu0 0.0
    %6683 = vmatpush2.msra.mxu0 0.0
    %6684 = vmatprep.subr.mxu0 0.0
    %6685 = vmatpush2.msra.mxu0 0.0
    %6686 = vmatprep.subr.mxu0 0.0
    %6687 = vmatpush2.msra.mxu0 0.0
    %6688 = vmatprep.subr.mxu0 0.0
    %6689 = vmatpush2.msra.mxu0 0.0
    %6690 = vmatprep.subr.mxu0 0.0
    %6691 = vmatpush2.msra.mxu0 0.0
    %6692 = vmatprep.mubr.f32.mxu0 0.0
    %6693 = vmatmul.mubr.f32.gmra.mxu0 %v5166
    %v6694 = vpop.f32.mrf.mxu0
    %v6695 = vadd.f32 %v6627, %v6694
    %v6696 = vpop.f32.mrf.mxu0
    %6697 = vmatprep.mubr.f32.mxu0 0.0
    %6698 = vmatmul.mubr.f32.gmra.mxu0 %v5169
    %v6699 = vpop.f32.mrf.mxu0
    %v6700 = vadd.f32 %v6627, %v6699
    %v6701 = vpop.f32.mrf.mxu0
    %6702 = vdwg.mxu0
    %v6703 = vld [vmem:[#allocation6 + $0x6e0] sm:$0xff]
    %v6704 = vld [vmem:[#allocation6 + $0x6e8] sm:$0xff]
    %v6705 = vld [vmem:[#allocation6 + $0x6f0] sm:$0xff]
    %v6706 = vld [vmem:[#allocation6 + $0x6f8] sm:$0xff]
    %v6707 = vld [vmem:[#allocation6 + $0x710] sm:$0x1]
    %v6708 = vlaneseq
    %v6709 = vshrl.u32 %v6708, 7
    %v6710 = vsub.s32 0, %v6709
    %v6711 = vrot.slane %v6707, %v6710
    %6712 = vmatprep.subr.mxu0 0.0
    %6713 = vmatpush1.msra.mxu0 0.0
    %6714 = vmatprep.subr.mxu0 0.0
    %6715 = vmatpush1.msra.mxu0 0.0
    %6716 = vmatprep.subr.mxu0 0.0
    %6717 = vmatpush1.msra.mxu0 0.0
    %6718 = vmatprep.subr.mxu0 0.0
    %6719 = vmatpush1.msra.mxu0 0.0
    %6720 = vmatprep.subr.mxu0 0.0
    %6721 = vmatpush1.msra.mxu0 0.0
    %6722 = vmatprep.subr.mxu0 0.0
    %6723 = vmatpush1.msra.mxu0 0.0
    %6724 = vmatprep.subr.mxu0 0.0
    %6725 = vmatpush1.msra.mxu0 0.0
    %6726 = vmatprep.subr.mxu0 0.0
    %6727 = vmatpush1.msra.mxu0 0.0
    %6728 = vmatprep.subr.mxu0 0.0
    %6729 = vmatpush1.msra.mxu0 0.0
    %6730 = vmatprep.subr.mxu0 0.0
    %6731 = vmatpush1.msra.mxu0 0.0
    %6732 = vmatprep.subr.mxu0 0.0
    %6733 = vmatpush1.msra.mxu0 0.0
    %6734 = vmatprep.subr.mxu0 0.0
    %6735 = vmatpush1.msra.mxu0 0.0
    %6736 = vmatprep.subr.mxu0 0.0
    %6737 = vmatpush1.msra.mxu0 %v6706
    %6738 = vmatprep.subr.mxu0 0.0
    %6739 = vmatpush1.msra.mxu0 %v6705
    %6740 = vmatprep.subr.mxu0 0.0
    %6741 = vmatpush1.msra.mxu0 %v6704
    %6742 = vmatprep.subr.mxu0 0.0
    %6743 = vmatpush1.msra.mxu0 %v6703
    %6744 = vmatprep.subr.mxu0 0.0
    %6745 = vmatpush2.msra.mxu0 0.0
    %6746 = vmatprep.subr.mxu0 0.0
    %6747 = vmatpush2.msra.mxu0 0.0
    %6748 = vmatprep.subr.mxu0 0.0
    %6749 = vmatpush2.msra.mxu0 0.0
    %6750 = vmatprep.subr.mxu0 0.0
    %6751 = vmatpush2.msra.mxu0 0.0
    %6752 = vmatprep.subr.mxu0 0.0
    %6753 = vmatpush2.msra.mxu0 0.0
    %6754 = vmatprep.subr.mxu0 0.0
    %6755 = vmatpush2.msra.mxu0 0.0
    %6756 = vmatprep.subr.mxu0 0.0
    %6757 = vmatpush2.msra.mxu0 0.0
    %6758 = vmatprep.subr.mxu0 0.0
    %6759 = vmatpush2.msra.mxu0 0.0
    %6760 = vmatprep.subr.mxu0 0.0
    %6761 = vmatpush2.msra.mxu0 0.0
    %6762 = vmatprep.subr.mxu0 0.0
    %6763 = vmatpush2.msra.mxu0 0.0
    %6764 = vmatprep.subr.mxu0 0.0
    %6765 = vmatpush2.msra.mxu0 0.0
    %6766 = vmatprep.subr.mxu0 0.0
    %6767 = vmatpush2.msra.mxu0 0.0
    %6768 = vmatprep.subr.mxu0 0.0
    %6769 = vmatpush2.msra.mxu0 0.0
    %6770 = vmatprep.subr.mxu0 0.0
    %6771 = vmatpush2.msra.mxu0 0.0
    %6772 = vmatprep.subr.mxu0 0.0
    %6773 = vmatpush2.msra.mxu0 0.0
    %6774 = vmatprep.subr.mxu0 0.0
    %6775 = vmatpush2.msra.mxu0 0.0
    %6776 = vmatprep.mubr.f32.mxu0 0.0
    %6777 = vmatmul.mubr.f32.gmra.mxu0 %v5166
    %v6778 = vpop.f32.mrf.mxu0
    %v6779 = vadd.f32 %v6711, %v6778
    %v6780 = vpop.f32.mrf.mxu0
    %6781 = vmatprep.mubr.f32.mxu0 0.0
    %6782 = vmatmul.mubr.f32.gmra.mxu0 %v5169
    %v6783 = vpop.f32.mrf.mxu0
    %v6784 = vadd.f32 %v6711, %v6783
    %v6785 = vpop.f32.mrf.mxu0
    %6786 = vdwg.mxu0
    %v6788 = vsel %vm552, %v6618, 0
    %v6791 = vsel %vm552, %v6695, 0
    %v6794 = vsel %vm552, %v6700, 0
    %6796 = vmatprep.subr.mxu0 0.0
    %6797 = vmatpush1.xpose.msra.mxu0 0.0
    %6798 = vmatprep.subr.mxu0 0.0
    %6799 = vmatpush1.xpose.msra.mxu0 0.0
    %6800 = vmatprep.subr.mxu0 0.0
    %6801 = vmatpush1.xpose.msra.mxu0 0.0
    %6802 = vmatprep.subr.mxu0 0.0
    %6803 = vmatpush1.xpose.msra.mxu0 0.0
    %6804 = vmatprep.subr.mxu0 0.0
    %6805 = vmatpush1.xpose.msra.mxu0 0.0
    %6806 = vmatprep.subr.mxu0 0.0
    %6807 = vmatpush1.xpose.msra.mxu0 0.0
    %6808 = vmatprep.subr.mxu0 0.0
    %6809 = vmatpush1.xpose.msra.mxu0 0.0
    %6810 = vmatprep.subr.mxu0 0.0
    %6811 = vmatpush1.xpose.msra.mxu0 0.0
    %6812 = vmatprep.subr.mxu0 0.0
    %6813 = vmatpush1.xpose.msra.mxu0 0.0
    %6814 = vmatprep.subr.mxu0 0.0
    %6815 = vmatpush1.xpose.msra.mxu0 0.0
    %6816 = vmatprep.subr.mxu0 0.0
    %6817 = vmatpush1.xpose.msra.mxu0 0.0
    %6818 = vmatprep.subr.mxu0 0.0
    %6819 = vmatpush1.xpose.msra.mxu0 0.0
    %6820 = vmatprep.subr.mxu0 0.0
    %6821 = vmatpush1.xpose.msra.mxu0 0.0
    %6822 = vmatprep.subr.mxu0 0.0
    %6823 = vmatpush1.xpose.msra.mxu0 0.0
    %6824 = vmatprep.subr.mxu0 0.0
    %6825 = vmatpush1.xpose.msra.mxu0 %v6794
    %6826 = vmatprep.subr.mxu0 0.0
    %6827 = vmatpush1.xpose.msra.mxu0 %v6791
    %6828 = vmatprep.subr.mxu0 0.0
    %6829 = vmatpush2.xpose.msra.mxu0 0.0
    %6830 = vmatprep.subr.mxu0 0.0
    %6831 = vmatpush2.xpose.msra.mxu0 0.0
    %6832 = vmatprep.subr.mxu0 0.0
    %6833 = vmatpush2.xpose.msra.mxu0 0.0
    %6834 = vmatprep.subr.mxu0 0.0
    %6835 = vmatpush2.xpose.msra.mxu0 0.0
    %6836 = vmatprep.subr.mxu0 0.0
    %6837 = vmatpush2.xpose.msra.mxu0 0.0
    %6838 = vmatprep.subr.mxu0 0.0
    %6839 = vmatpush2.xpose.msra.mxu0 0.0
    %6840 = vmatprep.subr.mxu0 0.0
    %6841 = vmatpush2.xpose.msra.mxu0 0.0
    %6842 = vmatprep.subr.mxu0 0.0
    %6843 = vmatpush2.xpose.msra.mxu0 0.0
    %6844 = vmatprep.subr.mxu0 0.0
    %6845 = vmatpush2.xpose.msra.mxu0 0.0
    %6846 = vmatprep.subr.mxu0 0.0
    %6847 = vmatpush2.xpose.msra.mxu0 0.0
    %6848 = vmatprep.subr.mxu0 0.0
    %6849 = vmatpush2.xpose.msra.mxu0 0.0
    %6850 = vmatprep.subr.mxu0 0.0
    %6851 = vmatpush2.xpose.msra.mxu0 0.0
    %6852 = vmatprep.subr.mxu0 0.0
    %6853 = vmatpush2.xpose.msra.mxu0 0.0
    %6854 = vmatprep.subr.mxu0 0.0
    %6855 = vmatpush2.xpose.msra.mxu0 0.0
    %6856 = vmatprep.subr.mxu0 0.0
    %6857 = vmatpush2.xpose.msra.mxu0 0.0
    %6858 = vmatprep.subr.mxu0 0.0
    %6859 = vmatpush2.xpose.msra.mxu0 0.0
    %6860 = vmatprep.mubr.f32.mxu0 0.0
    %6861 = vmatmul.mubr.f32.gmra.mxu0 %v6788
    %v6862 = vpop.f32.mrf.mxu0
    %v6863 = vadd.f32 %v290, %v6862
    %v6864 = vpop.f32.mrf.mxu0
    %6865 = vdwg.mxu0
    %v6866 = vsel %vm5409, %v6863, -inf
    %6867 = vmax.xlane.f32.xlu0 %v6866
    %v6868 = vpop.xlane.xlu0 %6867
    %v6869 = vsub.f32 %v6863, %v6868
    %v6870 = vmul.f32 %v6869, 1.442695
    %v6871 = vpow.pop %v6870
    %v6872 = vsel %vm5409, %v6871, 0.0
    %6873 = vadd.xlane.f32.xlu0 %v6872
    %v6874 = vpop.xlane.xlu0 %6873
    %v6875 = vrcp.pop %v6874
    %v6876 = vmul.f32 %v6871, %v6875
    %v6878 = vsel %vm214, %v6876, 0
    %6880 = vmatprep.subr.mxu0 0.0
    %6881 = vmatpush1.msra.mxu0 0.0
    %6882 = vmatprep.subr.mxu0 0.0
    %6883 = vmatpush1.msra.mxu0 0.0
    %6884 = vmatprep.subr.mxu0 0.0
    %6885 = vmatpush1.msra.mxu0 0.0
    %6886 = vmatprep.subr.mxu0 0.0
    %6887 = vmatpush1.msra.mxu0 0.0
    %6888 = vmatprep.subr.mxu0 0.0
    %6889 = vmatpush1.msra.mxu0 0.0
    %6890 = vmatprep.subr.mxu0 0.0
    %6891 = vmatpush1.msra.mxu0 0.0
    %6892 = vmatprep.subr.mxu0 0.0
    %6893 = vmatpush1.msra.mxu0 0.0
    %6894 = vmatprep.subr.mxu0 0.0
    %6895 = vmatpush1.msra.mxu0 0.0
    %6896 = vmatprep.subr.mxu0 0.0
    %6897 = vmatpush1.msra.mxu0 0.0
    %6898 = vmatprep.subr.mxu0 0.0
    %6899 = vmatpush1.msra.mxu0 0.0
    %6900 = vmatprep.subr.mxu0 0.0
    %6901 = vmatpush1.msra.mxu0 0.0
    %6902 = vmatprep.subr.mxu0 0.0
    %6903 = vmatpush1.msra.mxu0 0.0
    %6904 = vmatprep.subr.mxu0 0.0
    %6905 = vmatpush1.msra.mxu0 0.0
    %6906 = vmatprep.subr.mxu0 0.0
    %6907 = vmatpush1.msra.mxu0 0.0
    %6908 = vmatprep.subr.mxu0 0.0
    %6909 = vmatpush1.msra.mxu0 %v6784
    %6910 = vmatprep.subr.mxu0 0.0
    %6911 = vmatpush1.msra.mxu0 %v6779
    %6912 = vmatprep.subr.mxu0 0.0
    %6913 = vmatpush2.msra.mxu0 0.0
    %6914 = vmatprep.subr.mxu0 0.0
    %6915 = vmatpush2.msra.mxu0 0.0
    %6916 = vmatprep.subr.mxu0 0.0
    %6917 = vmatpush2.msra.mxu0 0.0
    %6918 = vmatprep.subr.mxu0 0.0
    %6919 = vmatpush2.msra.mxu0 0.0
    %6920 = vmatprep.subr.mxu0 0.0
    %6921 = vmatpush2.msra.mxu0 0.0
    %6922 = vmatprep.subr.mxu0 0.0
    %6923 = vmatpush2.msra.mxu0 0.0
    %6924 = vmatprep.subr.mxu0 0.0
    %6925 = vmatpush2.msra.mxu0 0.0
    %6926 = vmatprep.subr.mxu0 0.0
    %6927 = vmatpush2.msra.mxu0 0.0
    %6928 = vmatprep.subr.mxu0 0.0
    %6929 = vmatpush2.msra.mxu0 0.0
    %6930 = vmatprep.subr.mxu0 0.0
    %6931 = vmatpush2.msra.mxu0 0.0
    %6932 = vmatprep.subr.mxu0 0.0
    %6933 = vmatpush2.msra.mxu0 0.0
    %6934 = vmatprep.subr.mxu0 0.0
    %6935 = vmatpush2.msra.mxu0 0.0
    %6936 = vmatprep.subr.mxu0 0.0
    %6937 = vmatpush2.msra.mxu0 0.0
    %6938 = vmatprep.subr.mxu0 0.0
    %6939 = vmatpush2.msra.mxu0 0.0
    %6940 = vmatprep.subr.mxu0 0.0
    %6941 = vmatpush2.msra.mxu0 0.0
    %6942 = vmatprep.subr.mxu0 0.0
    %6943 = vmatpush2.msra.mxu0 0.0
    %6944 = vmatprep.mubr.f32.mxu0 0.0
    %6945 = vmatmul.mubr.f32.gmra.mxu0 %v6878
    %v6946 = vpop.f32.mrf.mxu0
    %v6947 = vadd.f32 0.0, %v6946
    %v6948 = vpop.f32.mrf.mxu0
    %6949 = vdwg.mxu0
    %v6950 = vld [vmem:[#allocation6 + $0x718] sm:$0xff]
    %v6952 = vsel %vm552, %v6947, 0
    %6954 = vmatprep.subr.mxu0 0.0
    %6955 = vmatpush1.msra.mxu0 0.0
    %6956 = vmatprep.subr.mxu0 0.0
    %6957 = vmatpush1.msra.mxu0 0.0
    %6958 = vmatprep.subr.mxu0 0.0
    %6959 = vmatpush1.msra.mxu0 0.0
    %6960 = vmatprep.subr.mxu0 0.0
    %6961 = vmatpush1.msra.mxu0 0.0
    %6962 = vmatprep.subr.mxu0 0.0
    %6963 = vmatpush1.msra.mxu0 0.0
    %6964 = vmatprep.subr.mxu0 0.0
    %6965 = vmatpush1.msra.mxu0 0.0
    %6966 = vmatprep.subr.mxu0 0.0
    %6967 = vmatpush1.msra.mxu0 0.0
    %6968 = vmatprep.subr.mxu0 0.0
    %6969 = vmatpush1.msra.mxu0 0.0
    %6970 = vmatprep.subr.mxu0 0.0
    %6971 = vmatpush1.msra.mxu0 0.0
    %6972 = vmatprep.subr.mxu0 0.0
    %6973 = vmatpush1.msra.mxu0 0.0
    %6974 = vmatprep.subr.mxu0 0.0
    %6975 = vmatpush1.msra.mxu0 0.0
    %6976 = vmatprep.subr.mxu0 0.0
    %6977 = vmatpush1.msra.mxu0 0.0
    %6978 = vmatprep.subr.mxu0 0.0
    %6979 = vmatpush1.msra.mxu0 0.0
    %6980 = vmatprep.subr.mxu0 0.0
    %6981 = vmatpush1.msra.mxu0 0.0
    %6982 = vmatprep.subr.mxu0 0.0
    %6983 = vmatpush1.msra.mxu0 0.0
    %6984 = vmatprep.subr.mxu0 0.0
    %6985 = vmatpush1.msra.mxu0 %v6950
    %6986 = vmatprep.subr.mxu0 0.0
    %6987 = vmatpush2.msra.mxu0 0.0
    %6988 = vmatprep.subr.mxu0 0.0
    %6989 = vmatpush2.msra.mxu0 0.0
    %6990 = vmatprep.subr.mxu0 0.0
    %6991 = vmatpush2.msra.mxu0 0.0
    %6992 = vmatprep.subr.mxu0 0.0
    %6993 = vmatpush2.msra.mxu0 0.0
    %6994 = vmatprep.subr.mxu0 0.0
    %6995 = vmatpush2.msra.mxu0 0.0
    %6996 = vmatprep.subr.mxu0 0.0
    %6997 = vmatpush2.msra.mxu0 0.0
    %6998 = vmatprep.subr.mxu0 0.0
    %6999 = vmatpush2.msra.mxu0 0.0
    %7000 = vmatprep.subr.mxu0 0.0
    %7001 = vmatpush2.msra.mxu0 0.0
    %7002 = vmatprep.subr.mxu0 0.0
    %7003 = vmatpush2.msra.mxu0 0.0
    %7004 = vmatprep.subr.mxu0 0.0
    %7005 = vmatpush2.msra.mxu0 0.0
    %7006 = vmatprep.subr.mxu0 0.0
    %7007 = vmatpush2.msra.mxu0 0.0
    %7008 = vmatprep.subr.mxu0 0.0
    %7009 = vmatpush2.msra.mxu0 0.0
    %7010 = vmatprep.subr.mxu0 0.0
    %7011 = vmatpush2.msra.mxu0 0.0
    %7012 = vmatprep.subr.mxu0 0.0
    %7013 = vmatpush2.msra.mxu0 0.0
    %7014 = vmatprep.subr.mxu0 0.0
    %7015 = vmatpush2.msra.mxu0 0.0
    %7016 = vmatprep.subr.mxu0 0.0
    %7017 = vmatpush2.msra.mxu0 0.0
    %7018 = vmatprep.mubr.f32.mxu0 0.0
    %7019 = vmatmul.mubr.f32.gmra.mxu0 %v6952
    %v7020 = vpop.f32.mrf.mxu0
    %v7021 = vadd.f32 0.0, %v7020
    %v7022 = vpop.f32.mrf.mxu0
    %7023 = vdwg.mxu0
    %v7024 = vadd.f32 %v6538, %v7021
    %v7025 = vld [vmem:[#allocation6 + $0x720] sm:$0x1]
    %v7026 = vlaneseq
    %v7027 = vshrl.u32 %v7026, 7
    %v7028 = vsub.s32 0, %v7027
    %v7029 = vrot.slane %v7025, %v7028
    %v7030 = vadd.f32 %v7024, %v7029
    %v7031 = vadd.f32 %v7030, %v5072
    %v7032 = vld [vmem:[#allocation6 + $0x728] sm:$0x1]
    %v7033 = vld [vmem:[#allocation6 + $0x730] sm:$0x1]
    %vm7034 = vcmask 254976
    %v7035 = vsel %vm7034, %v7031, 0.0
    %7036 = vadd.xlane.f32.xlu0 %v7035
    %v7037 = vpop.xlane.xlu0 %7036
    %v7038 = vmul.f32 %v7037, %v2424
    %v7039 = vsub.f32 %v7031, %v7038
    %v7040 = vmul.f32 %v7039, %v7039
    %v7041 = vsel %vm7034, %v7040, 0.0
    %7042 = vadd.xlane.f32.xlu0 %v7041
    %v7043 = vpop.xlane.xlu0 %7042
    %v7044 = vmul.f32 %v7043, %v2424
    %v7045 = vadd.f32 %v7044, 1e-05
    %v7046 = vrsqrt.pop %v7045
    %v7047 = vmul.f32 %v7039, %v7046
    %v7048 = vlaneseq
    %v7049 = vshrl.u32 %v7048, 7
    %v7050 = vsub.s32 0, %v7049
    %v7051 = vrot.slane %v7032, %v7050
    %v7052 = vmul.f32 %v7047, %v7051
    %v7053 = vlaneseq
    %v7054 = vshrl.u32 %v7053, 7
    %v7055 = vsub.s32 0, %v7054
    %v7056 = vrot.slane %v7033, %v7055
    %v7057 = vadd.f32 %v7052, %v7056
    %v7058 = vld [vmem:[#allocation6 + $0x738] sm:$0xff]
    %v7059 = vld [vmem:[#allocation6 + $0x740] sm:$0xff]
    %v7060 = vld [vmem:[#allocation6 + $0x748] sm:$0xff]
    %v7061 = vld [vmem:[#allocation6 + $0x750] sm:$0xff]
    %v7062 = vld [vmem:[#allocation6 + $0x758] sm:$0xff]
    %v7063 = vld [vmem:[#allocation6 + $0x760] sm:$0xff]
    %v7064 = vld [vmem:[#allocation6 + $0x768] sm:$0xff]
    %v7065 = vld [vmem:[#allocation6 + $0x770] sm:$0xff]
    %v7067 = vsel %vm300, %v285, 0
    %7069 = vmatprep.subr.mxu0 0.0
    %7070 = vmatpush1.msra.mxu0 0.0
    %7071 = vmatprep.subr.mxu0 0.0
    %7072 = vmatpush1.msra.mxu0 0.0
    %7073 = vmatprep.subr.mxu0 0.0
    %7074 = vmatpush1.msra.mxu0 0.0
    %7075 = vmatprep.subr.mxu0 0.0
    %7076 = vmatpush1.msra.mxu0 0.0
    %7077 = vmatprep.subr.mxu0 0.0
    %7078 = vmatpush1.msra.mxu0 0.0
    %7079 = vmatprep.subr.mxu0 0.0
    %7080 = vmatpush1.msra.mxu0 0.0
    %7081 = vmatprep.subr.mxu0 0.0
    %7082 = vmatpush1.msra.mxu0 0.0
    %7083 = vmatprep.subr.mxu0 0.0
    %7084 = vmatpush1.msra.mxu0 0.0
    %7085 = vmatprep.subr.mxu0 0.0
    %7086 = vmatpush1.msra.mxu0 0.0
    %7087 = vmatprep.subr.mxu0 0.0
    %7088 = vmatpush1.msra.mxu0 0.0
    %7089 = vmatprep.subr.mxu0 0.0
    %7090 = vmatpush1.msra.mxu0 0.0
    %7091 = vmatprep.subr.mxu0 0.0
    %7092 = vmatpush1.msra.mxu0 0.0
    %7093 = vmatprep.subr.mxu0 0.0
    %7094 = vmatpush1.msra.mxu0 %v7065
    %7095 = vmatprep.subr.mxu0 0.0
    %7096 = vmatpush1.msra.mxu0 %v7064
    %7097 = vmatprep.subr.mxu0 0.0
    %7098 = vmatpush1.msra.mxu0 %v7063
    %7099 = vmatprep.subr.mxu0 0.0
    %7100 = vmatpush1.msra.mxu0 %v7062
    %7101 = vmatprep.subr.mxu0 0.0
    %7102 = vmatpush2.msra.mxu0 0.0
    %7103 = vmatprep.subr.mxu0 0.0
    %7104 = vmatpush2.msra.mxu0 0.0
    %7105 = vmatprep.subr.mxu0 0.0
    %7106 = vmatpush2.msra.mxu0 0.0
    %7107 = vmatprep.subr.mxu0 0.0
    %7108 = vmatpush2.msra.mxu0 0.0
    %7109 = vmatprep.subr.mxu0 0.0
    %7110 = vmatpush2.msra.mxu0 0.0
    %7111 = vmatprep.subr.mxu0 0.0
    %7112 = vmatpush2.msra.mxu0 0.0
    %7113 = vmatprep.subr.mxu0 0.0
    %7114 = vmatpush2.msra.mxu0 0.0
    %7115 = vmatprep.subr.mxu0 0.0
    %7116 = vmatpush2.msra.mxu0 0.0
    %7117 = vmatprep.subr.mxu0 0.0
    %7118 = vmatpush2.msra.mxu0 0.0
    %7119 = vmatprep.subr.mxu0 0.0
    %7120 = vmatpush2.msra.mxu0 0.0
    %7121 = vmatprep.subr.mxu0 0.0
    %7122 = vmatpush2.msra.mxu0 0.0
    %7123 = vmatprep.subr.mxu0 0.0
    %7124 = vmatpush2.msra.mxu0 0.0
    %7125 = vmatprep.subr.mxu0 0.0
    %7126 = vmatpush2.msra.mxu0 0.0
    %7127 = vmatprep.subr.mxu0 0.0
    %7128 = vmatpush2.msra.mxu0 0.0
    %7129 = vmatprep.subr.mxu0 0.0
    %7130 = vmatpush2.msra.mxu0 0.0
    %7131 = vmatprep.subr.mxu0 0.0
    %7132 = vmatpush2.msra.mxu0 0.0
    %7133 = vmatprep.mubr.f32.mxu0 0.0
    %7134 = vmatmul.mubr.f32.gmra.mxu0 %v7067
    %v7135 = vpop.f32.mrf.mxu0
    %v7136 = vadd.f32 0.0, %v7135
    %v7137 = vpop.f32.mrf.mxu0
    %7138 = vdwg.mxu0
    %v7140 = vsel %vm300, %v7057, 0
    %7142 = vmatprep.subr.mxu0 0.0
    %7143 = vmatpush1.msra.mxu0 0.0
    %7144 = vmatprep.subr.mxu0 0.0
    %7145 = vmatpush1.msra.mxu0 0.0
    %7146 = vmatprep.subr.mxu0 0.0
    %7147 = vmatpush1.msra.mxu0 0.0
    %7148 = vmatprep.subr.mxu0 0.0
    %7149 = vmatpush1.msra.mxu0 0.0
    %7150 = vmatprep.subr.mxu0 0.0
    %7151 = vmatpush1.msra.mxu0 0.0
    %7152 = vmatprep.subr.mxu0 0.0
    %7153 = vmatpush1.msra.mxu0 0.0
    %7154 = vmatprep.subr.mxu0 0.0
    %7155 = vmatpush1.msra.mxu0 0.0
    %7156 = vmatprep.subr.mxu0 0.0
    %7157 = vmatpush1.msra.mxu0 0.0
    %7158 = vmatprep.subr.mxu0 0.0
    %7159 = vmatpush1.msra.mxu0 0.0
    %7160 = vmatprep.subr.mxu0 0.0
    %7161 = vmatpush1.msra.mxu0 0.0
    %7162 = vmatprep.subr.mxu0 0.0
    %7163 = vmatpush1.msra.mxu0 0.0
    %7164 = vmatprep.subr.mxu0 0.0
    %7165 = vmatpush1.msra.mxu0 0.0
    %7166 = vmatprep.subr.mxu0 0.0
    %7167 = vmatpush1.msra.mxu0 %v7061
    %7168 = vmatprep.subr.mxu0 0.0
    %7169 = vmatpush1.msra.mxu0 %v7060
    %7170 = vmatprep.subr.mxu0 0.0
    %7171 = vmatpush1.msra.mxu0 %v7059
    %7172 = vmatprep.subr.mxu0 0.0
    %7173 = vmatpush1.msra.mxu0 %v7058
    %7174 = vmatprep.subr.mxu0 0.0
    %7175 = vmatpush2.msra.mxu0 0.0
    %7176 = vmatprep.subr.mxu0 0.0
    %7177 = vmatpush2.msra.mxu0 0.0
    %7178 = vmatprep.subr.mxu0 0.0
    %7179 = vmatpush2.msra.mxu0 0.0
    %7180 = vmatprep.subr.mxu0 0.0
    %7181 = vmatpush2.msra.mxu0 0.0
    %7182 = vmatprep.subr.mxu0 0.0
    %7183 = vmatpush2.msra.mxu0 0.0
    %7184 = vmatprep.subr.mxu0 0.0
    %7185 = vmatpush2.msra.mxu0 0.0
    %7186 = vmatprep.subr.mxu0 0.0
    %7187 = vmatpush2.msra.mxu0 0.0
    %7188 = vmatprep.subr.mxu0 0.0
    %7189 = vmatpush2.msra.mxu0 0.0
    %7190 = vmatprep.subr.mxu0 0.0
    %7191 = vmatpush2.msra.mxu0 0.0
    %7192 = vmatprep.subr.mxu0 0.0
    %7193 = vmatpush2.msra.mxu0 0.0
    %7194 = vmatprep.subr.mxu0 0.0
    %7195 = vmatpush2.msra.mxu0 0.0
    %7196 = vmatprep.subr.mxu0 0.0
    %7197 = vmatpush2.msra.mxu0 0.0
    %7198 = vmatprep.subr.mxu0 0.0
    %7199 = vmatpush2.msra.mxu0 0.0
    %7200 = vmatprep.subr.mxu0 0.0
    %7201 = vmatpush2.msra.mxu0 0.0
    %7202 = vmatprep.subr.mxu0 0.0
    %7203 = vmatpush2.msra.mxu0 0.0
    %7204 = vmatprep.subr.mxu0 0.0
    %7205 = vmatpush2.msra.mxu0 0.0
    %7206 = vmatprep.mubr.f32.mxu0 0.0
    %7207 = vmatmul.mubr.f32.gmra.mxu0 %v7140
    %v7208 = vpop.f32.mrf.mxu0
    %v7209 = vadd.f32 %v7136, %v7208
    %v7210 = vpop.f32.mrf.mxu0
    %7211 = vdwg.mxu0
    %v7212 = vld [vmem:[#allocation6 + $0x778] sm:$0x1]
    %v7213 = vlaneseq
    %v7214 = vshrl.u32 %v7213, 7
    %v7215 = vsub.s32 0, %v7214
    %v7216 = vrot.slane %v7212, %v7215
    %v7217 = vadd.f32 %v7209, %v7216
    %v7218 = vmax.f32 %v7217, 0.0
    %v7219 = vld [vmem:[#allocation6 + $0x780] sm:$0xff]
    %v7220 = vld [vmem:[#allocation6 + $0x788] sm:$0xff]
    %v7221 = vld [vmem:[#allocation6 + $0x790] sm:$0xff]
    %v7222 = vld [vmem:[#allocation6 + $0x798] sm:$0xff]
    %v7223 = vld [vmem:[#allocation6 + $0x7a0] sm:$0x1]
    %v7224 = vlaneseq
    %v7225 = vshrl.u32 %v7224, 7
    %v7226 = vsub.s32 0, %v7225
    %v7227 = vrot.slane %v7223, %v7226
    %v7229 = vsel %vm300, %v7218, 0
    %7231 = vmatprep.subr.mxu0 0.0
    %7232 = vmatpush1.msra.mxu0 0.0
    %7233 = vmatprep.subr.mxu0 0.0
    %7234 = vmatpush1.msra.mxu0 0.0
    %7235 = vmatprep.subr.mxu0 0.0
    %7236 = vmatpush1.msra.mxu0 0.0
    %7237 = vmatprep.subr.mxu0 0.0
    %7238 = vmatpush1.msra.mxu0 0.0
    %7239 = vmatprep.subr.mxu0 0.0
    %7240 = vmatpush1.msra.mxu0 0.0
    %7241 = vmatprep.subr.mxu0 0.0
    %7242 = vmatpush1.msra.mxu0 0.0
    %7243 = vmatprep.subr.mxu0 0.0
    %7244 = vmatpush1.msra.mxu0 0.0
    %7245 = vmatprep.subr.mxu0 0.0
    %7246 = vmatpush1.msra.mxu0 0.0
    %7247 = vmatprep.subr.mxu0 0.0
    %7248 = vmatpush1.msra.mxu0 0.0
    %7249 = vmatprep.subr.mxu0 0.0
    %7250 = vmatpush1.msra.mxu0 0.0
    %7251 = vmatprep.subr.mxu0 0.0
    %7252 = vmatpush1.msra.mxu0 0.0
    %7253 = vmatprep.subr.mxu0 0.0
    %7254 = vmatpush1.msra.mxu0 0.0
    %7255 = vmatprep.subr.mxu0 0.0
    %7256 = vmatpush1.msra.mxu0 %v7222
    %7257 = vmatprep.subr.mxu0 0.0
    %7258 = vmatpush1.msra.mxu0 %v7221
    %7259 = vmatprep.subr.mxu0 0.0
    %7260 = vmatpush1.msra.mxu0 %v7220
    %7261 = vmatprep.subr.mxu0 0.0
    %7262 = vmatpush1.msra.mxu0 %v7219
    %7263 = vmatprep.subr.mxu0 0.0
    %7264 = vmatpush2.msra.mxu0 0.0
    %7265 = vmatprep.subr.mxu0 0.0
    %7266 = vmatpush2.msra.mxu0 0.0
    %7267 = vmatprep.subr.mxu0 0.0
    %7268 = vmatpush2.msra.mxu0 0.0
    %7269 = vmatprep.subr.mxu0 0.0
    %7270 = vmatpush2.msra.mxu0 0.0
    %7271 = vmatprep.subr.mxu0 0.0
    %7272 = vmatpush2.msra.mxu0 0.0
    %7273 = vmatprep.subr.mxu0 0.0
    %7274 = vmatpush2.msra.mxu0 0.0
    %7275 = vmatprep.subr.mxu0 0.0
    %7276 = vmatpush2.msra.mxu0 0.0
    %7277 = vmatprep.subr.mxu0 0.0
    %7278 = vmatpush2.msra.mxu0 0.0
    %7279 = vmatprep.subr.mxu0 0.0
    %7280 = vmatpush2.msra.mxu0 0.0
    %7281 = vmatprep.subr.mxu0 0.0
    %7282 = vmatpush2.msra.mxu0 0.0
    %7283 = vmatprep.subr.mxu0 0.0
    %7284 = vmatpush2.msra.mxu0 0.0
    %7285 = vmatprep.subr.mxu0 0.0
    %7286 = vmatpush2.msra.mxu0 0.0
    %7287 = vmatprep.subr.mxu0 0.0
    %7288 = vmatpush2.msra.mxu0 0.0
    %7289 = vmatprep.subr.mxu0 0.0
    %7290 = vmatpush2.msra.mxu0 0.0
    %7291 = vmatprep.subr.mxu0 0.0
    %7292 = vmatpush2.msra.mxu0 0.0
    %7293 = vmatprep.subr.mxu0 0.0
    %7294 = vmatpush2.msra.mxu0 0.0
    %7295 = vmatprep.mubr.f32.mxu0 0.0
    %7296 = vmatmul.mubr.f32.gmra.mxu0 %v7229
    %v7297 = vpop.f32.mrf.mxu0
    %v7298 = vadd.f32 %v7227, %v7297
    %v7299 = vpop.f32.mrf.mxu0
    %7300 = vdwg.mxu0
    %v7301 = vxor.u32 %v7298, 2147483648
    %v7302 = vmul.f32 %v7301, 1.442695
    %v7303 = vpow.pop %v7302
    %v7304 = vadd.f32 %v7303, 1.0
    %v7305 = vrcp.pop %v7304
    %v7306 = vmul.f32 1.0, %v7305
    %7307 = vst [vmem:[#allocation9] sm:$0x3] %v7306
    // Predicated region
    $region14: #{tpu_custom_call.1} parent=1 // pred_check
      _
    $region15: #{tpu_custom_call.1} parent=1 // pred_check_branch
      %7309 = sbr.rel (0) target = $region17
    $region16: #{tpu_custom_call.1} parent=1 // pred_region
      %s7311 = ssub.s32 32, 32
      %7312 = vsyncadd [#allocation8], %s7311
      %s7314 = sshll.u32 [#allocation9], 4
      %s7315 = int_to_ptr.vmem [resolvable:$true] %s7314
      %7317 = dma.vmem_to_hbm [thread:$0]  %s7315, 32, %s4, [#allocation8]
    $region17: #{tpu_custom_call.1} parent=1 // pred_fallthru
      _
    // Predicated region
    $region18: #{tpu_custom_call.1} parent=1 // pred_check
      _
    $region19: #{tpu_custom_call.1} parent=1 // pred_check_branch
      %7319 = sbr.rel (0) target = $region21
    $region20: #{tpu_custom_call.1} parent=1 // pred_region
      %7320 = dma.done [#allocation8], 32
    $region21: #{tpu_custom_call.1} parent=1 // pred_fallthru
      _
    %7321 = vsyncpa [#allocation7], 1
    %7322 = vsyncpa [#allocation8], 1

</llo_original>
